<compile_context>
chip_gen: v5e
topology: v5e:2x2
jax: 0.10.0
libtpu: 0.0.40
codegen_flags: <defaults>
</compile_context>

<pallas_src>
import jax
import jax.numpy as jnp
from jax.experimental import pallas as pl
from jax.experimental.pallas import tpu as pltpu

LEAKY_SLOPE = 0.01   # nn.LeakyReLU() default
BN_EPS = 1e-5        # nn.BatchNorm2d default


def _leaky(x):
    return jnp.where(x > 0, x, LEAKY_SLOPE * x)


def _mean_except_last(x):
    """Mean over all axes except the last (channel) axis, keepdims, as
    sequential single-axis reductions (safe lowering)."""
    s = x
    n = 1
    for ax in range(x.ndim - 1):
        s = jnp.sum(s, axis=ax, keepdims=True)
        n *= x.shape[ax]
    return s / float(n)


def _bn_lrelu(x, gamma, beta):
    """Training-mode BatchNorm (batch stats) per channel + LeakyReLU.
    gamma/beta are [1, C]; folded into one scale + one shift broadcast."""
    m = _mean_except_last(x)
    v = _mean_except_last((x - m) * (x - m))          # biased variance
    scale = jax.lax.rsqrt(v + BN_EPS) * gamma
    shift = beta - m * scale
    return _leaky(x * scale + shift)


# -----------------------------------------------------------------------------
# The single fused kernel.
#
# Activations are NHWC.  Each conv input is kept zero-padded and split into
# even/odd padded-row ("H-phase") VMEM buffers, so every 3x3 / stride-2 tap is
# a contiguous-rows + stride-2-sublane read (documented pl.ds stride pattern).
# im2col patches are assembled per sample into a 2-D (rows=49/9, K) buffer so
# each conv is a single MXU GEMM per sample.
# -----------------------------------------------------------------------------
def _disc_kernel(x_ref, w1_ref, b1_ref,
                 w2_ref, b2_ref, g2_ref, be2_ref,
                 w3_ref, b3_ref, g3_ref, be3_ref,
                 wl_ref, bl_ref,
                 out_ref,
                 ph1e, ph1o, ph2e, ph2o, pat2, raw2, ph3e, ph3o, pat3, raw3):
    f32 = jnp.float32
    B = x_ref.shape[0]

    # ---- stage 0: zero-pad (p=1) the 28x28 input, split padded rows by parity
    ph1e[...] = jnp.zeros(ph1e.shape, f32)
    ph1o[...] = jnp.zeros(ph1o.shape, f32)
    x = x_ref[...]                                     # [B,28,28,1]
    xr = x.reshape(B, 14, 2, 28, 1)                    # leading-dim split only
    # input row 2r   -> padded row 2r+1 (odd)  -> ph1o row r
    # input row 2r+1 -> padded row 2r+2 (even) -> ph1e row r+1
    ph1o[:, 0:14, 1:29, :] = xr[:, :, 0]
    ph1e[:, 1:15, 1:29, :] = xr[:, :, 1]

    # ---- conv1: 1->32, k3 s2 p1, as 9 shifted VPU MACs + bias + LeakyReLU ----
    w1 = w1_ref[...]                                   # [9,32], rows = (kh,kw)
    h1 = jnp.zeros((B, 14, 14, 32), f32) + b1_ref[...]
    for i in range(3):
        src = ph1e if i % 2 == 0 else ph1o
        r0 = i // 2
        for j in range(3):
            t = 3 * i + j
            tap = src[:, pl.ds(r0, 14), pl.ds(j, 14, stride=2), :]  # [B,14,14,1]
            h1 = h1 + tap * w1[t:t + 1, :]
    h1 = _leaky(h1)                                    # [B,14,14,32]

    # ---- scatter conv1 output into conv2's padded (p=1) H-phase buffers ------
    ph2e[...] = jnp.zeros(ph2e.shape, f32)
    ph2o[...] = jnp.zeros(ph2o.shape, f32)
    h1r = h1.reshape(B, 7, 2, 14, 32)                  # leading-dim split only
    ph2o[:, 0:7, 1:15, :] = h1r[:, :, 0]   # rows 0,2,..,12 -> padded rows 1..13
    ph2e[:, 1:8, 1:15, :] = h1r[:, :, 1]   # rows 1,3,..,13 -> padded rows 2..14

    # ---- conv2: 32->64, k3 s2 p1: im2col -> one GEMM per sample --------------
    for i in range(3):
        src = ph2e if i % 2 == 0 else ph2o
        r0 = i // 2
        for j in range(3):
            t = 3 * i + j
            tap = src[:, pl.ds(r0, 7), pl.ds(j, 7, stride=2), :]    # [B,7,7,32]
            for oh in range(7):
                pat2[:, oh * 7:(oh + 1) * 7, t * 32:(t + 1) * 32] = tap[:, oh, :, :]
    w2 = w2_ref[...]                                   # [288,64], rows = (kh,kw,cin)
    b2 = b2_ref[...]
    for b in range(B):
        raw2[b, :, :] = (jnp.dot(pat2[b, :, :], w2,
                                 preferred_element_type=f32) + b2)   # [49,64]

    # ---- BatchNorm2d(64) (batch stats) + LeakyReLU, fused --------------------
    raw2[...] = _bn_lrelu(raw2[...], g2_ref[...], be2_ref[...])      # [B,49,64]

    # ---- scatter conv2 output rows into conv3's (p=0) H-phase buffers --------
    for h in range(7):
        blk = raw2[:, h * 7:(h + 1) * 7, :]                          # [B,7,64]
        if h % 2 == 0:
            ph3e[:, h // 2, :, :] = blk       # rows 0,2,4,6
        else:
            ph3o[:, h // 2, :, :] = blk       # rows 1,3,5

    # ---- conv3: 64->128, k3 s2 p0: im2col -> one GEMM per sample -------------
    for i in range(3):
        src = ph3e if i % 2 == 0 else ph3o
        r0 = i // 2
        for j in range(3):
            t = 3 * i + j
            tap = src[:, pl.ds(r0, 3), pl.ds(j, 3, stride=2), :]     # [B,3,3,64]
            for oh in range(3):
                pat3[:, oh * 3:(oh + 1) * 3, t * 64:(t + 1) * 64] = tap[:, oh, :, :]
    w3 = w3_ref[...]                                   # [576,128]
    b3 = b3_ref[...]
    for b in range(B):
        raw3[b, :, :] = (jnp.dot(pat3[b, :, :], w3,
                                 preferred_element_type=f32) + b3)   # [9,128]

    # ---- BatchNorm2d(128) + LeakyReLU -----------------------------------------
    raw3[...] = _bn_lrelu(raw3[...], g3_ref[...], be3_ref[...])      # [B,9,128]

    # ---- Linear(1152 -> 1) + Sigmoid on the VPU --------------------------------
    # wl rows are ordered p = h*3 + w, columns = channel, i.e. the PyTorch
    # (h,w,c) flatten order of the NHWC activation is absorbed at init time.
    wl = wl_ref[...]                                   # [9,128]
    acc = jnp.zeros((B, 128), f32)
    for p in range(9):
        acc = acc + raw3[:, p, :] * wl[p:p + 1, :]
    logit = jnp.sum(acc, axis=1, keepdims=True) + bl_ref[...]        # [B,1]
    out_ref[...] = jax.nn.sigmoid(logit)


_VMEM = pl.BlockSpec(memory_space=pltpu.MemorySpace.VMEM)


def discriminator_forward(params, x_nchw):
    B = x_nchw.shape[0]
    # NCHW -> NHWC is a pure reshape because C == 1 (no transpose op).
    x = x_nchw.reshape(B, 28, 28, 1).astype(jnp.float32)

    out = pl.pallas_call(
        _disc_kernel,
        out_shape=jax.ShapeDtypeStruct((B, 1), jnp.float32),
        in_specs=[_VMEM] * 13,
        out_specs=_VMEM,
        scratch_shapes=[
            pltpu.VMEM((B, 15, 30, 1), jnp.float32),   # ph1e: padded input, even rows
            pltpu.VMEM((B, 15, 30, 1), jnp.float32),   # ph1o: padded input, odd rows
            pltpu.VMEM((B, 8, 16, 32), jnp.float32),   # ph2e: padded conv1 out, even rows
            pltpu.VMEM((B, 8, 16, 32), jnp.float32),   # ph2o: padded conv1 out, odd rows
            pltpu.VMEM((B, 49, 288), jnp.float32),     # pat2: conv2 im2col (per-sample 2D)
            pltpu.VMEM((B, 49, 64), jnp.float32),      # raw2: conv2 out / post-BN staging
            pltpu.VMEM((B, 4, 7, 64), jnp.float32),    # ph3e: conv2 out, even rows
            pltpu.VMEM((B, 3, 7, 64), jnp.float32),    # ph3o: conv2 out, odd rows
            pltpu.VMEM((B, 9, 576), jnp.float32),      # pat3: conv3 im2col (per-sample 2D)
            pltpu.VMEM((B, 9, 128), jnp.float32),      # raw3: conv3 out / post-BN staging
        ],
    )(x,
      params["w1"], params["b1"],
      params["w2"], params["b2"], params["g2"], params["be2"],
      params["w3"], params["b3"], params["g3"], params["be3"],
      params["wl"], params["bl"])
    return out


# -----------------------------------------------------------------------------
# Deterministic synthetic parameters (stored directly in kernel layout).
# NOTE: real PyTorch Conv2d weights (cout,cin,kh,kw) would need
#       w.transpose(2,3,1,0).reshape(kh*kw*cin, cout) to match this layout, and
#       the Linear weight [1,1152] (c,h,w order) would need its inputs permuted
#       to (h,w,c) and reshaped to (9,128).
# -----------------------------------------------------------------------------
def init_params(key):
    ks = jax.random.split(key, 8)

    def conv_w(k, kh, kw, cin, cout):
        fan_in = kh * kw * cin
        scale = (2.0 / fan_in) ** 0.5
        return scale * jax.random.normal(k, (kh * kw * cin, cout), jnp.float32)

    wl = (1.0 / (3 * 3 * 128) ** 0.5) * jax.random.normal(
        ks[6], (9, 128), jnp.float32)                  # rows p = h*3+w, cols = c
    bl = 0.01 * jax.random.normal(ks[7], (1, 1), jnp.float32)

    return {
        "w1": conv_w(ks[0], 3, 3, 1, 32),
        "b1": (0.01 * jax.random.normal(ks[1], (32,), jnp.float32)).reshape(1, 32),
        "w2": conv_w(ks[2], 3, 3, 32, 64),
        "b2": (0.01 * jax.random.normal(ks[3], (64,), jnp.float32)).reshape(1, 64),
        "g2": jnp.ones((1, 64), jnp.float32),
        "be2": jnp.zeros((1, 64), jnp.float32),
        "w3": conv_w(ks[4], 3, 3, 64, 128),
        "b3": (0.01 * jax.random.normal(ks[5], (128,), jnp.float32)).reshape(1, 128),
        "g3": jnp.ones((1, 128), jnp.float32),
        "be3": jnp.zeros((1, 128), jnp.float32),
        "wl": wl,
        "bl": bl,
    }


# -----------------------------------------------------------------------------
# Pure-JAX reference (for correctness validation only).
# -----------------------------------------------------------------------------
def _reference_forward(params, x_nchw):
    B = x_nchw.shape[0]
    x = x_nchw.reshape(B, 28, 28, 1).astype(jnp.float32)
    dn = ("NHWC", "HWIO", "NHWC")
    hp = jax.lax.Precision.HIGHEST

    def conv(inp, w_gemm, b, cin, cout, stride, pad):
        w = w_gemm.reshape(3, 3, cin, cout)
        y = jax.lax.conv_general_dilated(
            inp, w, (stride, stride), [(pad, pad), (pad, pad)],
            dimension_numbers=dn, precision=hp)
        return y + b.reshape(1, 1, 1, cout)

    def bn_lrelu(y, g, be):
        m = jnp.mean(y, axis=(0, 1, 2), keepdims=True)
        v = jnp.mean((y - m) ** 2, axis=(0, 1, 2), keepdims=True)
        y = (y - m) / jnp.sqrt(v + BN_EPS) * g.reshape(1, 1, 1, -1) \
            + be.reshape(1, 1, 1, -1)
        return jnp.where(y > 0, y, LEAKY_SLOPE * y)

    h1 = conv(x, params["w1"], params["b1"], 1, 32, 2, 1)
    h1 = jnp.where(h1 > 0, h1, LEAKY_SLOPE * h1)
    h2 = bn_lrelu(conv(h1, params["w2"], params["b2"], 32, 64, 2, 1),
                  params["g2"], params["be2"])
    h3 = bn_lrelu(conv(h2, params["w3"], params["b3"], 64, 128, 2, 0),
                  params["g3"], params["be3"])
    flat = h3.reshape(B, 3 * 3 * 128)                  # (h, w, c) order
    logit = flat @ params["wl"].reshape(3 * 3 * 128, 1) + params["bl"]
    return jax.nn.sigmoid(logit)


if __name__ == "__main__":
    key = jax.random.PRNGKey(0)
    k_params, k_x = jax.random.split(key)

    params = init_params(k_params)
    # Input shape is pinned by Linear(3*3*128, 1): MNIST-style [B, 1, 28, 28].
    x = jax.random.normal(k_x, (2, 1, 28, 28), jnp.float32)

    y = jax.jit(discriminator_forward)(params, x)
    y = jax.block_until_ready(y)

    assert y.shape == (2, 1), y.shape
    assert bool(jnp.all(jnp.isfinite(y)))
    assert bool(jnp.all((y >= 0.0) & (y <= 1.0)))

    y_ref = jax.block_until_ready(jax.jit(_reference_forward)(params, x))
    err = float(jnp.max(jnp.abs(y - y_ref)))
    assert err < 2e-3, f"mismatch vs pure-JAX reference: {err}"

    print("KERNEL_OK")
</pallas_src>

<mosaic_0001>
module attributes {stable_mosaic.version = 11 : i64} {
  func.func @_disc_kernel(%arg0: memref<2x28x28x1xf32, #tpu.memory_space<vmem>>, %arg1: memref<9x32xf32, #tpu.memory_space<vmem>>, %arg2: memref<1x32xf32, #tpu.memory_space<vmem>>, %arg3: memref<288x64xf32, #tpu.memory_space<vmem>>, %arg4: memref<1x64xf32, #tpu.memory_space<vmem>>, %arg5: memref<1x64xf32, #tpu.memory_space<vmem>>, %arg6: memref<1x64xf32, #tpu.memory_space<vmem>>, %arg7: memref<576x128xf32, #tpu.memory_space<vmem>>, %arg8: memref<1x128xf32, #tpu.memory_space<vmem>>, %arg9: memref<1x128xf32, #tpu.memory_space<vmem>>, %arg10: memref<1x128xf32, #tpu.memory_space<vmem>>, %arg11: memref<9x128xf32, #tpu.memory_space<vmem>>, %arg12: memref<1x1xf32, #tpu.memory_space<vmem>>, %arg13: memref<2x1xf32, #tpu.memory_space<vmem>>, %arg14: memref<2x15x30x1xf32, #tpu.memory_space<vmem>>, %arg15: memref<2x15x30x1xf32, #tpu.memory_space<vmem>>, %arg16: memref<2x8x16x32xf32, #tpu.memory_space<vmem>>, %arg17: memref<2x8x16x32xf32, #tpu.memory_space<vmem>>, %arg18: memref<2x49x288xf32, #tpu.memory_space<vmem>>, %arg19: memref<2x49x64xf32, #tpu.memory_space<vmem>>, %arg20: memref<2x4x7x64xf32, #tpu.memory_space<vmem>>, %arg21: memref<2x3x7x64xf32, #tpu.memory_space<vmem>>, %arg22: memref<2x9x576xf32, #tpu.memory_space<vmem>>, %arg23: memref<2x9x128xf32, #tpu.memory_space<vmem>>) attributes {dimension_semantics = [], scalar_prefetch = 0 : i64, scratch_operands = 10 : i64, tpu.core_type = #tpu.core_type<tc>} {
    %cst = arith.constant 0.000000e+00 : f32
    %0 = vector.broadcast %cst : f32 to vector<2x15x30x1xf32>
    %c0 = arith.constant 0 : index
    %c0_0 = arith.constant 0 : index
    %c0_1 = arith.constant 0 : index
    %c0_2 = arith.constant 0 : index
    %1 = vector.load %arg14[%c0, %c0_0, %c0_1, %c0_2] : memref<2x15x30x1xf32, #tpu.memory_space<vmem>>, vector<2x15x30x1xf32>
    tpu.vector_store %arg14[%c0, %c0_0, %c0_1, %c0_2], %0 {strides = array<i32>} : memref<2x15x30x1xf32, #tpu.memory_space<vmem>>, vector<2x15x30x1xf32>,
    %cst_3 = arith.constant 0.000000e+00 : f32
    %2 = vector.broadcast %cst_3 : f32 to vector<2x15x30x1xf32>
    %c0_4 = arith.constant 0 : index
    %c0_5 = arith.constant 0 : index
    %c0_6 = arith.constant 0 : index
    %c0_7 = arith.constant 0 : index
    %3 = vector.load %arg15[%c0_4, %c0_5, %c0_6, %c0_7] : memref<2x15x30x1xf32, #tpu.memory_space<vmem>>, vector<2x15x30x1xf32>
    tpu.vector_store %arg15[%c0_4, %c0_5, %c0_6, %c0_7], %2 {strides = array<i32>} : memref<2x15x30x1xf32, #tpu.memory_space<vmem>>, vector<2x15x30x1xf32>,
    %c0_8 = arith.constant 0 : index
    %c0_9 = arith.constant 0 : index
    %c0_10 = arith.constant 0 : index
    %c0_11 = arith.constant 0 : index
    %4 = vector.load %arg0[%c0_8, %c0_9, %c0_10, %c0_11] : memref<2x28x28x1xf32, #tpu.memory_space<vmem>>, vector<2x28x28x1xf32>
    %5 = vector.shape_cast %4 : vector<2x28x28x1xf32> to vector<2x14x2x28x1xf32>
    %6 = vector.extract_strided_slice %5 {offsets = [0, 0, 0, 0, 0], sizes = [2, 14, 1, 28, 1], strides = [1, 1, 1, 1, 1]} : vector<2x14x2x28x1xf32> to vector<2x14x1x28x1xf32>
    %7 = vector.shape_cast %6 : vector<2x14x1x28x1xf32> to vector<2x14x28x1xf32>
    %c0_12 = arith.constant 0 : index
    %c0_13 = arith.constant 0 : index
    %c1 = arith.constant 1 : index
    %c0_14 = arith.constant 0 : index
    %8 = vector.load %arg15[%c0_12, %c0_13, %c1, %c0_14] : memref<2x15x30x1xf32, #tpu.memory_space<vmem>>, vector<2x14x28x1xf32>
    tpu.vector_store %arg15[%c0_12, %c0_13, %c1, %c0_14], %7 {strides = array<i32>} : memref<2x15x30x1xf32, #tpu.memory_space<vmem>>, vector<2x14x28x1xf32>,
    %9 = vector.extract_strided_slice %5 {offsets = [0, 0, 1, 0, 0], sizes = [2, 14, 1, 28, 1], strides = [1, 1, 1, 1, 1]} : vector<2x14x2x28x1xf32> to vector<2x14x1x28x1xf32>
    %10 = vector.shape_cast %9 : vector<2x14x1x28x1xf32> to vector<2x14x28x1xf32>
    %c0_15 = arith.constant 0 : index
    %c1_16 = arith.constant 1 : index
    %c1_17 = arith.constant 1 : index
    %c0_18 = arith.constant 0 : index
    %11 = vector.load %arg14[%c0_15, %c1_16, %c1_17, %c0_18] : memref<2x15x30x1xf32, #tpu.memory_space<vmem>>, vector<2x14x28x1xf32>
    tpu.vector_store %arg14[%c0_15, %c1_16, %c1_17, %c0_18], %10 {strides = array<i32>} : memref<2x15x30x1xf32, #tpu.memory_space<vmem>>, vector<2x14x28x1xf32>,
    %c0_19 = arith.constant 0 : index
    %c0_20 = arith.constant 0 : index
    %12 = vector.load %arg1[%c0_19, %c0_20] : memref<9x32xf32, #tpu.memory_space<vmem>>, vector<9x32xf32>
    %cst_21 = arith.constant 0.000000e+00 : f32
    %13 = vector.broadcast %cst_21 : f32 to vector<2x14x14x32xf32>
    %c0_22 = arith.constant 0 : index
    %c0_23 = arith.constant 0 : index
    %14 = vector.load %arg2[%c0_22, %c0_23] : memref<1x32xf32, #tpu.memory_space<vmem>>, vector<1x32xf32>
    %15 = vector.shape_cast %14 : vector<1x32xf32> to vector<1x1x1x32xf32>
    %16 = vector.broadcast %15 : vector<1x1x1x32xf32> to vector<2x14x14x32xf32>
    %17 = arith.addf %13, %16 : vector<2x14x14x32xf32>
    %c0_24 = arith.constant 0 : index
    %c0_25 = arith.constant 0 : index
    %c0_26 = arith.constant 0 : index
    %c0_27 = arith.constant 0 : index
    %18 = tpu.strided_load %arg14[%c0_24, %c0_25, %c0_26, %c0_27] {strides = array<i32: 1, 1, 2, 1>} : memref<2x15x30x1xf32, #tpu.memory_space<vmem>>, vector<2x14x14x1xf32>
    %19 = vector.extract_strided_slice %12 {offsets = [0, 0], sizes = [1, 32], strides = [1, 1]} : vector<9x32xf32> to vector<1x32xf32>
    %20 = vector.shape_cast %19 : vector<1x32xf32> to vector<1x1x1x32xf32>
    %21 = vector.broadcast %18 : vector<2x14x14x1xf32> to vector<2x14x14x32xf32>
    %22 = vector.broadcast %20 : vector<1x1x1x32xf32> to vector<2x14x14x32xf32>
    %23 = arith.mulf %21, %22 : vector<2x14x14x32xf32>
    %24 = arith.addf %17, %23 : vector<2x14x14x32xf32>
    %c0_28 = arith.constant 0 : index
    %c0_29 = arith.constant 0 : index
    %c1_30 = arith.constant 1 : index
    %c0_31 = arith.constant 0 : index
    %25 = tpu.strided_load %arg14[%c0_28, %c0_29, %c1_30, %c0_31] {strides = array<i32: 1, 1, 2, 1>} : memref<2x15x30x1xf32, #tpu.memory_space<vmem>>, vector<2x14x14x1xf32>
    %26 = vector.extract_strided_slice %12 {offsets = [1, 0], sizes = [1, 32], strides = [1, 1]} : vector<9x32xf32> to vector<1x32xf32>
    %27 = vector.shape_cast %26 : vector<1x32xf32> to vector<1x1x1x32xf32>
    %28 = vector.broadcast %25 : vector<2x14x14x1xf32> to vector<2x14x14x32xf32>
    %29 = vector.broadcast %27 : vector<1x1x1x32xf32> to vector<2x14x14x32xf32>
    %30 = arith.mulf %28, %29 : vector<2x14x14x32xf32>
    %31 = arith.addf %24, %30 : vector<2x14x14x32xf32>
    %c0_32 = arith.constant 0 : index
    %c0_33 = arith.constant 0 : index
    %c2 = arith.constant 2 : index
    %c0_34 = arith.constant 0 : index
    %32 = tpu.strided_load %arg14[%c0_32, %c0_33, %c2, %c0_34] {strides = array<i32: 1, 1, 2, 1>} : memref<2x15x30x1xf32, #tpu.memory_space<vmem>>, vector<2x14x14x1xf32>
    %33 = vector.extract_strided_slice %12 {offsets = [2, 0], sizes = [1, 32], strides = [1, 1]} : vector<9x32xf32> to vector<1x32xf32>
    %34 = vector.shape_cast %33 : vector<1x32xf32> to vector<1x1x1x32xf32>
    %35 = vector.broadcast %32 : vector<2x14x14x1xf32> to vector<2x14x14x32xf32>
    %36 = vector.broadcast %34 : vector<1x1x1x32xf32> to vector<2x14x14x32xf32>
    %37 = arith.mulf %35, %36 : vector<2x14x14x32xf32>
    %38 = arith.addf %31, %37 : vector<2x14x14x32xf32>
    %c0_35 = arith.constant 0 : index
    %c0_36 = arith.constant 0 : index
    %c0_37 = arith.constant 0 : index
    %c0_38 = arith.constant 0 : index
    %39 = tpu.strided_load %arg15[%c0_35, %c0_36, %c0_37, %c0_38] {strides = array<i32: 1, 1, 2, 1>} : memref<2x15x30x1xf32, #tpu.memory_space<vmem>>, vector<2x14x14x1xf32>
    %40 = vector.extract_strided_slice %12 {offsets = [3, 0], sizes = [1, 32], strides = [1, 1]} : vector<9x32xf32> to vector<1x32xf32>
    %41 = vector.shape_cast %40 : vector<1x32xf32> to vector<1x1x1x32xf32>
    %42 = vector.broadcast %39 : vector<2x14x14x1xf32> to vector<2x14x14x32xf32>
    %43 = vector.broadcast %41 : vector<1x1x1x32xf32> to vector<2x14x14x32xf32>
    %44 = arith.mulf %42, %43 : vector<2x14x14x32xf32>
    %45 = arith.addf %38, %44 : vector<2x14x14x32xf32>
    %c0_39 = arith.constant 0 : index
    %c0_40 = arith.constant 0 : index
    %c1_41 = arith.constant 1 : index
    %c0_42 = arith.constant 0 : index
    %46 = tpu.strided_load %arg15[%c0_39, %c0_40, %c1_41, %c0_42] {strides = array<i32: 1, 1, 2, 1>} : memref<2x15x30x1xf32, #tpu.memory_space<vmem>>, vector<2x14x14x1xf32>
    %47 = vector.extract_strided_slice %12 {offsets = [4, 0], sizes = [1, 32], strides = [1, 1]} : vector<9x32xf32> to vector<1x32xf32>
    %48 = vector.shape_cast %47 : vector<1x32xf32> to vector<1x1x1x32xf32>
    %49 = vector.broadcast %46 : vector<2x14x14x1xf32> to vector<2x14x14x32xf32>
    %50 = vector.broadcast %48 : vector<1x1x1x32xf32> to vector<2x14x14x32xf32>
    %51 = arith.mulf %49, %50 : vector<2x14x14x32xf32>
    %52 = arith.addf %45, %51 : vector<2x14x14x32xf32>
    %c0_43 = arith.constant 0 : index
    %c0_44 = arith.constant 0 : index
    %c2_45 = arith.constant 2 : index
    %c0_46 = arith.constant 0 : index
    %53 = tpu.strided_load %arg15[%c0_43, %c0_44, %c2_45, %c0_46] {strides = array<i32: 1, 1, 2, 1>} : memref<2x15x30x1xf32, #tpu.memory_space<vmem>>, vector<2x14x14x1xf32>
    %54 = vector.extract_strided_slice %12 {offsets = [5, 0], sizes = [1, 32], strides = [1, 1]} : vector<9x32xf32> to vector<1x32xf32>
    %55 = vector.shape_cast %54 : vector<1x32xf32> to vector<1x1x1x32xf32>
    %56 = vector.broadcast %53 : vector<2x14x14x1xf32> to vector<2x14x14x32xf32>
    %57 = vector.broadcast %55 : vector<1x1x1x32xf32> to vector<2x14x14x32xf32>
    %58 = arith.mulf %56, %57 : vector<2x14x14x32xf32>
    %59 = arith.addf %52, %58 : vector<2x14x14x32xf32>
    %c0_47 = arith.constant 0 : index
    %c1_48 = arith.constant 1 : index
    %c0_49 = arith.constant 0 : index
    %c0_50 = arith.constant 0 : index
    %60 = tpu.strided_load %arg14[%c0_47, %c1_48, %c0_49, %c0_50] {strides = array<i32: 1, 1, 2, 1>} : memref<2x15x30x1xf32, #tpu.memory_space<vmem>>, vector<2x14x14x1xf32>
    %61 = vector.extract_strided_slice %12 {offsets = [6, 0], sizes = [1, 32], strides = [1, 1]} : vector<9x32xf32> to vector<1x32xf32>
    %62 = vector.shape_cast %61 : vector<1x32xf32> to vector<1x1x1x32xf32>
    %63 = vector.broadcast %60 : vector<2x14x14x1xf32> to vector<2x14x14x32xf32>
    %64 = vector.broadcast %62 : vector<1x1x1x32xf32> to vector<2x14x14x32xf32>
    %65 = arith.mulf %63, %64 : vector<2x14x14x32xf32>
    %66 = arith.addf %59, %65 : vector<2x14x14x32xf32>
    %c0_51 = arith.constant 0 : index
    %c1_52 = arith.constant 1 : index
    %c1_53 = arith.constant 1 : index
    %c0_54 = arith.constant 0 : index
    %67 = tpu.strided_load %arg14[%c0_51, %c1_52, %c1_53, %c0_54] {strides = array<i32: 1, 1, 2, 1>} : memref<2x15x30x1xf32, #tpu.memory_space<vmem>>, vector<2x14x14x1xf32>
    %68 = vector.extract_strided_slice %12 {offsets = [7, 0], sizes = [1, 32], strides = [1, 1]} : vector<9x32xf32> to vector<1x32xf32>
    %69 = vector.shape_cast %68 : vector<1x32xf32> to vector<1x1x1x32xf32>
    %70 = vector.broadcast %67 : vector<2x14x14x1xf32> to vector<2x14x14x32xf32>
    %71 = vector.broadcast %69 : vector<1x1x1x32xf32> to vector<2x14x14x32xf32>
    %72 = arith.mulf %70, %71 : vector<2x14x14x32xf32>
    %73 = arith.addf %66, %72 : vector<2x14x14x32xf32>
    %c0_55 = arith.constant 0 : index
    %c1_56 = arith.constant 1 : index
    %c2_57 = arith.constant 2 : index
    %c0_58 = arith.constant 0 : index
    %74 = tpu.strided_load %arg14[%c0_55, %c1_56, %c2_57, %c0_58] {strides = array<i32: 1, 1, 2, 1>} : memref<2x15x30x1xf32, #tpu.memory_space<vmem>>, vector<2x14x14x1xf32>
    %75 = vector.extract_strided_slice %12 {offsets = [8, 0], sizes = [1, 32], strides = [1, 1]} : vector<9x32xf32> to vector<1x32xf32>
    %76 = vector.shape_cast %75 : vector<1x32xf32> to vector<1x1x1x32xf32>
    %77 = vector.broadcast %74 : vector<2x14x14x1xf32> to vector<2x14x14x32xf32>
    %78 = vector.broadcast %76 : vector<1x1x1x32xf32> to vector<2x14x14x32xf32>
    %79 = arith.mulf %77, %78 : vector<2x14x14x32xf32>
    %80 = arith.addf %73, %79 : vector<2x14x14x32xf32>
    %cst_59 = arith.constant 0.000000e+00 : f32
    %81 = vector.broadcast %cst_59 : f32 to vector<2x14x14x32xf32>
    %82 = arith.cmpf ogt, %80, %81 : vector<2x14x14x32xf32>
    %cst_60 = arith.constant 0.00999999977 : f32
    %83 = vector.broadcast %cst_60 : f32 to vector<2x14x14x32xf32>
    %84 = arith.mulf %83, %80 : vector<2x14x14x32xf32>
    %85 = arith.select %82, %80, %84 : vector<2x14x14x32xi1>, vector<2x14x14x32xf32>
    %cst_61 = arith.constant 0.000000e+00 : f32
    %86 = vector.broadcast %cst_61 : f32 to vector<2x8x16x32xf32>
    %c0_62 = arith.constant 0 : index
    %c0_63 = arith.constant 0 : index
    %c0_64 = arith.constant 0 : index
    %c0_65 = arith.constant 0 : index
    %87 = vector.load %arg16[%c0_62, %c0_63, %c0_64, %c0_65] : memref<2x8x16x32xf32, #tpu.memory_space<vmem>>, vector<2x8x16x32xf32>
    tpu.vector_store %arg16[%c0_62, %c0_63, %c0_64, %c0_65], %86 {strides = array<i32>} : memref<2x8x16x32xf32, #tpu.memory_space<vmem>>, vector<2x8x16x32xf32>,
    %cst_66 = arith.constant 0.000000e+00 : f32
    %88 = vector.broadcast %cst_66 : f32 to vector<2x8x16x32xf32>
    %c0_67 = arith.constant 0 : index
    %c0_68 = arith.constant 0 : index
    %c0_69 = arith.constant 0 : index
    %c0_70 = arith.constant 0 : index
    %89 = vector.load %arg17[%c0_67, %c0_68, %c0_69, %c0_70] : memref<2x8x16x32xf32, #tpu.memory_space<vmem>>, vector<2x8x16x32xf32>
    tpu.vector_store %arg17[%c0_67, %c0_68, %c0_69, %c0_70], %88 {strides = array<i32>} : memref<2x8x16x32xf32, #tpu.memory_space<vmem>>, vector<2x8x16x32xf32>,
    %90 = vector.shape_cast %85 : vector<2x14x14x32xf32> to vector<2x7x2x14x32xf32>
    %91 = vector.extract_strided_slice %90 {offsets = [0, 0, 0, 0, 0], sizes = [2, 7, 1, 14, 32], strides = [1, 1, 1, 1, 1]} : vector<2x7x2x14x32xf32> to vector<2x7x1x14x32xf32>
    %92 = vector.shape_cast %91 : vector<2x7x1x14x32xf32> to vector<2x7x14x32xf32>
    %c0_71 = arith.constant 0 : index
    %c0_72 = arith.constant 0 : index
    %c1_73 = arith.constant 1 : index
    %c0_74 = arith.constant 0 : index
    %93 = vector.load %arg17[%c0_71, %c0_72, %c1_73, %c0_74] : memref<2x8x16x32xf32, #tpu.memory_space<vmem>>, vector<2x7x14x32xf32>
    tpu.vector_store %arg17[%c0_71, %c0_72, %c1_73, %c0_74], %92 {strides = array<i32>} : memref<2x8x16x32xf32, #tpu.memory_space<vmem>>, vector<2x7x14x32xf32>,
    %94 = vector.extract_strided_slice %90 {offsets = [0, 0, 1, 0, 0], sizes = [2, 7, 1, 14, 32], strides = [1, 1, 1, 1, 1]} : vector<2x7x2x14x32xf32> to vector<2x7x1x14x32xf32>
    %95 = vector.shape_cast %94 : vector<2x7x1x14x32xf32> to vector<2x7x14x32xf32>
    %c0_75 = arith.constant 0 : index
    %c1_76 = arith.constant 1 : index
    %c1_77 = arith.constant 1 : index
    %c0_78 = arith.constant 0 : index
    %96 = vector.load %arg16[%c0_75, %c1_76, %c1_77, %c0_78] : memref<2x8x16x32xf32, #tpu.memory_space<vmem>>, vector<2x7x14x32xf32>
    tpu.vector_store %arg16[%c0_75, %c1_76, %c1_77, %c0_78], %95 {strides = array<i32>} : memref<2x8x16x32xf32, #tpu.memory_space<vmem>>, vector<2x7x14x32xf32>,
    %c0_79 = arith.constant 0 : index
    %c0_80 = arith.constant 0 : index
    %c0_81 = arith.constant 0 : index
    %c0_82 = arith.constant 0 : index
    %97 = tpu.strided_load %arg16[%c0_79, %c0_80, %c0_81, %c0_82] {strides = array<i32: 1, 1, 2, 1>} : memref<2x8x16x32xf32, #tpu.memory_space<vmem>>, vector<2x7x7x32xf32>
    %98 = vector.extract_strided_slice %97 {offsets = [0, 0, 0, 0], sizes = [2, 1, 7, 32], strides = [1, 1, 1, 1]} : vector<2x7x7x32xf32> to vector<2x1x7x32xf32>
    %99 = vector.shape_cast %98 : vector<2x1x7x32xf32> to vector<2x7x32xf32>
    %c0_83 = arith.constant 0 : index
    %c0_84 = arith.constant 0 : index
    %c0_85 = arith.constant 0 : index
    %100 = vector.load %arg18[%c0_83, %c0_84, %c0_85] : memref<2x49x288xf32, #tpu.memory_space<vmem>>, vector<2x7x32xf32>
    tpu.vector_store %arg18[%c0_83, %c0_84, %c0_85], %99 {strides = array<i32>} : memref<2x49x288xf32, #tpu.memory_space<vmem>>, vector<2x7x32xf32>,
    %101 = vector.extract_strided_slice %97 {offsets = [0, 1, 0, 0], sizes = [2, 1, 7, 32], strides = [1, 1, 1, 1]} : vector<2x7x7x32xf32> to vector<2x1x7x32xf32>
    %102 = vector.shape_cast %101 : vector<2x1x7x32xf32> to vector<2x7x32xf32>
    %c0_86 = arith.constant 0 : index
    %c7 = arith.constant 7 : index
    %c0_87 = arith.constant 0 : index
    %103 = vector.load %arg18[%c0_86, %c7, %c0_87] : memref<2x49x288xf32, #tpu.memory_space<vmem>>, vector<2x7x32xf32>
    tpu.vector_store %arg18[%c0_86, %c7, %c0_87], %102 {strides = array<i32>} : memref<2x49x288xf32, #tpu.memory_space<vmem>>, vector<2x7x32xf32>,
    %104 = vector.extract_strided_slice %97 {offsets = [0, 2, 0, 0], sizes = [2, 1, 7, 32], strides = [1, 1, 1, 1]} : vector<2x7x7x32xf32> to vector<2x1x7x32xf32>
    %105 = vector.shape_cast %104 : vector<2x1x7x32xf32> to vector<2x7x32xf32>
    %c0_88 = arith.constant 0 : index
    %c14 = arith.constant 14 : index
    %c0_89 = arith.constant 0 : index
    %106 = vector.load %arg18[%c0_88, %c14, %c0_89] : memref<2x49x288xf32, #tpu.memory_space<vmem>>, vector<2x7x32xf32>
    tpu.vector_store %arg18[%c0_88, %c14, %c0_89], %105 {strides = array<i32>} : memref<2x49x288xf32, #tpu.memory_space<vmem>>, vector<2x7x32xf32>,
    %107 = vector.extract_strided_slice %97 {offsets = [0, 3, 0, 0], sizes = [2, 1, 7, 32], strides = [1, 1, 1, 1]} : vector<2x7x7x32xf32> to vector<2x1x7x32xf32>
    %108 = vector.shape_cast %107 : vector<2x1x7x32xf32> to vector<2x7x32xf32>
    %c0_90 = arith.constant 0 : index
    %c21 = arith.constant 21 : index
    %c0_91 = arith.constant 0 : index
    %109 = vector.load %arg18[%c0_90, %c21, %c0_91] : memref<2x49x288xf32, #tpu.memory_space<vmem>>, vector<2x7x32xf32>
    tpu.vector_store %arg18[%c0_90, %c21, %c0_91], %108 {strides = array<i32>} : memref<2x49x288xf32, #tpu.memory_space<vmem>>, vector<2x7x32xf32>,
    %110 = vector.extract_strided_slice %97 {offsets = [0, 4, 0, 0], sizes = [2, 1, 7, 32], strides = [1, 1, 1, 1]} : vector<2x7x7x32xf32> to vector<2x1x7x32xf32>
    %111 = vector.shape_cast %110 : vector<2x1x7x32xf32> to vector<2x7x32xf32>
    %c0_92 = arith.constant 0 : index
    %c28 = arith.constant 28 : index
    %c0_93 = arith.constant 0 : index
    %112 = vector.load %arg18[%c0_92, %c28, %c0_93] : memref<2x49x288xf32, #tpu.memory_space<vmem>>, vector<2x7x32xf32>
    tpu.vector_store %arg18[%c0_92, %c28, %c0_93], %111 {strides = array<i32>} : memref<2x49x288xf32, #tpu.memory_space<vmem>>, vector<2x7x32xf32>,
    %113 = vector.extract_strided_slice %97 {offsets = [0, 5, 0, 0], sizes = [2, 1, 7, 32], strides = [1, 1, 1, 1]} : vector<2x7x7x32xf32> to vector<2x1x7x32xf32>
    %114 = vector.shape_cast %113 : vector<2x1x7x32xf32> to vector<2x7x32xf32>
    %c0_94 = arith.constant 0 : index
    %c35 = arith.constant 35 : index
    %c0_95 = arith.constant 0 : index
    %115 = vector.load %arg18[%c0_94, %c35, %c0_95] : memref<2x49x288xf32, #tpu.memory_space<vmem>>, vector<2x7x32xf32>
    tpu.vector_store %arg18[%c0_94, %c35, %c0_95], %114 {strides = array<i32>} : memref<2x49x288xf32, #tpu.memory_space<vmem>>, vector<2x7x32xf32>,
    %116 = vector.extract_strided_slice %97 {offsets = [0, 6, 0, 0], sizes = [2, 1, 7, 32], strides = [1, 1, 1, 1]} : vector<2x7x7x32xf32> to vector<2x1x7x32xf32>
    %117 = vector.shape_cast %116 : vector<2x1x7x32xf32> to vector<2x7x32xf32>
    %c0_96 = arith.constant 0 : index
    %c42 = arith.constant 42 : index
    %c0_97 = arith.constant 0 : index
    %118 = vector.load %arg18[%c0_96, %c42, %c0_97] : memref<2x49x288xf32, #tpu.memory_space<vmem>>, vector<2x7x32xf32>
    tpu.vector_store %arg18[%c0_96, %c42, %c0_97], %117 {strides = array<i32>} : memref<2x49x288xf32, #tpu.memory_space<vmem>>, vector<2x7x32xf32>,
    %c0_98 = arith.constant 0 : index
    %c0_99 = arith.constant 0 : index
    %c1_100 = arith.constant 1 : index
    %c0_101 = arith.constant 0 : index
    %119 = tpu.strided_load %arg16[%c0_98, %c0_99, %c1_100, %c0_101] {strides = array<i32: 1, 1, 2, 1>} : memref<2x8x16x32xf32, #tpu.memory_space<vmem>>, vector<2x7x7x32xf32>
    %120 = vector.extract_strided_slice %119 {offsets = [0, 0, 0, 0], sizes = [2, 1, 7, 32], strides = [1, 1, 1, 1]} : vector<2x7x7x32xf32> to vector<2x1x7x32xf32>
    %121 = vector.shape_cast %120 : vector<2x1x7x32xf32> to vector<2x7x32xf32>
    %c0_102 = arith.constant 0 : index
    %c0_103 = arith.constant 0 : index
    %c32 = arith.constant 32 : index
    %122 = vector.load %arg18[%c0_102, %c0_103, %c32] : memref<2x49x288xf32, #tpu.memory_space<vmem>>, vector<2x7x32xf32>
    tpu.vector_store %arg18[%c0_102, %c0_103, %c32], %121 {strides = array<i32>} : memref<2x49x288xf32, #tpu.memory_space<vmem>>, vector<2x7x32xf32>,
    %123 = vector.extract_strided_slice %119 {offsets = [0, 1, 0, 0], sizes = [2, 1, 7, 32], strides = [1, 1, 1, 1]} : vector<2x7x7x32xf32> to vector<2x1x7x32xf32>
    %124 = vector.shape_cast %123 : vector<2x1x7x32xf32> to vector<2x7x32xf32>
    %c0_104 = arith.constant 0 : index
    %c7_105 = arith.constant 7 : index
    %c32_106 = arith.constant 32 : index
    %125 = vector.load %arg18[%c0_104, %c7_105, %c32_106] : memref<2x49x288xf32, #tpu.memory_space<vmem>>, vector<2x7x32xf32>
    tpu.vector_store %arg18[%c0_104, %c7_105, %c32_106], %124 {strides = array<i32>} : memref<2x49x288xf32, #tpu.memory_space<vmem>>, vector<2x7x32xf32>,
    %126 = vector.extract_strided_slice %119 {offsets = [0, 2, 0, 0], sizes = [2, 1, 7, 32], strides = [1, 1, 1, 1]} : vector<2x7x7x32xf32> to vector<2x1x7x32xf32>
    %127 = vector.shape_cast %126 : vector<2x1x7x32xf32> to vector<2x7x32xf32>
    %c0_107 = arith.constant 0 : index
    %c14_108 = arith.constant 14 : index
    %c32_109 = arith.constant 32 : index
    %128 = vector.load %arg18[%c0_107, %c14_108, %c32_109] : memref<2x49x288xf32, #tpu.memory_space<vmem>>, vector<2x7x32xf32>
    tpu.vector_store %arg18[%c0_107, %c14_108, %c32_109], %127 {strides = array<i32>} : memref<2x49x288xf32, #tpu.memory_space<vmem>>, vector<2x7x32xf32>,
    %129 = vector.extract_strided_slice %119 {offsets = [0, 3, 0, 0], sizes = [2, 1, 7, 32], strides = [1, 1, 1, 1]} : vector<2x7x7x32xf32> to vector<2x1x7x32xf32>
    %130 = vector.shape_cast %129 : vector<2x1x7x32xf32> to vector<2x7x32xf32>
    %c0_110 = arith.constant 0 : index
    %c21_111 = arith.constant 21 : index
    %c32_112 = arith.constant 32 : index
    %131 = vector.load %arg18[%c0_110, %c21_111, %c32_112] : memref<2x49x288xf32, #tpu.memory_space<vmem>>, vector<2x7x32xf32>
    tpu.vector_store %arg18[%c0_110, %c21_111, %c32_112], %130 {strides = array<i32>} : memref<2x49x288xf32, #tpu.memory_space<vmem>>, vector<2x7x32xf32>,
    %132 = vector.extract_strided_slice %119 {offsets = [0, 4, 0, 0], sizes = [2, 1, 7, 32], strides = [1, 1, 1, 1]} : vector<2x7x7x32xf32> to vector<2x1x7x32xf32>
    %133 = vector.shape_cast %132 : vector<2x1x7x32xf32> to vector<2x7x32xf32>
    %c0_113 = arith.constant 0 : index
    %c28_114 = arith.constant 28 : index
    %c32_115 = arith.constant 32 : index
    %134 = vector.load %arg18[%c0_113, %c28_114, %c32_115] : memref<2x49x288xf32, #tpu.memory_space<vmem>>, vector<2x7x32xf32>
    tpu.vector_store %arg18[%c0_113, %c28_114, %c32_115], %133 {strides = array<i32>} : memref<2x49x288xf32, #tpu.memory_space<vmem>>, vector<2x7x32xf32>,
    %135 = vector.extract_strided_slice %119 {offsets = [0, 5, 0, 0], sizes = [2, 1, 7, 32], strides = [1, 1, 1, 1]} : vector<2x7x7x32xf32> to vector<2x1x7x32xf32>
    %136 = vector.shape_cast %135 : vector<2x1x7x32xf32> to vector<2x7x32xf32>
    %c0_116 = arith.constant 0 : index
    %c35_117 = arith.constant 35 : index
    %c32_118 = arith.constant 32 : index
    %137 = vector.load %arg18[%c0_116, %c35_117, %c32_118] : memref<2x49x288xf32, #tpu.memory_space<vmem>>, vector<2x7x32xf32>
    tpu.vector_store %arg18[%c0_116, %c35_117, %c32_118], %136 {strides = array<i32>} : memref<2x49x288xf32, #tpu.memory_space<vmem>>, vector<2x7x32xf32>,
    %138 = vector.extract_strided_slice %119 {offsets = [0, 6, 0, 0], sizes = [2, 1, 7, 32], strides = [1, 1, 1, 1]} : vector<2x7x7x32xf32> to vector<2x1x7x32xf32>
    %139 = vector.shape_cast %138 : vector<2x1x7x32xf32> to vector<2x7x32xf32>
    %c0_119 = arith.constant 0 : index
    %c42_120 = arith.constant 42 : index
    %c32_121 = arith.constant 32 : index
    %140 = vector.load %arg18[%c0_119, %c42_120, %c32_121] : memref<2x49x288xf32, #tpu.memory_space<vmem>>, vector<2x7x32xf32>
    tpu.vector_store %arg18[%c0_119, %c42_120, %c32_121], %139 {strides = array<i32>} : memref<2x49x288xf32, #tpu.memory_space<vmem>>, vector<2x7x32xf32>,
    %c0_122 = arith.constant 0 : index
    %c0_123 = arith.constant 0 : index
    %c2_124 = arith.constant 2 : index
    %c0_125 = arith.constant 0 : index
    %141 = tpu.strided_load %arg16[%c0_122, %c0_123, %c2_124, %c0_125] {strides = array<i32: 1, 1, 2, 1>} : memref<2x8x16x32xf32, #tpu.memory_space<vmem>>, vector<2x7x7x32xf32>
    %142 = vector.extract_strided_slice %141 {offsets = [0, 0, 0, 0], sizes = [2, 1, 7, 32], strides = [1, 1, 1, 1]} : vector<2x7x7x32xf32> to vector<2x1x7x32xf32>
    %143 = vector.shape_cast %142 : vector<2x1x7x32xf32> to vector<2x7x32xf32>
    %c0_126 = arith.constant 0 : index
    %c0_127 = arith.constant 0 : index
    %c64 = arith.constant 64 : index
    %144 = vector.load %arg18[%c0_126, %c0_127, %c64] : memref<2x49x288xf32, #tpu.memory_space<vmem>>, vector<2x7x32xf32>
    tpu.vector_store %arg18[%c0_126, %c0_127, %c64], %143 {strides = array<i32>} : memref<2x49x288xf32, #tpu.memory_space<vmem>>, vector<2x7x32xf32>,
    %145 = vector.extract_strided_slice %141 {offsets = [0, 1, 0, 0], sizes = [2, 1, 7, 32], strides = [1, 1, 1, 1]} : vector<2x7x7x32xf32> to vector<2x1x7x32xf32>
    %146 = vector.shape_cast %145 : vector<2x1x7x32xf32> to vector<2x7x32xf32>
    %c0_128 = arith.constant 0 : index
    %c7_129 = arith.constant 7 : index
    %c64_130 = arith.constant 64 : index
    %147 = vector.load %arg18[%c0_128, %c7_129, %c64_130] : memref<2x49x288xf32, #tpu.memory_space<vmem>>, vector<2x7x32xf32>
    tpu.vector_store %arg18[%c0_128, %c7_129, %c64_130], %146 {strides = array<i32>} : memref<2x49x288xf32, #tpu.memory_space<vmem>>, vector<2x7x32xf32>,
    %148 = vector.extract_strided_slice %141 {offsets = [0, 2, 0, 0], sizes = [2, 1, 7, 32], strides = [1, 1, 1, 1]} : vector<2x7x7x32xf32> to vector<2x1x7x32xf32>
    %149 = vector.shape_cast %148 : vector<2x1x7x32xf32> to vector<2x7x32xf32>
    %c0_131 = arith.constant 0 : index
    %c14_132 = arith.constant 14 : index
    %c64_133 = arith.constant 64 : index
    %150 = vector.load %arg18[%c0_131, %c14_132, %c64_133] : memref<2x49x288xf32, #tpu.memory_space<vmem>>, vector<2x7x32xf32>
    tpu.vector_store %arg18[%c0_131, %c14_132, %c64_133], %149 {strides = array<i32>} : memref<2x49x288xf32, #tpu.memory_space<vmem>>, vector<2x7x32xf32>,
    %151 = vector.extract_strided_slice %141 {offsets = [0, 3, 0, 0], sizes = [2, 1, 7, 32], strides = [1, 1, 1, 1]} : vector<2x7x7x32xf32> to vector<2x1x7x32xf32>
    %152 = vector.shape_cast %151 : vector<2x1x7x32xf32> to vector<2x7x32xf32>
    %c0_134 = arith.constant 0 : index
    %c21_135 = arith.constant 21 : index
    %c64_136 = arith.constant 64 : index
    %153 = vector.load %arg18[%c0_134, %c21_135, %c64_136] : memref<2x49x288xf32, #tpu.memory_space<vmem>>, vector<2x7x32xf32>
    tpu.vector_store %arg18[%c0_134, %c21_135, %c64_136], %152 {strides = array<i32>} : memref<2x49x288xf32, #tpu.memory_space<vmem>>, vector<2x7x32xf32>,
    %154 = vector.extract_strided_slice %141 {offsets = [0, 4, 0, 0], sizes = [2, 1, 7, 32], strides = [1, 1, 1, 1]} : vector<2x7x7x32xf32> to vector<2x1x7x32xf32>
    %155 = vector.shape_cast %154 : vector<2x1x7x32xf32> to vector<2x7x32xf32>
    %c0_137 = arith.constant 0 : index
    %c28_138 = arith.constant 28 : index
    %c64_139 = arith.constant 64 : index
    %156 = vector.load %arg18[%c0_137, %c28_138, %c64_139] : memref<2x49x288xf32, #tpu.memory_space<vmem>>, vector<2x7x32xf32>
    tpu.vector_store %arg18[%c0_137, %c28_138, %c64_139], %155 {strides = array<i32>} : memref<2x49x288xf32, #tpu.memory_space<vmem>>, vector<2x7x32xf32>,
    %157 = vector.extract_strided_slice %141 {offsets = [0, 5, 0, 0], sizes = [2, 1, 7, 32], strides = [1, 1, 1, 1]} : vector<2x7x7x32xf32> to vector<2x1x7x32xf32>
    %158 = vector.shape_cast %157 : vector<2x1x7x32xf32> to vector<2x7x32xf32>
    %c0_140 = arith.constant 0 : index
    %c35_141 = arith.constant 35 : index
    %c64_142 = arith.constant 64 : index
    %159 = vector.load %arg18[%c0_140, %c35_141, %c64_142] : memref<2x49x288xf32, #tpu.memory_space<vmem>>, vector<2x7x32xf32>
    tpu.vector_store %arg18[%c0_140, %c35_141, %c64_142], %158 {strides = array<i32>} : memref<2x49x288xf32, #tpu.memory_space<vmem>>, vector<2x7x32xf32>,
    %160 = vector.extract_strided_slice %141 {offsets = [0, 6, 0, 0], sizes = [2, 1, 7, 32], strides = [1, 1, 1, 1]} : vector<2x7x7x32xf32> to vector<2x1x7x32xf32>
    %161 = vector.shape_cast %160 : vector<2x1x7x32xf32> to vector<2x7x32xf32>
    %c0_143 = arith.constant 0 : index
    %c42_144 = arith.constant 42 : index
    %c64_145 = arith.constant 64 : index
    %162 = vector.load %arg18[%c0_143, %c42_144, %c64_145] : memref<2x49x288xf32, #tpu.memory_space<vmem>>, vector<2x7x32xf32>
    tpu.vector_store %arg18[%c0_143, %c42_144, %c64_145], %161 {strides = array<i32>} : memref<2x49x288xf32, #tpu.memory_space<vmem>>, vector<2x7x32xf32>,
    %c0_146 = arith.constant 0 : index
    %c0_147 = arith.constant 0 : index
    %c0_148 = arith.constant 0 : index
    %c0_149 = arith.constant 0 : index
    %163 = tpu.strided_load %arg17[%c0_146, %c0_147, %c0_148, %c0_149] {strides = array<i32: 1, 1, 2, 1>} : memref<2x8x16x32xf32, #tpu.memory_space<vmem>>, vector<2x7x7x32xf32>
    %164 = vector.extract_strided_slice %163 {offsets = [0, 0, 0, 0], sizes = [2, 1, 7, 32], strides = [1, 1, 1, 1]} : vector<2x7x7x32xf32> to vector<2x1x7x32xf32>
    %165 = vector.shape_cast %164 : vector<2x1x7x32xf32> to vector<2x7x32xf32>
    %c0_150 = arith.constant 0 : index
    %c0_151 = arith.constant 0 : index
    %c96 = arith.constant 96 : index
    %166 = vector.load %arg18[%c0_150, %c0_151, %c96] : memref<2x49x288xf32, #tpu.memory_space<vmem>>, vector<2x7x32xf32>
    tpu.vector_store %arg18[%c0_150, %c0_151, %c96], %165 {strides = array<i32>} : memref<2x49x288xf32, #tpu.memory_space<vmem>>, vector<2x7x32xf32>,
    %167 = vector.extract_strided_slice %163 {offsets = [0, 1, 0, 0], sizes = [2, 1, 7, 32], strides = [1, 1, 1, 1]} : vector<2x7x7x32xf32> to vector<2x1x7x32xf32>
    %168 = vector.shape_cast %167 : vector<2x1x7x32xf32> to vector<2x7x32xf32>
    %c0_152 = arith.constant 0 : index
    %c7_153 = arith.constant 7 : index
    %c96_154 = arith.constant 96 : index
    %169 = vector.load %arg18[%c0_152, %c7_153, %c96_154] : memref<2x49x288xf32, #tpu.memory_space<vmem>>, vector<2x7x32xf32>
    tpu.vector_store %arg18[%c0_152, %c7_153, %c96_154], %168 {strides = array<i32>} : memref<2x49x288xf32, #tpu.memory_space<vmem>>, vector<2x7x32xf32>,
    %170 = vector.extract_strided_slice %163 {offsets = [0, 2, 0, 0], sizes = [2, 1, 7, 32], strides = [1, 1, 1, 1]} : vector<2x7x7x32xf32> to vector<2x1x7x32xf32>
    %171 = vector.shape_cast %170 : vector<2x1x7x32xf32> to vector<2x7x32xf32>
    %c0_155 = arith.constant 0 : index
    %c14_156 = arith.constant 14 : index
    %c96_157 = arith.constant 96 : index
    %172 = vector.load %arg18[%c0_155, %c14_156, %c96_157] : memref<2x49x288xf32, #tpu.memory_space<vmem>>, vector<2x7x32xf32>
    tpu.vector_store %arg18[%c0_155, %c14_156, %c96_157], %171 {strides = array<i32>} : memref<2x49x288xf32, #tpu.memory_space<vmem>>, vector<2x7x32xf32>,
    %173 = vector.extract_strided_slice %163 {offsets = [0, 3, 0, 0], sizes = [2, 1, 7, 32], strides = [1, 1, 1, 1]} : vector<2x7x7x32xf32> to vector<2x1x7x32xf32>
    %174 = vector.shape_cast %173 : vector<2x1x7x32xf32> to vector<2x7x32xf32>
    %c0_158 = arith.constant 0 : index
    %c21_159 = arith.constant 21 : index
    %c96_160 = arith.constant 96 : index
    %175 = vector.load %arg18[%c0_158, %c21_159, %c96_160] : memref<2x49x288xf32, #tpu.memory_space<vmem>>, vector<2x7x32xf32>
    tpu.vector_store %arg18[%c0_158, %c21_159, %c96_160], %174 {strides = array<i32>} : memref<2x49x288xf32, #tpu.memory_space<vmem>>, vector<2x7x32xf32>,
    %176 = vector.extract_strided_slice %163 {offsets = [0, 4, 0, 0], sizes = [2, 1, 7, 32], strides = [1, 1, 1, 1]} : vector<2x7x7x32xf32> to vector<2x1x7x32xf32>
    %177 = vector.shape_cast %176 : vector<2x1x7x32xf32> to vector<2x7x32xf32>
    %c0_161 = arith.constant 0 : index
    %c28_162 = arith.constant 28 : index
    %c96_163 = arith.constant 96 : index
    %178 = vector.load %arg18[%c0_161, %c28_162, %c96_163] : memref<2x49x288xf32, #tpu.memory_space<vmem>>, vector<2x7x32xf32>
    tpu.vector_store %arg18[%c0_161, %c28_162, %c96_163], %177 {strides = array<i32>} : memref<2x49x288xf32, #tpu.memory_space<vmem>>, vector<2x7x32xf32>,
    %179 = vector.extract_strided_slice %163 {offsets = [0, 5, 0, 0], sizes = [2, 1, 7, 32], strides = [1, 1, 1, 1]} : vector<2x7x7x32xf32> to vector<2x1x7x32xf32>
    %180 = vector.shape_cast %179 : vector<2x1x7x32xf32> to vector<2x7x32xf32>
    %c0_164 = arith.constant 0 : index
    %c35_165 = arith.constant 35 : index
    %c96_166 = arith.constant 96 : index
    %181 = vector.load %arg18[%c0_164, %c35_165, %c96_166] : memref<2x49x288xf32, #tpu.memory_space<vmem>>, vector<2x7x32xf32>
    tpu.vector_store %arg18[%c0_164, %c35_165, %c96_166], %180 {strides = array<i32>} : memref<2x49x288xf32, #tpu.memory_space<vmem>>, vector<2x7x32xf32>,
    %182 = vector.extract_strided_slice %163 {offsets = [0, 6, 0, 0], sizes = [2, 1, 7, 32], strides = [1, 1, 1, 1]} : vector<2x7x7x32xf32> to vector<2x1x7x32xf32>
    %183 = vector.shape_cast %182 : vector<2x1x7x32xf32> to vector<2x7x32xf32>
    %c0_167 = arith.constant 0 : index
    %c42_168 = arith.constant 42 : index
    %c96_169 = arith.constant 96 : index
    %184 = vector.load %arg18[%c0_167, %c42_168, %c96_169] : memref<2x49x288xf32, #tpu.memory_space<vmem>>, vector<2x7x32xf32>
    tpu.vector_store %arg18[%c0_167, %c42_168, %c96_169], %183 {strides = array<i32>} : memref<2x49x288xf32, #tpu.memory_space<vmem>>, vector<2x7x32xf32>,
    %c0_170 = arith.constant 0 : index
    %c0_171 = arith.constant 0 : index
    %c1_172 = arith.constant 1 : index
    %c0_173 = arith.constant 0 : index
    %185 = tpu.strided_load %arg17[%c0_170, %c0_171, %c1_172, %c0_173] {strides = array<i32: 1, 1, 2, 1>} : memref<2x8x16x32xf32, #tpu.memory_space<vmem>>, vector<2x7x7x32xf32>
    %186 = vector.extract_strided_slice %185 {offsets = [0, 0, 0, 0], sizes = [2, 1, 7, 32], strides = [1, 1, 1, 1]} : vector<2x7x7x32xf32> to vector<2x1x7x32xf32>
    %187 = vector.shape_cast %186 : vector<2x1x7x32xf32> to vector<2x7x32xf32>
    %c0_174 = arith.constant 0 : index
    %c0_175 = arith.constant 0 : index
    %c128 = arith.constant 128 : index
    %188 = vector.load %arg18[%c0_174, %c0_175, %c128] : memref<2x49x288xf32, #tpu.memory_space<vmem>>, vector<2x7x32xf32>
    tpu.vector_store %arg18[%c0_174, %c0_175, %c128], %187 {strides = array<i32>} : memref<2x49x288xf32, #tpu.memory_space<vmem>>, vector<2x7x32xf32>,
    %189 = vector.extract_strided_slice %185 {offsets = [0, 1, 0, 0], sizes = [2, 1, 7, 32], strides = [1, 1, 1, 1]} : vector<2x7x7x32xf32> to vector<2x1x7x32xf32>
    %190 = vector.shape_cast %189 : vector<2x1x7x32xf32> to vector<2x7x32xf32>
    %c0_176 = arith.constant 0 : index
    %c7_177 = arith.constant 7 : index
    %c128_178 = arith.constant 128 : index
    %191 = vector.load %arg18[%c0_176, %c7_177, %c128_178] : memref<2x49x288xf32, #tpu.memory_space<vmem>>, vector<2x7x32xf32>
    tpu.vector_store %arg18[%c0_176, %c7_177, %c128_178], %190 {strides = array<i32>} : memref<2x49x288xf32, #tpu.memory_space<vmem>>, vector<2x7x32xf32>,
    %192 = vector.extract_strided_slice %185 {offsets = [0, 2, 0, 0], sizes = [2, 1, 7, 32], strides = [1, 1, 1, 1]} : vector<2x7x7x32xf32> to vector<2x1x7x32xf32>
    %193 = vector.shape_cast %192 : vector<2x1x7x32xf32> to vector<2x7x32xf32>
    %c0_179 = arith.constant 0 : index
    %c14_180 = arith.constant 14 : index
    %c128_181 = arith.constant 128 : index
    %194 = vector.load %arg18[%c0_179, %c14_180, %c128_181] : memref<2x49x288xf32, #tpu.memory_space<vmem>>, vector<2x7x32xf32>
    tpu.vector_store %arg18[%c0_179, %c14_180, %c128_181], %193 {strides = array<i32>} : memref<2x49x288xf32, #tpu.memory_space<vmem>>, vector<2x7x32xf32>,
    %195 = vector.extract_strided_slice %185 {offsets = [0, 3, 0, 0], sizes = [2, 1, 7, 32], strides = [1, 1, 1, 1]} : vector<2x7x7x32xf32> to vector<2x1x7x32xf32>
    %196 = vector.shape_cast %195 : vector<2x1x7x32xf32> to vector<2x7x32xf32>
    %c0_182 = arith.constant 0 : index
    %c21_183 = arith.constant 21 : index
    %c128_184 = arith.constant 128 : index
    %197 = vector.load %arg18[%c0_182, %c21_183, %c128_184] : memref<2x49x288xf32, #tpu.memory_space<vmem>>, vector<2x7x32xf32>
    tpu.vector_store %arg18[%c0_182, %c21_183, %c128_184], %196 {strides = array<i32>} : memref<2x49x288xf32, #tpu.memory_space<vmem>>, vector<2x7x32xf32>,
    %198 = vector.extract_strided_slice %185 {offsets = [0, 4, 0, 0], sizes = [2, 1, 7, 32], strides = [1, 1, 1, 1]} : vector<2x7x7x32xf32> to vector<2x1x7x32xf32>
    %199 = vector.shape_cast %198 : vector<2x1x7x32xf32> to vector<2x7x32xf32>
    %c0_185 = arith.constant 0 : index
    %c28_186 = arith.constant 28 : index
    %c128_187 = arith.constant 128 : index
    %200 = vector.load %arg18[%c0_185, %c28_186, %c128_187] : memref<2x49x288xf32, #tpu.memory_space<vmem>>, vector<2x7x32xf32>
    tpu.vector_store %arg18[%c0_185, %c28_186, %c128_187], %199 {strides = array<i32>} : memref<2x49x288xf32, #tpu.memory_space<vmem>>, vector<2x7x32xf32>,
    %201 = vector.extract_strided_slice %185 {offsets = [0, 5, 0, 0], sizes = [2, 1, 7, 32], strides = [1, 1, 1, 1]} : vector<2x7x7x32xf32> to vector<2x1x7x32xf32>
    %202 = vector.shape_cast %201 : vector<2x1x7x32xf32> to vector<2x7x32xf32>
    %c0_188 = arith.constant 0 : index
    %c35_189 = arith.constant 35 : index
    %c128_190 = arith.constant 128 : index
    %203 = vector.load %arg18[%c0_188, %c35_189, %c128_190] : memref<2x49x288xf32, #tpu.memory_space<vmem>>, vector<2x7x32xf32>
    tpu.vector_store %arg18[%c0_188, %c35_189, %c128_190], %202 {strides = array<i32>} : memref<2x49x288xf32, #tpu.memory_space<vmem>>, vector<2x7x32xf32>,
    %204 = vector.extract_strided_slice %185 {offsets = [0, 6, 0, 0], sizes = [2, 1, 7, 32], strides = [1, 1, 1, 1]} : vector<2x7x7x32xf32> to vector<2x1x7x32xf32>
    %205 = vector.shape_cast %204 : vector<2x1x7x32xf32> to vector<2x7x32xf32>
    %c0_191 = arith.constant 0 : index
    %c42_192 = arith.constant 42 : index
    %c128_193 = arith.constant 128 : index
    %206 = vector.load %arg18[%c0_191, %c42_192, %c128_193] : memref<2x49x288xf32, #tpu.memory_space<vmem>>, vector<2x7x32xf32>
    tpu.vector_store %arg18[%c0_191, %c42_192, %c128_193], %205 {strides = array<i32>} : memref<2x49x288xf32, #tpu.memory_space<vmem>>, vector<2x7x32xf32>,
    %c0_194 = arith.constant 0 : index
    %c0_195 = arith.constant 0 : index
    %c2_196 = arith.constant 2 : index
    %c0_197 = arith.constant 0 : index
    %207 = tpu.strided_load %arg17[%c0_194, %c0_195, %c2_196, %c0_197] {strides = array<i32: 1, 1, 2, 1>} : memref<2x8x16x32xf32, #tpu.memory_space<vmem>>, vector<2x7x7x32xf32>
    %208 = vector.extract_strided_slice %207 {offsets = [0, 0, 0, 0], sizes = [2, 1, 7, 32], strides = [1, 1, 1, 1]} : vector<2x7x7x32xf32> to vector<2x1x7x32xf32>
    %209 = vector.shape_cast %208 : vector<2x1x7x32xf32> to vector<2x7x32xf32>
    %c0_198 = arith.constant 0 : index
    %c0_199 = arith.constant 0 : index
    %c160 = arith.constant 160 : index
    %210 = vector.load %arg18[%c0_198, %c0_199, %c160] : memref<2x49x288xf32, #tpu.memory_space<vmem>>, vector<2x7x32xf32>
    tpu.vector_store %arg18[%c0_198, %c0_199, %c160], %209 {strides = array<i32>} : memref<2x49x288xf32, #tpu.memory_space<vmem>>, vector<2x7x32xf32>,
    %211 = vector.extract_strided_slice %207 {offsets = [0, 1, 0, 0], sizes = [2, 1, 7, 32], strides = [1, 1, 1, 1]} : vector<2x7x7x32xf32> to vector<2x1x7x32xf32>
    %212 = vector.shape_cast %211 : vector<2x1x7x32xf32> to vector<2x7x32xf32>
    %c0_200 = arith.constant 0 : index
    %c7_201 = arith.constant 7 : index
    %c160_202 = arith.constant 160 : index
    %213 = vector.load %arg18[%c0_200, %c7_201, %c160_202] : memref<2x49x288xf32, #tpu.memory_space<vmem>>, vector<2x7x32xf32>
    tpu.vector_store %arg18[%c0_200, %c7_201, %c160_202], %212 {strides = array<i32>} : memref<2x49x288xf32, #tpu.memory_space<vmem>>, vector<2x7x32xf32>,
    %214 = vector.extract_strided_slice %207 {offsets = [0, 2, 0, 0], sizes = [2, 1, 7, 32], strides = [1, 1, 1, 1]} : vector<2x7x7x32xf32> to vector<2x1x7x32xf32>
    %215 = vector.shape_cast %214 : vector<2x1x7x32xf32> to vector<2x7x32xf32>
    %c0_203 = arith.constant 0 : index
    %c14_204 = arith.constant 14 : index
    %c160_205 = arith.constant 160 : index
    %216 = vector.load %arg18[%c0_203, %c14_204, %c160_205] : memref<2x49x288xf32, #tpu.memory_space<vmem>>, vector<2x7x32xf32>
    tpu.vector_store %arg18[%c0_203, %c14_204, %c160_205], %215 {strides = array<i32>} : memref<2x49x288xf32, #tpu.memory_space<vmem>>, vector<2x7x32xf32>,
    %217 = vector.extract_strided_slice %207 {offsets = [0, 3, 0, 0], sizes = [2, 1, 7, 32], strides = [1, 1, 1, 1]} : vector<2x7x7x32xf32> to vector<2x1x7x32xf32>
    %218 = vector.shape_cast %217 : vector<2x1x7x32xf32> to vector<2x7x32xf32>
    %c0_206 = arith.constant 0 : index
    %c21_207 = arith.constant 21 : index
    %c160_208 = arith.constant 160 : index
    %219 = vector.load %arg18[%c0_206, %c21_207, %c160_208] : memref<2x49x288xf32, #tpu.memory_space<vmem>>, vector<2x7x32xf32>
    tpu.vector_store %arg18[%c0_206, %c21_207, %c160_208], %218 {strides = array<i32>} : memref<2x49x288xf32, #tpu.memory_space<vmem>>, vector<2x7x32xf32>,
    %220 = vector.extract_strided_slice %207 {offsets = [0, 4, 0, 0], sizes = [2, 1, 7, 32], strides = [1, 1, 1, 1]} : vector<2x7x7x32xf32> to vector<2x1x7x32xf32>
    %221 = vector.shape_cast %220 : vector<2x1x7x32xf32> to vector<2x7x32xf32>
    %c0_209 = arith.constant 0 : index
    %c28_210 = arith.constant 28 : index
    %c160_211 = arith.constant 160 : index
    %222 = vector.load %arg18[%c0_209, %c28_210, %c160_211] : memref<2x49x288xf32, #tpu.memory_space<vmem>>, vector<2x7x32xf32>
    tpu.vector_store %arg18[%c0_209, %c28_210, %c160_211], %221 {strides = array<i32>} : memref<2x49x288xf32, #tpu.memory_space<vmem>>, vector<2x7x32xf32>,
    %223 = vector.extract_strided_slice %207 {offsets = [0, 5, 0, 0], sizes = [2, 1, 7, 32], strides = [1, 1, 1, 1]} : vector<2x7x7x32xf32> to vector<2x1x7x32xf32>
    %224 = vector.shape_cast %223 : vector<2x1x7x32xf32> to vector<2x7x32xf32>
    %c0_212 = arith.constant 0 : index
    %c35_213 = arith.constant 35 : index
    %c160_214 = arith.constant 160 : index
    %225 = vector.load %arg18[%c0_212, %c35_213, %c160_214] : memref<2x49x288xf32, #tpu.memory_space<vmem>>, vector<2x7x32xf32>
    tpu.vector_store %arg18[%c0_212, %c35_213, %c160_214], %224 {strides = array<i32>} : memref<2x49x288xf32, #tpu.memory_space<vmem>>, vector<2x7x32xf32>,
    %226 = vector.extract_strided_slice %207 {offsets = [0, 6, 0, 0], sizes = [2, 1, 7, 32], strides = [1, 1, 1, 1]} : vector<2x7x7x32xf32> to vector<2x1x7x32xf32>
    %227 = vector.shape_cast %226 : vector<2x1x7x32xf32> to vector<2x7x32xf32>
    %c0_215 = arith.constant 0 : index
    %c42_216 = arith.constant 42 : index
    %c160_217 = arith.constant 160 : index
    %228 = vector.load %arg18[%c0_215, %c42_216, %c160_217] : memref<2x49x288xf32, #tpu.memory_space<vmem>>, vector<2x7x32xf32>
    tpu.vector_store %arg18[%c0_215, %c42_216, %c160_217], %227 {strides = array<i32>} : memref<2x49x288xf32, #tpu.memory_space<vmem>>, vector<2x7x32xf32>,
    %c0_218 = arith.constant 0 : index
    %c1_219 = arith.constant 1 : index
    %c0_220 = arith.constant 0 : index
    %c0_221 = arith.constant 0 : index
    %229 = tpu.strided_load %arg16[%c0_218, %c1_219, %c0_220, %c0_221] {strides = array<i32: 1, 1, 2, 1>} : memref<2x8x16x32xf32, #tpu.memory_space<vmem>>, vector<2x7x7x32xf32>
    %230 = vector.extract_strided_slice %229 {offsets = [0, 0, 0, 0], sizes = [2, 1, 7, 32], strides = [1, 1, 1, 1]} : vector<2x7x7x32xf32> to vector<2x1x7x32xf32>
    %231 = vector.shape_cast %230 : vector<2x1x7x32xf32> to vector<2x7x32xf32>
    %c0_222 = arith.constant 0 : index
    %c0_223 = arith.constant 0 : index
    %c192 = arith.constant 192 : index
    %232 = vector.load %arg18[%c0_222, %c0_223, %c192] : memref<2x49x288xf32, #tpu.memory_space<vmem>>, vector<2x7x32xf32>
    tpu.vector_store %arg18[%c0_222, %c0_223, %c192], %231 {strides = array<i32>} : memref<2x49x288xf32, #tpu.memory_space<vmem>>, vector<2x7x32xf32>,
    %233 = vector.extract_strided_slice %229 {offsets = [0, 1, 0, 0], sizes = [2, 1, 7, 32], strides = [1, 1, 1, 1]} : vector<2x7x7x32xf32> to vector<2x1x7x32xf32>
    %234 = vector.shape_cast %233 : vector<2x1x7x32xf32> to vector<2x7x32xf32>
    %c0_224 = arith.constant 0 : index
    %c7_225 = arith.constant 7 : index
    %c192_226 = arith.constant 192 : index
    %235 = vector.load %arg18[%c0_224, %c7_225, %c192_226] : memref<2x49x288xf32, #tpu.memory_space<vmem>>, vector<2x7x32xf32>
    tpu.vector_store %arg18[%c0_224, %c7_225, %c192_226], %234 {strides = array<i32>} : memref<2x49x288xf32, #tpu.memory_space<vmem>>, vector<2x7x32xf32>,
    %236 = vector.extract_strided_slice %229 {offsets = [0, 2, 0, 0], sizes = [2, 1, 7, 32], strides = [1, 1, 1, 1]} : vector<2x7x7x32xf32> to vector<2x1x7x32xf32>
    %237 = vector.shape_cast %236 : vector<2x1x7x32xf32> to vector<2x7x32xf32>
    %c0_227 = arith.constant 0 : index
    %c14_228 = arith.constant 14 : index
    %c192_229 = arith.constant 192 : index
    %238 = vector.load %arg18[%c0_227, %c14_228, %c192_229] : memref<2x49x288xf32, #tpu.memory_space<vmem>>, vector<2x7x32xf32>
    tpu.vector_store %arg18[%c0_227, %c14_228, %c192_229], %237 {strides = array<i32>} : memref<2x49x288xf32, #tpu.memory_space<vmem>>, vector<2x7x32xf32>,
    %239 = vector.extract_strided_slice %229 {offsets = [0, 3, 0, 0], sizes = [2, 1, 7, 32], strides = [1, 1, 1, 1]} : vector<2x7x7x32xf32> to vector<2x1x7x32xf32>
    %240 = vector.shape_cast %239 : vector<2x1x7x32xf32> to vector<2x7x32xf32>
    %c0_230 = arith.constant 0 : index
    %c21_231 = arith.constant 21 : index
    %c192_232 = arith.constant 192 : index
    %241 = vector.load %arg18[%c0_230, %c21_231, %c192_232] : memref<2x49x288xf32, #tpu.memory_space<vmem>>, vector<2x7x32xf32>
    tpu.vector_store %arg18[%c0_230, %c21_231, %c192_232], %240 {strides = array<i32>} : memref<2x49x288xf32, #tpu.memory_space<vmem>>, vector<2x7x32xf32>,
    %242 = vector.extract_strided_slice %229 {offsets = [0, 4, 0, 0], sizes = [2, 1, 7, 32], strides = [1, 1, 1, 1]} : vector<2x7x7x32xf32> to vector<2x1x7x32xf32>
    %243 = vector.shape_cast %242 : vector<2x1x7x32xf32> to vector<2x7x32xf32>
    %c0_233 = arith.constant 0 : index
    %c28_234 = arith.constant 28 : index
    %c192_235 = arith.constant 192 : index
    %244 = vector.load %arg18[%c0_233, %c28_234, %c192_235] : memref<2x49x288xf32, #tpu.memory_space<vmem>>, vector<2x7x32xf32>
    tpu.vector_store %arg18[%c0_233, %c28_234, %c192_235], %243 {strides = array<i32>} : memref<2x49x288xf32, #tpu.memory_space<vmem>>, vector<2x7x32xf32>,
    %245 = vector.extract_strided_slice %229 {offsets = [0, 5, 0, 0], sizes = [2, 1, 7, 32], strides = [1, 1, 1, 1]} : vector<2x7x7x32xf32> to vector<2x1x7x32xf32>
    %246 = vector.shape_cast %245 : vector<2x1x7x32xf32> to vector<2x7x32xf32>
    %c0_236 = arith.constant 0 : index
    %c35_237 = arith.constant 35 : index
    %c192_238 = arith.constant 192 : index
    %247 = vector.load %arg18[%c0_236, %c35_237, %c192_238] : memref<2x49x288xf32, #tpu.memory_space<vmem>>, vector<2x7x32xf32>
    tpu.vector_store %arg18[%c0_236, %c35_237, %c192_238], %246 {strides = array<i32>} : memref<2x49x288xf32, #tpu.memory_space<vmem>>, vector<2x7x32xf32>,
    %248 = vector.extract_strided_slice %229 {offsets = [0, 6, 0, 0], sizes = [2, 1, 7, 32], strides = [1, 1, 1, 1]} : vector<2x7x7x32xf32> to vector<2x1x7x32xf32>
    %249 = vector.shape_cast %248 : vector<2x1x7x32xf32> to vector<2x7x32xf32>
    %c0_239 = arith.constant 0 : index
    %c42_240 = arith.constant 42 : index
    %c192_241 = arith.constant 192 : index
    %250 = vector.load %arg18[%c0_239, %c42_240, %c192_241] : memref<2x49x288xf32, #tpu.memory_space<vmem>>, vector<2x7x32xf32>
    tpu.vector_store %arg18[%c0_239, %c42_240, %c192_241], %249 {strides = array<i32>} : memref<2x49x288xf32, #tpu.memory_space<vmem>>, vector<2x7x32xf32>,
    %c0_242 = arith.constant 0 : index
    %c1_243 = arith.constant 1 : index
    %c1_244 = arith.constant 1 : index
    %c0_245 = arith.constant 0 : index
    %251 = tpu.strided_load %arg16[%c0_242, %c1_243, %c1_244, %c0_245] {strides = array<i32: 1, 1, 2, 1>} : memref<2x8x16x32xf32, #tpu.memory_space<vmem>>, vector<2x7x7x32xf32>
    %252 = vector.extract_strided_slice %251 {offsets = [0, 0, 0, 0], sizes = [2, 1, 7, 32], strides = [1, 1, 1, 1]} : vector<2x7x7x32xf32> to vector<2x1x7x32xf32>
    %253 = vector.shape_cast %252 : vector<2x1x7x32xf32> to vector<2x7x32xf32>
    %c0_246 = arith.constant 0 : index
    %c0_247 = arith.constant 0 : index
    %c224 = arith.constant 224 : index
    %254 = vector.load %arg18[%c0_246, %c0_247, %c224] : memref<2x49x288xf32, #tpu.memory_space<vmem>>, vector<2x7x32xf32>
    tpu.vector_store %arg18[%c0_246, %c0_247, %c224], %253 {strides = array<i32>} : memref<2x49x288xf32, #tpu.memory_space<vmem>>, vector<2x7x32xf32>,
    %255 = vector.extract_strided_slice %251 {offsets = [0, 1, 0, 0], sizes = [2, 1, 7, 32], strides = [1, 1, 1, 1]} : vector<2x7x7x32xf32> to vector<2x1x7x32xf32>
    %256 = vector.shape_cast %255 : vector<2x1x7x32xf32> to vector<2x7x32xf32>
    %c0_248 = arith.constant 0 : index
    %c7_249 = arith.constant 7 : index
    %c224_250 = arith.constant 224 : index
    %257 = vector.load %arg18[%c0_248, %c7_249, %c224_250] : memref<2x49x288xf32, #tpu.memory_space<vmem>>, vector<2x7x32xf32>
    tpu.vector_store %arg18[%c0_248, %c7_249, %c224_250], %256 {strides = array<i32>} : memref<2x49x288xf32, #tpu.memory_space<vmem>>, vector<2x7x32xf32>,
    %258 = vector.extract_strided_slice %251 {offsets = [0, 2, 0, 0], sizes = [2, 1, 7, 32], strides = [1, 1, 1, 1]} : vector<2x7x7x32xf32> to vector<2x1x7x32xf32>
    %259 = vector.shape_cast %258 : vector<2x1x7x32xf32> to vector<2x7x32xf32>
    %c0_251 = arith.constant 0 : index
    %c14_252 = arith.constant 14 : index
    %c224_253 = arith.constant 224 : index
    %260 = vector.load %arg18[%c0_251, %c14_252, %c224_253] : memref<2x49x288xf32, #tpu.memory_space<vmem>>, vector<2x7x32xf32>
    tpu.vector_store %arg18[%c0_251, %c14_252, %c224_253], %259 {strides = array<i32>} : memref<2x49x288xf32, #tpu.memory_space<vmem>>, vector<2x7x32xf32>,
    %261 = vector.extract_strided_slice %251 {offsets = [0, 3, 0, 0], sizes = [2, 1, 7, 32], strides = [1, 1, 1, 1]} : vector<2x7x7x32xf32> to vector<2x1x7x32xf32>
    %262 = vector.shape_cast %261 : vector<2x1x7x32xf32> to vector<2x7x32xf32>
    %c0_254 = arith.constant 0 : index
    %c21_255 = arith.constant 21 : index
    %c224_256 = arith.constant 224 : index
    %263 = vector.load %arg18[%c0_254, %c21_255, %c224_256] : memref<2x49x288xf32, #tpu.memory_space<vmem>>, vector<2x7x32xf32>
    tpu.vector_store %arg18[%c0_254, %c21_255, %c224_256], %262 {strides = array<i32>} : memref<2x49x288xf32, #tpu.memory_space<vmem>>, vector<2x7x32xf32>,
    %264 = vector.extract_strided_slice %251 {offsets = [0, 4, 0, 0], sizes = [2, 1, 7, 32], strides = [1, 1, 1, 1]} : vector<2x7x7x32xf32> to vector<2x1x7x32xf32>
    %265 = vector.shape_cast %264 : vector<2x1x7x32xf32> to vector<2x7x32xf32>
    %c0_257 = arith.constant 0 : index
    %c28_258 = arith.constant 28 : index
    %c224_259 = arith.constant 224 : index
    %266 = vector.load %arg18[%c0_257, %c28_258, %c224_259] : memref<2x49x288xf32, #tpu.memory_space<vmem>>, vector<2x7x32xf32>
    tpu.vector_store %arg18[%c0_257, %c28_258, %c224_259], %265 {strides = array<i32>} : memref<2x49x288xf32, #tpu.memory_space<vmem>>, vector<2x7x32xf32>,
    %267 = vector.extract_strided_slice %251 {offsets = [0, 5, 0, 0], sizes = [2, 1, 7, 32], strides = [1, 1, 1, 1]} : vector<2x7x7x32xf32> to vector<2x1x7x32xf32>
    %268 = vector.shape_cast %267 : vector<2x1x7x32xf32> to vector<2x7x32xf32>
    %c0_260 = arith.constant 0 : index
    %c35_261 = arith.constant 35 : index
    %c224_262 = arith.constant 224 : index
    %269 = vector.load %arg18[%c0_260, %c35_261, %c224_262] : memref<2x49x288xf32, #tpu.memory_space<vmem>>, vector<2x7x32xf32>
    tpu.vector_store %arg18[%c0_260, %c35_261, %c224_262], %268 {strides = array<i32>} : memref<2x49x288xf32, #tpu.memory_space<vmem>>, vector<2x7x32xf32>,
    %270 = vector.extract_strided_slice %251 {offsets = [0, 6, 0, 0], sizes = [2, 1, 7, 32], strides = [1, 1, 1, 1]} : vector<2x7x7x32xf32> to vector<2x1x7x32xf32>
    %271 = vector.shape_cast %270 : vector<2x1x7x32xf32> to vector<2x7x32xf32>
    %c0_263 = arith.constant 0 : index
    %c42_264 = arith.constant 42 : index
    %c224_265 = arith.constant 224 : index
    %272 = vector.load %arg18[%c0_263, %c42_264, %c224_265] : memref<2x49x288xf32, #tpu.memory_space<vmem>>, vector<2x7x32xf32>
    tpu.vector_store %arg18[%c0_263, %c42_264, %c224_265], %271 {strides = array<i32>} : memref<2x49x288xf32, #tpu.memory_space<vmem>>, vector<2x7x32xf32>,
    %c0_266 = arith.constant 0 : index
    %c1_267 = arith.constant 1 : index
    %c2_268 = arith.constant 2 : index
    %c0_269 = arith.constant 0 : index
    %273 = tpu.strided_load %arg16[%c0_266, %c1_267, %c2_268, %c0_269] {strides = array<i32: 1, 1, 2, 1>} : memref<2x8x16x32xf32, #tpu.memory_space<vmem>>, vector<2x7x7x32xf32>
    %274 = vector.extract_strided_slice %273 {offsets = [0, 0, 0, 0], sizes = [2, 1, 7, 32], strides = [1, 1, 1, 1]} : vector<2x7x7x32xf32> to vector<2x1x7x32xf32>
    %275 = vector.shape_cast %274 : vector<2x1x7x32xf32> to vector<2x7x32xf32>
    %c0_270 = arith.constant 0 : index
    %c0_271 = arith.constant 0 : index
    %c256 = arith.constant 256 : index
    %276 = vector.load %arg18[%c0_270, %c0_271, %c256] : memref<2x49x288xf32, #tpu.memory_space<vmem>>, vector<2x7x32xf32>
    tpu.vector_store %arg18[%c0_270, %c0_271, %c256], %275 {strides = array<i32>} : memref<2x49x288xf32, #tpu.memory_space<vmem>>, vector<2x7x32xf32>,
    %277 = vector.extract_strided_slice %273 {offsets = [0, 1, 0, 0], sizes = [2, 1, 7, 32], strides = [1, 1, 1, 1]} : vector<2x7x7x32xf32> to vector<2x1x7x32xf32>
    %278 = vector.shape_cast %277 : vector<2x1x7x32xf32> to vector<2x7x32xf32>
    %c0_272 = arith.constant 0 : index
    %c7_273 = arith.constant 7 : index
    %c256_274 = arith.constant 256 : index
    %279 = vector.load %arg18[%c0_272, %c7_273, %c256_274] : memref<2x49x288xf32, #tpu.memory_space<vmem>>, vector<2x7x32xf32>
    tpu.vector_store %arg18[%c0_272, %c7_273, %c256_274], %278 {strides = array<i32>} : memref<2x49x288xf32, #tpu.memory_space<vmem>>, vector<2x7x32xf32>,
    %280 = vector.extract_strided_slice %273 {offsets = [0, 2, 0, 0], sizes = [2, 1, 7, 32], strides = [1, 1, 1, 1]} : vector<2x7x7x32xf32> to vector<2x1x7x32xf32>
    %281 = vector.shape_cast %280 : vector<2x1x7x32xf32> to vector<2x7x32xf32>
    %c0_275 = arith.constant 0 : index
    %c14_276 = arith.constant 14 : index
    %c256_277 = arith.constant 256 : index
    %282 = vector.load %arg18[%c0_275, %c14_276, %c256_277] : memref<2x49x288xf32, #tpu.memory_space<vmem>>, vector<2x7x32xf32>
    tpu.vector_store %arg18[%c0_275, %c14_276, %c256_277], %281 {strides = array<i32>} : memref<2x49x288xf32, #tpu.memory_space<vmem>>, vector<2x7x32xf32>,
    %283 = vector.extract_strided_slice %273 {offsets = [0, 3, 0, 0], sizes = [2, 1, 7, 32], strides = [1, 1, 1, 1]} : vector<2x7x7x32xf32> to vector<2x1x7x32xf32>
    %284 = vector.shape_cast %283 : vector<2x1x7x32xf32> to vector<2x7x32xf32>
    %c0_278 = arith.constant 0 : index
    %c21_279 = arith.constant 21 : index
    %c256_280 = arith.constant 256 : index
    %285 = vector.load %arg18[%c0_278, %c21_279, %c256_280] : memref<2x49x288xf32, #tpu.memory_space<vmem>>, vector<2x7x32xf32>
    tpu.vector_store %arg18[%c0_278, %c21_279, %c256_280], %284 {strides = array<i32>} : memref<2x49x288xf32, #tpu.memory_space<vmem>>, vector<2x7x32xf32>,
    %286 = vector.extract_strided_slice %273 {offsets = [0, 4, 0, 0], sizes = [2, 1, 7, 32], strides = [1, 1, 1, 1]} : vector<2x7x7x32xf32> to vector<2x1x7x32xf32>
    %287 = vector.shape_cast %286 : vector<2x1x7x32xf32> to vector<2x7x32xf32>
    %c0_281 = arith.constant 0 : index
    %c28_282 = arith.constant 28 : index
    %c256_283 = arith.constant 256 : index
    %288 = vector.load %arg18[%c0_281, %c28_282, %c256_283] : memref<2x49x288xf32, #tpu.memory_space<vmem>>, vector<2x7x32xf32>
    tpu.vector_store %arg18[%c0_281, %c28_282, %c256_283], %287 {strides = array<i32>} : memref<2x49x288xf32, #tpu.memory_space<vmem>>, vector<2x7x32xf32>,
    %289 = vector.extract_strided_slice %273 {offsets = [0, 5, 0, 0], sizes = [2, 1, 7, 32], strides = [1, 1, 1, 1]} : vector<2x7x7x32xf32> to vector<2x1x7x32xf32>
    %290 = vector.shape_cast %289 : vector<2x1x7x32xf32> to vector<2x7x32xf32>
    %c0_284 = arith.constant 0 : index
    %c35_285 = arith.constant 35 : index
    %c256_286 = arith.constant 256 : index
    %291 = vector.load %arg18[%c0_284, %c35_285, %c256_286] : memref<2x49x288xf32, #tpu.memory_space<vmem>>, vector<2x7x32xf32>
    tpu.vector_store %arg18[%c0_284, %c35_285, %c256_286], %290 {strides = array<i32>} : memref<2x49x288xf32, #tpu.memory_space<vmem>>, vector<2x7x32xf32>,
    %292 = vector.extract_strided_slice %273 {offsets = [0, 6, 0, 0], sizes = [2, 1, 7, 32], strides = [1, 1, 1, 1]} : vector<2x7x7x32xf32> to vector<2x1x7x32xf32>
    %293 = vector.shape_cast %292 : vector<2x1x7x32xf32> to vector<2x7x32xf32>
    %c0_287 = arith.constant 0 : index
    %c42_288 = arith.constant 42 : index
    %c256_289 = arith.constant 256 : index
    %294 = vector.load %arg18[%c0_287, %c42_288, %c256_289] : memref<2x49x288xf32, #tpu.memory_space<vmem>>, vector<2x7x32xf32>
    tpu.vector_store %arg18[%c0_287, %c42_288, %c256_289], %293 {strides = array<i32>} : memref<2x49x288xf32, #tpu.memory_space<vmem>>, vector<2x7x32xf32>,
    %c0_290 = arith.constant 0 : index
    %c0_291 = arith.constant 0 : index
    %295 = vector.load %arg3[%c0_290, %c0_291] : memref<288x64xf32, #tpu.memory_space<vmem>>, vector<288x64xf32>
    %c0_292 = arith.constant 0 : index
    %c0_293 = arith.constant 0 : index
    %296 = vector.load %arg4[%c0_292, %c0_293] : memref<1x64xf32, #tpu.memory_space<vmem>>, vector<1x64xf32>
    %c0_294 = arith.constant 0 : index
    %c0_295 = arith.constant 0 : index
    %c0_296 = arith.constant 0 : index
    %297 = vector.load %arg18[%c0_294, %c0_295, %c0_296] : memref<2x49x288xf32, #tpu.memory_space<vmem>>, vector<1x49x288xf32>
    %298 = vector.shape_cast %297 : vector<1x49x288xf32> to vector<49x288xf32>
    %cst_297 = arith.constant dense<0.000000e+00> : vector<49x64xf32>
    %299 = tpu.matmul %298, %295, %cst_297 {dimension_numbers = #tpu.dot_dimension_numbers<[1], [0], [0], [1], [0, 0, 1, 1], [], []>} : vector<49x288xf32>, vector<288x64xf32>, vector<49x64xf32> -> vector<49x64xf32>
    %300 = vector.broadcast %296 : vector<1x64xf32> to vector<49x64xf32>
    %301 = arith.addf %299, %300 : vector<49x64xf32>
    %c0_298 = arith.constant 0 : index
    %c0_299 = arith.constant 0 : index
    %c0_300 = arith.constant 0 : index
    %302 = vector.load %arg19[%c0_298, %c0_299, %c0_300] : memref<2x49x64xf32, #tpu.memory_space<vmem>>, vector<1x49x64xf32>
    %303 = vector.shape_cast %302 : vector<1x49x64xf32> to vector<49x64xf32>
    %304 = vector.shape_cast %301 : vector<49x64xf32> to vector<1x49x64xf32>
    tpu.vector_store %arg19[%c0_298, %c0_299, %c0_300], %304 {strides = array<i32>} : memref<2x49x64xf32, #tpu.memory_space<vmem>>, vector<1x49x64xf32>,
    %c1_301 = arith.constant 1 : index
    %c0_302 = arith.constant 0 : index
    %c0_303 = arith.constant 0 : index
    %305 = vector.load %arg18[%c1_301, %c0_302, %c0_303] : memref<2x49x288xf32, #tpu.memory_space<vmem>>, vector<1x49x288xf32>
    %306 = vector.shape_cast %305 : vector<1x49x288xf32> to vector<49x288xf32>
    %cst_304 = arith.constant dense<0.000000e+00> : vector<49x64xf32>
    %307 = tpu.matmul %306, %295, %cst_304 {dimension_numbers = #tpu.dot_dimension_numbers<[1], [0], [0], [1], [0, 0, 1, 1], [], []>} : vector<49x288xf32>, vector<288x64xf32>, vector<49x64xf32> -> vector<49x64xf32>
    %308 = vector.broadcast %296 : vector<1x64xf32> to vector<49x64xf32>
    %309 = arith.addf %307, %308 : vector<49x64xf32>
    %c1_305 = arith.constant 1 : index
    %c0_306 = arith.constant 0 : index
    %c0_307 = arith.constant 0 : index
    %310 = vector.load %arg19[%c1_305, %c0_306, %c0_307] : memref<2x49x64xf32, #tpu.memory_space<vmem>>, vector<1x49x64xf32>
    %311 = vector.shape_cast %310 : vector<1x49x64xf32> to vector<49x64xf32>
    %312 = vector.shape_cast %309 : vector<49x64xf32> to vector<1x49x64xf32>
    tpu.vector_store %arg19[%c1_305, %c0_306, %c0_307], %312 {strides = array<i32>} : memref<2x49x64xf32, #tpu.memory_space<vmem>>, vector<1x49x64xf32>,
    %c0_308 = arith.constant 0 : index
    %c0_309 = arith.constant 0 : index
    %c0_310 = arith.constant 0 : index
    %313 = vector.load %arg19[%c0_308, %c0_309, %c0_310] : memref<2x49x64xf32, #tpu.memory_space<vmem>>, vector<2x49x64xf32>
    %c0_311 = arith.constant 0 : index
    %c0_312 = arith.constant 0 : index
    %314 = vector.load %arg5[%c0_311, %c0_312] : memref<1x64xf32, #tpu.memory_space<vmem>>, vector<1x64xf32>
    %c0_313 = arith.constant 0 : index
    %c0_314 = arith.constant 0 : index
    %315 = vector.load %arg6[%c0_313, %c0_314] : memref<1x64xf32, #tpu.memory_space<vmem>>, vector<1x64xf32>
    %cst_315 = arith.constant dense<0.000000e+00> : vector<49x64xf32>
    %316 = vector.multi_reduction <add>, %313, %cst_315 [0] : vector<2x49x64xf32> to vector<49x64xf32>
    %317 = vector.shape_cast %316 : vector<49x64xf32> to vector<1x49x64xf32>
    %cst_316 = arith.constant dense<0.000000e+00> : vector<1x64xf32>
    %318 = vector.multi_reduction <add>, %317, %cst_316 [1] : vector<1x49x64xf32> to vector<1x64xf32>
    %319 = vector.shape_cast %318 : vector<1x64xf32> to vector<1x1x64xf32>
    %cst_317 = arith.constant 9.800000e+01 : f32
    %320 = vector.broadcast %cst_317 : f32 to vector<1x1x64xf32>
    %321 = arith.divf %319, %320 : vector<1x1x64xf32>
    %322 = vector.broadcast %321 : vector<1x1x64xf32> to vector<2x49x64xf32>
    %323 = arith.subf %313, %322 : vector<2x49x64xf32>
    %324 = vector.broadcast %321 : vector<1x1x64xf32> to vector<2x49x64xf32>
    %325 = arith.subf %313, %324 : vector<2x49x64xf32>
    %326 = arith.mulf %323, %325 : vector<2x49x64xf32>
    %cst_318 = arith.constant dense<0.000000e+00> : vector<49x64xf32>
    %327 = vector.multi_reduction <add>, %326, %cst_318 [0] : vector<2x49x64xf32> to vector<49x64xf32>
    %328 = vector.shape_cast %327 : vector<49x64xf32> to vector<1x49x64xf32>
    %cst_319 = arith.constant dense<0.000000e+00> : vector<1x64xf32>
    %329 = vector.multi_reduction <add>, %328, %cst_319 [1] : vector<1x49x64xf32> to vector<1x64xf32>
    %330 = vector.shape_cast %329 : vector<1x64xf32> to vector<1x1x64xf32>
    %cst_320 = arith.constant 9.800000e+01 : f32
    %331 = vector.broadcast %cst_320 : f32 to vector<1x1x64xf32>
    %332 = arith.divf %330, %331 : vector<1x1x64xf32>
    %cst_321 = arith.constant 9.99999974E-6 : f32
    %333 = vector.broadcast %cst_321 : f32 to vector<1x1x64xf32>
    %334 = arith.addf %332, %333 : vector<1x1x64xf32>
    %335 = math.rsqrt %334 : vector<1x1x64xf32>
    %336 = vector.shape_cast %314 : vector<1x64xf32> to vector<1x1x64xf32>
    %337 = arith.mulf %335, %336 : vector<1x1x64xf32>
    %338 = arith.mulf %321, %337 : vector<1x1x64xf32>
    %339 = vector.shape_cast %315 : vector<1x64xf32> to vector<1x1x64xf32>
    %340 = arith.subf %339, %338 : vector<1x1x64xf32>
    %341 = vector.broadcast %337 : vector<1x1x64xf32> to vector<2x49x64xf32>
    %342 = arith.mulf %313, %341 : vector<2x49x64xf32>
    %343 = vector.broadcast %340 : vector<1x1x64xf32> to vector<2x49x64xf32>
    %344 = arith.addf %342, %343 : vector<2x49x64xf32>
    %cst_322 = arith.constant 0.000000e+00 : f32
    %345 = vector.broadcast %cst_322 : f32 to vector<2x49x64xf32>
    %346 = arith.cmpf ogt, %344, %345 : vector<2x49x64xf32>
    %cst_323 = arith.constant 0.00999999977 : f32
    %347 = vector.broadcast %cst_323 : f32 to vector<2x49x64xf32>
    %348 = arith.mulf %347, %344 : vector<2x49x64xf32>
    %349 = arith.select %346, %344, %348 : vector<2x49x64xi1>, vector<2x49x64xf32>
    %c0_324 = arith.constant 0 : index
    %c0_325 = arith.constant 0 : index
    %c0_326 = arith.constant 0 : index
    %350 = vector.load %arg19[%c0_324, %c0_325, %c0_326] : memref<2x49x64xf32, #tpu.memory_space<vmem>>, vector<2x49x64xf32>
    tpu.vector_store %arg19[%c0_324, %c0_325, %c0_326], %349 {strides = array<i32>} : memref<2x49x64xf32, #tpu.memory_space<vmem>>, vector<2x49x64xf32>,
    %c0_327 = arith.constant 0 : index
    %c0_328 = arith.constant 0 : index
    %c0_329 = arith.constant 0 : index
    %351 = vector.load %arg19[%c0_327, %c0_328, %c0_329] : memref<2x49x64xf32, #tpu.memory_space<vmem>>, vector<2x7x64xf32>
    %c0_330 = arith.constant 0 : index
    %c0_331 = arith.constant 0 : index
    %c0_332 = arith.constant 0 : index
    %c0_333 = arith.constant 0 : index
    %352 = vector.load %arg20[%c0_330, %c0_331, %c0_332, %c0_333] : memref<2x4x7x64xf32, #tpu.memory_space<vmem>>, vector<2x1x7x64xf32>
    %353 = vector.shape_cast %352 : vector<2x1x7x64xf32> to vector<2x7x64xf32>
    %354 = vector.shape_cast %351 : vector<2x7x64xf32> to vector<2x1x7x64xf32>
    tpu.vector_store %arg20[%c0_330, %c0_331, %c0_332, %c0_333], %354 {strides = array<i32>} : memref<2x4x7x64xf32, #tpu.memory_space<vmem>>, vector<2x1x7x64xf32>,
    %c0_334 = arith.constant 0 : index
    %c7_335 = arith.constant 7 : index
    %c0_336 = arith.constant 0 : index
    %355 = vector.load %arg19[%c0_334, %c7_335, %c0_336] : memref<2x49x64xf32, #tpu.memory_space<vmem>>, vector<2x7x64xf32>
    %c0_337 = arith.constant 0 : index
    %c0_338 = arith.constant 0 : index
    %c0_339 = arith.constant 0 : index
    %c0_340 = arith.constant 0 : index
    %356 = vector.load %arg21[%c0_337, %c0_338, %c0_339, %c0_340] : memref<2x3x7x64xf32, #tpu.memory_space<vmem>>, vector<2x1x7x64xf32>
    %357 = vector.shape_cast %356 : vector<2x1x7x64xf32> to vector<2x7x64xf32>
    %358 = vector.shape_cast %355 : vector<2x7x64xf32> to vector<2x1x7x64xf32>
    tpu.vector_store %arg21[%c0_337, %c0_338, %c0_339, %c0_340], %358 {strides = array<i32>} : memref<2x3x7x64xf32, #tpu.memory_space<vmem>>, vector<2x1x7x64xf32>,
    %c0_341 = arith.constant 0 : index
    %c14_342 = arith.constant 14 : index
    %c0_343 = arith.constant 0 : index
    %359 = vector.load %arg19[%c0_341, %c14_342, %c0_343] : memref<2x49x64xf32, #tpu.memory_space<vmem>>, vector<2x7x64xf32>
    %c0_344 = arith.constant 0 : index
    %c1_345 = arith.constant 1 : index
    %c0_346 = arith.constant 0 : index
    %c0_347 = arith.constant 0 : index
    %360 = vector.load %arg20[%c0_344, %c1_345, %c0_346, %c0_347] : memref<2x4x7x64xf32, #tpu.memory_space<vmem>>, vector<2x1x7x64xf32>
    %361 = vector.shape_cast %360 : vector<2x1x7x64xf32> to vector<2x7x64xf32>
    %362 = vector.shape_cast %359 : vector<2x7x64xf32> to vector<2x1x7x64xf32>
    tpu.vector_store %arg20[%c0_344, %c1_345, %c0_346, %c0_347], %362 {strides = array<i32>} : memref<2x4x7x64xf32, #tpu.memory_space<vmem>>, vector<2x1x7x64xf32>,
    %c0_348 = arith.constant 0 : index
    %c21_349 = arith.constant 21 : index
    %c0_350 = arith.constant 0 : index
    %363 = vector.load %arg19[%c0_348, %c21_349, %c0_350] : memref<2x49x64xf32, #tpu.memory_space<vmem>>, vector<2x7x64xf32>
    %c0_351 = arith.constant 0 : index
    %c1_352 = arith.constant 1 : index
    %c0_353 = arith.constant 0 : index
    %c0_354 = arith.constant 0 : index
    %364 = vector.load %arg21[%c0_351, %c1_352, %c0_353, %c0_354] : memref<2x3x7x64xf32, #tpu.memory_space<vmem>>, vector<2x1x7x64xf32>
    %365 = vector.shape_cast %364 : vector<2x1x7x64xf32> to vector<2x7x64xf32>
    %366 = vector.shape_cast %363 : vector<2x7x64xf32> to vector<2x1x7x64xf32>
    tpu.vector_store %arg21[%c0_351, %c1_352, %c0_353, %c0_354], %366 {strides = array<i32>} : memref<2x3x7x64xf32, #tpu.memory_space<vmem>>, vector<2x1x7x64xf32>,
    %c0_355 = arith.constant 0 : index
    %c28_356 = arith.constant 28 : index
    %c0_357 = arith.constant 0 : index
    %367 = vector.load %arg19[%c0_355, %c28_356, %c0_357] : memref<2x49x64xf32, #tpu.memory_space<vmem>>, vector<2x7x64xf32>
    %c0_358 = arith.constant 0 : index
    %c2_359 = arith.constant 2 : index
    %c0_360 = arith.constant 0 : index
    %c0_361 = arith.constant 0 : index
    %368 = vector.load %arg20[%c0_358, %c2_359, %c0_360, %c0_361] : memref<2x4x7x64xf32, #tpu.memory_space<vmem>>, vector<2x1x7x64xf32>
    %369 = vector.shape_cast %368 : vector<2x1x7x64xf32> to vector<2x7x64xf32>
    %370 = vector.shape_cast %367 : vector<2x7x64xf32> to vector<2x1x7x64xf32>
    tpu.vector_store %arg20[%c0_358, %c2_359, %c0_360, %c0_361], %370 {strides = array<i32>} : memref<2x4x7x64xf32, #tpu.memory_space<vmem>>, vector<2x1x7x64xf32>,
    %c0_362 = arith.constant 0 : index
    %c35_363 = arith.constant 35 : index
    %c0_364 = arith.constant 0 : index
    %371 = vector.load %arg19[%c0_362, %c35_363, %c0_364] : memref<2x49x64xf32, #tpu.memory_space<vmem>>, vector<2x7x64xf32>
    %c0_365 = arith.constant 0 : index
    %c2_366 = arith.constant 2 : index
    %c0_367 = arith.constant 0 : index
    %c0_368 = arith.constant 0 : index
    %372 = vector.load %arg21[%c0_365, %c2_366, %c0_367, %c0_368] : memref<2x3x7x64xf32, #tpu.memory_space<vmem>>, vector<2x1x7x64xf32>
    %373 = vector.shape_cast %372 : vector<2x1x7x64xf32> to vector<2x7x64xf32>
    %374 = vector.shape_cast %371 : vector<2x7x64xf32> to vector<2x1x7x64xf32>
    tpu.vector_store %arg21[%c0_365, %c2_366, %c0_367, %c0_368], %374 {strides = array<i32>} : memref<2x3x7x64xf32, #tpu.memory_space<vmem>>, vector<2x1x7x64xf32>,
    %c0_369 = arith.constant 0 : index
    %c42_370 = arith.constant 42 : index
    %c0_371 = arith.constant 0 : index
    %375 = vector.load %arg19[%c0_369, %c42_370, %c0_371] : memref<2x49x64xf32, #tpu.memory_space<vmem>>, vector<2x7x64xf32>
    %c0_372 = arith.constant 0 : index
    %c3 = arith.constant 3 : index
    %c0_373 = arith.constant 0 : index
    %c0_374 = arith.constant 0 : index
    %376 = vector.load %arg20[%c0_372, %c3, %c0_373, %c0_374] : memref<2x4x7x64xf32, #tpu.memory_space<vmem>>, vector<2x1x7x64xf32>
    %377 = vector.shape_cast %376 : vector<2x1x7x64xf32> to vector<2x7x64xf32>
    %378 = vector.shape_cast %375 : vector<2x7x64xf32> to vector<2x1x7x64xf32>
    tpu.vector_store %arg20[%c0_372, %c3, %c0_373, %c0_374], %378 {strides = array<i32>} : memref<2x4x7x64xf32, #tpu.memory_space<vmem>>, vector<2x1x7x64xf32>,
    %c0_375 = arith.constant 0 : index
    %c0_376 = arith.constant 0 : index
    %c0_377 = arith.constant 0 : index
    %c0_378 = arith.constant 0 : index
    %379 = tpu.strided_load %arg20[%c0_375, %c0_376, %c0_377, %c0_378] {strides = array<i32: 1, 1, 2, 1>} : memref<2x4x7x64xf32, #tpu.memory_space<vmem>>, vector<2x3x3x64xf32>
    %380 = vector.extract_strided_slice %379 {offsets = [0, 0, 0, 0], sizes = [2, 1, 3, 64], strides = [1, 1, 1, 1]} : vector<2x3x3x64xf32> to vector<2x1x3x64xf32>
    %381 = vector.shape_cast %380 : vector<2x1x3x64xf32> to vector<2x3x64xf32>
    %c0_379 = arith.constant 0 : index
    %c0_380 = arith.constant 0 : index
    %c0_381 = arith.constant 0 : index
    %382 = vector.load %arg22[%c0_379, %c0_380, %c0_381] : memref<2x9x576xf32, #tpu.memory_space<vmem>>, vector<2x3x64xf32>
    tpu.vector_store %arg22[%c0_379, %c0_380, %c0_381], %381 {strides = array<i32>} : memref<2x9x576xf32, #tpu.memory_space<vmem>>, vector<2x3x64xf32>,
    %383 = vector.extract_strided_slice %379 {offsets = [0, 1, 0, 0], sizes = [2, 1, 3, 64], strides = [1, 1, 1, 1]} : vector<2x3x3x64xf32> to vector<2x1x3x64xf32>
    %384 = vector.shape_cast %383 : vector<2x1x3x64xf32> to vector<2x3x64xf32>
    %c0_382 = arith.constant 0 : index
    %c3_383 = arith.constant 3 : index
    %c0_384 = arith.constant 0 : index
    %385 = vector.load %arg22[%c0_382, %c3_383, %c0_384] : memref<2x9x576xf32, #tpu.memory_space<vmem>>, vector<2x3x64xf32>
    tpu.vector_store %arg22[%c0_382, %c3_383, %c0_384], %384 {strides = array<i32>} : memref<2x9x576xf32, #tpu.memory_space<vmem>>, vector<2x3x64xf32>,
    %386 = vector.extract_strided_slice %379 {offsets = [0, 2, 0, 0], sizes = [2, 1, 3, 64], strides = [1, 1, 1, 1]} : vector<2x3x3x64xf32> to vector<2x1x3x64xf32>
    %387 = vector.shape_cast %386 : vector<2x1x3x64xf32> to vector<2x3x64xf32>
    %c0_385 = arith.constant 0 : index
    %c6 = arith.constant 6 : index
    %c0_386 = arith.constant 0 : index
    %388 = vector.load %arg22[%c0_385, %c6, %c0_386] : memref<2x9x576xf32, #tpu.memory_space<vmem>>, vector<2x3x64xf32>
    tpu.vector_store %arg22[%c0_385, %c6, %c0_386], %387 {strides = array<i32>} : memref<2x9x576xf32, #tpu.memory_space<vmem>>, vector<2x3x64xf32>,
    %c0_387 = arith.constant 0 : index
    %c0_388 = arith.constant 0 : index
    %c1_389 = arith.constant 1 : index
    %c0_390 = arith.constant 0 : index
    %389 = tpu.strided_load %arg20[%c0_387, %c0_388, %c1_389, %c0_390] {strides = array<i32: 1, 1, 2, 1>} : memref<2x4x7x64xf32, #tpu.memory_space<vmem>>, vector<2x3x3x64xf32>
    %390 = vector.extract_strided_slice %389 {offsets = [0, 0, 0, 0], sizes = [2, 1, 3, 64], strides = [1, 1, 1, 1]} : vector<2x3x3x64xf32> to vector<2x1x3x64xf32>
    %391 = vector.shape_cast %390 : vector<2x1x3x64xf32> to vector<2x3x64xf32>
    %c0_391 = arith.constant 0 : index
    %c0_392 = arith.constant 0 : index
    %c64_393 = arith.constant 64 : index
    %392 = vector.load %arg22[%c0_391, %c0_392, %c64_393] : memref<2x9x576xf32, #tpu.memory_space<vmem>>, vector<2x3x64xf32>
    tpu.vector_store %arg22[%c0_391, %c0_392, %c64_393], %391 {strides = array<i32>} : memref<2x9x576xf32, #tpu.memory_space<vmem>>, vector<2x3x64xf32>,
    %393 = vector.extract_strided_slice %389 {offsets = [0, 1, 0, 0], sizes = [2, 1, 3, 64], strides = [1, 1, 1, 1]} : vector<2x3x3x64xf32> to vector<2x1x3x64xf32>
    %394 = vector.shape_cast %393 : vector<2x1x3x64xf32> to vector<2x3x64xf32>
    %c0_394 = arith.constant 0 : index
    %c3_395 = arith.constant 3 : index
    %c64_396 = arith.constant 64 : index
    %395 = vector.load %arg22[%c0_394, %c3_395, %c64_396] : memref<2x9x576xf32, #tpu.memory_space<vmem>>, vector<2x3x64xf32>
    tpu.vector_store %arg22[%c0_394, %c3_395, %c64_396], %394 {strides = array<i32>} : memref<2x9x576xf32, #tpu.memory_space<vmem>>, vector<2x3x64xf32>,
    %396 = vector.extract_strided_slice %389 {offsets = [0, 2, 0, 0], sizes = [2, 1, 3, 64], strides = [1, 1, 1, 1]} : vector<2x3x3x64xf32> to vector<2x1x3x64xf32>
    %397 = vector.shape_cast %396 : vector<2x1x3x64xf32> to vector<2x3x64xf32>
    %c0_397 = arith.constant 0 : index
    %c6_398 = arith.constant 6 : index
    %c64_399 = arith.constant 64 : index
    %398 = vector.load %arg22[%c0_397, %c6_398, %c64_399] : memref<2x9x576xf32, #tpu.memory_space<vmem>>, vector<2x3x64xf32>
    tpu.vector_store %arg22[%c0_397, %c6_398, %c64_399], %397 {strides = array<i32>} : memref<2x9x576xf32, #tpu.memory_space<vmem>>, vector<2x3x64xf32>,
    %c0_400 = arith.constant 0 : index
    %c0_401 = arith.constant 0 : index
    %c2_402 = arith.constant 2 : index
    %c0_403 = arith.constant 0 : index
    %399 = tpu.strided_load %arg20[%c0_400, %c0_401, %c2_402, %c0_403] {strides = array<i32: 1, 1, 2, 1>} : memref<2x4x7x64xf32, #tpu.memory_space<vmem>>, vector<2x3x3x64xf32>
    %400 = vector.extract_strided_slice %399 {offsets = [0, 0, 0, 0], sizes = [2, 1, 3, 64], strides = [1, 1, 1, 1]} : vector<2x3x3x64xf32> to vector<2x1x3x64xf32>
    %401 = vector.shape_cast %400 : vector<2x1x3x64xf32> to vector<2x3x64xf32>
    %c0_404 = arith.constant 0 : index
    %c0_405 = arith.constant 0 : index
    %c128_406 = arith.constant 128 : index
    %402 = vector.load %arg22[%c0_404, %c0_405, %c128_406] : memref<2x9x576xf32, #tpu.memory_space<vmem>>, vector<2x3x64xf32>
    tpu.vector_store %arg22[%c0_404, %c0_405, %c128_406], %401 {strides = array<i32>} : memref<2x9x576xf32, #tpu.memory_space<vmem>>, vector<2x3x64xf32>,
    %403 = vector.extract_strided_slice %399 {offsets = [0, 1, 0, 0], sizes = [2, 1, 3, 64], strides = [1, 1, 1, 1]} : vector<2x3x3x64xf32> to vector<2x1x3x64xf32>
    %404 = vector.shape_cast %403 : vector<2x1x3x64xf32> to vector<2x3x64xf32>
    %c0_407 = arith.constant 0 : index
    %c3_408 = arith.constant 3 : index
    %c128_409 = arith.constant 128 : index
    %405 = vector.load %arg22[%c0_407, %c3_408, %c128_409] : memref<2x9x576xf32, #tpu.memory_space<vmem>>, vector<2x3x64xf32>
    tpu.vector_store %arg22[%c0_407, %c3_408, %c128_409], %404 {strides = array<i32>} : memref<2x9x576xf32, #tpu.memory_space<vmem>>, vector<2x3x64xf32>,
    %406 = vector.extract_strided_slice %399 {offsets = [0, 2, 0, 0], sizes = [2, 1, 3, 64], strides = [1, 1, 1, 1]} : vector<2x3x3x64xf32> to vector<2x1x3x64xf32>
    %407 = vector.shape_cast %406 : vector<2x1x3x64xf32> to vector<2x3x64xf32>
    %c0_410 = arith.constant 0 : index
    %c6_411 = arith.constant 6 : index
    %c128_412 = arith.constant 128 : index
    %408 = vector.load %arg22[%c0_410, %c6_411, %c128_412] : memref<2x9x576xf32, #tpu.memory_space<vmem>>, vector<2x3x64xf32>
    tpu.vector_store %arg22[%c0_410, %c6_411, %c128_412], %407 {strides = array<i32>} : memref<2x9x576xf32, #tpu.memory_space<vmem>>, vector<2x3x64xf32>,
    %c0_413 = arith.constant 0 : index
    %c0_414 = arith.constant 0 : index
    %c0_415 = arith.constant 0 : index
    %c0_416 = arith.constant 0 : index
    %409 = tpu.strided_load %arg21[%c0_413, %c0_414, %c0_415, %c0_416] {strides = array<i32: 1, 1, 2, 1>} : memref<2x3x7x64xf32, #tpu.memory_space<vmem>>, vector<2x3x3x64xf32>
    %410 = vector.extract_strided_slice %409 {offsets = [0, 0, 0, 0], sizes = [2, 1, 3, 64], strides = [1, 1, 1, 1]} : vector<2x3x3x64xf32> to vector<2x1x3x64xf32>
    %411 = vector.shape_cast %410 : vector<2x1x3x64xf32> to vector<2x3x64xf32>
    %c0_417 = arith.constant 0 : index
    %c0_418 = arith.constant 0 : index
    %c192_419 = arith.constant 192 : index
    %412 = vector.load %arg22[%c0_417, %c0_418, %c192_419] : memref<2x9x576xf32, #tpu.memory_space<vmem>>, vector<2x3x64xf32>
    tpu.vector_store %arg22[%c0_417, %c0_418, %c192_419], %411 {strides = array<i32>} : memref<2x9x576xf32, #tpu.memory_space<vmem>>, vector<2x3x64xf32>,
    %413 = vector.extract_strided_slice %409 {offsets = [0, 1, 0, 0], sizes = [2, 1, 3, 64], strides = [1, 1, 1, 1]} : vector<2x3x3x64xf32> to vector<2x1x3x64xf32>
    %414 = vector.shape_cast %413 : vector<2x1x3x64xf32> to vector<2x3x64xf32>
    %c0_420 = arith.constant 0 : index
    %c3_421 = arith.constant 3 : index
    %c192_422 = arith.constant 192 : index
    %415 = vector.load %arg22[%c0_420, %c3_421, %c192_422] : memref<2x9x576xf32, #tpu.memory_space<vmem>>, vector<2x3x64xf32>
    tpu.vector_store %arg22[%c0_420, %c3_421, %c192_422], %414 {strides = array<i32>} : memref<2x9x576xf32, #tpu.memory_space<vmem>>, vector<2x3x64xf32>,
    %416 = vector.extract_strided_slice %409 {offsets = [0, 2, 0, 0], sizes = [2, 1, 3, 64], strides = [1, 1, 1, 1]} : vector<2x3x3x64xf32> to vector<2x1x3x64xf32>
    %417 = vector.shape_cast %416 : vector<2x1x3x64xf32> to vector<2x3x64xf32>
    %c0_423 = arith.constant 0 : index
    %c6_424 = arith.constant 6 : index
    %c192_425 = arith.constant 192 : index
    %418 = vector.load %arg22[%c0_423, %c6_424, %c192_425] : memref<2x9x576xf32, #tpu.memory_space<vmem>>, vector<2x3x64xf32>
    tpu.vector_store %arg22[%c0_423, %c6_424, %c192_425], %417 {strides = array<i32>} : memref<2x9x576xf32, #tpu.memory_space<vmem>>, vector<2x3x64xf32>,
    %c0_426 = arith.constant 0 : index
    %c0_427 = arith.constant 0 : index
    %c1_428 = arith.constant 1 : index
    %c0_429 = arith.constant 0 : index
    %419 = tpu.strided_load %arg21[%c0_426, %c0_427, %c1_428, %c0_429] {strides = array<i32: 1, 1, 2, 1>} : memref<2x3x7x64xf32, #tpu.memory_space<vmem>>, vector<2x3x3x64xf32>
    %420 = vector.extract_strided_slice %419 {offsets = [0, 0, 0, 0], sizes = [2, 1, 3, 64], strides = [1, 1, 1, 1]} : vector<2x3x3x64xf32> to vector<2x1x3x64xf32>
    %421 = vector.shape_cast %420 : vector<2x1x3x64xf32> to vector<2x3x64xf32>
    %c0_430 = arith.constant 0 : index
    %c0_431 = arith.constant 0 : index
    %c256_432 = arith.constant 256 : index
    %422 = vector.load %arg22[%c0_430, %c0_431, %c256_432] : memref<2x9x576xf32, #tpu.memory_space<vmem>>, vector<2x3x64xf32>
    tpu.vector_store %arg22[%c0_430, %c0_431, %c256_432], %421 {strides = array<i32>} : memref<2x9x576xf32, #tpu.memory_space<vmem>>, vector<2x3x64xf32>,
    %423 = vector.extract_strided_slice %419 {offsets = [0, 1, 0, 0], sizes = [2, 1, 3, 64], strides = [1, 1, 1, 1]} : vector<2x3x3x64xf32> to vector<2x1x3x64xf32>
    %424 = vector.shape_cast %423 : vector<2x1x3x64xf32> to vector<2x3x64xf32>
    %c0_433 = arith.constant 0 : index
    %c3_434 = arith.constant 3 : index
    %c256_435 = arith.constant 256 : index
    %425 = vector.load %arg22[%c0_433, %c3_434, %c256_435] : memref<2x9x576xf32, #tpu.memory_space<vmem>>, vector<2x3x64xf32>
    tpu.vector_store %arg22[%c0_433, %c3_434, %c256_435], %424 {strides = array<i32>} : memref<2x9x576xf32, #tpu.memory_space<vmem>>, vector<2x3x64xf32>,
    %426 = vector.extract_strided_slice %419 {offsets = [0, 2, 0, 0], sizes = [2, 1, 3, 64], strides = [1, 1, 1, 1]} : vector<2x3x3x64xf32> to vector<2x1x3x64xf32>
    %427 = vector.shape_cast %426 : vector<2x1x3x64xf32> to vector<2x3x64xf32>
    %c0_436 = arith.constant 0 : index
    %c6_437 = arith.constant 6 : index
    %c256_438 = arith.constant 256 : index
    %428 = vector.load %arg22[%c0_436, %c6_437, %c256_438] : memref<2x9x576xf32, #tpu.memory_space<vmem>>, vector<2x3x64xf32>
    tpu.vector_store %arg22[%c0_436, %c6_437, %c256_438], %427 {strides = array<i32>} : memref<2x9x576xf32, #tpu.memory_space<vmem>>, vector<2x3x64xf32>,
    %c0_439 = arith.constant 0 : index
    %c0_440 = arith.constant 0 : index
    %c2_441 = arith.constant 2 : index
    %c0_442 = arith.constant 0 : index
    %429 = tpu.strided_load %arg21[%c0_439, %c0_440, %c2_441, %c0_442] {strides = array<i32: 1, 1, 2, 1>} : memref<2x3x7x64xf32, #tpu.memory_space<vmem>>, vector<2x3x3x64xf32>
    %430 = vector.extract_strided_slice %429 {offsets = [0, 0, 0, 0], sizes = [2, 1, 3, 64], strides = [1, 1, 1, 1]} : vector<2x3x3x64xf32> to vector<2x1x3x64xf32>
    %431 = vector.shape_cast %430 : vector<2x1x3x64xf32> to vector<2x3x64xf32>
    %c0_443 = arith.constant 0 : index
    %c0_444 = arith.constant 0 : index
    %c320 = arith.constant 320 : index
    %432 = vector.load %arg22[%c0_443, %c0_444, %c320] : memref<2x9x576xf32, #tpu.memory_space<vmem>>, vector<2x3x64xf32>
    tpu.vector_store %arg22[%c0_443, %c0_444, %c320], %431 {strides = array<i32>} : memref<2x9x576xf32, #tpu.memory_space<vmem>>, vector<2x3x64xf32>,
    %433 = vector.extract_strided_slice %429 {offsets = [0, 1, 0, 0], sizes = [2, 1, 3, 64], strides = [1, 1, 1, 1]} : vector<2x3x3x64xf32> to vector<2x1x3x64xf32>
    %434 = vector.shape_cast %433 : vector<2x1x3x64xf32> to vector<2x3x64xf32>
    %c0_445 = arith.constant 0 : index
    %c3_446 = arith.constant 3 : index
    %c320_447 = arith.constant 320 : index
    %435 = vector.load %arg22[%c0_445, %c3_446, %c320_447] : memref<2x9x576xf32, #tpu.memory_space<vmem>>, vector<2x3x64xf32>
    tpu.vector_store %arg22[%c0_445, %c3_446, %c320_447], %434 {strides = array<i32>} : memref<2x9x576xf32, #tpu.memory_space<vmem>>, vector<2x3x64xf32>,
    %436 = vector.extract_strided_slice %429 {offsets = [0, 2, 0, 0], sizes = [2, 1, 3, 64], strides = [1, 1, 1, 1]} : vector<2x3x3x64xf32> to vector<2x1x3x64xf32>
    %437 = vector.shape_cast %436 : vector<2x1x3x64xf32> to vector<2x3x64xf32>
    %c0_448 = arith.constant 0 : index
    %c6_449 = arith.constant 6 : index
    %c320_450 = arith.constant 320 : index
    %438 = vector.load %arg22[%c0_448, %c6_449, %c320_450] : memref<2x9x576xf32, #tpu.memory_space<vmem>>, vector<2x3x64xf32>
    tpu.vector_store %arg22[%c0_448, %c6_449, %c320_450], %437 {strides = array<i32>} : memref<2x9x576xf32, #tpu.memory_space<vmem>>, vector<2x3x64xf32>,
    %c0_451 = arith.constant 0 : index
    %c1_452 = arith.constant 1 : index
    %c0_453 = arith.constant 0 : index
    %c0_454 = arith.constant 0 : index
    %439 = tpu.strided_load %arg20[%c0_451, %c1_452, %c0_453, %c0_454] {strides = array<i32: 1, 1, 2, 1>} : memref<2x4x7x64xf32, #tpu.memory_space<vmem>>, vector<2x3x3x64xf32>
    %440 = vector.extract_strided_slice %439 {offsets = [0, 0, 0, 0], sizes = [2, 1, 3, 64], strides = [1, 1, 1, 1]} : vector<2x3x3x64xf32> to vector<2x1x3x64xf32>
    %441 = vector.shape_cast %440 : vector<2x1x3x64xf32> to vector<2x3x64xf32>
    %c0_455 = arith.constant 0 : index
    %c0_456 = arith.constant 0 : index
    %c384 = arith.constant 384 : index
    %442 = vector.load %arg22[%c0_455, %c0_456, %c384] : memref<2x9x576xf32, #tpu.memory_space<vmem>>, vector<2x3x64xf32>
    tpu.vector_store %arg22[%c0_455, %c0_456, %c384], %441 {strides = array<i32>} : memref<2x9x576xf32, #tpu.memory_space<vmem>>, vector<2x3x64xf32>,
    %443 = vector.extract_strided_slice %439 {offsets = [0, 1, 0, 0], sizes = [2, 1, 3, 64], strides = [1, 1, 1, 1]} : vector<2x3x3x64xf32> to vector<2x1x3x64xf32>
    %444 = vector.shape_cast %443 : vector<2x1x3x64xf32> to vector<2x3x64xf32>
    %c0_457 = arith.constant 0 : index
    %c3_458 = arith.constant 3 : index
    %c384_459 = arith.constant 384 : index
    %445 = vector.load %arg22[%c0_457, %c3_458, %c384_459] : memref<2x9x576xf32, #tpu.memory_space<vmem>>, vector<2x3x64xf32>
    tpu.vector_store %arg22[%c0_457, %c3_458, %c384_459], %444 {strides = array<i32>} : memref<2x9x576xf32, #tpu.memory_space<vmem>>, vector<2x3x64xf32>,
    %446 = vector.extract_strided_slice %439 {offsets = [0, 2, 0, 0], sizes = [2, 1, 3, 64], strides = [1, 1, 1, 1]} : vector<2x3x3x64xf32> to vector<2x1x3x64xf32>
    %447 = vector.shape_cast %446 : vector<2x1x3x64xf32> to vector<2x3x64xf32>
    %c0_460 = arith.constant 0 : index
    %c6_461 = arith.constant 6 : index
    %c384_462 = arith.constant 384 : index
    %448 = vector.load %arg22[%c0_460, %c6_461, %c384_462] : memref<2x9x576xf32, #tpu.memory_space<vmem>>, vector<2x3x64xf32>
    tpu.vector_store %arg22[%c0_460, %c6_461, %c384_462], %447 {strides = array<i32>} : memref<2x9x576xf32, #tpu.memory_space<vmem>>, vector<2x3x64xf32>,
    %c0_463 = arith.constant 0 : index
    %c1_464 = arith.constant 1 : index
    %c1_465 = arith.constant 1 : index
    %c0_466 = arith.constant 0 : index
    %449 = tpu.strided_load %arg20[%c0_463, %c1_464, %c1_465, %c0_466] {strides = array<i32: 1, 1, 2, 1>} : memref<2x4x7x64xf32, #tpu.memory_space<vmem>>, vector<2x3x3x64xf32>
    %450 = vector.extract_strided_slice %449 {offsets = [0, 0, 0, 0], sizes = [2, 1, 3, 64], strides = [1, 1, 1, 1]} : vector<2x3x3x64xf32> to vector<2x1x3x64xf32>
    %451 = vector.shape_cast %450 : vector<2x1x3x64xf32> to vector<2x3x64xf32>
    %c0_467 = arith.constant 0 : index
    %c0_468 = arith.constant 0 : index
    %c448 = arith.constant 448 : index
    %452 = vector.load %arg22[%c0_467, %c0_468, %c448] : memref<2x9x576xf32, #tpu.memory_space<vmem>>, vector<2x3x64xf32>
    tpu.vector_store %arg22[%c0_467, %c0_468, %c448], %451 {strides = array<i32>} : memref<2x9x576xf32, #tpu.memory_space<vmem>>, vector<2x3x64xf32>,
    %453 = vector.extract_strided_slice %449 {offsets = [0, 1, 0, 0], sizes = [2, 1, 3, 64], strides = [1, 1, 1, 1]} : vector<2x3x3x64xf32> to vector<2x1x3x64xf32>
    %454 = vector.shape_cast %453 : vector<2x1x3x64xf32> to vector<2x3x64xf32>
    %c0_469 = arith.constant 0 : index
    %c3_470 = arith.constant 3 : index
    %c448_471 = arith.constant 448 : index
    %455 = vector.load %arg22[%c0_469, %c3_470, %c448_471] : memref<2x9x576xf32, #tpu.memory_space<vmem>>, vector<2x3x64xf32>
    tpu.vector_store %arg22[%c0_469, %c3_470, %c448_471], %454 {strides = array<i32>} : memref<2x9x576xf32, #tpu.memory_space<vmem>>, vector<2x3x64xf32>,
    %456 = vector.extract_strided_slice %449 {offsets = [0, 2, 0, 0], sizes = [2, 1, 3, 64], strides = [1, 1, 1, 1]} : vector<2x3x3x64xf32> to vector<2x1x3x64xf32>
    %457 = vector.shape_cast %456 : vector<2x1x3x64xf32> to vector<2x3x64xf32>
    %c0_472 = arith.constant 0 : index
    %c6_473 = arith.constant 6 : index
    %c448_474 = arith.constant 448 : index
    %458 = vector.load %arg22[%c0_472, %c6_473, %c448_474] : memref<2x9x576xf32, #tpu.memory_space<vmem>>, vector<2x3x64xf32>
    tpu.vector_store %arg22[%c0_472, %c6_473, %c448_474], %457 {strides = array<i32>} : memref<2x9x576xf32, #tpu.memory_space<vmem>>, vector<2x3x64xf32>,
    %c0_475 = arith.constant 0 : index
    %c1_476 = arith.constant 1 : index
    %c2_477 = arith.constant 2 : index
    %c0_478 = arith.constant 0 : index
    %459 = tpu.strided_load %arg20[%c0_475, %c1_476, %c2_477, %c0_478] {strides = array<i32: 1, 1, 2, 1>} : memref<2x4x7x64xf32, #tpu.memory_space<vmem>>, vector<2x3x3x64xf32>
    %460 = vector.extract_strided_slice %459 {offsets = [0, 0, 0, 0], sizes = [2, 1, 3, 64], strides = [1, 1, 1, 1]} : vector<2x3x3x64xf32> to vector<2x1x3x64xf32>
    %461 = vector.shape_cast %460 : vector<2x1x3x64xf32> to vector<2x3x64xf32>
    %c0_479 = arith.constant 0 : index
    %c0_480 = arith.constant 0 : index
    %c512 = arith.constant 512 : index
    %462 = vector.load %arg22[%c0_479, %c0_480, %c512] : memref<2x9x576xf32, #tpu.memory_space<vmem>>, vector<2x3x64xf32>
    tpu.vector_store %arg22[%c0_479, %c0_480, %c512], %461 {strides = array<i32>} : memref<2x9x576xf32, #tpu.memory_space<vmem>>, vector<2x3x64xf32>,
    %463 = vector.extract_strided_slice %459 {offsets = [0, 1, 0, 0], sizes = [2, 1, 3, 64], strides = [1, 1, 1, 1]} : vector<2x3x3x64xf32> to vector<2x1x3x64xf32>
    %464 = vector.shape_cast %463 : vector<2x1x3x64xf32> to vector<2x3x64xf32>
    %c0_481 = arith.constant 0 : index
    %c3_482 = arith.constant 3 : index
    %c512_483 = arith.constant 512 : index
    %465 = vector.load %arg22[%c0_481, %c3_482, %c512_483] : memref<2x9x576xf32, #tpu.memory_space<vmem>>, vector<2x3x64xf32>
    tpu.vector_store %arg22[%c0_481, %c3_482, %c512_483], %464 {strides = array<i32>} : memref<2x9x576xf32, #tpu.memory_space<vmem>>, vector<2x3x64xf32>,
    %466 = vector.extract_strided_slice %459 {offsets = [0, 2, 0, 0], sizes = [2, 1, 3, 64], strides = [1, 1, 1, 1]} : vector<2x3x3x64xf32> to vector<2x1x3x64xf32>
    %467 = vector.shape_cast %466 : vector<2x1x3x64xf32> to vector<2x3x64xf32>
    %c0_484 = arith.constant 0 : index
    %c6_485 = arith.constant 6 : index
    %c512_486 = arith.constant 512 : index
    %468 = vector.load %arg22[%c0_484, %c6_485, %c512_486] : memref<2x9x576xf32, #tpu.memory_space<vmem>>, vector<2x3x64xf32>
    tpu.vector_store %arg22[%c0_484, %c6_485, %c512_486], %467 {strides = array<i32>} : memref<2x9x576xf32, #tpu.memory_space<vmem>>, vector<2x3x64xf32>,
    %c0_487 = arith.constant 0 : index
    %c0_488 = arith.constant 0 : index
    %469 = vector.load %arg7[%c0_487, %c0_488] : memref<576x128xf32, #tpu.memory_space<vmem>>, vector<576x128xf32>
    %c0_489 = arith.constant 0 : index
    %c0_490 = arith.constant 0 : index
    %470 = vector.load %arg8[%c0_489, %c0_490] : memref<1x128xf32, #tpu.memory_space<vmem>>, vector<1x128xf32>
    %c0_491 = arith.constant 0 : index
    %c0_492 = arith.constant 0 : index
    %c0_493 = arith.constant 0 : index
    %471 = vector.load %arg22[%c0_491, %c0_492, %c0_493] : memref<2x9x576xf32, #tpu.memory_space<vmem>>, vector<1x9x576xf32>
    %472 = vector.shape_cast %471 : vector<1x9x576xf32> to vector<9x576xf32>
    %cst_494 = arith.constant dense<0.000000e+00> : vector<9x128xf32>
    %473 = tpu.matmul %472, %469, %cst_494 {dimension_numbers = #tpu.dot_dimension_numbers<[1], [0], [0], [1], [0, 0, 1, 1], [], []>} : vector<9x576xf32>, vector<576x128xf32>, vector<9x128xf32> -> vector<9x128xf32>
    %474 = vector.broadcast %470 : vector<1x128xf32> to vector<9x128xf32>
    %475 = arith.addf %473, %474 : vector<9x128xf32>
    %c0_495 = arith.constant 0 : index
    %c0_496 = arith.constant 0 : index
    %c0_497 = arith.constant 0 : index
    %476 = vector.load %arg23[%c0_495, %c0_496, %c0_497] : memref<2x9x128xf32, #tpu.memory_space<vmem>>, vector<1x9x128xf32>
    %477 = vector.shape_cast %476 : vector<1x9x128xf32> to vector<9x128xf32>
    %478 = vector.shape_cast %475 : vector<9x128xf32> to vector<1x9x128xf32>
    tpu.vector_store %arg23[%c0_495, %c0_496, %c0_497], %478 {strides = array<i32>} : memref<2x9x128xf32, #tpu.memory_space<vmem>>, vector<1x9x128xf32>,
    %c1_498 = arith.constant 1 : index
    %c0_499 = arith.constant 0 : index
    %c0_500 = arith.constant 0 : index
    %479 = vector.load %arg22[%c1_498, %c0_499, %c0_500] : memref<2x9x576xf32, #tpu.memory_space<vmem>>, vector<1x9x576xf32>
    %480 = vector.shape_cast %479 : vector<1x9x576xf32> to vector<9x576xf32>
    %cst_501 = arith.constant dense<0.000000e+00> : vector<9x128xf32>
    %481 = tpu.matmul %480, %469, %cst_501 {dimension_numbers = #tpu.dot_dimension_numbers<[1], [0], [0], [1], [0, 0, 1, 1], [], []>} : vector<9x576xf32>, vector<576x128xf32>, vector<9x128xf32> -> vector<9x128xf32>
    %482 = vector.broadcast %470 : vector<1x128xf32> to vector<9x128xf32>
    %483 = arith.addf %481, %482 : vector<9x128xf32>
    %c1_502 = arith.constant 1 : index
    %c0_503 = arith.constant 0 : index
    %c0_504 = arith.constant 0 : index
    %484 = vector.load %arg23[%c1_502, %c0_503, %c0_504] : memref<2x9x128xf32, #tpu.memory_space<vmem>>, vector<1x9x128xf32>
    %485 = vector.shape_cast %484 : vector<1x9x128xf32> to vector<9x128xf32>
    %486 = vector.shape_cast %483 : vector<9x128xf32> to vector<1x9x128xf32>
    tpu.vector_store %arg23[%c1_502, %c0_503, %c0_504], %486 {strides = array<i32>} : memref<2x9x128xf32, #tpu.memory_space<vmem>>, vector<1x9x128xf32>,
    %c0_505 = arith.constant 0 : index
    %c0_506 = arith.constant 0 : index
    %c0_507 = arith.constant 0 : index
    %487 = vector.load %arg23[%c0_505, %c0_506, %c0_507] : memref<2x9x128xf32, #tpu.memory_space<vmem>>, vector<2x9x128xf32>
    %c0_508 = arith.constant 0 : index
    %c0_509 = arith.constant 0 : index
    %488 = vector.load %arg9[%c0_508, %c0_509] : memref<1x128xf32, #tpu.memory_space<vmem>>, vector<1x128xf32>
    %c0_510 = arith.constant 0 : index
    %c0_511 = arith.constant 0 : index
    %489 = vector.load %arg10[%c0_510, %c0_511] : memref<1x128xf32, #tpu.memory_space<vmem>>, vector<1x128xf32>
    %cst_512 = arith.constant dense<0.000000e+00> : vector<9x128xf32>
    %490 = vector.multi_reduction <add>, %487, %cst_512 [0] : vector<2x9x128xf32> to vector<9x128xf32>
    %491 = vector.shape_cast %490 : vector<9x128xf32> to vector<1x9x128xf32>
    %cst_513 = arith.constant dense<0.000000e+00> : vector<1x128xf32>
    %492 = vector.multi_reduction <add>, %491, %cst_513 [1] : vector<1x9x128xf32> to vector<1x128xf32>
    %493 = vector.shape_cast %492 : vector<1x128xf32> to vector<1x1x128xf32>
    %cst_514 = arith.constant 1.800000e+01 : f32
    %494 = vector.broadcast %cst_514 : f32 to vector<1x1x128xf32>
    %495 = arith.divf %493, %494 : vector<1x1x128xf32>
    %496 = vector.broadcast %495 : vector<1x1x128xf32> to vector<2x9x128xf32>
    %497 = arith.subf %487, %496 : vector<2x9x128xf32>
    %498 = vector.broadcast %495 : vector<1x1x128xf32> to vector<2x9x128xf32>
    %499 = arith.subf %487, %498 : vector<2x9x128xf32>
    %500 = arith.mulf %497, %499 : vector<2x9x128xf32>
    %cst_515 = arith.constant dense<0.000000e+00> : vector<9x128xf32>
    %501 = vector.multi_reduction <add>, %500, %cst_515 [0] : vector<2x9x128xf32> to vector<9x128xf32>
    %502 = vector.shape_cast %501 : vector<9x128xf32> to vector<1x9x128xf32>
    %cst_516 = arith.constant dense<0.000000e+00> : vector<1x128xf32>
    %503 = vector.multi_reduction <add>, %502, %cst_516 [1] : vector<1x9x128xf32> to vector<1x128xf32>
    %504 = vector.shape_cast %503 : vector<1x128xf32> to vector<1x1x128xf32>
    %cst_517 = arith.constant 1.800000e+01 : f32
    %505 = vector.broadcast %cst_517 : f32 to vector<1x1x128xf32>
    %506 = arith.divf %504, %505 : vector<1x1x128xf32>
    %cst_518 = arith.constant 9.99999974E-6 : f32
    %507 = vector.broadcast %cst_518 : f32 to vector<1x1x128xf32>
    %508 = arith.addf %506, %507 : vector<1x1x128xf32>
    %509 = math.rsqrt %508 : vector<1x1x128xf32>
    %510 = vector.shape_cast %488 : vector<1x128xf32> to vector<1x1x128xf32>
    %511 = arith.mulf %509, %510 : vector<1x1x128xf32>
    %512 = arith.mulf %495, %511 : vector<1x1x128xf32>
    %513 = vector.shape_cast %489 : vector<1x128xf32> to vector<1x1x128xf32>
    %514 = arith.subf %513, %512 : vector<1x1x128xf32>
    %515 = vector.broadcast %511 : vector<1x1x128xf32> to vector<2x9x128xf32>
    %516 = arith.mulf %487, %515 : vector<2x9x128xf32>
    %517 = vector.broadcast %514 : vector<1x1x128xf32> to vector<2x9x128xf32>
    %518 = arith.addf %516, %517 : vector<2x9x128xf32>
    %cst_519 = arith.constant 0.000000e+00 : f32
    %519 = vector.broadcast %cst_519 : f32 to vector<2x9x128xf32>
    %520 = arith.cmpf ogt, %518, %519 : vector<2x9x128xf32>
    %cst_520 = arith.constant 0.00999999977 : f32
    %521 = vector.broadcast %cst_520 : f32 to vector<2x9x128xf32>
    %522 = arith.mulf %521, %518 : vector<2x9x128xf32>
    %523 = arith.select %520, %518, %522 : vector<2x9x128xi1>, vector<2x9x128xf32>
    %c0_521 = arith.constant 0 : index
    %c0_522 = arith.constant 0 : index
    %c0_523 = arith.constant 0 : index
    %524 = vector.load %arg23[%c0_521, %c0_522, %c0_523] : memref<2x9x128xf32, #tpu.memory_space<vmem>>, vector<2x9x128xf32>
    tpu.vector_store %arg23[%c0_521, %c0_522, %c0_523], %523 {strides = array<i32>} : memref<2x9x128xf32, #tpu.memory_space<vmem>>, vector<2x9x128xf32>,
    %c0_524 = arith.constant 0 : index
    %c0_525 = arith.constant 0 : index
    %525 = vector.load %arg11[%c0_524, %c0_525] : memref<9x128xf32, #tpu.memory_space<vmem>>, vector<9x128xf32>
    %cst_526 = arith.constant 0.000000e+00 : f32
    %526 = vector.broadcast %cst_526 : f32 to vector<2x128xf32>
    %c0_527 = arith.constant 0 : index
    %c0_528 = arith.constant 0 : index
    %c0_529 = arith.constant 0 : index
    %527 = vector.load %arg23[%c0_527, %c0_528, %c0_529] : memref<2x9x128xf32, #tpu.memory_space<vmem>>, vector<2x1x128xf32>
    %528 = vector.shape_cast %527 : vector<2x1x128xf32> to vector<2x128xf32>
    %529 = vector.extract_strided_slice %525 {offsets = [0, 0], sizes = [1, 128], strides = [1, 1]} : vector<9x128xf32> to vector<1x128xf32>
    %530 = vector.broadcast %529 : vector<1x128xf32> to vector<2x128xf32>
    %531 = arith.mulf %528, %530 : vector<2x128xf32>
    %532 = arith.addf %526, %531 : vector<2x128xf32>
    %c0_530 = arith.constant 0 : index
    %c1_531 = arith.constant 1 : index
    %c0_532 = arith.constant 0 : index
    %533 = vector.load %arg23[%c0_530, %c1_531, %c0_532] : memref<2x9x128xf32, #tpu.memory_space<vmem>>, vector<2x1x128xf32>
    %534 = vector.shape_cast %533 : vector<2x1x128xf32> to vector<2x128xf32>
    %535 = vector.extract_strided_slice %525 {offsets = [1, 0], sizes = [1, 128], strides = [1, 1]} : vector<9x128xf32> to vector<1x128xf32>
    %536 = vector.broadcast %535 : vector<1x128xf32> to vector<2x128xf32>
    %537 = arith.mulf %534, %536 : vector<2x128xf32>
    %538 = arith.addf %532, %537 : vector<2x128xf32>
    %c0_533 = arith.constant 0 : index
    %c2_534 = arith.constant 2 : index
    %c0_535 = arith.constant 0 : index
    %539 = vector.load %arg23[%c0_533, %c2_534, %c0_535] : memref<2x9x128xf32, #tpu.memory_space<vmem>>, vector<2x1x128xf32>
    %540 = vector.shape_cast %539 : vector<2x1x128xf32> to vector<2x128xf32>
    %541 = vector.extract_strided_slice %525 {offsets = [2, 0], sizes = [1, 128], strides = [1, 1]} : vector<9x128xf32> to vector<1x128xf32>
    %542 = vector.broadcast %541 : vector<1x128xf32> to vector<2x128xf32>
    %543 = arith.mulf %540, %542 : vector<2x128xf32>
    %544 = arith.addf %538, %543 : vector<2x128xf32>
    %c0_536 = arith.constant 0 : index
    %c3_537 = arith.constant 3 : index
    %c0_538 = arith.constant 0 : index
    %545 = vector.load %arg23[%c0_536, %c3_537, %c0_538] : memref<2x9x128xf32, #tpu.memory_space<vmem>>, vector<2x1x128xf32>
    %546 = vector.shape_cast %545 : vector<2x1x128xf32> to vector<2x128xf32>
    %547 = vector.extract_strided_slice %525 {offsets = [3, 0], sizes = [1, 128], strides = [1, 1]} : vector<9x128xf32> to vector<1x128xf32>
    %548 = vector.broadcast %547 : vector<1x128xf32> to vector<2x128xf32>
    %549 = arith.mulf %546, %548 : vector<2x128xf32>
    %550 = arith.addf %544, %549 : vector<2x128xf32>
    %c0_539 = arith.constant 0 : index
    %c4 = arith.constant 4 : index
    %c0_540 = arith.constant 0 : index
    %551 = vector.load %arg23[%c0_539, %c4, %c0_540] : memref<2x9x128xf32, #tpu.memory_space<vmem>>, vector<2x1x128xf32>
    %552 = vector.shape_cast %551 : vector<2x1x128xf32> to vector<2x128xf32>
    %553 = vector.extract_strided_slice %525 {offsets = [4, 0], sizes = [1, 128], strides = [1, 1]} : vector<9x128xf32> to vector<1x128xf32>
    %554 = vector.broadcast %553 : vector<1x128xf32> to vector<2x128xf32>
    %555 = arith.mulf %552, %554 : vector<2x128xf32>
    %556 = arith.addf %550, %555 : vector<2x128xf32>
    %c0_541 = arith.constant 0 : index
    %c5 = arith.constant 5 : index
    %c0_542 = arith.constant 0 : index
    %557 = vector.load %arg23[%c0_541, %c5, %c0_542] : memref<2x9x128xf32, #tpu.memory_space<vmem>>, vector<2x1x128xf32>
    %558 = vector.shape_cast %557 : vector<2x1x128xf32> to vector<2x128xf32>
    %559 = vector.extract_strided_slice %525 {offsets = [5, 0], sizes = [1, 128], strides = [1, 1]} : vector<9x128xf32> to vector<1x128xf32>
    %560 = vector.broadcast %559 : vector<1x128xf32> to vector<2x128xf32>
    %561 = arith.mulf %558, %560 : vector<2x128xf32>
    %562 = arith.addf %556, %561 : vector<2x128xf32>
    %c0_543 = arith.constant 0 : index
    %c6_544 = arith.constant 6 : index
    %c0_545 = arith.constant 0 : index
    %563 = vector.load %arg23[%c0_543, %c6_544, %c0_545] : memref<2x9x128xf32, #tpu.memory_space<vmem>>, vector<2x1x128xf32>
    %564 = vector.shape_cast %563 : vector<2x1x128xf32> to vector<2x128xf32>
    %565 = vector.extract_strided_slice %525 {offsets = [6, 0], sizes = [1, 128], strides = [1, 1]} : vector<9x128xf32> to vector<1x128xf32>
    %566 = vector.broadcast %565 : vector<1x128xf32> to vector<2x128xf32>
    %567 = arith.mulf %564, %566 : vector<2x128xf32>
    %568 = arith.addf %562, %567 : vector<2x128xf32>
    %c0_546 = arith.constant 0 : index
    %c7_547 = arith.constant 7 : index
    %c0_548 = arith.constant 0 : index
    %569 = vector.load %arg23[%c0_546, %c7_547, %c0_548] : memref<2x9x128xf32, #tpu.memory_space<vmem>>, vector<2x1x128xf32>
    %570 = vector.shape_cast %569 : vector<2x1x128xf32> to vector<2x128xf32>
    %571 = vector.extract_strided_slice %525 {offsets = [7, 0], sizes = [1, 128], strides = [1, 1]} : vector<9x128xf32> to vector<1x128xf32>
    %572 = vector.broadcast %571 : vector<1x128xf32> to vector<2x128xf32>
    %573 = arith.mulf %570, %572 : vector<2x128xf32>
    %574 = arith.addf %568, %573 : vector<2x128xf32>
    %c0_549 = arith.constant 0 : index
    %c8 = arith.constant 8 : index
    %c0_550 = arith.constant 0 : index
    %575 = vector.load %arg23[%c0_549, %c8, %c0_550] : memref<2x9x128xf32, #tpu.memory_space<vmem>>, vector<2x1x128xf32>
    %576 = vector.shape_cast %575 : vector<2x1x128xf32> to vector<2x128xf32>
    %577 = vector.extract_strided_slice %525 {offsets = [8, 0], sizes = [1, 128], strides = [1, 1]} : vector<9x128xf32> to vector<1x128xf32>
    %578 = vector.broadcast %577 : vector<1x128xf32> to vector<2x128xf32>
    %579 = arith.mulf %576, %578 : vector<2x128xf32>
    %580 = arith.addf %574, %579 : vector<2x128xf32>
    %cst_551 = arith.constant dense<0.000000e+00> : vector<2xf32>
    %581 = vector.multi_reduction <add>, %580, %cst_551 [1] : vector<2x128xf32> to vector<2xf32>
    %582 = vector.shape_cast %581 : vector<2xf32> to vector<2x1xf32>
    %c0_552 = arith.constant 0 : index
    %c0_553 = arith.constant 0 : index
    %583 = vector.load %arg12[%c0_552, %c0_553] : memref<1x1xf32, #tpu.memory_space<vmem>>, vector<1x1xf32>
    %584 = vector.broadcast %583 : vector<1x1xf32> to vector<2x1xf32>
    %585 = arith.addf %582, %584 : vector<2x1xf32>
    %586 = arith.negf %585 : vector<2x1xf32>
    %587 = math.exp %586 : vector<2x1xf32>
    %cst_554 = arith.constant 1.000000e+00 : f32
    %588 = vector.broadcast %cst_554 : f32 to vector<2x1xf32>
    %589 = arith.addf %588, %587 : vector<2x1xf32>
    %590 = arith.divf %588, %589 : vector<2x1xf32>
    %c0_555 = arith.constant 0 : index
    %c0_556 = arith.constant 0 : index
    %591 = vector.load %arg13[%c0_555, %c0_556] : memref<2x1xf32, #tpu.memory_space<vmem>>, vector<2x1xf32>
    tpu.vector_store %arg13[%c0_555, %c0_556], %590 {strides = array<i32>} : memref<2x1xf32, #tpu.memory_space<vmem>>, vector<2x1xf32>,
    return
  }
}

</mosaic_0001>

<llo_original>
// kernel: discriminator_forward.1
$region0: #{discriminator_forward.1}
  #allocation0 [shape = 'u32[]', space=smem, size = 0x4, offset = 0x4, fixed_abs, tag = 'smem constant byte address 0x4 - core index']
  #allocation1 [shape = 'u32[72,128]{1,0:T(1,128)}', space=vmem, size = 0x9000, scoped, tag = 'internal scratch']
  #allocation2 [shape = 'f32[2,15,30,1]{3,2,1,0:T(8,128)}', space=vmem, size = 0x78000, scoped, tag = 'scratch operand']
  #allocation3 [shape = 'f32[2,15,30,1]{3,2,1,0:T(8,128)}', space=vmem, size = 0x78000, scoped, tag = 'scratch operand']
  #allocation4 [shape = 'f32[2,8,16,32]{3,2,1,0:T(8,128)}', space=vmem, size = 0x20000, scoped, tag = 'scratch operand']
  #allocation5 [shape = 'f32[2,8,16,32]{3,2,1,0:T(8,128)}', space=vmem, size = 0x20000, scoped, tag = 'scratch operand']
  #allocation6 [shape = 'f32[2,49,288]{2,1,0:T(8,128)}', space=vmem, size = 0x2a000, scoped, tag = 'scratch operand']
  #allocation7 [shape = 'f32[2,49,64]{2,1,0:T(8,128)}', space=vmem, size = 0xe000, scoped, tag = 'scratch operand']
  #allocation8 [shape = 'f32[2,4,7,64]{3,2,1,0:T(8,128)}', space=vmem, size = 0x8000, scoped, tag = 'scratch operand']
  #allocation9 [shape = 'f32[2,3,7,64]{3,2,1,0:T(8,128)}', space=vmem, size = 0x6000, scoped, tag = 'scratch operand']
  #allocation10 [shape = 'f32[2,9,576]{2,1,0:T(8,128)}', space=vmem, size = 0x14000, scoped, tag = 'scratch operand']
  #allocation11 [shape = 'f32[2,9,128]{2,1,0:T(8,128)}', space=vmem, size = 0x4000, scoped, tag = 'scratch operand']
  #allocation12 [shape = 'f32[1,1]{1,0:T(1,128)S(1)}', space=vmem, size = 0x200, scoped, tag = 'scoped memory for discriminator_forward.1']
  %s0 = inlined_call_operand.vmem [shape: f32[2,28,28,1], index: 0, kind: input, shape index: {}]
  %s1 = inlined_call_operand.vmem [shape: f32[9,32], index: 1, kind: input, shape index: {}]
  %s2 = inlined_call_operand.vmem [shape: f32[1,32], index: 2, kind: input, shape index: {}]
  %s3 = inlined_call_operand.vmem [shape: f32[288,64], index: 3, kind: input, shape index: {}]
  %s4 = inlined_call_operand.vmem [shape: f32[1,64], index: 4, kind: input, shape index: {}]
  %s5 = inlined_call_operand.vmem [shape: f32[1,64], index: 5, kind: input, shape index: {}]
  %s6 = inlined_call_operand.vmem [shape: f32[1,64], index: 6, kind: input, shape index: {}]
  %s7 = inlined_call_operand.vmem [shape: f32[576,128], index: 7, kind: input, shape index: {}]
  %s8 = inlined_call_operand.vmem [shape: f32[1,128], index: 8, kind: input, shape index: {}]
  %s9 = inlined_call_operand.vmem [shape: f32[1,128], index: 9, kind: input, shape index: {}]
  %s10 = inlined_call_operand.vmem [shape: f32[1,128], index: 10, kind: input, shape index: {}]
  %s11 = inlined_call_operand.vmem [shape: f32[9,128], index: 11, kind: input, shape index: {}]
  %s12 = inlined_call_operand.<no memory space> [shape: f32[1,1], index: 12, kind: input, shape index: {}]
  %s13 = inlined_call_operand.vmem [shape: f32[2,1], index: 13, kind: output, shape index: {}]
  %s14 = sld [smem:[#allocation0]]
  $region62: #{discriminator_forward.1} parent=0
    _
  %s16 = ssub.s32 1, %s14
  %s17 = scalar_select 0, %s16, %s14
  %v18 = vstv %s12
  %19 = vst [vmem:[#allocation12] sm:$0x1] %v18
  // Predicated region
  $region2: #{discriminator_forward.1} parent=0 // pred_check
    _
  $region3: #{discriminator_forward.1} parent=0 // pred_check_branch
    %21 = sbr.rel (0) target = $region5
  $region4: #{discriminator_forward.1} parent=0 // pred_region
    _
  $region5: #{discriminator_forward.1} parent=0 // pred_fallthru
    _
  // Predicated region
  $region6: #{discriminator_forward.1} parent=0 // pred_check
    _
  $region7: #{discriminator_forward.1} parent=0 // pred_check_branch
    %23 = sbr.rel (0) target = $region9
  $region8: #{discriminator_forward.1} parent=0 // pred_region
    _
  $region9: #{discriminator_forward.1} parent=0 // pred_fallthru
    _
  // Predicated region
  $region10: #{discriminator_forward.1} parent=0 // pred_check
    _
  $region11: #{discriminator_forward.1} parent=0 // pred_check_branch
    %25 = sbr.rel (0) target = $region13
  $region12: #{discriminator_forward.1} parent=0 // pred_region
    _
  $region13: #{discriminator_forward.1} parent=0 // pred_fallthru
    _
  // Predicated region
  $region14: #{discriminator_forward.1} parent=0 // pred_check
    _
  $region15: #{discriminator_forward.1} parent=0 // pred_check_branch
    %27 = sbr.rel (0) target = $region17
  $region16: #{discriminator_forward.1} parent=0 // pred_region
    _
  $region17: #{discriminator_forward.1} parent=0 // pred_fallthru
    _
  // Predicated region
  $region18: #{discriminator_forward.1} parent=0 // pred_check
    _
  $region19: #{discriminator_forward.1} parent=0 // pred_check_branch
    %29 = sbr.rel (0) target = $region21
  $region20: #{discriminator_forward.1} parent=0 // pred_region
    _
  $region21: #{discriminator_forward.1} parent=0 // pred_fallthru
    _
  // Predicated region
  $region22: #{discriminator_forward.1} parent=0 // pred_check
    _
  $region23: #{discriminator_forward.1} parent=0 // pred_check_branch
    %31 = sbr.rel (0) target = $region25
  $region24: #{discriminator_forward.1} parent=0 // pred_region
    _
  $region25: #{discriminator_forward.1} parent=0 // pred_fallthru
    _
  // Predicated region
  $region26: #{discriminator_forward.1} parent=0 // pred_check
    _
  $region27: #{discriminator_forward.1} parent=0 // pred_check_branch
    %33 = sbr.rel (0) target = $region29
  $region28: #{discriminator_forward.1} parent=0 // pred_region
    _
  $region29: #{discriminator_forward.1} parent=0 // pred_fallthru
    _
  // Predicated region
  $region30: #{discriminator_forward.1} parent=0 // pred_check
    _
  $region31: #{discriminator_forward.1} parent=0 // pred_check_branch
    %35 = sbr.rel (0) target = $region33
  $region32: #{discriminator_forward.1} parent=0 // pred_region
    _
  $region33: #{discriminator_forward.1} parent=0 // pred_fallthru
    _
  // Predicated region
  $region34: #{discriminator_forward.1} parent=0 // pred_check
    _
  $region35: #{discriminator_forward.1} parent=0 // pred_check_branch
    %37 = sbr.rel (0) target = $region37
  $region36: #{discriminator_forward.1} parent=0 // pred_region
    _
  $region37: #{discriminator_forward.1} parent=0 // pred_fallthru
    _
  // Predicated region
  $region38: #{discriminator_forward.1} parent=0 // pred_check
    _
  $region39: #{discriminator_forward.1} parent=0 // pred_check_branch
    %39 = sbr.rel (0) target = $region41
  $region40: #{discriminator_forward.1} parent=0 // pred_region
    _
  $region41: #{discriminator_forward.1} parent=0 // pred_fallthru
    _
  // Predicated region
  $region42: #{discriminator_forward.1} parent=0 // pred_check
    _
  $region43: #{discriminator_forward.1} parent=0 // pred_check_branch
    %41 = sbr.rel (0) target = $region45
  $region44: #{discriminator_forward.1} parent=0 // pred_region
    _
  $region45: #{discriminator_forward.1} parent=0 // pred_fallthru
    _
  // Predicated region
  $region46: #{discriminator_forward.1} parent=0 // pred_check
    _
  $region47: #{discriminator_forward.1} parent=0 // pred_check_branch
    %43 = sbr.rel (0) target = $region49
  $region48: #{discriminator_forward.1} parent=0 // pred_region
    _
  $region49: #{discriminator_forward.1} parent=0 // pred_fallthru
    _
  // Predicated region
  $region50: #{discriminator_forward.1} parent=0 // pred_check
    _
  $region51: #{discriminator_forward.1} parent=0 // pred_check_branch
    %45 = sbr.rel (0) target = $region53
  $region52: #{discriminator_forward.1} parent=0 // pred_region
    _
  $region53: #{discriminator_forward.1} parent=0 // pred_fallthru
    _
  %vm46 = vcmask 7168
  %47 = vst.msk [vmem:[#allocation2] sm:$0xff] %vm46, 0.0
  %48 = vst.msk [vmem:[#allocation2 + $0x8] sm:$0xff] %vm46, 0.0
  %49 = vst.msk [vmem:[#allocation2 + $0x10] sm:$0xff] %vm46, 0.0
  %vm50 = vcmask 5120
  %51 = vst.msk [vmem:[#allocation2 + $0x18] sm:$0x3f] %vm50, 0.0
  %52 = vst.msk [vmem:[#allocation2 + $0x20] sm:$0xff] %vm46, 0.0
  %53 = vst.msk [vmem:[#allocation2 + $0x28] sm:$0xff] %vm46, 0.0
  %54 = vst.msk [vmem:[#allocation2 + $0x30] sm:$0xff] %vm46, 0.0
  %55 = vst.msk [vmem:[#allocation2 + $0x38] sm:$0x3f] %vm50, 0.0
  %56 = vst.msk [vmem:[#allocation2 + $0x40] sm:$0xff] %vm46, 0.0
  %57 = vst.msk [vmem:[#allocation2 + $0x48] sm:$0xff] %vm46, 0.0
  %58 = vst.msk [vmem:[#allocation2 + $0x50] sm:$0xff] %vm46, 0.0
  %59 = vst.msk [vmem:[#allocation2 + $0x58] sm:$0x3f] %vm50, 0.0
  %60 = vst.msk [vmem:[#allocation2 + $0x60] sm:$0xff] %vm46, 0.0
  %61 = vst.msk [vmem:[#allocation2 + $0x68] sm:$0xff] %vm46, 0.0
  %62 = vst.msk [vmem:[#allocation2 + $0x70] sm:$0xff] %vm46, 0.0
  %63 = vst.msk [vmem:[#allocation2 + $0x78] sm:$0x3f] %vm50, 0.0
  %64 = vst.msk [vmem:[#allocation2 + $0x80] sm:$0xff] %vm46, 0.0
  %65 = vst.msk [vmem:[#allocation2 + $0x88] sm:$0xff] %vm46, 0.0
  %66 = vst.msk [vmem:[#allocation2 + $0x90] sm:$0xff] %vm46, 0.0
  %67 = vst.msk [vmem:[#allocation2 + $0x98] sm:$0x3f] %vm50, 0.0
  %68 = vst.msk [vmem:[#allocation2 + $0xa0] sm:$0xff] %vm46, 0.0
  %69 = vst.msk [vmem:[#allocation2 + $0xa8] sm:$0xff] %vm46, 0.0
  %70 = vst.msk [vmem:[#allocation2 + $0xb0] sm:$0xff] %vm46, 0.0
  %71 = vst.msk [vmem:[#allocation2 + $0xb8] sm:$0x3f] %vm50, 0.0
  %72 = vst.msk [vmem:[#allocation2 + $0xc0] sm:$0xff] %vm46, 0.0
  %73 = vst.msk [vmem:[#allocation2 + $0xc8] sm:$0xff] %vm46, 0.0
  %74 = vst.msk [vmem:[#allocation2 + $0xd0] sm:$0xff] %vm46, 0.0
  %75 = vst.msk [vmem:[#allocation2 + $0xd8] sm:$0x3f] %vm50, 0.0
  %76 = vst.msk [vmem:[#allocation2 + $0xe0] sm:$0xff] %vm46, 0.0
  %77 = vst.msk [vmem:[#allocation2 + $0xe8] sm:$0xff] %vm46, 0.0
  %78 = vst.msk [vmem:[#allocation2 + $0xf0] sm:$0xff] %vm46, 0.0
  %79 = vst.msk [vmem:[#allocation2 + $0xf8] sm:$0x3f] %vm50, 0.0
  %80 = vst.msk [vmem:[#allocation2 + $0x100] sm:$0xff] %vm46, 0.0
  %81 = vst.msk [vmem:[#allocation2 + $0x108] sm:$0xff] %vm46, 0.0
  %82 = vst.msk [vmem:[#allocation2 + $0x110] sm:$0xff] %vm46, 0.0
  %83 = vst.msk [vmem:[#allocation2 + $0x118] sm:$0x3f] %vm50, 0.0
  %84 = vst.msk [vmem:[#allocation2 + $0x120] sm:$0xff] %vm46, 0.0
  %85 = vst.msk [vmem:[#allocation2 + $0x128] sm:$0xff] %vm46, 0.0
  %86 = vst.msk [vmem:[#allocation2 + $0x130] sm:$0xff] %vm46, 0.0
  %87 = vst.msk [vmem:[#allocation2 + $0x138] sm:$0x3f] %vm50, 0.0
  %88 = vst.msk [vmem:[#allocation2 + $0x140] sm:$0xff] %vm46, 0.0
  %89 = vst.msk [vmem:[#allocation2 + $0x148] sm:$0xff] %vm46, 0.0
  %90 = vst.msk [vmem:[#allocation2 + $0x150] sm:$0xff] %vm46, 0.0
  %91 = vst.msk [vmem:[#allocation2 + $0x158] sm:$0x3f] %vm50, 0.0
  %92 = vst.msk [vmem:[#allocation2 + $0x160] sm:$0xff] %vm46, 0.0
  %93 = vst.msk [vmem:[#allocation2 + $0x168] sm:$0xff] %vm46, 0.0
  %94 = vst.msk [vmem:[#allocation2 + $0x170] sm:$0xff] %vm46, 0.0
  %95 = vst.msk [vmem:[#allocation2 + $0x178] sm:$0x3f] %vm50, 0.0
  %96 = vst.msk [vmem:[#allocation2 + $0x180] sm:$0xff] %vm46, 0.0
  %97 = vst.msk [vmem:[#allocation2 + $0x188] sm:$0xff] %vm46, 0.0
  %98 = vst.msk [vmem:[#allocation2 + $0x190] sm:$0xff] %vm46, 0.0
  %99 = vst.msk [vmem:[#allocation2 + $0x198] sm:$0x3f] %vm50, 0.0
  %100 = vst.msk [vmem:[#allocation2 + $0x1a0] sm:$0xff] %vm46, 0.0
  %101 = vst.msk [vmem:[#allocation2 + $0x1a8] sm:$0xff] %vm46, 0.0
  %102 = vst.msk [vmem:[#allocation2 + $0x1b0] sm:$0xff] %vm46, 0.0
  %103 = vst.msk [vmem:[#allocation2 + $0x1b8] sm:$0x3f] %vm50, 0.0
  %104 = vst.msk [vmem:[#allocation2 + $0x1c0] sm:$0xff] %vm46, 0.0
  %105 = vst.msk [vmem:[#allocation2 + $0x1c8] sm:$0xff] %vm46, 0.0
  %106 = vst.msk [vmem:[#allocation2 + $0x1d0] sm:$0xff] %vm46, 0.0
  %107 = vst.msk [vmem:[#allocation2 + $0x1d8] sm:$0x3f] %vm50, 0.0
  %108 = vst.msk [vmem:[#allocation2 + $0x1e0] sm:$0xff] %vm46, 0.0
  %109 = vst.msk [vmem:[#allocation2 + $0x1e8] sm:$0xff] %vm46, 0.0
  %110 = vst.msk [vmem:[#allocation2 + $0x1f0] sm:$0xff] %vm46, 0.0
  %111 = vst.msk [vmem:[#allocation2 + $0x1f8] sm:$0x3f] %vm50, 0.0
  %112 = vst.msk [vmem:[#allocation2 + $0x200] sm:$0xff] %vm46, 0.0
  %113 = vst.msk [vmem:[#allocation2 + $0x208] sm:$0xff] %vm46, 0.0
  %114 = vst.msk [vmem:[#allocation2 + $0x210] sm:$0xff] %vm46, 0.0
  %115 = vst.msk [vmem:[#allocation2 + $0x218] sm:$0x3f] %vm50, 0.0
  %116 = vst.msk [vmem:[#allocation2 + $0x220] sm:$0xff] %vm46, 0.0
  %117 = vst.msk [vmem:[#allocation2 + $0x228] sm:$0xff] %vm46, 0.0
  %118 = vst.msk [vmem:[#allocation2 + $0x230] sm:$0xff] %vm46, 0.0
  %119 = vst.msk [vmem:[#allocation2 + $0x238] sm:$0x3f] %vm50, 0.0
  %120 = vst.msk [vmem:[#allocation2 + $0x240] sm:$0xff] %vm46, 0.0
  %121 = vst.msk [vmem:[#allocation2 + $0x248] sm:$0xff] %vm46, 0.0
  %122 = vst.msk [vmem:[#allocation2 + $0x250] sm:$0xff] %vm46, 0.0
  %123 = vst.msk [vmem:[#allocation2 + $0x258] sm:$0x3f] %vm50, 0.0
  %124 = vst.msk [vmem:[#allocation2 + $0x260] sm:$0xff] %vm46, 0.0
  %125 = vst.msk [vmem:[#allocation2 + $0x268] sm:$0xff] %vm46, 0.0
  %126 = vst.msk [vmem:[#allocation2 + $0x270] sm:$0xff] %vm46, 0.0
  %127 = vst.msk [vmem:[#allocation2 + $0x278] sm:$0x3f] %vm50, 0.0
  %128 = vst.msk [vmem:[#allocation2 + $0x280] sm:$0xff] %vm46, 0.0
  %129 = vst.msk [vmem:[#allocation2 + $0x288] sm:$0xff] %vm46, 0.0
  %130 = vst.msk [vmem:[#allocation2 + $0x290] sm:$0xff] %vm46, 0.0
  %131 = vst.msk [vmem:[#allocation2 + $0x298] sm:$0x3f] %vm50, 0.0
  %132 = vst.msk [vmem:[#allocation2 + $0x2a0] sm:$0xff] %vm46, 0.0
  %133 = vst.msk [vmem:[#allocation2 + $0x2a8] sm:$0xff] %vm46, 0.0
  %134 = vst.msk [vmem:[#allocation2 + $0x2b0] sm:$0xff] %vm46, 0.0
  %135 = vst.msk [vmem:[#allocation2 + $0x2b8] sm:$0x3f] %vm50, 0.0
  %136 = vst.msk [vmem:[#allocation2 + $0x2c0] sm:$0xff] %vm46, 0.0
  %137 = vst.msk [vmem:[#allocation2 + $0x2c8] sm:$0xff] %vm46, 0.0
  %138 = vst.msk [vmem:[#allocation2 + $0x2d0] sm:$0xff] %vm46, 0.0
  %139 = vst.msk [vmem:[#allocation2 + $0x2d8] sm:$0x3f] %vm50, 0.0
  %140 = vst.msk [vmem:[#allocation2 + $0x2e0] sm:$0xff] %vm46, 0.0
  %141 = vst.msk [vmem:[#allocation2 + $0x2e8] sm:$0xff] %vm46, 0.0
  %142 = vst.msk [vmem:[#allocation2 + $0x2f0] sm:$0xff] %vm46, 0.0
  %143 = vst.msk [vmem:[#allocation2 + $0x2f8] sm:$0x3f] %vm50, 0.0
  %144 = vst.msk [vmem:[#allocation2 + $0x300] sm:$0xff] %vm46, 0.0
  %145 = vst.msk [vmem:[#allocation2 + $0x308] sm:$0xff] %vm46, 0.0
  %146 = vst.msk [vmem:[#allocation2 + $0x310] sm:$0xff] %vm46, 0.0
  %147 = vst.msk [vmem:[#allocation2 + $0x318] sm:$0x3f] %vm50, 0.0
  %148 = vst.msk [vmem:[#allocation2 + $0x320] sm:$0xff] %vm46, 0.0
  %149 = vst.msk [vmem:[#allocation2 + $0x328] sm:$0xff] %vm46, 0.0
  %150 = vst.msk [vmem:[#allocation2 + $0x330] sm:$0xff] %vm46, 0.0
  %151 = vst.msk [vmem:[#allocation2 + $0x338] sm:$0x3f] %vm50, 0.0
  %152 = vst.msk [vmem:[#allocation2 + $0x340] sm:$0xff] %vm46, 0.0
  %153 = vst.msk [vmem:[#allocation2 + $0x348] sm:$0xff] %vm46, 0.0
  %154 = vst.msk [vmem:[#allocation2 + $0x350] sm:$0xff] %vm46, 0.0
  %155 = vst.msk [vmem:[#allocation2 + $0x358] sm:$0x3f] %vm50, 0.0
  %156 = vst.msk [vmem:[#allocation2 + $0x360] sm:$0xff] %vm46, 0.0
  %157 = vst.msk [vmem:[#allocation2 + $0x368] sm:$0xff] %vm46, 0.0
  %158 = vst.msk [vmem:[#allocation2 + $0x370] sm:$0xff] %vm46, 0.0
  %159 = vst.msk [vmem:[#allocation2 + $0x378] sm:$0x3f] %vm50, 0.0
  %160 = vst.msk [vmem:[#allocation2 + $0x380] sm:$0xff] %vm46, 0.0
  %161 = vst.msk [vmem:[#allocation2 + $0x388] sm:$0xff] %vm46, 0.0
  %162 = vst.msk [vmem:[#allocation2 + $0x390] sm:$0xff] %vm46, 0.0
  %163 = vst.msk [vmem:[#allocation2 + $0x398] sm:$0x3f] %vm50, 0.0
  %164 = vst.msk [vmem:[#allocation2 + $0x3a0] sm:$0xff] %vm46, 0.0
  %165 = vst.msk [vmem:[#allocation2 + $0x3a8] sm:$0xff] %vm46, 0.0
  %166 = vst.msk [vmem:[#allocation2 + $0x3b0] sm:$0xff] %vm46, 0.0
  %167 = vst.msk [vmem:[#allocation2 + $0x3b8] sm:$0x3f] %vm50, 0.0
  %168 = vst.msk [vmem:[#allocation3] sm:$0xff] %vm46, 0.0
  %169 = vst.msk [vmem:[#allocation3 + $0x8] sm:$0xff] %vm46, 0.0
  %170 = vst.msk [vmem:[#allocation3 + $0x10] sm:$0xff] %vm46, 0.0
  %171 = vst.msk [vmem:[#allocation3 + $0x18] sm:$0x3f] %vm50, 0.0
  %172 = vst.msk [vmem:[#allocation3 + $0x20] sm:$0xff] %vm46, 0.0
  %173 = vst.msk [vmem:[#allocation3 + $0x28] sm:$0xff] %vm46, 0.0
  %174 = vst.msk [vmem:[#allocation3 + $0x30] sm:$0xff] %vm46, 0.0
  %175 = vst.msk [vmem:[#allocation3 + $0x38] sm:$0x3f] %vm50, 0.0
  %176 = vst.msk [vmem:[#allocation3 + $0x40] sm:$0xff] %vm46, 0.0
  %177 = vst.msk [vmem:[#allocation3 + $0x48] sm:$0xff] %vm46, 0.0
  %178 = vst.msk [vmem:[#allocation3 + $0x50] sm:$0xff] %vm46, 0.0
  %179 = vst.msk [vmem:[#allocation3 + $0x58] sm:$0x3f] %vm50, 0.0
  %180 = vst.msk [vmem:[#allocation3 + $0x60] sm:$0xff] %vm46, 0.0
  %181 = vst.msk [vmem:[#allocation3 + $0x68] sm:$0xff] %vm46, 0.0
  %182 = vst.msk [vmem:[#allocation3 + $0x70] sm:$0xff] %vm46, 0.0
  %183 = vst.msk [vmem:[#allocation3 + $0x78] sm:$0x3f] %vm50, 0.0
  %184 = vst.msk [vmem:[#allocation3 + $0x80] sm:$0xff] %vm46, 0.0
  %185 = vst.msk [vmem:[#allocation3 + $0x88] sm:$0xff] %vm46, 0.0
  %186 = vst.msk [vmem:[#allocation3 + $0x90] sm:$0xff] %vm46, 0.0
  %187 = vst.msk [vmem:[#allocation3 + $0x98] sm:$0x3f] %vm50, 0.0
  %188 = vst.msk [vmem:[#allocation3 + $0xa0] sm:$0xff] %vm46, 0.0
  %189 = vst.msk [vmem:[#allocation3 + $0xa8] sm:$0xff] %vm46, 0.0
  %190 = vst.msk [vmem:[#allocation3 + $0xb0] sm:$0xff] %vm46, 0.0
  %191 = vst.msk [vmem:[#allocation3 + $0xb8] sm:$0x3f] %vm50, 0.0
  %192 = vst.msk [vmem:[#allocation3 + $0xc0] sm:$0xff] %vm46, 0.0
  %193 = vst.msk [vmem:[#allocation3 + $0xc8] sm:$0xff] %vm46, 0.0
  %194 = vst.msk [vmem:[#allocation3 + $0xd0] sm:$0xff] %vm46, 0.0
  %195 = vst.msk [vmem:[#allocation3 + $0xd8] sm:$0x3f] %vm50, 0.0
  %196 = vst.msk [vmem:[#allocation3 + $0xe0] sm:$0xff] %vm46, 0.0
  %197 = vst.msk [vmem:[#allocation3 + $0xe8] sm:$0xff] %vm46, 0.0
  %198 = vst.msk [vmem:[#allocation3 + $0xf0] sm:$0xff] %vm46, 0.0
  %199 = vst.msk [vmem:[#allocation3 + $0xf8] sm:$0x3f] %vm50, 0.0
  %200 = vst.msk [vmem:[#allocation3 + $0x100] sm:$0xff] %vm46, 0.0
  %201 = vst.msk [vmem:[#allocation3 + $0x108] sm:$0xff] %vm46, 0.0
  %202 = vst.msk [vmem:[#allocation3 + $0x110] sm:$0xff] %vm46, 0.0
  %203 = vst.msk [vmem:[#allocation3 + $0x118] sm:$0x3f] %vm50, 0.0
  %204 = vst.msk [vmem:[#allocation3 + $0x120] sm:$0xff] %vm46, 0.0
  %205 = vst.msk [vmem:[#allocation3 + $0x128] sm:$0xff] %vm46, 0.0
  %206 = vst.msk [vmem:[#allocation3 + $0x130] sm:$0xff] %vm46, 0.0
  %207 = vst.msk [vmem:[#allocation3 + $0x138] sm:$0x3f] %vm50, 0.0
  %208 = vst.msk [vmem:[#allocation3 + $0x140] sm:$0xff] %vm46, 0.0
  %209 = vst.msk [vmem:[#allocation3 + $0x148] sm:$0xff] %vm46, 0.0
  %210 = vst.msk [vmem:[#allocation3 + $0x150] sm:$0xff] %vm46, 0.0
  %211 = vst.msk [vmem:[#allocation3 + $0x158] sm:$0x3f] %vm50, 0.0
  %212 = vst.msk [vmem:[#allocation3 + $0x160] sm:$0xff] %vm46, 0.0
  %213 = vst.msk [vmem:[#allocation3 + $0x168] sm:$0xff] %vm46, 0.0
  %214 = vst.msk [vmem:[#allocation3 + $0x170] sm:$0xff] %vm46, 0.0
  %215 = vst.msk [vmem:[#allocation3 + $0x178] sm:$0x3f] %vm50, 0.0
  %216 = vst.msk [vmem:[#allocation3 + $0x180] sm:$0xff] %vm46, 0.0
  %217 = vst.msk [vmem:[#allocation3 + $0x188] sm:$0xff] %vm46, 0.0
  %218 = vst.msk [vmem:[#allocation3 + $0x190] sm:$0xff] %vm46, 0.0
  %219 = vst.msk [vmem:[#allocation3 + $0x198] sm:$0x3f] %vm50, 0.0
  %220 = vst.msk [vmem:[#allocation3 + $0x1a0] sm:$0xff] %vm46, 0.0
  %221 = vst.msk [vmem:[#allocation3 + $0x1a8] sm:$0xff] %vm46, 0.0
  %222 = vst.msk [vmem:[#allocation3 + $0x1b0] sm:$0xff] %vm46, 0.0
  %223 = vst.msk [vmem:[#allocation3 + $0x1b8] sm:$0x3f] %vm50, 0.0
  %224 = vst.msk [vmem:[#allocation3 + $0x1c0] sm:$0xff] %vm46, 0.0
  %225 = vst.msk [vmem:[#allocation3 + $0x1c8] sm:$0xff] %vm46, 0.0
  %226 = vst.msk [vmem:[#allocation3 + $0x1d0] sm:$0xff] %vm46, 0.0
  %227 = vst.msk [vmem:[#allocation3 + $0x1d8] sm:$0x3f] %vm50, 0.0
  %228 = vst.msk [vmem:[#allocation3 + $0x1e0] sm:$0xff] %vm46, 0.0
  %229 = vst.msk [vmem:[#allocation3 + $0x1e8] sm:$0xff] %vm46, 0.0
  %230 = vst.msk [vmem:[#allocation3 + $0x1f0] sm:$0xff] %vm46, 0.0
  %231 = vst.msk [vmem:[#allocation3 + $0x1f8] sm:$0x3f] %vm50, 0.0
  %232 = vst.msk [vmem:[#allocation3 + $0x200] sm:$0xff] %vm46, 0.0
  %233 = vst.msk [vmem:[#allocation3 + $0x208] sm:$0xff] %vm46, 0.0
  %234 = vst.msk [vmem:[#allocation3 + $0x210] sm:$0xff] %vm46, 0.0
  %235 = vst.msk [vmem:[#allocation3 + $0x218] sm:$0x3f] %vm50, 0.0
  %236 = vst.msk [vmem:[#allocation3 + $0x220] sm:$0xff] %vm46, 0.0
  %237 = vst.msk [vmem:[#allocation3 + $0x228] sm:$0xff] %vm46, 0.0
  %238 = vst.msk [vmem:[#allocation3 + $0x230] sm:$0xff] %vm46, 0.0
  %239 = vst.msk [vmem:[#allocation3 + $0x238] sm:$0x3f] %vm50, 0.0
  %240 = vst.msk [vmem:[#allocation3 + $0x240] sm:$0xff] %vm46, 0.0
  %241 = vst.msk [vmem:[#allocation3 + $0x248] sm:$0xff] %vm46, 0.0
  %242 = vst.msk [vmem:[#allocation3 + $0x250] sm:$0xff] %vm46, 0.0
  %243 = vst.msk [vmem:[#allocation3 + $0x258] sm:$0x3f] %vm50, 0.0
  %244 = vst.msk [vmem:[#allocation3 + $0x260] sm:$0xff] %vm46, 0.0
  %245 = vst.msk [vmem:[#allocation3 + $0x268] sm:$0xff] %vm46, 0.0
  %246 = vst.msk [vmem:[#allocation3 + $0x270] sm:$0xff] %vm46, 0.0
  %247 = vst.msk [vmem:[#allocation3 + $0x278] sm:$0x3f] %vm50, 0.0
  %248 = vst.msk [vmem:[#allocation3 + $0x280] sm:$0xff] %vm46, 0.0
  %249 = vst.msk [vmem:[#allocation3 + $0x288] sm:$0xff] %vm46, 0.0
  %250 = vst.msk [vmem:[#allocation3 + $0x290] sm:$0xff] %vm46, 0.0
  %251 = vst.msk [vmem:[#allocation3 + $0x298] sm:$0x3f] %vm50, 0.0
  %252 = vst.msk [vmem:[#allocation3 + $0x2a0] sm:$0xff] %vm46, 0.0
  %253 = vst.msk [vmem:[#allocation3 + $0x2a8] sm:$0xff] %vm46, 0.0
  %254 = vst.msk [vmem:[#allocation3 + $0x2b0] sm:$0xff] %vm46, 0.0
  %255 = vst.msk [vmem:[#allocation3 + $0x2b8] sm:$0x3f] %vm50, 0.0
  %256 = vst.msk [vmem:[#allocation3 + $0x2c0] sm:$0xff] %vm46, 0.0
  %257 = vst.msk [vmem:[#allocation3 + $0x2c8] sm:$0xff] %vm46, 0.0
  %258 = vst.msk [vmem:[#allocation3 + $0x2d0] sm:$0xff] %vm46, 0.0
  %259 = vst.msk [vmem:[#allocation3 + $0x2d8] sm:$0x3f] %vm50, 0.0
  %260 = vst.msk [vmem:[#allocation3 + $0x2e0] sm:$0xff] %vm46, 0.0
  %261 = vst.msk [vmem:[#allocation3 + $0x2e8] sm:$0xff] %vm46, 0.0
  %262 = vst.msk [vmem:[#allocation3 + $0x2f0] sm:$0xff] %vm46, 0.0
  %263 = vst.msk [vmem:[#allocation3 + $0x2f8] sm:$0x3f] %vm50, 0.0
  %264 = vst.msk [vmem:[#allocation3 + $0x300] sm:$0xff] %vm46, 0.0
  %265 = vst.msk [vmem:[#allocation3 + $0x308] sm:$0xff] %vm46, 0.0
  %266 = vst.msk [vmem:[#allocation3 + $0x310] sm:$0xff] %vm46, 0.0
  %267 = vst.msk [vmem:[#allocation3 + $0x318] sm:$0x3f] %vm50, 0.0
  %268 = vst.msk [vmem:[#allocation3 + $0x320] sm:$0xff] %vm46, 0.0
  %269 = vst.msk [vmem:[#allocation3 + $0x328] sm:$0xff] %vm46, 0.0
  %270 = vst.msk [vmem:[#allocation3 + $0x330] sm:$0xff] %vm46, 0.0
  %271 = vst.msk [vmem:[#allocation3 + $0x338] sm:$0x3f] %vm50, 0.0
  %272 = vst.msk [vmem:[#allocation3 + $0x340] sm:$0xff] %vm46, 0.0
  %273 = vst.msk [vmem:[#allocation3 + $0x348] sm:$0xff] %vm46, 0.0
  %274 = vst.msk [vmem:[#allocation3 + $0x350] sm:$0xff] %vm46, 0.0
  %275 = vst.msk [vmem:[#allocation3 + $0x358] sm:$0x3f] %vm50, 0.0
  %276 = vst.msk [vmem:[#allocation3 + $0x360] sm:$0xff] %vm46, 0.0
  %277 = vst.msk [vmem:[#allocation3 + $0x368] sm:$0xff] %vm46, 0.0
  %278 = vst.msk [vmem:[#allocation3 + $0x370] sm:$0xff] %vm46, 0.0
  %279 = vst.msk [vmem:[#allocation3 + $0x378] sm:$0x3f] %vm50, 0.0
  %280 = vst.msk [vmem:[#allocation3 + $0x380] sm:$0xff] %vm46, 0.0
  %281 = vst.msk [vmem:[#allocation3 + $0x388] sm:$0xff] %vm46, 0.0
  %282 = vst.msk [vmem:[#allocation3 + $0x390] sm:$0xff] %vm46, 0.0
  %283 = vst.msk [vmem:[#allocation3 + $0x398] sm:$0x3f] %vm50, 0.0
  %284 = vst.msk [vmem:[#allocation3 + $0x3a0] sm:$0xff] %vm46, 0.0
  %285 = vst.msk [vmem:[#allocation3 + $0x3a8] sm:$0xff] %vm46, 0.0
  %286 = vst.msk [vmem:[#allocation3 + $0x3b0] sm:$0xff] %vm46, 0.0
  %287 = vst.msk [vmem:[#allocation3 + $0x3b8] sm:$0x3f] %vm50, 0.0
  %v288 = vld [vmem:[%s0] sm:$0xff]
  %v289 = vld [vmem:[%s0 + $0x8] sm:$0xff]
  %v290 = vld [vmem:[%s0 + $0x10] sm:$0xff]
  %v291 = vld [vmem:[%s0 + $0x18] sm:$0xf]
  %v292 = vld [vmem:[%s0 + $0x20] sm:$0xff]
  %v293 = vld [vmem:[%s0 + $0x28] sm:$0xff]
  %v294 = vld [vmem:[%s0 + $0x30] sm:$0xff]
  %v295 = vld [vmem:[%s0 + $0x38] sm:$0xf]
  %v296 = vld [vmem:[%s0 + $0x40] sm:$0xff]
  %v297 = vld [vmem:[%s0 + $0x48] sm:$0xff]
  %v298 = vld [vmem:[%s0 + $0x50] sm:$0xff]
  %v299 = vld [vmem:[%s0 + $0x58] sm:$0xf]
  %v300 = vld [vmem:[%s0 + $0x60] sm:$0xff]
  %v301 = vld [vmem:[%s0 + $0x68] sm:$0xff]
  %v302 = vld [vmem:[%s0 + $0x70] sm:$0xff]
  %v303 = vld [vmem:[%s0 + $0x78] sm:$0xf]
  %v304 = vld [vmem:[%s0 + $0x80] sm:$0xff]
  %v305 = vld [vmem:[%s0 + $0x88] sm:$0xff]
  %v306 = vld [vmem:[%s0 + $0x90] sm:$0xff]
  %v307 = vld [vmem:[%s0 + $0x98] sm:$0xf]
  %v308 = vld [vmem:[%s0 + $0xa0] sm:$0xff]
  %v309 = vld [vmem:[%s0 + $0xa8] sm:$0xff]
  %v310 = vld [vmem:[%s0 + $0xb0] sm:$0xff]
  %v311 = vld [vmem:[%s0 + $0xb8] sm:$0xf]
  %v312 = vld [vmem:[%s0 + $0xc0] sm:$0xff]
  %v313 = vld [vmem:[%s0 + $0xc8] sm:$0xff]
  %v314 = vld [vmem:[%s0 + $0xd0] sm:$0xff]
  %v315 = vld [vmem:[%s0 + $0xd8] sm:$0xf]
  %v316 = vld [vmem:[%s0 + $0xe0] sm:$0xff]
  %v317 = vld [vmem:[%s0 + $0xe8] sm:$0xff]
  %v318 = vld [vmem:[%s0 + $0xf0] sm:$0xff]
  %v319 = vld [vmem:[%s0 + $0xf8] sm:$0xf]
  %v320 = vld [vmem:[%s0 + $0x100] sm:$0xff]
  %v321 = vld [vmem:[%s0 + $0x108] sm:$0xff]
  %v322 = vld [vmem:[%s0 + $0x110] sm:$0xff]
  %v323 = vld [vmem:[%s0 + $0x118] sm:$0xf]
  %v324 = vld [vmem:[%s0 + $0x120] sm:$0xff]
  %v325 = vld [vmem:[%s0 + $0x128] sm:$0xff]
  %v326 = vld [vmem:[%s0 + $0x130] sm:$0xff]
  %v327 = vld [vmem:[%s0 + $0x138] sm:$0xf]
  %v328 = vld [vmem:[%s0 + $0x140] sm:$0xff]
  %v329 = vld [vmem:[%s0 + $0x148] sm:$0xff]
  %v330 = vld [vmem:[%s0 + $0x150] sm:$0xff]
  %v331 = vld [vmem:[%s0 + $0x158] sm:$0xf]
  %v332 = vld [vmem:[%s0 + $0x160] sm:$0xff]
  %v333 = vld [vmem:[%s0 + $0x168] sm:$0xff]
  %v334 = vld [vmem:[%s0 + $0x170] sm:$0xff]
  %v335 = vld [vmem:[%s0 + $0x178] sm:$0xf]
  %v336 = vld [vmem:[%s0 + $0x180] sm:$0xff]
  %v337 = vld [vmem:[%s0 + $0x188] sm:$0xff]
  %v338 = vld [vmem:[%s0 + $0x190] sm:$0xff]
  %v339 = vld [vmem:[%s0 + $0x198] sm:$0xf]
  %v340 = vld [vmem:[%s0 + $0x1a0] sm:$0xff]
  %v341 = vld [vmem:[%s0 + $0x1a8] sm:$0xff]
  %v342 = vld [vmem:[%s0 + $0x1b0] sm:$0xff]
  %v343 = vld [vmem:[%s0 + $0x1b8] sm:$0xf]
  %v344 = vld [vmem:[%s0 + $0x1c0] sm:$0xff]
  %v345 = vld [vmem:[%s0 + $0x1c8] sm:$0xff]
  %v346 = vld [vmem:[%s0 + $0x1d0] sm:$0xff]
  %v347 = vld [vmem:[%s0 + $0x1d8] sm:$0xf]
  %v348 = vld [vmem:[%s0 + $0x1e0] sm:$0xff]
  %v349 = vld [vmem:[%s0 + $0x1e8] sm:$0xff]
  %v350 = vld [vmem:[%s0 + $0x1f0] sm:$0xff]
  %v351 = vld [vmem:[%s0 + $0x1f8] sm:$0xf]
  %v352 = vld [vmem:[%s0 + $0x200] sm:$0xff]
  %v353 = vld [vmem:[%s0 + $0x208] sm:$0xff]
  %v354 = vld [vmem:[%s0 + $0x210] sm:$0xff]
  %v355 = vld [vmem:[%s0 + $0x218] sm:$0xf]
  %v356 = vld [vmem:[%s0 + $0x220] sm:$0xff]
  %v357 = vld [vmem:[%s0 + $0x228] sm:$0xff]
  %v358 = vld [vmem:[%s0 + $0x230] sm:$0xff]
  %v359 = vld [vmem:[%s0 + $0x238] sm:$0xf]
  %v360 = vld [vmem:[%s0 + $0x240] sm:$0xff]
  %v361 = vld [vmem:[%s0 + $0x248] sm:$0xff]
  %v362 = vld [vmem:[%s0 + $0x250] sm:$0xff]
  %v363 = vld [vmem:[%s0 + $0x258] sm:$0xf]
  %v364 = vld [vmem:[%s0 + $0x260] sm:$0xff]
  %v365 = vld [vmem:[%s0 + $0x268] sm:$0xff]
  %v366 = vld [vmem:[%s0 + $0x270] sm:$0xff]
  %v367 = vld [vmem:[%s0 + $0x278] sm:$0xf]
  %v368 = vld [vmem:[%s0 + $0x280] sm:$0xff]
  %v369 = vld [vmem:[%s0 + $0x288] sm:$0xff]
  %v370 = vld [vmem:[%s0 + $0x290] sm:$0xff]
  %v371 = vld [vmem:[%s0 + $0x298] sm:$0xf]
  %v372 = vld [vmem:[%s0 + $0x2a0] sm:$0xff]
  %v373 = vld [vmem:[%s0 + $0x2a8] sm:$0xff]
  %v374 = vld [vmem:[%s0 + $0x2b0] sm:$0xff]
  %v375 = vld [vmem:[%s0 + $0x2b8] sm:$0xf]
  %v376 = vld [vmem:[%s0 + $0x2c0] sm:$0xff]
  %v377 = vld [vmem:[%s0 + $0x2c8] sm:$0xff]
  %v378 = vld [vmem:[%s0 + $0x2d0] sm:$0xff]
  %v379 = vld [vmem:[%s0 + $0x2d8] sm:$0xf]
  %v380 = vld [vmem:[%s0 + $0x2e0] sm:$0xff]
  %v381 = vld [vmem:[%s0 + $0x2e8] sm:$0xff]
  %v382 = vld [vmem:[%s0 + $0x2f0] sm:$0xff]
  %v383 = vld [vmem:[%s0 + $0x2f8] sm:$0xf]
  %v384 = vld [vmem:[%s0 + $0x300] sm:$0xff]
  %v385 = vld [vmem:[%s0 + $0x308] sm:$0xff]
  %v386 = vld [vmem:[%s0 + $0x310] sm:$0xff]
  %v387 = vld [vmem:[%s0 + $0x318] sm:$0xf]
  %v388 = vld [vmem:[%s0 + $0x320] sm:$0xff]
  %v389 = vld [vmem:[%s0 + $0x328] sm:$0xff]
  %v390 = vld [vmem:[%s0 + $0x330] sm:$0xff]
  %v391 = vld [vmem:[%s0 + $0x338] sm:$0xf]
  %v392 = vld [vmem:[%s0 + $0x340] sm:$0xff]
  %v393 = vld [vmem:[%s0 + $0x348] sm:$0xff]
  %v394 = vld [vmem:[%s0 + $0x350] sm:$0xff]
  %v395 = vld [vmem:[%s0 + $0x358] sm:$0xf]
  %v396 = vld [vmem:[%s0 + $0x360] sm:$0xff]
  %v397 = vld [vmem:[%s0 + $0x368] sm:$0xff]
  %v398 = vld [vmem:[%s0 + $0x370] sm:$0xff]
  %v399 = vld [vmem:[%s0 + $0x378] sm:$0xf]
  %v400 = vld [vmem:[%s0 + $0x380] sm:$0xff]
  %v401 = vld [vmem:[%s0 + $0x388] sm:$0xff]
  %v402 = vld [vmem:[%s0 + $0x390] sm:$0xff]
  %v403 = vld [vmem:[%s0 + $0x398] sm:$0xf]
  %v404 = vld [vmem:[%s0 + $0x3a0] sm:$0xff]
  %v405 = vld [vmem:[%s0 + $0x3a8] sm:$0xff]
  %v406 = vld [vmem:[%s0 + $0x3b0] sm:$0xff]
  %v407 = vld [vmem:[%s0 + $0x3b8] sm:$0xf]
  %v408 = vld [vmem:[%s0 + $0x3c0] sm:$0xff]
  %v409 = vld [vmem:[%s0 + $0x3c8] sm:$0xff]
  %v410 = vld [vmem:[%s0 + $0x3d0] sm:$0xff]
  %v411 = vld [vmem:[%s0 + $0x3d8] sm:$0xf]
  %v412 = vld [vmem:[%s0 + $0x3e0] sm:$0xff]
  %v413 = vld [vmem:[%s0 + $0x3e8] sm:$0xff]
  %v414 = vld [vmem:[%s0 + $0x3f0] sm:$0xff]
  %v415 = vld [vmem:[%s0 + $0x3f8] sm:$0xf]
  %v416 = vld [vmem:[%s0 + $0x400] sm:$0xff]
  %v417 = vld [vmem:[%s0 + $0x408] sm:$0xff]
  %v418 = vld [vmem:[%s0 + $0x410] sm:$0xff]
  %v419 = vld [vmem:[%s0 + $0x418] sm:$0xf]
  %v420 = vld [vmem:[%s0 + $0x420] sm:$0xff]
  %v421 = vld [vmem:[%s0 + $0x428] sm:$0xff]
  %v422 = vld [vmem:[%s0 + $0x430] sm:$0xff]
  %v423 = vld [vmem:[%s0 + $0x438] sm:$0xf]
  %v424 = vld [vmem:[%s0 + $0x440] sm:$0xff]
  %v425 = vld [vmem:[%s0 + $0x448] sm:$0xff]
  %v426 = vld [vmem:[%s0 + $0x450] sm:$0xff]
  %v427 = vld [vmem:[%s0 + $0x458] sm:$0xf]
  %v428 = vld [vmem:[%s0 + $0x460] sm:$0xff]
  %v429 = vld [vmem:[%s0 + $0x468] sm:$0xff]
  %v430 = vld [vmem:[%s0 + $0x470] sm:$0xff]
  %v431 = vld [vmem:[%s0 + $0x478] sm:$0xf]
  %v432 = vld [vmem:[%s0 + $0x480] sm:$0xff]
  %v433 = vld [vmem:[%s0 + $0x488] sm:$0xff]
  %v434 = vld [vmem:[%s0 + $0x490] sm:$0xff]
  %v435 = vld [vmem:[%s0 + $0x498] sm:$0xf]
  %v436 = vld [vmem:[%s0 + $0x4a0] sm:$0xff]
  %v437 = vld [vmem:[%s0 + $0x4a8] sm:$0xff]
  %v438 = vld [vmem:[%s0 + $0x4b0] sm:$0xff]
  %v439 = vld [vmem:[%s0 + $0x4b8] sm:$0xf]
  %v440 = vld [vmem:[%s0 + $0x4c0] sm:$0xff]
  %v441 = vld [vmem:[%s0 + $0x4c8] sm:$0xff]
  %v442 = vld [vmem:[%s0 + $0x4d0] sm:$0xff]
  %v443 = vld [vmem:[%s0 + $0x4d8] sm:$0xf]
  %v444 = vld [vmem:[%s0 + $0x4e0] sm:$0xff]
  %v445 = vld [vmem:[%s0 + $0x4e8] sm:$0xff]
  %v446 = vld [vmem:[%s0 + $0x4f0] sm:$0xff]
  %v447 = vld [vmem:[%s0 + $0x4f8] sm:$0xf]
  %v448 = vld [vmem:[%s0 + $0x500] sm:$0xff]
  %v449 = vld [vmem:[%s0 + $0x508] sm:$0xff]
  %v450 = vld [vmem:[%s0 + $0x510] sm:$0xff]
  %v451 = vld [vmem:[%s0 + $0x518] sm:$0xf]
  %v452 = vld [vmem:[%s0 + $0x520] sm:$0xff]
  %v453 = vld [vmem:[%s0 + $0x528] sm:$0xff]
  %v454 = vld [vmem:[%s0 + $0x530] sm:$0xff]
  %v455 = vld [vmem:[%s0 + $0x538] sm:$0xf]
  %v456 = vld [vmem:[%s0 + $0x540] sm:$0xff]
  %v457 = vld [vmem:[%s0 + $0x548] sm:$0xff]
  %v458 = vld [vmem:[%s0 + $0x550] sm:$0xff]
  %v459 = vld [vmem:[%s0 + $0x558] sm:$0xf]
  %v460 = vld [vmem:[%s0 + $0x560] sm:$0xff]
  %v461 = vld [vmem:[%s0 + $0x568] sm:$0xff]
  %v462 = vld [vmem:[%s0 + $0x570] sm:$0xff]
  %v463 = vld [vmem:[%s0 + $0x578] sm:$0xf]
  %v464 = vld [vmem:[%s0 + $0x580] sm:$0xff]
  %v465 = vld [vmem:[%s0 + $0x588] sm:$0xff]
  %v466 = vld [vmem:[%s0 + $0x590] sm:$0xff]
  %v467 = vld [vmem:[%s0 + $0x598] sm:$0xf]
  %v468 = vld [vmem:[%s0 + $0x5a0] sm:$0xff]
  %v469 = vld [vmem:[%s0 + $0x5a8] sm:$0xff]
  %v470 = vld [vmem:[%s0 + $0x5b0] sm:$0xff]
  %v471 = vld [vmem:[%s0 + $0x5b8] sm:$0xf]
  %v472 = vld [vmem:[%s0 + $0x5c0] sm:$0xff]
  %v473 = vld [vmem:[%s0 + $0x5c8] sm:$0xff]
  %v474 = vld [vmem:[%s0 + $0x5d0] sm:$0xff]
  %v475 = vld [vmem:[%s0 + $0x5d8] sm:$0xf]
  %v476 = vld [vmem:[%s0 + $0x5e0] sm:$0xff]
  %v477 = vld [vmem:[%s0 + $0x5e8] sm:$0xff]
  %v478 = vld [vmem:[%s0 + $0x5f0] sm:$0xff]
  %v479 = vld [vmem:[%s0 + $0x5f8] sm:$0xf]
  %v480 = vld [vmem:[%s0 + $0x600] sm:$0xff]
  %v481 = vld [vmem:[%s0 + $0x608] sm:$0xff]
  %v482 = vld [vmem:[%s0 + $0x610] sm:$0xff]
  %v483 = vld [vmem:[%s0 + $0x618] sm:$0xf]
  %v484 = vld [vmem:[%s0 + $0x620] sm:$0xff]
  %v485 = vld [vmem:[%s0 + $0x628] sm:$0xff]
  %v486 = vld [vmem:[%s0 + $0x630] sm:$0xff]
  %v487 = vld [vmem:[%s0 + $0x638] sm:$0xf]
  %v488 = vld [vmem:[%s0 + $0x640] sm:$0xff]
  %v489 = vld [vmem:[%s0 + $0x648] sm:$0xff]
  %v490 = vld [vmem:[%s0 + $0x650] sm:$0xff]
  %v491 = vld [vmem:[%s0 + $0x658] sm:$0xf]
  %v492 = vld [vmem:[%s0 + $0x660] sm:$0xff]
  %v493 = vld [vmem:[%s0 + $0x668] sm:$0xff]
  %v494 = vld [vmem:[%s0 + $0x670] sm:$0xff]
  %v495 = vld [vmem:[%s0 + $0x678] sm:$0xf]
  %v496 = vld [vmem:[%s0 + $0x680] sm:$0xff]
  %v497 = vld [vmem:[%s0 + $0x688] sm:$0xff]
  %v498 = vld [vmem:[%s0 + $0x690] sm:$0xff]
  %v499 = vld [vmem:[%s0 + $0x698] sm:$0xf]
  %v500 = vld [vmem:[%s0 + $0x6a0] sm:$0xff]
  %v501 = vld [vmem:[%s0 + $0x6a8] sm:$0xff]
  %v502 = vld [vmem:[%s0 + $0x6b0] sm:$0xff]
  %v503 = vld [vmem:[%s0 + $0x6b8] sm:$0xf]
  %v504 = vld [vmem:[%s0 + $0x6c0] sm:$0xff]
  %v505 = vld [vmem:[%s0 + $0x6c8] sm:$0xff]
  %v506 = vld [vmem:[%s0 + $0x6d0] sm:$0xff]
  %v507 = vld [vmem:[%s0 + $0x6d8] sm:$0xf]
  %v508 = vld [vmem:[%s0 + $0x6e0] sm:$0xff]
  %v509 = vld [vmem:[%s0 + $0x6e8] sm:$0xff]
  %v510 = vld [vmem:[%s0 + $0x6f0] sm:$0xff]
  %v511 = vld [vmem:[%s0 + $0x6f8] sm:$0xf]
  %512 = vst.msk [vmem:[#allocation3 + $0x1] sm:$0xff] %vm46, %v288
  %513 = vst.msk [vmem:[#allocation3 + $0x9] sm:$0xff] %vm46, %v289
  %514 = vst.msk [vmem:[#allocation3 + $0x11] sm:$0xff] %vm46, %v290
  %vm515 = vcmask 3072
  %516 = vst.msk [vmem:[#allocation3 + $0x19] sm:$0xf] %vm515, %v291
  %517 = vst.msk [vmem:[#allocation3 + $0x21] sm:$0xff] %vm46, %v296
  %518 = vst.msk [vmem:[#allocation3 + $0x29] sm:$0xff] %vm46, %v297
  %519 = vst.msk [vmem:[#allocation3 + $0x31] sm:$0xff] %vm46, %v298
  %520 = vst.msk [vmem:[#allocation3 + $0x39] sm:$0xf] %vm515, %v299
  %521 = vst.msk [vmem:[#allocation3 + $0x41] sm:$0xff] %vm46, %v304
  %522 = vst.msk [vmem:[#allocation3 + $0x49] sm:$0xff] %vm46, %v305
  %523 = vst.msk [vmem:[#allocation3 + $0x51] sm:$0xff] %vm46, %v306
  %524 = vst.msk [vmem:[#allocation3 + $0x59] sm:$0xf] %vm515, %v307
  %525 = vst.msk [vmem:[#allocation3 + $0x61] sm:$0xff] %vm46, %v312
  %526 = vst.msk [vmem:[#allocation3 + $0x69] sm:$0xff] %vm46, %v313
  %527 = vst.msk [vmem:[#allocation3 + $0x71] sm:$0xff] %vm46, %v314
  %528 = vst.msk [vmem:[#allocation3 + $0x79] sm:$0xf] %vm515, %v315
  %529 = vst.msk [vmem:[#allocation3 + $0x81] sm:$0xff] %vm46, %v320
  %530 = vst.msk [vmem:[#allocation3 + $0x89] sm:$0xff] %vm46, %v321
  %531 = vst.msk [vmem:[#allocation3 + $0x91] sm:$0xff] %vm46, %v322
  %532 = vst.msk [vmem:[#allocation3 + $0x99] sm:$0xf] %vm515, %v323
  %533 = vst.msk [vmem:[#allocation3 + $0xa1] sm:$0xff] %vm46, %v328
  %534 = vst.msk [vmem:[#allocation3 + $0xa9] sm:$0xff] %vm46, %v329
  %535 = vst.msk [vmem:[#allocation3 + $0xb1] sm:$0xff] %vm46, %v330
  %536 = vst.msk [vmem:[#allocation3 + $0xb9] sm:$0xf] %vm515, %v331
  %537 = vst.msk [vmem:[#allocation3 + $0xc1] sm:$0xff] %vm46, %v336
  %538 = vst.msk [vmem:[#allocation3 + $0xc9] sm:$0xff] %vm46, %v337
  %539 = vst.msk [vmem:[#allocation3 + $0xd1] sm:$0xff] %vm46, %v338
  %540 = vst.msk [vmem:[#allocation3 + $0xd9] sm:$0xf] %vm515, %v339
  %541 = vst.msk [vmem:[#allocation3 + $0xe1] sm:$0xff] %vm46, %v344
  %542 = vst.msk [vmem:[#allocation3 + $0xe9] sm:$0xff] %vm46, %v345
  %543 = vst.msk [vmem:[#allocation3 + $0xf1] sm:$0xff] %vm46, %v346
  %544 = vst.msk [vmem:[#allocation3 + $0xf9] sm:$0xf] %vm515, %v347
  %545 = vst.msk [vmem:[#allocation3 + $0x101] sm:$0xff] %vm46, %v352
  %546 = vst.msk [vmem:[#allocation3 + $0x109] sm:$0xff] %vm46, %v353
  %547 = vst.msk [vmem:[#allocation3 + $0x111] sm:$0xff] %vm46, %v354
  %548 = vst.msk [vmem:[#allocation3 + $0x119] sm:$0xf] %vm515, %v355
  %549 = vst.msk [vmem:[#allocation3 + $0x121] sm:$0xff] %vm46, %v360
  %550 = vst.msk [vmem:[#allocation3 + $0x129] sm:$0xff] %vm46, %v361
  %551 = vst.msk [vmem:[#allocation3 + $0x131] sm:$0xff] %vm46, %v362
  %552 = vst.msk [vmem:[#allocation3 + $0x139] sm:$0xf] %vm515, %v363
  %553 = vst.msk [vmem:[#allocation3 + $0x141] sm:$0xff] %vm46, %v368
  %554 = vst.msk [vmem:[#allocation3 + $0x149] sm:$0xff] %vm46, %v369
  %555 = vst.msk [vmem:[#allocation3 + $0x151] sm:$0xff] %vm46, %v370
  %556 = vst.msk [vmem:[#allocation3 + $0x159] sm:$0xf] %vm515, %v371
  %557 = vst.msk [vmem:[#allocation3 + $0x161] sm:$0xff] %vm46, %v376
  %558 = vst.msk [vmem:[#allocation3 + $0x169] sm:$0xff] %vm46, %v377
  %559 = vst.msk [vmem:[#allocation3 + $0x171] sm:$0xff] %vm46, %v378
  %560 = vst.msk [vmem:[#allocation3 + $0x179] sm:$0xf] %vm515, %v379
  %561 = vst.msk [vmem:[#allocation3 + $0x181] sm:$0xff] %vm46, %v384
  %562 = vst.msk [vmem:[#allocation3 + $0x189] sm:$0xff] %vm46, %v385
  %563 = vst.msk [vmem:[#allocation3 + $0x191] sm:$0xff] %vm46, %v386
  %564 = vst.msk [vmem:[#allocation3 + $0x199] sm:$0xf] %vm515, %v387
  %565 = vst.msk [vmem:[#allocation3 + $0x1a1] sm:$0xff] %vm46, %v392
  %566 = vst.msk [vmem:[#allocation3 + $0x1a9] sm:$0xff] %vm46, %v393
  %567 = vst.msk [vmem:[#allocation3 + $0x1b1] sm:$0xff] %vm46, %v394
  %568 = vst.msk [vmem:[#allocation3 + $0x1b9] sm:$0xf] %vm515, %v395
  %569 = vst.msk [vmem:[#allocation3 + $0x1e1] sm:$0xff] %vm46, %v400
  %570 = vst.msk [vmem:[#allocation3 + $0x1e9] sm:$0xff] %vm46, %v401
  %571 = vst.msk [vmem:[#allocation3 + $0x1f1] sm:$0xff] %vm46, %v402
  %572 = vst.msk [vmem:[#allocation3 + $0x1f9] sm:$0xf] %vm515, %v403
  %573 = vst.msk [vmem:[#allocation3 + $0x201] sm:$0xff] %vm46, %v408
  %574 = vst.msk [vmem:[#allocation3 + $0x209] sm:$0xff] %vm46, %v409
  %575 = vst.msk [vmem:[#allocation3 + $0x211] sm:$0xff] %vm46, %v410
  %576 = vst.msk [vmem:[#allocation3 + $0x219] sm:$0xf] %vm515, %v411
  %577 = vst.msk [vmem:[#allocation3 + $0x221] sm:$0xff] %vm46, %v416
  %578 = vst.msk [vmem:[#allocation3 + $0x229] sm:$0xff] %vm46, %v417
  %579 = vst.msk [vmem:[#allocation3 + $0x231] sm:$0xff] %vm46, %v418
  %580 = vst.msk [vmem:[#allocation3 + $0x239] sm:$0xf] %vm515, %v419
  %581 = vst.msk [vmem:[#allocation3 + $0x241] sm:$0xff] %vm46, %v424
  %582 = vst.msk [vmem:[#allocation3 + $0x249] sm:$0xff] %vm46, %v425
  %583 = vst.msk [vmem:[#allocation3 + $0x251] sm:$0xff] %vm46, %v426
  %584 = vst.msk [vmem:[#allocation3 + $0x259] sm:$0xf] %vm515, %v427
  %585 = vst.msk [vmem:[#allocation3 + $0x261] sm:$0xff] %vm46, %v432
  %586 = vst.msk [vmem:[#allocation3 + $0x269] sm:$0xff] %vm46, %v433
  %587 = vst.msk [vmem:[#allocation3 + $0x271] sm:$0xff] %vm46, %v434
  %588 = vst.msk [vmem:[#allocation3 + $0x279] sm:$0xf] %vm515, %v435
  %589 = vst.msk [vmem:[#allocation3 + $0x281] sm:$0xff] %vm46, %v440
  %590 = vst.msk [vmem:[#allocation3 + $0x289] sm:$0xff] %vm46, %v441
  %591 = vst.msk [vmem:[#allocation3 + $0x291] sm:$0xff] %vm46, %v442
  %592 = vst.msk [vmem:[#allocation3 + $0x299] sm:$0xf] %vm515, %v443
  %593 = vst.msk [vmem:[#allocation3 + $0x2a1] sm:$0xff] %vm46, %v448
  %594 = vst.msk [vmem:[#allocation3 + $0x2a9] sm:$0xff] %vm46, %v449
  %595 = vst.msk [vmem:[#allocation3 + $0x2b1] sm:$0xff] %vm46, %v450
  %596 = vst.msk [vmem:[#allocation3 + $0x2b9] sm:$0xf] %vm515, %v451
  %597 = vst.msk [vmem:[#allocation3 + $0x2c1] sm:$0xff] %vm46, %v456
  %598 = vst.msk [vmem:[#allocation3 + $0x2c9] sm:$0xff] %vm46, %v457
  %599 = vst.msk [vmem:[#allocation3 + $0x2d1] sm:$0xff] %vm46, %v458
  %600 = vst.msk [vmem:[#allocation3 + $0x2d9] sm:$0xf] %vm515, %v459
  %601 = vst.msk [vmem:[#allocation3 + $0x2e1] sm:$0xff] %vm46, %v464
  %602 = vst.msk [vmem:[#allocation3 + $0x2e9] sm:$0xff] %vm46, %v465
  %603 = vst.msk [vmem:[#allocation3 + $0x2f1] sm:$0xff] %vm46, %v466
  %604 = vst.msk [vmem:[#allocation3 + $0x2f9] sm:$0xf] %vm515, %v467
  %605 = vst.msk [vmem:[#allocation3 + $0x301] sm:$0xff] %vm46, %v472
  %606 = vst.msk [vmem:[#allocation3 + $0x309] sm:$0xff] %vm46, %v473
  %607 = vst.msk [vmem:[#allocation3 + $0x311] sm:$0xff] %vm46, %v474
  %608 = vst.msk [vmem:[#allocation3 + $0x319] sm:$0xf] %vm515, %v475
  %609 = vst.msk [vmem:[#allocation3 + $0x321] sm:$0xff] %vm46, %v480
  %610 = vst.msk [vmem:[#allocation3 + $0x329] sm:$0xff] %vm46, %v481
  %611 = vst.msk [vmem:[#allocation3 + $0x331] sm:$0xff] %vm46, %v482
  %612 = vst.msk [vmem:[#allocation3 + $0x339] sm:$0xf] %vm515, %v483
  %613 = vst.msk [vmem:[#allocation3 + $0x341] sm:$0xff] %vm46, %v488
  %614 = vst.msk [vmem:[#allocation3 + $0x349] sm:$0xff] %vm46, %v489
  %615 = vst.msk [vmem:[#allocation3 + $0x351] sm:$0xff] %vm46, %v490
  %616 = vst.msk [vmem:[#allocation3 + $0x359] sm:$0xf] %vm515, %v491
  %617 = vst.msk [vmem:[#allocation3 + $0x361] sm:$0xff] %vm46, %v496
  %618 = vst.msk [vmem:[#allocation3 + $0x369] sm:$0xff] %vm46, %v497
  %619 = vst.msk [vmem:[#allocation3 + $0x371] sm:$0xff] %vm46, %v498
  %620 = vst.msk [vmem:[#allocation3 + $0x379] sm:$0xf] %vm515, %v499
  %621 = vst.msk [vmem:[#allocation3 + $0x381] sm:$0xff] %vm46, %v504
  %622 = vst.msk [vmem:[#allocation3 + $0x389] sm:$0xff] %vm46, %v505
  %623 = vst.msk [vmem:[#allocation3 + $0x391] sm:$0xff] %vm46, %v506
  %624 = vst.msk [vmem:[#allocation3 + $0x399] sm:$0xf] %vm515, %v507
  %s625 = scalar_lea.vmem [#allocation2], 32
  %626 = vst.msk [vmem:[%s625 + $0x1] sm:$0xff] %vm46, %v292
  %627 = vst.msk [vmem:[%s625 + $0x9] sm:$0xff] %vm46, %v293
  %628 = vst.msk [vmem:[%s625 + $0x11] sm:$0xff] %vm46, %v294
  %629 = vst.msk [vmem:[%s625 + $0x19] sm:$0xf] %vm515, %v295
  %630 = vst.msk [vmem:[%s625 + $0x21] sm:$0xff] %vm46, %v300
  %631 = vst.msk [vmem:[%s625 + $0x29] sm:$0xff] %vm46, %v301
  %632 = vst.msk [vmem:[%s625 + $0x31] sm:$0xff] %vm46, %v302
  %633 = vst.msk [vmem:[%s625 + $0x39] sm:$0xf] %vm515, %v303
  %634 = vst.msk [vmem:[%s625 + $0x41] sm:$0xff] %vm46, %v308
  %635 = vst.msk [vmem:[%s625 + $0x49] sm:$0xff] %vm46, %v309
  %636 = vst.msk [vmem:[%s625 + $0x51] sm:$0xff] %vm46, %v310
  %637 = vst.msk [vmem:[%s625 + $0x59] sm:$0xf] %vm515, %v311
  %638 = vst.msk [vmem:[%s625 + $0x61] sm:$0xff] %vm46, %v316
  %639 = vst.msk [vmem:[%s625 + $0x69] sm:$0xff] %vm46, %v317
  %640 = vst.msk [vmem:[%s625 + $0x71] sm:$0xff] %vm46, %v318
  %641 = vst.msk [vmem:[%s625 + $0x79] sm:$0xf] %vm515, %v319
  %642 = vst.msk [vmem:[%s625 + $0x81] sm:$0xff] %vm46, %v324
  %643 = vst.msk [vmem:[%s625 + $0x89] sm:$0xff] %vm46, %v325
  %644 = vst.msk [vmem:[%s625 + $0x91] sm:$0xff] %vm46, %v326
  %645 = vst.msk [vmem:[%s625 + $0x99] sm:$0xf] %vm515, %v327
  %646 = vst.msk [vmem:[%s625 + $0xa1] sm:$0xff] %vm46, %v332
  %647 = vst.msk [vmem:[%s625 + $0xa9] sm:$0xff] %vm46, %v333
  %648 = vst.msk [vmem:[%s625 + $0xb1] sm:$0xff] %vm46, %v334
  %649 = vst.msk [vmem:[%s625 + $0xb9] sm:$0xf] %vm515, %v335
  %650 = vst.msk [vmem:[%s625 + $0xc1] sm:$0xff] %vm46, %v340
  %651 = vst.msk [vmem:[%s625 + $0xc9] sm:$0xff] %vm46, %v341
  %652 = vst.msk [vmem:[%s625 + $0xd1] sm:$0xff] %vm46, %v342
  %653 = vst.msk [vmem:[%s625 + $0xd9] sm:$0xf] %vm515, %v343
  %654 = vst.msk [vmem:[%s625 + $0xe1] sm:$0xff] %vm46, %v348
  %655 = vst.msk [vmem:[%s625 + $0xe9] sm:$0xff] %vm46, %v349
  %656 = vst.msk [vmem:[%s625 + $0xf1] sm:$0xff] %vm46, %v350
  %657 = vst.msk [vmem:[%s625 + $0xf9] sm:$0xf] %vm515, %v351
  %658 = vst.msk [vmem:[%s625 + $0x101] sm:$0xff] %vm46, %v356
  %659 = vst.msk [vmem:[%s625 + $0x109] sm:$0xff] %vm46, %v357
  %660 = vst.msk [vmem:[%s625 + $0x111] sm:$0xff] %vm46, %v358
  %661 = vst.msk [vmem:[%s625 + $0x119] sm:$0xf] %vm515, %v359
  %662 = vst.msk [vmem:[%s625 + $0x121] sm:$0xff] %vm46, %v364
  %663 = vst.msk [vmem:[%s625 + $0x129] sm:$0xff] %vm46, %v365
  %664 = vst.msk [vmem:[%s625 + $0x131] sm:$0xff] %vm46, %v366
  %665 = vst.msk [vmem:[%s625 + $0x139] sm:$0xf] %vm515, %v367
  %666 = vst.msk [vmem:[%s625 + $0x141] sm:$0xff] %vm46, %v372
  %667 = vst.msk [vmem:[%s625 + $0x149] sm:$0xff] %vm46, %v373
  %668 = vst.msk [vmem:[%s625 + $0x151] sm:$0xff] %vm46, %v374
  %669 = vst.msk [vmem:[%s625 + $0x159] sm:$0xf] %vm515, %v375
  %670 = vst.msk [vmem:[%s625 + $0x161] sm:$0xff] %vm46, %v380
  %671 = vst.msk [vmem:[%s625 + $0x169] sm:$0xff] %vm46, %v381
  %672 = vst.msk [vmem:[%s625 + $0x171] sm:$0xff] %vm46, %v382
  %673 = vst.msk [vmem:[%s625 + $0x179] sm:$0xf] %vm515, %v383
  %674 = vst.msk [vmem:[%s625 + $0x181] sm:$0xff] %vm46, %v388
  %675 = vst.msk [vmem:[%s625 + $0x189] sm:$0xff] %vm46, %v389
  %676 = vst.msk [vmem:[%s625 + $0x191] sm:$0xff] %vm46, %v390
  %677 = vst.msk [vmem:[%s625 + $0x199] sm:$0xf] %vm515, %v391
  %678 = vst.msk [vmem:[%s625 + $0x1a1] sm:$0xff] %vm46, %v396
  %679 = vst.msk [vmem:[%s625 + $0x1a9] sm:$0xff] %vm46, %v397
  %680 = vst.msk [vmem:[%s625 + $0x1b1] sm:$0xff] %vm46, %v398
  %681 = vst.msk [vmem:[%s625 + $0x1b9] sm:$0xf] %vm515, %v399
  %682 = vst.msk [vmem:[%s625 + $0x1e1] sm:$0xff] %vm46, %v404
  %683 = vst.msk [vmem:[%s625 + $0x1e9] sm:$0xff] %vm46, %v405
  %684 = vst.msk [vmem:[%s625 + $0x1f1] sm:$0xff] %vm46, %v406
  %685 = vst.msk [vmem:[%s625 + $0x1f9] sm:$0xf] %vm515, %v407
  %686 = vst.msk [vmem:[%s625 + $0x201] sm:$0xff] %vm46, %v412
  %687 = vst.msk [vmem:[%s625 + $0x209] sm:$0xff] %vm46, %v413
  %688 = vst.msk [vmem:[%s625 + $0x211] sm:$0xff] %vm46, %v414
  %689 = vst.msk [vmem:[%s625 + $0x219] sm:$0xf] %vm515, %v415
  %690 = vst.msk [vmem:[%s625 + $0x221] sm:$0xff] %vm46, %v420
  %691 = vst.msk [vmem:[%s625 + $0x229] sm:$0xff] %vm46, %v421
  %692 = vst.msk [vmem:[%s625 + $0x231] sm:$0xff] %vm46, %v422
  %693 = vst.msk [vmem:[%s625 + $0x239] sm:$0xf] %vm515, %v423
  %694 = vst.msk [vmem:[%s625 + $0x241] sm:$0xff] %vm46, %v428
  %695 = vst.msk [vmem:[%s625 + $0x249] sm:$0xff] %vm46, %v429
  %696 = vst.msk [vmem:[%s625 + $0x251] sm:$0xff] %vm46, %v430
  %697 = vst.msk [vmem:[%s625 + $0x259] sm:$0xf] %vm515, %v431
  %698 = vst.msk [vmem:[%s625 + $0x261] sm:$0xff] %vm46, %v436
  %699 = vst.msk [vmem:[%s625 + $0x269] sm:$0xff] %vm46, %v437
  %700 = vst.msk [vmem:[%s625 + $0x271] sm:$0xff] %vm46, %v438
  %701 = vst.msk [vmem:[%s625 + $0x279] sm:$0xf] %vm515, %v439
  %702 = vst.msk [vmem:[%s625 + $0x281] sm:$0xff] %vm46, %v444
  %703 = vst.msk [vmem:[%s625 + $0x289] sm:$0xff] %vm46, %v445
  %704 = vst.msk [vmem:[%s625 + $0x291] sm:$0xff] %vm46, %v446
  %705 = vst.msk [vmem:[%s625 + $0x299] sm:$0xf] %vm515, %v447
  %706 = vst.msk [vmem:[%s625 + $0x2a1] sm:$0xff] %vm46, %v452
  %707 = vst.msk [vmem:[%s625 + $0x2a9] sm:$0xff] %vm46, %v453
  %708 = vst.msk [vmem:[%s625 + $0x2b1] sm:$0xff] %vm46, %v454
  %709 = vst.msk [vmem:[%s625 + $0x2b9] sm:$0xf] %vm515, %v455
  %710 = vst.msk [vmem:[%s625 + $0x2c1] sm:$0xff] %vm46, %v460
  %711 = vst.msk [vmem:[%s625 + $0x2c9] sm:$0xff] %vm46, %v461
  %712 = vst.msk [vmem:[%s625 + $0x2d1] sm:$0xff] %vm46, %v462
  %713 = vst.msk [vmem:[%s625 + $0x2d9] sm:$0xf] %vm515, %v463
  %714 = vst.msk [vmem:[%s625 + $0x2e1] sm:$0xff] %vm46, %v468
  %715 = vst.msk [vmem:[%s625 + $0x2e9] sm:$0xff] %vm46, %v469
  %716 = vst.msk [vmem:[%s625 + $0x2f1] sm:$0xff] %vm46, %v470
  %717 = vst.msk [vmem:[%s625 + $0x2f9] sm:$0xf] %vm515, %v471
  %718 = vst.msk [vmem:[%s625 + $0x301] sm:$0xff] %vm46, %v476
  %719 = vst.msk [vmem:[%s625 + $0x309] sm:$0xff] %vm46, %v477
  %720 = vst.msk [vmem:[%s625 + $0x311] sm:$0xff] %vm46, %v478
  %721 = vst.msk [vmem:[%s625 + $0x319] sm:$0xf] %vm515, %v479
  %722 = vst.msk [vmem:[%s625 + $0x321] sm:$0xff] %vm46, %v484
  %723 = vst.msk [vmem:[%s625 + $0x329] sm:$0xff] %vm46, %v485
  %724 = vst.msk [vmem:[%s625 + $0x331] sm:$0xff] %vm46, %v486
  %725 = vst.msk [vmem:[%s625 + $0x339] sm:$0xf] %vm515, %v487
  %726 = vst.msk [vmem:[%s625 + $0x341] sm:$0xff] %vm46, %v492
  %727 = vst.msk [vmem:[%s625 + $0x349] sm:$0xff] %vm46, %v493
  %728 = vst.msk [vmem:[%s625 + $0x351] sm:$0xff] %vm46, %v494
  %729 = vst.msk [vmem:[%s625 + $0x359] sm:$0xf] %vm515, %v495
  %730 = vst.msk [vmem:[%s625 + $0x361] sm:$0xff] %vm46, %v500
  %731 = vst.msk [vmem:[%s625 + $0x369] sm:$0xff] %vm46, %v501
  %732 = vst.msk [vmem:[%s625 + $0x371] sm:$0xff] %vm46, %v502
  %733 = vst.msk [vmem:[%s625 + $0x379] sm:$0xf] %vm515, %v503
  %734 = vst.msk [vmem:[%s625 + $0x381] sm:$0xff] %vm46, %v508
  %735 = vst.msk [vmem:[%s625 + $0x389] sm:$0xff] %vm46, %v509
  %736 = vst.msk [vmem:[%s625 + $0x391] sm:$0xff] %vm46, %v510
  %737 = vst.msk [vmem:[%s625 + $0x399] sm:$0xf] %vm515, %v511
  %v738 = vld [vmem:[%s1] sm:$0xff]
  %v739 = vld [vmem:[%s1 + $0x8] sm:$0x1]
  %v740 = vld [vmem:[%s2] sm:$0x1]
  %v742 = vperm.slane %v740, 0
  %v744 = vadd.f32 %v742, 0.0
  %v745 = vld [vmem:[#allocation2] ss:$2 sm:$0xff]
  %s746 = scalar_lea.vmem [#allocation2], 16
  %v747 = vld [vmem:[%s746] ss:$2 sm:$0x3f]
  %s748 = scalar_lea.vmem [#allocation2], 32
  %v749 = vld [vmem:[%s748] ss:$2 sm:$0xff]
  %s750 = scalar_lea.vmem [#allocation2], 48
  %v751 = vld [vmem:[%s750] ss:$2 sm:$0x3f]
  %s752 = scalar_lea.vmem [#allocation2], 64
  %v753 = vld [vmem:[%s752] ss:$2 sm:$0xff]
  %s754 = scalar_lea.vmem [#allocation2], 80
  %v755 = vld [vmem:[%s754] ss:$2 sm:$0x3f]
  %s756 = scalar_lea.vmem [#allocation2], 96
  %v757 = vld [vmem:[%s756] ss:$2 sm:$0xff]
  %s758 = scalar_lea.vmem [#allocation2], 112
  %v759 = vld [vmem:[%s758] ss:$2 sm:$0x3f]
  %s760 = scalar_lea.vmem [#allocation2], 128
  %v761 = vld [vmem:[%s760] ss:$2 sm:$0xff]
  %s762 = scalar_lea.vmem [#allocation2], 144
  %v763 = vld [vmem:[%s762] ss:$2 sm:$0x3f]
  %s764 = scalar_lea.vmem [#allocation2], 160
  %v765 = vld [vmem:[%s764] ss:$2 sm:$0xff]
  %s766 = scalar_lea.vmem [#allocation2], 176
  %v767 = vld [vmem:[%s766] ss:$2 sm:$0x3f]
  %s768 = scalar_lea.vmem [#allocation2], 192
  %v769 = vld [vmem:[%s768] ss:$2 sm:$0xff]
  %s770 = scalar_lea.vmem [#allocation2], 208
  %v771 = vld [vmem:[%s770] ss:$2 sm:$0x3f]
  %s772 = scalar_lea.vmem [#allocation2], 224
  %v773 = vld [vmem:[%s772] ss:$2 sm:$0xff]
  %s774 = scalar_lea.vmem [#allocation2], 240
  %v775 = vld [vmem:[%s774] ss:$2 sm:$0x3f]
  %s776 = scalar_lea.vmem [#allocation2], 256
  %v777 = vld [vmem:[%s776] ss:$2 sm:$0xff]
  %s778 = scalar_lea.vmem [#allocation2], 272
  %v779 = vld [vmem:[%s778] ss:$2 sm:$0x3f]
  %s780 = scalar_lea.vmem [#allocation2], 288
  %v781 = vld [vmem:[%s780] ss:$2 sm:$0xff]
  %s782 = scalar_lea.vmem [#allocation2], 304
  %v783 = vld [vmem:[%s782] ss:$2 sm:$0x3f]
  %s784 = scalar_lea.vmem [#allocation2], 320
  %v785 = vld [vmem:[%s784] ss:$2 sm:$0xff]
  %s786 = scalar_lea.vmem [#allocation2], 336
  %v787 = vld [vmem:[%s786] ss:$2 sm:$0x3f]
  %s788 = scalar_lea.vmem [#allocation2], 352
  %v789 = vld [vmem:[%s788] ss:$2 sm:$0xff]
  %s790 = scalar_lea.vmem [#allocation2], 368
  %v791 = vld [vmem:[%s790] ss:$2 sm:$0x3f]
  %s792 = scalar_lea.vmem [#allocation2], 384
  %v793 = vld [vmem:[%s792] ss:$2 sm:$0xff]
  %s794 = scalar_lea.vmem [#allocation2], 400
  %v795 = vld [vmem:[%s794] ss:$2 sm:$0x3f]
  %s796 = scalar_lea.vmem [#allocation2], 416
  %v797 = vld [vmem:[%s796] ss:$2 sm:$0xff]
  %s798 = scalar_lea.vmem [#allocation2], 432
  %v799 = vld [vmem:[%s798] ss:$2 sm:$0x3f]
  %s800 = scalar_lea.vmem [#allocation2], 480
  %v801 = vld [vmem:[%s800] ss:$2 sm:$0xff]
  %s802 = scalar_lea.vmem [#allocation2], 496
  %v803 = vld [vmem:[%s802] ss:$2 sm:$0x3f]
  %s804 = scalar_lea.vmem [#allocation2], 512
  %v805 = vld [vmem:[%s804] ss:$2 sm:$0xff]
  %s806 = scalar_lea.vmem [#allocation2], 528
  %v807 = vld [vmem:[%s806] ss:$2 sm:$0x3f]
  %s808 = scalar_lea.vmem [#allocation2], 544
  %v809 = vld [vmem:[%s808] ss:$2 sm:$0xff]
  %s810 = scalar_lea.vmem [#allocation2], 560
  %v811 = vld [vmem:[%s810] ss:$2 sm:$0x3f]
  %s812 = scalar_lea.vmem [#allocation2], 576
  %v813 = vld [vmem:[%s812] ss:$2 sm:$0xff]
  %s814 = scalar_lea.vmem [#allocation2], 592
  %v815 = vld [vmem:[%s814] ss:$2 sm:$0x3f]
  %s816 = scalar_lea.vmem [#allocation2], 608
  %v817 = vld [vmem:[%s816] ss:$2 sm:$0xff]
  %s818 = scalar_lea.vmem [#allocation2], 624
  %v819 = vld [vmem:[%s818] ss:$2 sm:$0x3f]
  %s820 = scalar_lea.vmem [#allocation2], 640
  %v821 = vld [vmem:[%s820] ss:$2 sm:$0xff]
  %s822 = scalar_lea.vmem [#allocation2], 656
  %v823 = vld [vmem:[%s822] ss:$2 sm:$0x3f]
  %s824 = scalar_lea.vmem [#allocation2], 672
  %v825 = vld [vmem:[%s824] ss:$2 sm:$0xff]
  %s826 = scalar_lea.vmem [#allocation2], 688
  %v827 = vld [vmem:[%s826] ss:$2 sm:$0x3f]
  %s828 = scalar_lea.vmem [#allocation2], 704
  %v829 = vld [vmem:[%s828] ss:$2 sm:$0xff]
  %s830 = scalar_lea.vmem [#allocation2], 720
  %v831 = vld [vmem:[%s830] ss:$2 sm:$0x3f]
  %s832 = scalar_lea.vmem [#allocation2], 736
  %v833 = vld [vmem:[%s832] ss:$2 sm:$0xff]
  %s834 = scalar_lea.vmem [#allocation2], 752
  %v835 = vld [vmem:[%s834] ss:$2 sm:$0x3f]
  %s836 = scalar_lea.vmem [#allocation2], 768
  %v837 = vld [vmem:[%s836] ss:$2 sm:$0xff]
  %s838 = scalar_lea.vmem [#allocation2], 784
  %v839 = vld [vmem:[%s838] ss:$2 sm:$0x3f]
  %s840 = scalar_lea.vmem [#allocation2], 800
  %v841 = vld [vmem:[%s840] ss:$2 sm:$0xff]
  %s842 = scalar_lea.vmem [#allocation2], 816
  %v843 = vld [vmem:[%s842] ss:$2 sm:$0x3f]
  %s844 = scalar_lea.vmem [#allocation2], 832
  %v845 = vld [vmem:[%s844] ss:$2 sm:$0xff]
  %s846 = scalar_lea.vmem [#allocation2], 848
  %v847 = vld [vmem:[%s846] ss:$2 sm:$0x3f]
  %s848 = scalar_lea.vmem [#allocation2], 864
  %v849 = vld [vmem:[%s848] ss:$2 sm:$0xff]
  %s850 = scalar_lea.vmem [#allocation2], 880
  %v851 = vld [vmem:[%s850] ss:$2 sm:$0x3f]
  %s852 = scalar_lea.vmem [#allocation2], 896
  %v853 = vld [vmem:[%s852] ss:$2 sm:$0xff]
  %s854 = scalar_lea.vmem [#allocation2], 912
  %v855 = vld [vmem:[%s854] ss:$2 sm:$0x3f]
  %857 = vset.pattern.permute.xlu0 0
  %858 = vperm.xlu0 %857, %v745
  %v859 = vpop.permute.xlu0 %858
  %862 = vset.pattern.permute.xlu0 0
  %863 = vperm.xlu0 %862, %v747
  %v864 = vpop.permute.xlu0 %863
  %867 = vset.pattern.permute.xlu0 0
  %868 = vperm.xlu0 %867, %v749
  %v869 = vpop.permute.xlu0 %868
  %872 = vset.pattern.permute.xlu0 0
  %873 = vperm.xlu0 %872, %v751
  %v874 = vpop.permute.xlu0 %873
  %877 = vset.pattern.permute.xlu0 0
  %878 = vperm.xlu0 %877, %v753
  %v879 = vpop.permute.xlu0 %878
  %882 = vset.pattern.permute.xlu0 0
  %883 = vperm.xlu0 %882, %v755
  %v884 = vpop.permute.xlu0 %883
  %887 = vset.pattern.permute.xlu0 0
  %888 = vperm.xlu0 %887, %v757
  %v889 = vpop.permute.xlu0 %888
  %892 = vset.pattern.permute.xlu0 0
  %893 = vperm.xlu0 %892, %v759
  %v894 = vpop.permute.xlu0 %893
  %897 = vset.pattern.permute.xlu0 0
  %898 = vperm.xlu0 %897, %v761
  %v899 = vpop.permute.xlu0 %898
  %902 = vset.pattern.permute.xlu0 0
  %903 = vperm.xlu0 %902, %v763
  %v904 = vpop.permute.xlu0 %903
  %907 = vset.pattern.permute.xlu0 0
  %908 = vperm.xlu0 %907, %v765
  %v909 = vpop.permute.xlu0 %908
  %912 = vset.pattern.permute.xlu0 0
  %913 = vperm.xlu0 %912, %v767
  %v914 = vpop.permute.xlu0 %913
  %917 = vset.pattern.permute.xlu0 0
  %918 = vperm.xlu0 %917, %v769
  %v919 = vpop.permute.xlu0 %918
  %922 = vset.pattern.permute.xlu0 0
  %923 = vperm.xlu0 %922, %v771
  %v924 = vpop.permute.xlu0 %923
  %927 = vset.pattern.permute.xlu0 0
  %928 = vperm.xlu0 %927, %v773
  %v929 = vpop.permute.xlu0 %928
  %932 = vset.pattern.permute.xlu0 0
  %933 = vperm.xlu0 %932, %v775
  %v934 = vpop.permute.xlu0 %933
  %937 = vset.pattern.permute.xlu0 0
  %938 = vperm.xlu0 %937, %v777
  %v939 = vpop.permute.xlu0 %938
  %942 = vset.pattern.permute.xlu0 0
  %943 = vperm.xlu0 %942, %v779
  %v944 = vpop.permute.xlu0 %943
  %947 = vset.pattern.permute.xlu0 0
  %948 = vperm.xlu0 %947, %v781
  %v949 = vpop.permute.xlu0 %948
  %952 = vset.pattern.permute.xlu0 0
  %953 = vperm.xlu0 %952, %v783
  %v954 = vpop.permute.xlu0 %953
  %957 = vset.pattern.permute.xlu0 0
  %958 = vperm.xlu0 %957, %v785
  %v959 = vpop.permute.xlu0 %958
  %962 = vset.pattern.permute.xlu0 0
  %963 = vperm.xlu0 %962, %v787
  %v964 = vpop.permute.xlu0 %963
  %967 = vset.pattern.permute.xlu0 0
  %968 = vperm.xlu0 %967, %v789
  %v969 = vpop.permute.xlu0 %968
  %972 = vset.pattern.permute.xlu0 0
  %973 = vperm.xlu0 %972, %v791
  %v974 = vpop.permute.xlu0 %973
  %977 = vset.pattern.permute.xlu0 0
  %978 = vperm.xlu0 %977, %v793
  %v979 = vpop.permute.xlu0 %978
  %982 = vset.pattern.permute.xlu0 0
  %983 = vperm.xlu0 %982, %v795
  %v984 = vpop.permute.xlu0 %983
  %987 = vset.pattern.permute.xlu0 0
  %988 = vperm.xlu0 %987, %v797
  %v989 = vpop.permute.xlu0 %988
  %992 = vset.pattern.permute.xlu0 0
  %993 = vperm.xlu0 %992, %v799
  %v994 = vpop.permute.xlu0 %993
  %997 = vset.pattern.permute.xlu0 0
  %998 = vperm.xlu0 %997, %v801
  %v999 = vpop.permute.xlu0 %998
  %1002 = vset.pattern.permute.xlu0 0
  %1003 = vperm.xlu0 %1002, %v803
  %v1004 = vpop.permute.xlu0 %1003
  %1007 = vset.pattern.permute.xlu0 0
  %1008 = vperm.xlu0 %1007, %v805
  %v1009 = vpop.permute.xlu0 %1008
  %1012 = vset.pattern.permute.xlu0 0
  %1013 = vperm.xlu0 %1012, %v807
  %v1014 = vpop.permute.xlu0 %1013
  %1017 = vset.pattern.permute.xlu0 0
  %1018 = vperm.xlu0 %1017, %v809
  %v1019 = vpop.permute.xlu0 %1018
  %1022 = vset.pattern.permute.xlu0 0
  %1023 = vperm.xlu0 %1022, %v811
  %v1024 = vpop.permute.xlu0 %1023
  %1027 = vset.pattern.permute.xlu0 0
  %1028 = vperm.xlu0 %1027, %v813
  %v1029 = vpop.permute.xlu0 %1028
  %1032 = vset.pattern.permute.xlu0 0
  %1033 = vperm.xlu0 %1032, %v815
  %v1034 = vpop.permute.xlu0 %1033
  %1037 = vset.pattern.permute.xlu0 0
  %1038 = vperm.xlu0 %1037, %v817
  %v1039 = vpop.permute.xlu0 %1038
  %1042 = vset.pattern.permute.xlu0 0
  %1043 = vperm.xlu0 %1042, %v819
  %v1044 = vpop.permute.xlu0 %1043
  %1047 = vset.pattern.permute.xlu0 0
  %1048 = vperm.xlu0 %1047, %v821
  %v1049 = vpop.permute.xlu0 %1048
  %1052 = vset.pattern.permute.xlu0 0
  %1053 = vperm.xlu0 %1052, %v823
  %v1054 = vpop.permute.xlu0 %1053
  %1057 = vset.pattern.permute.xlu0 0
  %1058 = vperm.xlu0 %1057, %v825
  %v1059 = vpop.permute.xlu0 %1058
  %1062 = vset.pattern.permute.xlu0 0
  %1063 = vperm.xlu0 %1062, %v827
  %v1064 = vpop.permute.xlu0 %1063
  %1067 = vset.pattern.permute.xlu0 0
  %1068 = vperm.xlu0 %1067, %v829
  %v1069 = vpop.permute.xlu0 %1068
  %1072 = vset.pattern.permute.xlu0 0
  %1073 = vperm.xlu0 %1072, %v831
  %v1074 = vpop.permute.xlu0 %1073
  %1077 = vset.pattern.permute.xlu0 0
  %1078 = vperm.xlu0 %1077, %v833
  %v1079 = vpop.permute.xlu0 %1078
  %1082 = vset.pattern.permute.xlu0 0
  %1083 = vperm.xlu0 %1082, %v835
  %v1084 = vpop.permute.xlu0 %1083
  %1087 = vset.pattern.permute.xlu0 0
  %1088 = vperm.xlu0 %1087, %v837
  %v1089 = vpop.permute.xlu0 %1088
  %1092 = vset.pattern.permute.xlu0 0
  %1093 = vperm.xlu0 %1092, %v839
  %v1094 = vpop.permute.xlu0 %1093
  %1097 = vset.pattern.permute.xlu0 0
  %1098 = vperm.xlu0 %1097, %v841
  %v1099 = vpop.permute.xlu0 %1098
  %1102 = vset.pattern.permute.xlu0 0
  %1103 = vperm.xlu0 %1102, %v843
  %v1104 = vpop.permute.xlu0 %1103
  %1107 = vset.pattern.permute.xlu0 0
  %1108 = vperm.xlu0 %1107, %v845
  %v1109 = vpop.permute.xlu0 %1108
  %1112 = vset.pattern.permute.xlu0 0
  %1113 = vperm.xlu0 %1112, %v847
  %v1114 = vpop.permute.xlu0 %1113
  %1117 = vset.pattern.permute.xlu0 0
  %1118 = vperm.xlu0 %1117, %v849
  %v1119 = vpop.permute.xlu0 %1118
  %1122 = vset.pattern.permute.xlu0 0
  %1123 = vperm.xlu0 %1122, %v851
  %v1124 = vpop.permute.xlu0 %1123
  %1127 = vset.pattern.permute.xlu0 0
  %1128 = vperm.xlu0 %1127, %v853
  %v1129 = vpop.permute.xlu0 %1128
  %1132 = vset.pattern.permute.xlu0 0
  %1133 = vperm.xlu0 %1132, %v855
  %v1134 = vpop.permute.xlu0 %1133
  %v1136 = vperm.slane %v738, 0
  %v1137 = vmul.f32 %v859, %v1136
  %v1138 = vmul.f32 %v864, %v1136
  %v1139 = vmul.f32 %v869, %v1136
  %v1140 = vmul.f32 %v874, %v1136
  %v1141 = vmul.f32 %v879, %v1136
  %v1142 = vmul.f32 %v884, %v1136
  %v1143 = vmul.f32 %v889, %v1136
  %v1144 = vmul.f32 %v894, %v1136
  %v1145 = vmul.f32 %v899, %v1136
  %v1146 = vmul.f32 %v904, %v1136
  %v1147 = vmul.f32 %v909, %v1136
  %v1148 = vmul.f32 %v914, %v1136
  %v1149 = vmul.f32 %v919, %v1136
  %v1150 = vmul.f32 %v924, %v1136
  %v1151 = vmul.f32 %v929, %v1136
  %v1152 = vmul.f32 %v934, %v1136
  %v1153 = vmul.f32 %v939, %v1136
  %v1154 = vmul.f32 %v944, %v1136
  %v1155 = vmul.f32 %v949, %v1136
  %v1156 = vmul.f32 %v954, %v1136
  %v1157 = vmul.f32 %v959, %v1136
  %v1158 = vmul.f32 %v964, %v1136
  %v1159 = vmul.f32 %v969, %v1136
  %v1160 = vmul.f32 %v974, %v1136
  %v1161 = vmul.f32 %v979, %v1136
  %v1162 = vmul.f32 %v984, %v1136
  %v1163 = vmul.f32 %v989, %v1136
  %v1164 = vmul.f32 %v994, %v1136
  %v1165 = vmul.f32 %v999, %v1136
  %v1166 = vmul.f32 %v1004, %v1136
  %v1167 = vmul.f32 %v1009, %v1136
  %v1168 = vmul.f32 %v1014, %v1136
  %v1169 = vmul.f32 %v1019, %v1136
  %v1170 = vmul.f32 %v1024, %v1136
  %v1171 = vmul.f32 %v1029, %v1136
  %v1172 = vmul.f32 %v1034, %v1136
  %v1173 = vmul.f32 %v1039, %v1136
  %v1174 = vmul.f32 %v1044, %v1136
  %v1175 = vmul.f32 %v1049, %v1136
  %v1176 = vmul.f32 %v1054, %v1136
  %v1177 = vmul.f32 %v1059, %v1136
  %v1178 = vmul.f32 %v1064, %v1136
  %v1179 = vmul.f32 %v1069, %v1136
  %v1180 = vmul.f32 %v1074, %v1136
  %v1181 = vmul.f32 %v1079, %v1136
  %v1182 = vmul.f32 %v1084, %v1136
  %v1183 = vmul.f32 %v1089, %v1136
  %v1184 = vmul.f32 %v1094, %v1136
  %v1185 = vmul.f32 %v1099, %v1136
  %v1186 = vmul.f32 %v1104, %v1136
  %v1187 = vmul.f32 %v1109, %v1136
  %v1188 = vmul.f32 %v1114, %v1136
  %v1189 = vmul.f32 %v1119, %v1136
  %v1190 = vmul.f32 %v1124, %v1136
  %v1191 = vmul.f32 %v1129, %v1136
  %v1192 = vmul.f32 %v1134, %v1136
  %v1193 = vadd.f32 %v744, %v1137
  %v1194 = vadd.f32 %v744, %v1138
  %v1195 = vadd.f32 %v744, %v1139
  %v1196 = vadd.f32 %v744, %v1140
  %v1197 = vadd.f32 %v744, %v1141
  %v1198 = vadd.f32 %v744, %v1142
  %v1199 = vadd.f32 %v744, %v1143
  %v1200 = vadd.f32 %v744, %v1144
  %v1201 = vadd.f32 %v744, %v1145
  %v1202 = vadd.f32 %v744, %v1146
  %v1203 = vadd.f32 %v744, %v1147
  %v1204 = vadd.f32 %v744, %v1148
  %v1205 = vadd.f32 %v744, %v1149
  %v1206 = vadd.f32 %v744, %v1150
  %v1207 = vadd.f32 %v744, %v1151
  %v1208 = vadd.f32 %v744, %v1152
  %v1209 = vadd.f32 %v744, %v1153
  %v1210 = vadd.f32 %v744, %v1154
  %v1211 = vadd.f32 %v744, %v1155
  %v1212 = vadd.f32 %v744, %v1156
  %v1213 = vadd.f32 %v744, %v1157
  %v1214 = vadd.f32 %v744, %v1158
  %v1215 = vadd.f32 %v744, %v1159
  %v1216 = vadd.f32 %v744, %v1160
  %v1217 = vadd.f32 %v744, %v1161
  %v1218 = vadd.f32 %v744, %v1162
  %v1219 = vadd.f32 %v744, %v1163
  %v1220 = vadd.f32 %v744, %v1164
  %v1221 = vadd.f32 %v744, %v1165
  %v1222 = vadd.f32 %v744, %v1166
  %v1223 = vadd.f32 %v744, %v1167
  %v1224 = vadd.f32 %v744, %v1168
  %v1225 = vadd.f32 %v744, %v1169
  %v1226 = vadd.f32 %v744, %v1170
  %v1227 = vadd.f32 %v744, %v1171
  %v1228 = vadd.f32 %v744, %v1172
  %v1229 = vadd.f32 %v744, %v1173
  %v1230 = vadd.f32 %v744, %v1174
  %v1231 = vadd.f32 %v744, %v1175
  %v1232 = vadd.f32 %v744, %v1176
  %v1233 = vadd.f32 %v744, %v1177
  %v1234 = vadd.f32 %v744, %v1178
  %v1235 = vadd.f32 %v744, %v1179
  %v1236 = vadd.f32 %v744, %v1180
  %v1237 = vadd.f32 %v744, %v1181
  %v1238 = vadd.f32 %v744, %v1182
  %v1239 = vadd.f32 %v744, %v1183
  %v1240 = vadd.f32 %v744, %v1184
  %v1241 = vadd.f32 %v744, %v1185
  %v1242 = vadd.f32 %v744, %v1186
  %v1243 = vadd.f32 %v744, %v1187
  %v1244 = vadd.f32 %v744, %v1188
  %v1245 = vadd.f32 %v744, %v1189
  %v1246 = vadd.f32 %v744, %v1190
  %v1247 = vadd.f32 %v744, %v1191
  %v1248 = vadd.f32 %v744, %v1192
  %s1249 = scalar_lea.vmem [#allocation2], 1
  %v1250 = vld [vmem:[%s1249] ss:$2 sm:$0xff]
  %s1251 = scalar_lea.vmem [#allocation2], 17
  %v1252 = vld [vmem:[%s1251] ss:$2 sm:$0x3f]
  %s1253 = scalar_lea.vmem [#allocation2], 33
  %v1254 = vld [vmem:[%s1253] ss:$2 sm:$0xff]
  %s1255 = scalar_lea.vmem [#allocation2], 49
  %v1256 = vld [vmem:[%s1255] ss:$2 sm:$0x3f]
  %s1257 = scalar_lea.vmem [#allocation2], 65
  %v1258 = vld [vmem:[%s1257] ss:$2 sm:$0xff]
  %s1259 = scalar_lea.vmem [#allocation2], 81
  %v1260 = vld [vmem:[%s1259] ss:$2 sm:$0x3f]
  %s1261 = scalar_lea.vmem [#allocation2], 97
  %v1262 = vld [vmem:[%s1261] ss:$2 sm:$0xff]
  %s1263 = scalar_lea.vmem [#allocation2], 113
  %v1264 = vld [vmem:[%s1263] ss:$2 sm:$0x3f]
  %s1265 = scalar_lea.vmem [#allocation2], 129
  %v1266 = vld [vmem:[%s1265] ss:$2 sm:$0xff]
  %s1267 = scalar_lea.vmem [#allocation2], 145
  %v1268 = vld [vmem:[%s1267] ss:$2 sm:$0x3f]
  %s1269 = scalar_lea.vmem [#allocation2], 161
  %v1270 = vld [vmem:[%s1269] ss:$2 sm:$0xff]
  %s1271 = scalar_lea.vmem [#allocation2], 177
  %v1272 = vld [vmem:[%s1271] ss:$2 sm:$0x3f]
  %s1273 = scalar_lea.vmem [#allocation2], 193
  %v1274 = vld [vmem:[%s1273] ss:$2 sm:$0xff]
  %s1275 = scalar_lea.vmem [#allocation2], 209
  %v1276 = vld [vmem:[%s1275] ss:$2 sm:$0x3f]
  %s1277 = scalar_lea.vmem [#allocation2], 225
  %v1278 = vld [vmem:[%s1277] ss:$2 sm:$0xff]
  %s1279 = scalar_lea.vmem [#allocation2], 241
  %v1280 = vld [vmem:[%s1279] ss:$2 sm:$0x3f]
  %s1281 = scalar_lea.vmem [#allocation2], 257
  %v1282 = vld [vmem:[%s1281] ss:$2 sm:$0xff]
  %s1283 = scalar_lea.vmem [#allocation2], 273
  %v1284 = vld [vmem:[%s1283] ss:$2 sm:$0x3f]
  %s1285 = scalar_lea.vmem [#allocation2], 289
  %v1286 = vld [vmem:[%s1285] ss:$2 sm:$0xff]
  %s1287 = scalar_lea.vmem [#allocation2], 305
  %v1288 = vld [vmem:[%s1287] ss:$2 sm:$0x3f]
  %s1289 = scalar_lea.vmem [#allocation2], 321
  %v1290 = vld [vmem:[%s1289] ss:$2 sm:$0xff]
  %s1291 = scalar_lea.vmem [#allocation2], 337
  %v1292 = vld [vmem:[%s1291] ss:$2 sm:$0x3f]
  %s1293 = scalar_lea.vmem [#allocation2], 353
  %v1294 = vld [vmem:[%s1293] ss:$2 sm:$0xff]
  %s1295 = scalar_lea.vmem [#allocation2], 369
  %v1296 = vld [vmem:[%s1295] ss:$2 sm:$0x3f]
  %s1297 = scalar_lea.vmem [#allocation2], 385
  %v1298 = vld [vmem:[%s1297] ss:$2 sm:$0xff]
  %s1299 = scalar_lea.vmem [#allocation2], 401
  %v1300 = vld [vmem:[%s1299] ss:$2 sm:$0x3f]
  %s1301 = scalar_lea.vmem [#allocation2], 417
  %v1302 = vld [vmem:[%s1301] ss:$2 sm:$0xff]
  %s1303 = scalar_lea.vmem [#allocation2], 433
  %v1304 = vld [vmem:[%s1303] ss:$2 sm:$0x3f]
  %s1305 = scalar_lea.vmem [#allocation2], 481
  %v1306 = vld [vmem:[%s1305] ss:$2 sm:$0xff]
  %s1307 = scalar_lea.vmem [#allocation2], 497
  %v1308 = vld [vmem:[%s1307] ss:$2 sm:$0x3f]
  %s1309 = scalar_lea.vmem [#allocation2], 513
  %v1310 = vld [vmem:[%s1309] ss:$2 sm:$0xff]
  %s1311 = scalar_lea.vmem [#allocation2], 529
  %v1312 = vld [vmem:[%s1311] ss:$2 sm:$0x3f]
  %s1313 = scalar_lea.vmem [#allocation2], 545
  %v1314 = vld [vmem:[%s1313] ss:$2 sm:$0xff]
  %s1315 = scalar_lea.vmem [#allocation2], 561
  %v1316 = vld [vmem:[%s1315] ss:$2 sm:$0x3f]
  %s1317 = scalar_lea.vmem [#allocation2], 577
  %v1318 = vld [vmem:[%s1317] ss:$2 sm:$0xff]
  %s1319 = scalar_lea.vmem [#allocation2], 593
  %v1320 = vld [vmem:[%s1319] ss:$2 sm:$0x3f]
  %s1321 = scalar_lea.vmem [#allocation2], 609
  %v1322 = vld [vmem:[%s1321] ss:$2 sm:$0xff]
  %s1323 = scalar_lea.vmem [#allocation2], 625
  %v1324 = vld [vmem:[%s1323] ss:$2 sm:$0x3f]
  %s1325 = scalar_lea.vmem [#allocation2], 641
  %v1326 = vld [vmem:[%s1325] ss:$2 sm:$0xff]
  %s1327 = scalar_lea.vmem [#allocation2], 657
  %v1328 = vld [vmem:[%s1327] ss:$2 sm:$0x3f]
  %s1329 = scalar_lea.vmem [#allocation2], 673
  %v1330 = vld [vmem:[%s1329] ss:$2 sm:$0xff]
  %s1331 = scalar_lea.vmem [#allocation2], 689
  %v1332 = vld [vmem:[%s1331] ss:$2 sm:$0x3f]
  %s1333 = scalar_lea.vmem [#allocation2], 705
  %v1334 = vld [vmem:[%s1333] ss:$2 sm:$0xff]
  %s1335 = scalar_lea.vmem [#allocation2], 721
  %v1336 = vld [vmem:[%s1335] ss:$2 sm:$0x3f]
  %s1337 = scalar_lea.vmem [#allocation2], 737
  %v1338 = vld [vmem:[%s1337] ss:$2 sm:$0xff]
  %s1339 = scalar_lea.vmem [#allocation2], 753
  %v1340 = vld [vmem:[%s1339] ss:$2 sm:$0x3f]
  %s1341 = scalar_lea.vmem [#allocation2], 769
  %v1342 = vld [vmem:[%s1341] ss:$2 sm:$0xff]
  %s1343 = scalar_lea.vmem [#allocation2], 785
  %v1344 = vld [vmem:[%s1343] ss:$2 sm:$0x3f]
  %s1345 = scalar_lea.vmem [#allocation2], 801
  %v1346 = vld [vmem:[%s1345] ss:$2 sm:$0xff]
  %s1347 = scalar_lea.vmem [#allocation2], 817
  %v1348 = vld [vmem:[%s1347] ss:$2 sm:$0x3f]
  %s1349 = scalar_lea.vmem [#allocation2], 833
  %v1350 = vld [vmem:[%s1349] ss:$2 sm:$0xff]
  %s1351 = scalar_lea.vmem [#allocation2], 849
  %v1352 = vld [vmem:[%s1351] ss:$2 sm:$0x3f]
  %s1353 = scalar_lea.vmem [#allocation2], 865
  %v1354 = vld [vmem:[%s1353] ss:$2 sm:$0xff]
  %s1355 = scalar_lea.vmem [#allocation2], 881
  %v1356 = vld [vmem:[%s1355] ss:$2 sm:$0x3f]
  %s1357 = scalar_lea.vmem [#allocation2], 897
  %v1358 = vld [vmem:[%s1357] ss:$2 sm:$0xff]
  %s1359 = scalar_lea.vmem [#allocation2], 913
  %v1360 = vld [vmem:[%s1359] ss:$2 sm:$0x3f]
  %1362 = vset.pattern.permute.xlu0 0
  %1363 = vperm.xlu0 %1362, %v1250
  %v1364 = vpop.permute.xlu0 %1363
  %1367 = vset.pattern.permute.xlu0 0
  %1368 = vperm.xlu0 %1367, %v1252
  %v1369 = vpop.permute.xlu0 %1368
  %1372 = vset.pattern.permute.xlu0 0
  %1373 = vperm.xlu0 %1372, %v1254
  %v1374 = vpop.permute.xlu0 %1373
  %1377 = vset.pattern.permute.xlu0 0
  %1378 = vperm.xlu0 %1377, %v1256
  %v1379 = vpop.permute.xlu0 %1378
  %1382 = vset.pattern.permute.xlu0 0
  %1383 = vperm.xlu0 %1382, %v1258
  %v1384 = vpop.permute.xlu0 %1383
  %1387 = vset.pattern.permute.xlu0 0
  %1388 = vperm.xlu0 %1387, %v1260
  %v1389 = vpop.permute.xlu0 %1388
  %1392 = vset.pattern.permute.xlu0 0
  %1393 = vperm.xlu0 %1392, %v1262
  %v1394 = vpop.permute.xlu0 %1393
  %1397 = vset.pattern.permute.xlu0 0
  %1398 = vperm.xlu0 %1397, %v1264
  %v1399 = vpop.permute.xlu0 %1398
  %1402 = vset.pattern.permute.xlu0 0
  %1403 = vperm.xlu0 %1402, %v1266
  %v1404 = vpop.permute.xlu0 %1403
  %1407 = vset.pattern.permute.xlu0 0
  %1408 = vperm.xlu0 %1407, %v1268
  %v1409 = vpop.permute.xlu0 %1408
  %1412 = vset.pattern.permute.xlu0 0
  %1413 = vperm.xlu0 %1412, %v1270
  %v1414 = vpop.permute.xlu0 %1413
  %1417 = vset.pattern.permute.xlu0 0
  %1418 = vperm.xlu0 %1417, %v1272
  %v1419 = vpop.permute.xlu0 %1418
  %1422 = vset.pattern.permute.xlu0 0
  %1423 = vperm.xlu0 %1422, %v1274
  %v1424 = vpop.permute.xlu0 %1423
  %1427 = vset.pattern.permute.xlu0 0
  %1428 = vperm.xlu0 %1427, %v1276
  %v1429 = vpop.permute.xlu0 %1428
  %1432 = vset.pattern.permute.xlu0 0
  %1433 = vperm.xlu0 %1432, %v1278
  %v1434 = vpop.permute.xlu0 %1433
  %1437 = vset.pattern.permute.xlu0 0
  %1438 = vperm.xlu0 %1437, %v1280
  %v1439 = vpop.permute.xlu0 %1438
  %1442 = vset.pattern.permute.xlu0 0
  %1443 = vperm.xlu0 %1442, %v1282
  %v1444 = vpop.permute.xlu0 %1443
  %1447 = vset.pattern.permute.xlu0 0
  %1448 = vperm.xlu0 %1447, %v1284
  %v1449 = vpop.permute.xlu0 %1448
  %1452 = vset.pattern.permute.xlu0 0
  %1453 = vperm.xlu0 %1452, %v1286
  %v1454 = vpop.permute.xlu0 %1453
  %1457 = vset.pattern.permute.xlu0 0
  %1458 = vperm.xlu0 %1457, %v1288
  %v1459 = vpop.permute.xlu0 %1458
  %1462 = vset.pattern.permute.xlu0 0
  %1463 = vperm.xlu0 %1462, %v1290
  %v1464 = vpop.permute.xlu0 %1463
  %1467 = vset.pattern.permute.xlu0 0
  %1468 = vperm.xlu0 %1467, %v1292
  %v1469 = vpop.permute.xlu0 %1468
  %1472 = vset.pattern.permute.xlu0 0
  %1473 = vperm.xlu0 %1472, %v1294
  %v1474 = vpop.permute.xlu0 %1473
  %1477 = vset.pattern.permute.xlu0 0
  %1478 = vperm.xlu0 %1477, %v1296
  %v1479 = vpop.permute.xlu0 %1478
  %1482 = vset.pattern.permute.xlu0 0
  %1483 = vperm.xlu0 %1482, %v1298
  %v1484 = vpop.permute.xlu0 %1483
  %1487 = vset.pattern.permute.xlu0 0
  %1488 = vperm.xlu0 %1487, %v1300
  %v1489 = vpop.permute.xlu0 %1488
  %1492 = vset.pattern.permute.xlu0 0
  %1493 = vperm.xlu0 %1492, %v1302
  %v1494 = vpop.permute.xlu0 %1493
  %1497 = vset.pattern.permute.xlu0 0
  %1498 = vperm.xlu0 %1497, %v1304
  %v1499 = vpop.permute.xlu0 %1498
  %1502 = vset.pattern.permute.xlu0 0
  %1503 = vperm.xlu0 %1502, %v1306
  %v1504 = vpop.permute.xlu0 %1503
  %1507 = vset.pattern.permute.xlu0 0
  %1508 = vperm.xlu0 %1507, %v1308
  %v1509 = vpop.permute.xlu0 %1508
  %1512 = vset.pattern.permute.xlu0 0
  %1513 = vperm.xlu0 %1512, %v1310
  %v1514 = vpop.permute.xlu0 %1513
  %1517 = vset.pattern.permute.xlu0 0
  %1518 = vperm.xlu0 %1517, %v1312
  %v1519 = vpop.permute.xlu0 %1518
  %1522 = vset.pattern.permute.xlu0 0
  %1523 = vperm.xlu0 %1522, %v1314
  %v1524 = vpop.permute.xlu0 %1523
  %1527 = vset.pattern.permute.xlu0 0
  %1528 = vperm.xlu0 %1527, %v1316
  %v1529 = vpop.permute.xlu0 %1528
  %1532 = vset.pattern.permute.xlu0 0
  %1533 = vperm.xlu0 %1532, %v1318
  %v1534 = vpop.permute.xlu0 %1533
  %1537 = vset.pattern.permute.xlu0 0
  %1538 = vperm.xlu0 %1537, %v1320
  %v1539 = vpop.permute.xlu0 %1538
  %1542 = vset.pattern.permute.xlu0 0
  %1543 = vperm.xlu0 %1542, %v1322
  %v1544 = vpop.permute.xlu0 %1543
  %1547 = vset.pattern.permute.xlu0 0
  %1548 = vperm.xlu0 %1547, %v1324
  %v1549 = vpop.permute.xlu0 %1548
  %1552 = vset.pattern.permute.xlu0 0
  %1553 = vperm.xlu0 %1552, %v1326
  %v1554 = vpop.permute.xlu0 %1553
  %1557 = vset.pattern.permute.xlu0 0
  %1558 = vperm.xlu0 %1557, %v1328
  %v1559 = vpop.permute.xlu0 %1558
  %1562 = vset.pattern.permute.xlu0 0
  %1563 = vperm.xlu0 %1562, %v1330
  %v1564 = vpop.permute.xlu0 %1563
  %1567 = vset.pattern.permute.xlu0 0
  %1568 = vperm.xlu0 %1567, %v1332
  %v1569 = vpop.permute.xlu0 %1568
  %1572 = vset.pattern.permute.xlu0 0
  %1573 = vperm.xlu0 %1572, %v1334
  %v1574 = vpop.permute.xlu0 %1573
  %1577 = vset.pattern.permute.xlu0 0
  %1578 = vperm.xlu0 %1577, %v1336
  %v1579 = vpop.permute.xlu0 %1578
  %1582 = vset.pattern.permute.xlu0 0
  %1583 = vperm.xlu0 %1582, %v1338
  %v1584 = vpop.permute.xlu0 %1583
  %1587 = vset.pattern.permute.xlu0 0
  %1588 = vperm.xlu0 %1587, %v1340
  %v1589 = vpop.permute.xlu0 %1588
  %1592 = vset.pattern.permute.xlu0 0
  %1593 = vperm.xlu0 %1592, %v1342
  %v1594 = vpop.permute.xlu0 %1593
  %1597 = vset.pattern.permute.xlu0 0
  %1598 = vperm.xlu0 %1597, %v1344
  %v1599 = vpop.permute.xlu0 %1598
  %1602 = vset.pattern.permute.xlu0 0
  %1603 = vperm.xlu0 %1602, %v1346
  %v1604 = vpop.permute.xlu0 %1603
  %1607 = vset.pattern.permute.xlu0 0
  %1608 = vperm.xlu0 %1607, %v1348
  %v1609 = vpop.permute.xlu0 %1608
  %1612 = vset.pattern.permute.xlu0 0
  %1613 = vperm.xlu0 %1612, %v1350
  %v1614 = vpop.permute.xlu0 %1613
  %1617 = vset.pattern.permute.xlu0 0
  %1618 = vperm.xlu0 %1617, %v1352
  %v1619 = vpop.permute.xlu0 %1618
  %1622 = vset.pattern.permute.xlu0 0
  %1623 = vperm.xlu0 %1622, %v1354
  %v1624 = vpop.permute.xlu0 %1623
  %1627 = vset.pattern.permute.xlu0 0
  %1628 = vperm.xlu0 %1627, %v1356
  %v1629 = vpop.permute.xlu0 %1628
  %1632 = vset.pattern.permute.xlu0 0
  %1633 = vperm.xlu0 %1632, %v1358
  %v1634 = vpop.permute.xlu0 %1633
  %1637 = vset.pattern.permute.xlu0 0
  %1638 = vperm.xlu0 %1637, %v1360
  %v1639 = vpop.permute.xlu0 %1638
  %v1641 = vperm.slane %v738, 1
  %v1642 = vmul.f32 %v1364, %v1641
  %v1643 = vmul.f32 %v1369, %v1641
  %v1644 = vmul.f32 %v1374, %v1641
  %v1645 = vmul.f32 %v1379, %v1641
  %v1646 = vmul.f32 %v1384, %v1641
  %v1647 = vmul.f32 %v1389, %v1641
  %v1648 = vmul.f32 %v1394, %v1641
  %v1649 = vmul.f32 %v1399, %v1641
  %v1650 = vmul.f32 %v1404, %v1641
  %v1651 = vmul.f32 %v1409, %v1641
  %v1652 = vmul.f32 %v1414, %v1641
  %v1653 = vmul.f32 %v1419, %v1641
  %v1654 = vmul.f32 %v1424, %v1641
  %v1655 = vmul.f32 %v1429, %v1641
  %v1656 = vmul.f32 %v1434, %v1641
  %v1657 = vmul.f32 %v1439, %v1641
  %v1658 = vmul.f32 %v1444, %v1641
  %v1659 = vmul.f32 %v1449, %v1641
  %v1660 = vmul.f32 %v1454, %v1641
  %v1661 = vmul.f32 %v1459, %v1641
  %v1662 = vmul.f32 %v1464, %v1641
  %v1663 = vmul.f32 %v1469, %v1641
  %v1664 = vmul.f32 %v1474, %v1641
  %v1665 = vmul.f32 %v1479, %v1641
  %v1666 = vmul.f32 %v1484, %v1641
  %v1667 = vmul.f32 %v1489, %v1641
  %v1668 = vmul.f32 %v1494, %v1641
  %v1669 = vmul.f32 %v1499, %v1641
  %v1670 = vmul.f32 %v1504, %v1641
  %v1671 = vmul.f32 %v1509, %v1641
  %v1672 = vmul.f32 %v1514, %v1641
  %v1673 = vmul.f32 %v1519, %v1641
  %v1674 = vmul.f32 %v1524, %v1641
  %v1675 = vmul.f32 %v1529, %v1641
  %v1676 = vmul.f32 %v1534, %v1641
  %v1677 = vmul.f32 %v1539, %v1641
  %v1678 = vmul.f32 %v1544, %v1641
  %v1679 = vmul.f32 %v1549, %v1641
  %v1680 = vmul.f32 %v1554, %v1641
  %v1681 = vmul.f32 %v1559, %v1641
  %v1682 = vmul.f32 %v1564, %v1641
  %v1683 = vmul.f32 %v1569, %v1641
  %v1684 = vmul.f32 %v1574, %v1641
  %v1685 = vmul.f32 %v1579, %v1641
  %v1686 = vmul.f32 %v1584, %v1641
  %v1687 = vmul.f32 %v1589, %v1641
  %v1688 = vmul.f32 %v1594, %v1641
  %v1689 = vmul.f32 %v1599, %v1641
  %v1690 = vmul.f32 %v1604, %v1641
  %v1691 = vmul.f32 %v1609, %v1641
  %v1692 = vmul.f32 %v1614, %v1641
  %v1693 = vmul.f32 %v1619, %v1641
  %v1694 = vmul.f32 %v1624, %v1641
  %v1695 = vmul.f32 %v1629, %v1641
  %v1696 = vmul.f32 %v1634, %v1641
  %v1697 = vmul.f32 %v1639, %v1641
  %v1698 = vadd.f32 %v1193, %v1642
  %v1699 = vadd.f32 %v1194, %v1643
  %v1700 = vadd.f32 %v1195, %v1644
  %v1701 = vadd.f32 %v1196, %v1645
  %v1702 = vadd.f32 %v1197, %v1646
  %v1703 = vadd.f32 %v1198, %v1647
  %v1704 = vadd.f32 %v1199, %v1648
  %v1705 = vadd.f32 %v1200, %v1649
  %v1706 = vadd.f32 %v1201, %v1650
  %v1707 = vadd.f32 %v1202, %v1651
  %v1708 = vadd.f32 %v1203, %v1652
  %v1709 = vadd.f32 %v1204, %v1653
  %v1710 = vadd.f32 %v1205, %v1654
  %v1711 = vadd.f32 %v1206, %v1655
  %v1712 = vadd.f32 %v1207, %v1656
  %v1713 = vadd.f32 %v1208, %v1657
  %v1714 = vadd.f32 %v1209, %v1658
  %v1715 = vadd.f32 %v1210, %v1659
  %v1716 = vadd.f32 %v1211, %v1660
  %v1717 = vadd.f32 %v1212, %v1661
  %v1718 = vadd.f32 %v1213, %v1662
  %v1719 = vadd.f32 %v1214, %v1663
  %v1720 = vadd.f32 %v1215, %v1664
  %v1721 = vadd.f32 %v1216, %v1665
  %v1722 = vadd.f32 %v1217, %v1666
  %v1723 = vadd.f32 %v1218, %v1667
  %v1724 = vadd.f32 %v1219, %v1668
  %v1725 = vadd.f32 %v1220, %v1669
  %v1726 = vadd.f32 %v1221, %v1670
  %v1727 = vadd.f32 %v1222, %v1671
  %v1728 = vadd.f32 %v1223, %v1672
  %v1729 = vadd.f32 %v1224, %v1673
  %v1730 = vadd.f32 %v1225, %v1674
  %v1731 = vadd.f32 %v1226, %v1675
  %v1732 = vadd.f32 %v1227, %v1676
  %v1733 = vadd.f32 %v1228, %v1677
  %v1734 = vadd.f32 %v1229, %v1678
  %v1735 = vadd.f32 %v1230, %v1679
  %v1736 = vadd.f32 %v1231, %v1680
  %v1737 = vadd.f32 %v1232, %v1681
  %v1738 = vadd.f32 %v1233, %v1682
  %v1739 = vadd.f32 %v1234, %v1683
  %v1740 = vadd.f32 %v1235, %v1684
  %v1741 = vadd.f32 %v1236, %v1685
  %v1742 = vadd.f32 %v1237, %v1686
  %v1743 = vadd.f32 %v1238, %v1687
  %v1744 = vadd.f32 %v1239, %v1688
  %v1745 = vadd.f32 %v1240, %v1689
  %v1746 = vadd.f32 %v1241, %v1690
  %v1747 = vadd.f32 %v1242, %v1691
  %v1748 = vadd.f32 %v1243, %v1692
  %v1749 = vadd.f32 %v1244, %v1693
  %v1750 = vadd.f32 %v1245, %v1694
  %v1751 = vadd.f32 %v1246, %v1695
  %v1752 = vadd.f32 %v1247, %v1696
  %v1753 = vadd.f32 %v1248, %v1697
  %s1754 = scalar_lea.vmem [#allocation2], 2
  %v1755 = vld [vmem:[%s1754] ss:$2 sm:$0xff]
  %s1756 = scalar_lea.vmem [#allocation2], 18
  %v1757 = vld [vmem:[%s1756] ss:$2 sm:$0x3f]
  %s1758 = scalar_lea.vmem [#allocation2], 34
  %v1759 = vld [vmem:[%s1758] ss:$2 sm:$0xff]
  %s1760 = scalar_lea.vmem [#allocation2], 50
  %v1761 = vld [vmem:[%s1760] ss:$2 sm:$0x3f]
  %s1762 = scalar_lea.vmem [#allocation2], 66
  %v1763 = vld [vmem:[%s1762] ss:$2 sm:$0xff]
  %s1764 = scalar_lea.vmem [#allocation2], 82
  %v1765 = vld [vmem:[%s1764] ss:$2 sm:$0x3f]
  %s1766 = scalar_lea.vmem [#allocation2], 98
  %v1767 = vld [vmem:[%s1766] ss:$2 sm:$0xff]
  %s1768 = scalar_lea.vmem [#allocation2], 114
  %v1769 = vld [vmem:[%s1768] ss:$2 sm:$0x3f]
  %s1770 = scalar_lea.vmem [#allocation2], 130
  %v1771 = vld [vmem:[%s1770] ss:$2 sm:$0xff]
  %s1772 = scalar_lea.vmem [#allocation2], 146
  %v1773 = vld [vmem:[%s1772] ss:$2 sm:$0x3f]
  %s1774 = scalar_lea.vmem [#allocation2], 162
  %v1775 = vld [vmem:[%s1774] ss:$2 sm:$0xff]
  %s1776 = scalar_lea.vmem [#allocation2], 178
  %v1777 = vld [vmem:[%s1776] ss:$2 sm:$0x3f]
  %s1778 = scalar_lea.vmem [#allocation2], 194
  %v1779 = vld [vmem:[%s1778] ss:$2 sm:$0xff]
  %s1780 = scalar_lea.vmem [#allocation2], 210
  %v1781 = vld [vmem:[%s1780] ss:$2 sm:$0x3f]
  %s1782 = scalar_lea.vmem [#allocation2], 226
  %v1783 = vld [vmem:[%s1782] ss:$2 sm:$0xff]
  %s1784 = scalar_lea.vmem [#allocation2], 242
  %v1785 = vld [vmem:[%s1784] ss:$2 sm:$0x3f]
  %s1786 = scalar_lea.vmem [#allocation2], 258
  %v1787 = vld [vmem:[%s1786] ss:$2 sm:$0xff]
  %s1788 = scalar_lea.vmem [#allocation2], 274
  %v1789 = vld [vmem:[%s1788] ss:$2 sm:$0x3f]
  %s1790 = scalar_lea.vmem [#allocation2], 290
  %v1791 = vld [vmem:[%s1790] ss:$2 sm:$0xff]
  %s1792 = scalar_lea.vmem [#allocation2], 306
  %v1793 = vld [vmem:[%s1792] ss:$2 sm:$0x3f]
  %s1794 = scalar_lea.vmem [#allocation2], 322
  %v1795 = vld [vmem:[%s1794] ss:$2 sm:$0xff]
  %s1796 = scalar_lea.vmem [#allocation2], 338
  %v1797 = vld [vmem:[%s1796] ss:$2 sm:$0x3f]
  %s1798 = scalar_lea.vmem [#allocation2], 354
  %v1799 = vld [vmem:[%s1798] ss:$2 sm:$0xff]
  %s1800 = scalar_lea.vmem [#allocation2], 370
  %v1801 = vld [vmem:[%s1800] ss:$2 sm:$0x3f]
  %s1802 = scalar_lea.vmem [#allocation2], 386
  %v1803 = vld [vmem:[%s1802] ss:$2 sm:$0xff]
  %s1804 = scalar_lea.vmem [#allocation2], 402
  %v1805 = vld [vmem:[%s1804] ss:$2 sm:$0x3f]
  %s1806 = scalar_lea.vmem [#allocation2], 418
  %v1807 = vld [vmem:[%s1806] ss:$2 sm:$0xff]
  %s1808 = scalar_lea.vmem [#allocation2], 434
  %v1809 = vld [vmem:[%s1808] ss:$2 sm:$0x3f]
  %s1810 = scalar_lea.vmem [#allocation2], 482
  %v1811 = vld [vmem:[%s1810] ss:$2 sm:$0xff]
  %s1812 = scalar_lea.vmem [#allocation2], 498
  %v1813 = vld [vmem:[%s1812] ss:$2 sm:$0x3f]
  %s1814 = scalar_lea.vmem [#allocation2], 514
  %v1815 = vld [vmem:[%s1814] ss:$2 sm:$0xff]
  %s1816 = scalar_lea.vmem [#allocation2], 530
  %v1817 = vld [vmem:[%s1816] ss:$2 sm:$0x3f]
  %s1818 = scalar_lea.vmem [#allocation2], 546
  %v1819 = vld [vmem:[%s1818] ss:$2 sm:$0xff]
  %s1820 = scalar_lea.vmem [#allocation2], 562
  %v1821 = vld [vmem:[%s1820] ss:$2 sm:$0x3f]
  %s1822 = scalar_lea.vmem [#allocation2], 578
  %v1823 = vld [vmem:[%s1822] ss:$2 sm:$0xff]
  %s1824 = scalar_lea.vmem [#allocation2], 594
  %v1825 = vld [vmem:[%s1824] ss:$2 sm:$0x3f]
  %s1826 = scalar_lea.vmem [#allocation2], 610
  %v1827 = vld [vmem:[%s1826] ss:$2 sm:$0xff]
  %s1828 = scalar_lea.vmem [#allocation2], 626
  %v1829 = vld [vmem:[%s1828] ss:$2 sm:$0x3f]
  %s1830 = scalar_lea.vmem [#allocation2], 642
  %v1831 = vld [vmem:[%s1830] ss:$2 sm:$0xff]
  %s1832 = scalar_lea.vmem [#allocation2], 658
  %v1833 = vld [vmem:[%s1832] ss:$2 sm:$0x3f]
  %s1834 = scalar_lea.vmem [#allocation2], 674
  %v1835 = vld [vmem:[%s1834] ss:$2 sm:$0xff]
  %s1836 = scalar_lea.vmem [#allocation2], 690
  %v1837 = vld [vmem:[%s1836] ss:$2 sm:$0x3f]
  %s1838 = scalar_lea.vmem [#allocation2], 706
  %v1839 = vld [vmem:[%s1838] ss:$2 sm:$0xff]
  %s1840 = scalar_lea.vmem [#allocation2], 722
  %v1841 = vld [vmem:[%s1840] ss:$2 sm:$0x3f]
  %s1842 = scalar_lea.vmem [#allocation2], 738
  %v1843 = vld [vmem:[%s1842] ss:$2 sm:$0xff]
  %s1844 = scalar_lea.vmem [#allocation2], 754
  %v1845 = vld [vmem:[%s1844] ss:$2 sm:$0x3f]
  %s1846 = scalar_lea.vmem [#allocation2], 770
  %v1847 = vld [vmem:[%s1846] ss:$2 sm:$0xff]
  %s1848 = scalar_lea.vmem [#allocation2], 786
  %v1849 = vld [vmem:[%s1848] ss:$2 sm:$0x3f]
  %s1850 = scalar_lea.vmem [#allocation2], 802
  %v1851 = vld [vmem:[%s1850] ss:$2 sm:$0xff]
  %s1852 = scalar_lea.vmem [#allocation2], 818
  %v1853 = vld [vmem:[%s1852] ss:$2 sm:$0x3f]
  %s1854 = scalar_lea.vmem [#allocation2], 834
  %v1855 = vld [vmem:[%s1854] ss:$2 sm:$0xff]
  %s1856 = scalar_lea.vmem [#allocation2], 850
  %v1857 = vld [vmem:[%s1856] ss:$2 sm:$0x3f]
  %s1858 = scalar_lea.vmem [#allocation2], 866
  %v1859 = vld [vmem:[%s1858] ss:$2 sm:$0xff]
  %s1860 = scalar_lea.vmem [#allocation2], 882
  %v1861 = vld [vmem:[%s1860] ss:$2 sm:$0x3f]
  %s1862 = scalar_lea.vmem [#allocation2], 898
  %v1863 = vld [vmem:[%s1862] ss:$2 sm:$0xff]
  %s1864 = scalar_lea.vmem [#allocation2], 914
  %v1865 = vld [vmem:[%s1864] ss:$2 sm:$0x3f]
  %1867 = vset.pattern.permute.xlu0 0
  %1868 = vperm.xlu0 %1867, %v1755
  %v1869 = vpop.permute.xlu0 %1868
  %1872 = vset.pattern.permute.xlu0 0
  %1873 = vperm.xlu0 %1872, %v1757
  %v1874 = vpop.permute.xlu0 %1873
  %1877 = vset.pattern.permute.xlu0 0
  %1878 = vperm.xlu0 %1877, %v1759
  %v1879 = vpop.permute.xlu0 %1878
  %1882 = vset.pattern.permute.xlu0 0
  %1883 = vperm.xlu0 %1882, %v1761
  %v1884 = vpop.permute.xlu0 %1883
  %1887 = vset.pattern.permute.xlu0 0
  %1888 = vperm.xlu0 %1887, %v1763
  %v1889 = vpop.permute.xlu0 %1888
  %1892 = vset.pattern.permute.xlu0 0
  %1893 = vperm.xlu0 %1892, %v1765
  %v1894 = vpop.permute.xlu0 %1893
  %1897 = vset.pattern.permute.xlu0 0
  %1898 = vperm.xlu0 %1897, %v1767
  %v1899 = vpop.permute.xlu0 %1898
  %1902 = vset.pattern.permute.xlu0 0
  %1903 = vperm.xlu0 %1902, %v1769
  %v1904 = vpop.permute.xlu0 %1903
  %1907 = vset.pattern.permute.xlu0 0
  %1908 = vperm.xlu0 %1907, %v1771
  %v1909 = vpop.permute.xlu0 %1908
  %1912 = vset.pattern.permute.xlu0 0
  %1913 = vperm.xlu0 %1912, %v1773
  %v1914 = vpop.permute.xlu0 %1913
  %1917 = vset.pattern.permute.xlu0 0
  %1918 = vperm.xlu0 %1917, %v1775
  %v1919 = vpop.permute.xlu0 %1918
  %1922 = vset.pattern.permute.xlu0 0
  %1923 = vperm.xlu0 %1922, %v1777
  %v1924 = vpop.permute.xlu0 %1923
  %1927 = vset.pattern.permute.xlu0 0
  %1928 = vperm.xlu0 %1927, %v1779
  %v1929 = vpop.permute.xlu0 %1928
  %1932 = vset.pattern.permute.xlu0 0
  %1933 = vperm.xlu0 %1932, %v1781
  %v1934 = vpop.permute.xlu0 %1933
  %1937 = vset.pattern.permute.xlu0 0
  %1938 = vperm.xlu0 %1937, %v1783
  %v1939 = vpop.permute.xlu0 %1938
  %1942 = vset.pattern.permute.xlu0 0
  %1943 = vperm.xlu0 %1942, %v1785
  %v1944 = vpop.permute.xlu0 %1943
  %1947 = vset.pattern.permute.xlu0 0
  %1948 = vperm.xlu0 %1947, %v1787
  %v1949 = vpop.permute.xlu0 %1948
  %1952 = vset.pattern.permute.xlu0 0
  %1953 = vperm.xlu0 %1952, %v1789
  %v1954 = vpop.permute.xlu0 %1953
  %1957 = vset.pattern.permute.xlu0 0
  %1958 = vperm.xlu0 %1957, %v1791
  %v1959 = vpop.permute.xlu0 %1958
  %1962 = vset.pattern.permute.xlu0 0
  %1963 = vperm.xlu0 %1962, %v1793
  %v1964 = vpop.permute.xlu0 %1963
  %1967 = vset.pattern.permute.xlu0 0
  %1968 = vperm.xlu0 %1967, %v1795
  %v1969 = vpop.permute.xlu0 %1968
  %1972 = vset.pattern.permute.xlu0 0
  %1973 = vperm.xlu0 %1972, %v1797
  %v1974 = vpop.permute.xlu0 %1973
  %1977 = vset.pattern.permute.xlu0 0
  %1978 = vperm.xlu0 %1977, %v1799
  %v1979 = vpop.permute.xlu0 %1978
  %1982 = vset.pattern.permute.xlu0 0
  %1983 = vperm.xlu0 %1982, %v1801
  %v1984 = vpop.permute.xlu0 %1983
  %1987 = vset.pattern.permute.xlu0 0
  %1988 = vperm.xlu0 %1987, %v1803
  %v1989 = vpop.permute.xlu0 %1988
  %1992 = vset.pattern.permute.xlu0 0
  %1993 = vperm.xlu0 %1992, %v1805
  %v1994 = vpop.permute.xlu0 %1993
  %1997 = vset.pattern.permute.xlu0 0
  %1998 = vperm.xlu0 %1997, %v1807
  %v1999 = vpop.permute.xlu0 %1998
  %2002 = vset.pattern.permute.xlu0 0
  %2003 = vperm.xlu0 %2002, %v1809
  %v2004 = vpop.permute.xlu0 %2003
  %2007 = vset.pattern.permute.xlu0 0
  %2008 = vperm.xlu0 %2007, %v1811
  %v2009 = vpop.permute.xlu0 %2008
  %2012 = vset.pattern.permute.xlu0 0
  %2013 = vperm.xlu0 %2012, %v1813
  %v2014 = vpop.permute.xlu0 %2013
  %2017 = vset.pattern.permute.xlu0 0
  %2018 = vperm.xlu0 %2017, %v1815
  %v2019 = vpop.permute.xlu0 %2018
  %2022 = vset.pattern.permute.xlu0 0
  %2023 = vperm.xlu0 %2022, %v1817
  %v2024 = vpop.permute.xlu0 %2023
  %2027 = vset.pattern.permute.xlu0 0
  %2028 = vperm.xlu0 %2027, %v1819
  %v2029 = vpop.permute.xlu0 %2028
  %2032 = vset.pattern.permute.xlu0 0
  %2033 = vperm.xlu0 %2032, %v1821
  %v2034 = vpop.permute.xlu0 %2033
  %2037 = vset.pattern.permute.xlu0 0
  %2038 = vperm.xlu0 %2037, %v1823
  %v2039 = vpop.permute.xlu0 %2038
  %2042 = vset.pattern.permute.xlu0 0
  %2043 = vperm.xlu0 %2042, %v1825
  %v2044 = vpop.permute.xlu0 %2043
  %2047 = vset.pattern.permute.xlu0 0
  %2048 = vperm.xlu0 %2047, %v1827
  %v2049 = vpop.permute.xlu0 %2048
  %2052 = vset.pattern.permute.xlu0 0
  %2053 = vperm.xlu0 %2052, %v1829
  %v2054 = vpop.permute.xlu0 %2053
  %2057 = vset.pattern.permute.xlu0 0
  %2058 = vperm.xlu0 %2057, %v1831
  %v2059 = vpop.permute.xlu0 %2058
  %2062 = vset.pattern.permute.xlu0 0
  %2063 = vperm.xlu0 %2062, %v1833
  %v2064 = vpop.permute.xlu0 %2063
  %2067 = vset.pattern.permute.xlu0 0
  %2068 = vperm.xlu0 %2067, %v1835
  %v2069 = vpop.permute.xlu0 %2068
  %2072 = vset.pattern.permute.xlu0 0
  %2073 = vperm.xlu0 %2072, %v1837
  %v2074 = vpop.permute.xlu0 %2073
  %2077 = vset.pattern.permute.xlu0 0
  %2078 = vperm.xlu0 %2077, %v1839
  %v2079 = vpop.permute.xlu0 %2078
  %2082 = vset.pattern.permute.xlu0 0
  %2083 = vperm.xlu0 %2082, %v1841
  %v2084 = vpop.permute.xlu0 %2083
  %2087 = vset.pattern.permute.xlu0 0
  %2088 = vperm.xlu0 %2087, %v1843
  %v2089 = vpop.permute.xlu0 %2088
  %2092 = vset.pattern.permute.xlu0 0
  %2093 = vperm.xlu0 %2092, %v1845
  %v2094 = vpop.permute.xlu0 %2093
  %2097 = vset.pattern.permute.xlu0 0
  %2098 = vperm.xlu0 %2097, %v1847
  %v2099 = vpop.permute.xlu0 %2098
  %2102 = vset.pattern.permute.xlu0 0
  %2103 = vperm.xlu0 %2102, %v1849
  %v2104 = vpop.permute.xlu0 %2103
  %2107 = vset.pattern.permute.xlu0 0
  %2108 = vperm.xlu0 %2107, %v1851
  %v2109 = vpop.permute.xlu0 %2108
  %2112 = vset.pattern.permute.xlu0 0
  %2113 = vperm.xlu0 %2112, %v1853
  %v2114 = vpop.permute.xlu0 %2113
  %2117 = vset.pattern.permute.xlu0 0
  %2118 = vperm.xlu0 %2117, %v1855
  %v2119 = vpop.permute.xlu0 %2118
  %2122 = vset.pattern.permute.xlu0 0
  %2123 = vperm.xlu0 %2122, %v1857
  %v2124 = vpop.permute.xlu0 %2123
  %2127 = vset.pattern.permute.xlu0 0
  %2128 = vperm.xlu0 %2127, %v1859
  %v2129 = vpop.permute.xlu0 %2128
  %2132 = vset.pattern.permute.xlu0 0
  %2133 = vperm.xlu0 %2132, %v1861
  %v2134 = vpop.permute.xlu0 %2133
  %2137 = vset.pattern.permute.xlu0 0
  %2138 = vperm.xlu0 %2137, %v1863
  %v2139 = vpop.permute.xlu0 %2138
  %2142 = vset.pattern.permute.xlu0 0
  %2143 = vperm.xlu0 %2142, %v1865
  %v2144 = vpop.permute.xlu0 %2143
  %v2146 = vperm.slane %v738, 2
  %v2147 = vmul.f32 %v1869, %v2146
  %v2148 = vmul.f32 %v1874, %v2146
  %v2149 = vmul.f32 %v1879, %v2146
  %v2150 = vmul.f32 %v1884, %v2146
  %v2151 = vmul.f32 %v1889, %v2146
  %v2152 = vmul.f32 %v1894, %v2146
  %v2153 = vmul.f32 %v1899, %v2146
  %v2154 = vmul.f32 %v1904, %v2146
  %v2155 = vmul.f32 %v1909, %v2146
  %v2156 = vmul.f32 %v1914, %v2146
  %v2157 = vmul.f32 %v1919, %v2146
  %v2158 = vmul.f32 %v1924, %v2146
  %v2159 = vmul.f32 %v1929, %v2146
  %v2160 = vmul.f32 %v1934, %v2146
  %v2161 = vmul.f32 %v1939, %v2146
  %v2162 = vmul.f32 %v1944, %v2146
  %v2163 = vmul.f32 %v1949, %v2146
  %v2164 = vmul.f32 %v1954, %v2146
  %v2165 = vmul.f32 %v1959, %v2146
  %v2166 = vmul.f32 %v1964, %v2146
  %v2167 = vmul.f32 %v1969, %v2146
  %v2168 = vmul.f32 %v1974, %v2146
  %v2169 = vmul.f32 %v1979, %v2146
  %v2170 = vmul.f32 %v1984, %v2146
  %v2171 = vmul.f32 %v1989, %v2146
  %v2172 = vmul.f32 %v1994, %v2146
  %v2173 = vmul.f32 %v1999, %v2146
  %v2174 = vmul.f32 %v2004, %v2146
  %v2175 = vmul.f32 %v2009, %v2146
  %v2176 = vmul.f32 %v2014, %v2146
  %v2177 = vmul.f32 %v2019, %v2146
  %v2178 = vmul.f32 %v2024, %v2146
  %v2179 = vmul.f32 %v2029, %v2146
  %v2180 = vmul.f32 %v2034, %v2146
  %v2181 = vmul.f32 %v2039, %v2146
  %v2182 = vmul.f32 %v2044, %v2146
  %v2183 = vmul.f32 %v2049, %v2146
  %v2184 = vmul.f32 %v2054, %v2146
  %v2185 = vmul.f32 %v2059, %v2146
  %v2186 = vmul.f32 %v2064, %v2146
  %v2187 = vmul.f32 %v2069, %v2146
  %v2188 = vmul.f32 %v2074, %v2146
  %v2189 = vmul.f32 %v2079, %v2146
  %v2190 = vmul.f32 %v2084, %v2146
  %v2191 = vmul.f32 %v2089, %v2146
  %v2192 = vmul.f32 %v2094, %v2146
  %v2193 = vmul.f32 %v2099, %v2146
  %v2194 = vmul.f32 %v2104, %v2146
  %v2195 = vmul.f32 %v2109, %v2146
  %v2196 = vmul.f32 %v2114, %v2146
  %v2197 = vmul.f32 %v2119, %v2146
  %v2198 = vmul.f32 %v2124, %v2146
  %v2199 = vmul.f32 %v2129, %v2146
  %v2200 = vmul.f32 %v2134, %v2146
  %v2201 = vmul.f32 %v2139, %v2146
  %v2202 = vmul.f32 %v2144, %v2146
  %v2203 = vadd.f32 %v1698, %v2147
  %v2204 = vadd.f32 %v1699, %v2148
  %v2205 = vadd.f32 %v1700, %v2149
  %v2206 = vadd.f32 %v1701, %v2150
  %v2207 = vadd.f32 %v1702, %v2151
  %v2208 = vadd.f32 %v1703, %v2152
  %v2209 = vadd.f32 %v1704, %v2153
  %v2210 = vadd.f32 %v1705, %v2154
  %v2211 = vadd.f32 %v1706, %v2155
  %v2212 = vadd.f32 %v1707, %v2156
  %v2213 = vadd.f32 %v1708, %v2157
  %v2214 = vadd.f32 %v1709, %v2158
  %v2215 = vadd.f32 %v1710, %v2159
  %v2216 = vadd.f32 %v1711, %v2160
  %v2217 = vadd.f32 %v1712, %v2161
  %v2218 = vadd.f32 %v1713, %v2162
  %v2219 = vadd.f32 %v1714, %v2163
  %v2220 = vadd.f32 %v1715, %v2164
  %v2221 = vadd.f32 %v1716, %v2165
  %v2222 = vadd.f32 %v1717, %v2166
  %v2223 = vadd.f32 %v1718, %v2167
  %v2224 = vadd.f32 %v1719, %v2168
  %v2225 = vadd.f32 %v1720, %v2169
  %v2226 = vadd.f32 %v1721, %v2170
  %v2227 = vadd.f32 %v1722, %v2171
  %v2228 = vadd.f32 %v1723, %v2172
  %v2229 = vadd.f32 %v1724, %v2173
  %v2230 = vadd.f32 %v1725, %v2174
  %v2231 = vadd.f32 %v1726, %v2175
  %v2232 = vadd.f32 %v1727, %v2176
  %v2233 = vadd.f32 %v1728, %v2177
  %v2234 = vadd.f32 %v1729, %v2178
  %v2235 = vadd.f32 %v1730, %v2179
  %v2236 = vadd.f32 %v1731, %v2180
  %v2237 = vadd.f32 %v1732, %v2181
  %v2238 = vadd.f32 %v1733, %v2182
  %v2239 = vadd.f32 %v1734, %v2183
  %v2240 = vadd.f32 %v1735, %v2184
  %v2241 = vadd.f32 %v1736, %v2185
  %v2242 = vadd.f32 %v1737, %v2186
  %v2243 = vadd.f32 %v1738, %v2187
  %v2244 = vadd.f32 %v1739, %v2188
  %v2245 = vadd.f32 %v1740, %v2189
  %v2246 = vadd.f32 %v1741, %v2190
  %v2247 = vadd.f32 %v1742, %v2191
  %v2248 = vadd.f32 %v1743, %v2192
  %v2249 = vadd.f32 %v1744, %v2193
  %v2250 = vadd.f32 %v1745, %v2194
  %v2251 = vadd.f32 %v1746, %v2195
  %v2252 = vadd.f32 %v1747, %v2196
  %v2253 = vadd.f32 %v1748, %v2197
  %v2254 = vadd.f32 %v1749, %v2198
  %v2255 = vadd.f32 %v1750, %v2199
  %v2256 = vadd.f32 %v1751, %v2200
  %v2257 = vadd.f32 %v1752, %v2201
  %v2258 = vadd.f32 %v1753, %v2202
  %v2259 = vld [vmem:[#allocation3] ss:$2 sm:$0xff]
  %s2260 = scalar_lea.vmem [#allocation3], 16
  %v2261 = vld [vmem:[%s2260] ss:$2 sm:$0x3f]
  %s2262 = scalar_lea.vmem [#allocation3], 32
  %v2263 = vld [vmem:[%s2262] ss:$2 sm:$0xff]
  %s2264 = scalar_lea.vmem [#allocation3], 48
  %v2265 = vld [vmem:[%s2264] ss:$2 sm:$0x3f]
  %s2266 = scalar_lea.vmem [#allocation3], 64
  %v2267 = vld [vmem:[%s2266] ss:$2 sm:$0xff]
  %s2268 = scalar_lea.vmem [#allocation3], 80
  %v2269 = vld [vmem:[%s2268] ss:$2 sm:$0x3f]
  %s2270 = scalar_lea.vmem [#allocation3], 96
  %v2271 = vld [vmem:[%s2270] ss:$2 sm:$0xff]
  %s2272 = scalar_lea.vmem [#allocation3], 112
  %v2273 = vld [vmem:[%s2272] ss:$2 sm:$0x3f]
  %s2274 = scalar_lea.vmem [#allocation3], 128
  %v2275 = vld [vmem:[%s2274] ss:$2 sm:$0xff]
  %s2276 = scalar_lea.vmem [#allocation3], 144
  %v2277 = vld [vmem:[%s2276] ss:$2 sm:$0x3f]
  %s2278 = scalar_lea.vmem [#allocation3], 160
  %v2279 = vld [vmem:[%s2278] ss:$2 sm:$0xff]
  %s2280 = scalar_lea.vmem [#allocation3], 176
  %v2281 = vld [vmem:[%s2280] ss:$2 sm:$0x3f]
  %s2282 = scalar_lea.vmem [#allocation3], 192
  %v2283 = vld [vmem:[%s2282] ss:$2 sm:$0xff]
  %s2284 = scalar_lea.vmem [#allocation3], 208
  %v2285 = vld [vmem:[%s2284] ss:$2 sm:$0x3f]
  %s2286 = scalar_lea.vmem [#allocation3], 224
  %v2287 = vld [vmem:[%s2286] ss:$2 sm:$0xff]
  %s2288 = scalar_lea.vmem [#allocation3], 240
  %v2289 = vld [vmem:[%s2288] ss:$2 sm:$0x3f]
  %s2290 = scalar_lea.vmem [#allocation3], 256
  %v2291 = vld [vmem:[%s2290] ss:$2 sm:$0xff]
  %s2292 = scalar_lea.vmem [#allocation3], 272
  %v2293 = vld [vmem:[%s2292] ss:$2 sm:$0x3f]
  %s2294 = scalar_lea.vmem [#allocation3], 288
  %v2295 = vld [vmem:[%s2294] ss:$2 sm:$0xff]
  %s2296 = scalar_lea.vmem [#allocation3], 304
  %v2297 = vld [vmem:[%s2296] ss:$2 sm:$0x3f]
  %s2298 = scalar_lea.vmem [#allocation3], 320
  %v2299 = vld [vmem:[%s2298] ss:$2 sm:$0xff]
  %s2300 = scalar_lea.vmem [#allocation3], 336
  %v2301 = vld [vmem:[%s2300] ss:$2 sm:$0x3f]
  %s2302 = scalar_lea.vmem [#allocation3], 352
  %v2303 = vld [vmem:[%s2302] ss:$2 sm:$0xff]
  %s2304 = scalar_lea.vmem [#allocation3], 368
  %v2305 = vld [vmem:[%s2304] ss:$2 sm:$0x3f]
  %s2306 = scalar_lea.vmem [#allocation3], 384
  %v2307 = vld [vmem:[%s2306] ss:$2 sm:$0xff]
  %s2308 = scalar_lea.vmem [#allocation3], 400
  %v2309 = vld [vmem:[%s2308] ss:$2 sm:$0x3f]
  %s2310 = scalar_lea.vmem [#allocation3], 416
  %v2311 = vld [vmem:[%s2310] ss:$2 sm:$0xff]
  %s2312 = scalar_lea.vmem [#allocation3], 432
  %v2313 = vld [vmem:[%s2312] ss:$2 sm:$0x3f]
  %s2314 = scalar_lea.vmem [#allocation3], 480
  %v2315 = vld [vmem:[%s2314] ss:$2 sm:$0xff]
  %s2316 = scalar_lea.vmem [#allocation3], 496
  %v2317 = vld [vmem:[%s2316] ss:$2 sm:$0x3f]
  %s2318 = scalar_lea.vmem [#allocation3], 512
  %v2319 = vld [vmem:[%s2318] ss:$2 sm:$0xff]
  %s2320 = scalar_lea.vmem [#allocation3], 528
  %v2321 = vld [vmem:[%s2320] ss:$2 sm:$0x3f]
  %s2322 = scalar_lea.vmem [#allocation3], 544
  %v2323 = vld [vmem:[%s2322] ss:$2 sm:$0xff]
  %s2324 = scalar_lea.vmem [#allocation3], 560
  %v2325 = vld [vmem:[%s2324] ss:$2 sm:$0x3f]
  %s2326 = scalar_lea.vmem [#allocation3], 576
  %v2327 = vld [vmem:[%s2326] ss:$2 sm:$0xff]
  %s2328 = scalar_lea.vmem [#allocation3], 592
  %v2329 = vld [vmem:[%s2328] ss:$2 sm:$0x3f]
  %s2330 = scalar_lea.vmem [#allocation3], 608
  %v2331 = vld [vmem:[%s2330] ss:$2 sm:$0xff]
  %s2332 = scalar_lea.vmem [#allocation3], 624
  %v2333 = vld [vmem:[%s2332] ss:$2 sm:$0x3f]
  %s2334 = scalar_lea.vmem [#allocation3], 640
  %v2335 = vld [vmem:[%s2334] ss:$2 sm:$0xff]
  %s2336 = scalar_lea.vmem [#allocation3], 656
  %v2337 = vld [vmem:[%s2336] ss:$2 sm:$0x3f]
  %s2338 = scalar_lea.vmem [#allocation3], 672
  %v2339 = vld [vmem:[%s2338] ss:$2 sm:$0xff]
  %s2340 = scalar_lea.vmem [#allocation3], 688
  %v2341 = vld [vmem:[%s2340] ss:$2 sm:$0x3f]
  %s2342 = scalar_lea.vmem [#allocation3], 704
  %v2343 = vld [vmem:[%s2342] ss:$2 sm:$0xff]
  %s2344 = scalar_lea.vmem [#allocation3], 720
  %v2345 = vld [vmem:[%s2344] ss:$2 sm:$0x3f]
  %s2346 = scalar_lea.vmem [#allocation3], 736
  %v2347 = vld [vmem:[%s2346] ss:$2 sm:$0xff]
  %s2348 = scalar_lea.vmem [#allocation3], 752
  %v2349 = vld [vmem:[%s2348] ss:$2 sm:$0x3f]
  %s2350 = scalar_lea.vmem [#allocation3], 768
  %v2351 = vld [vmem:[%s2350] ss:$2 sm:$0xff]
  %s2352 = scalar_lea.vmem [#allocation3], 784
  %v2353 = vld [vmem:[%s2352] ss:$2 sm:$0x3f]
  %s2354 = scalar_lea.vmem [#allocation3], 800
  %v2355 = vld [vmem:[%s2354] ss:$2 sm:$0xff]
  %s2356 = scalar_lea.vmem [#allocation3], 816
  %v2357 = vld [vmem:[%s2356] ss:$2 sm:$0x3f]
  %s2358 = scalar_lea.vmem [#allocation3], 832
  %v2359 = vld [vmem:[%s2358] ss:$2 sm:$0xff]
  %s2360 = scalar_lea.vmem [#allocation3], 848
  %v2361 = vld [vmem:[%s2360] ss:$2 sm:$0x3f]
  %s2362 = scalar_lea.vmem [#allocation3], 864
  %v2363 = vld [vmem:[%s2362] ss:$2 sm:$0xff]
  %s2364 = scalar_lea.vmem [#allocation3], 880
  %v2365 = vld [vmem:[%s2364] ss:$2 sm:$0x3f]
  %s2366 = scalar_lea.vmem [#allocation3], 896
  %v2367 = vld [vmem:[%s2366] ss:$2 sm:$0xff]
  %s2368 = scalar_lea.vmem [#allocation3], 912
  %v2369 = vld [vmem:[%s2368] ss:$2 sm:$0x3f]
  %2371 = vset.pattern.permute.xlu0 0
  %2372 = vperm.xlu0 %2371, %v2259
  %v2373 = vpop.permute.xlu0 %2372
  %2376 = vset.pattern.permute.xlu0 0
  %2377 = vperm.xlu0 %2376, %v2261
  %v2378 = vpop.permute.xlu0 %2377
  %2381 = vset.pattern.permute.xlu0 0
  %2382 = vperm.xlu0 %2381, %v2263
  %v2383 = vpop.permute.xlu0 %2382
  %2386 = vset.pattern.permute.xlu0 0
  %2387 = vperm.xlu0 %2386, %v2265
  %v2388 = vpop.permute.xlu0 %2387
  %2391 = vset.pattern.permute.xlu0 0
  %2392 = vperm.xlu0 %2391, %v2267
  %v2393 = vpop.permute.xlu0 %2392
  %2396 = vset.pattern.permute.xlu0 0
  %2397 = vperm.xlu0 %2396, %v2269
  %v2398 = vpop.permute.xlu0 %2397
  %2401 = vset.pattern.permute.xlu0 0
  %2402 = vperm.xlu0 %2401, %v2271
  %v2403 = vpop.permute.xlu0 %2402
  %2406 = vset.pattern.permute.xlu0 0
  %2407 = vperm.xlu0 %2406, %v2273
  %v2408 = vpop.permute.xlu0 %2407
  %2411 = vset.pattern.permute.xlu0 0
  %2412 = vperm.xlu0 %2411, %v2275
  %v2413 = vpop.permute.xlu0 %2412
  %2416 = vset.pattern.permute.xlu0 0
  %2417 = vperm.xlu0 %2416, %v2277
  %v2418 = vpop.permute.xlu0 %2417
  %2421 = vset.pattern.permute.xlu0 0
  %2422 = vperm.xlu0 %2421, %v2279
  %v2423 = vpop.permute.xlu0 %2422
  %2426 = vset.pattern.permute.xlu0 0
  %2427 = vperm.xlu0 %2426, %v2281
  %v2428 = vpop.permute.xlu0 %2427
  %2431 = vset.pattern.permute.xlu0 0
  %2432 = vperm.xlu0 %2431, %v2283
  %v2433 = vpop.permute.xlu0 %2432
  %2436 = vset.pattern.permute.xlu0 0
  %2437 = vperm.xlu0 %2436, %v2285
  %v2438 = vpop.permute.xlu0 %2437
  %2441 = vset.pattern.permute.xlu0 0
  %2442 = vperm.xlu0 %2441, %v2287
  %v2443 = vpop.permute.xlu0 %2442
  %2446 = vset.pattern.permute.xlu0 0
  %2447 = vperm.xlu0 %2446, %v2289
  %v2448 = vpop.permute.xlu0 %2447
  %2451 = vset.pattern.permute.xlu0 0
  %2452 = vperm.xlu0 %2451, %v2291
  %v2453 = vpop.permute.xlu0 %2452
  %2456 = vset.pattern.permute.xlu0 0
  %2457 = vperm.xlu0 %2456, %v2293
  %v2458 = vpop.permute.xlu0 %2457
  %2461 = vset.pattern.permute.xlu0 0
  %2462 = vperm.xlu0 %2461, %v2295
  %v2463 = vpop.permute.xlu0 %2462
  %2466 = vset.pattern.permute.xlu0 0
  %2467 = vperm.xlu0 %2466, %v2297
  %v2468 = vpop.permute.xlu0 %2467
  %2471 = vset.pattern.permute.xlu0 0
  %2472 = vperm.xlu0 %2471, %v2299
  %v2473 = vpop.permute.xlu0 %2472
  %2476 = vset.pattern.permute.xlu0 0
  %2477 = vperm.xlu0 %2476, %v2301
  %v2478 = vpop.permute.xlu0 %2477
  %2481 = vset.pattern.permute.xlu0 0
  %2482 = vperm.xlu0 %2481, %v2303
  %v2483 = vpop.permute.xlu0 %2482
  %2486 = vset.pattern.permute.xlu0 0
  %2487 = vperm.xlu0 %2486, %v2305
  %v2488 = vpop.permute.xlu0 %2487
  %2491 = vset.pattern.permute.xlu0 0
  %2492 = vperm.xlu0 %2491, %v2307
  %v2493 = vpop.permute.xlu0 %2492
  %2496 = vset.pattern.permute.xlu0 0
  %2497 = vperm.xlu0 %2496, %v2309
  %v2498 = vpop.permute.xlu0 %2497
  %2501 = vset.pattern.permute.xlu0 0
  %2502 = vperm.xlu0 %2501, %v2311
  %v2503 = vpop.permute.xlu0 %2502
  %2506 = vset.pattern.permute.xlu0 0
  %2507 = vperm.xlu0 %2506, %v2313
  %v2508 = vpop.permute.xlu0 %2507
  %2511 = vset.pattern.permute.xlu0 0
  %2512 = vperm.xlu0 %2511, %v2315
  %v2513 = vpop.permute.xlu0 %2512
  %2516 = vset.pattern.permute.xlu0 0
  %2517 = vperm.xlu0 %2516, %v2317
  %v2518 = vpop.permute.xlu0 %2517
  %2521 = vset.pattern.permute.xlu0 0
  %2522 = vperm.xlu0 %2521, %v2319
  %v2523 = vpop.permute.xlu0 %2522
  %2526 = vset.pattern.permute.xlu0 0
  %2527 = vperm.xlu0 %2526, %v2321
  %v2528 = vpop.permute.xlu0 %2527
  %2531 = vset.pattern.permute.xlu0 0
  %2532 = vperm.xlu0 %2531, %v2323
  %v2533 = vpop.permute.xlu0 %2532
  %2536 = vset.pattern.permute.xlu0 0
  %2537 = vperm.xlu0 %2536, %v2325
  %v2538 = vpop.permute.xlu0 %2537
  %2541 = vset.pattern.permute.xlu0 0
  %2542 = vperm.xlu0 %2541, %v2327
  %v2543 = vpop.permute.xlu0 %2542
  %2546 = vset.pattern.permute.xlu0 0
  %2547 = vperm.xlu0 %2546, %v2329
  %v2548 = vpop.permute.xlu0 %2547
  %2551 = vset.pattern.permute.xlu0 0
  %2552 = vperm.xlu0 %2551, %v2331
  %v2553 = vpop.permute.xlu0 %2552
  %2556 = vset.pattern.permute.xlu0 0
  %2557 = vperm.xlu0 %2556, %v2333
  %v2558 = vpop.permute.xlu0 %2557
  %2561 = vset.pattern.permute.xlu0 0
  %2562 = vperm.xlu0 %2561, %v2335
  %v2563 = vpop.permute.xlu0 %2562
  %2566 = vset.pattern.permute.xlu0 0
  %2567 = vperm.xlu0 %2566, %v2337
  %v2568 = vpop.permute.xlu0 %2567
  %2571 = vset.pattern.permute.xlu0 0
  %2572 = vperm.xlu0 %2571, %v2339
  %v2573 = vpop.permute.xlu0 %2572
  %2576 = vset.pattern.permute.xlu0 0
  %2577 = vperm.xlu0 %2576, %v2341
  %v2578 = vpop.permute.xlu0 %2577
  %2581 = vset.pattern.permute.xlu0 0
  %2582 = vperm.xlu0 %2581, %v2343
  %v2583 = vpop.permute.xlu0 %2582
  %2586 = vset.pattern.permute.xlu0 0
  %2587 = vperm.xlu0 %2586, %v2345
  %v2588 = vpop.permute.xlu0 %2587
  %2591 = vset.pattern.permute.xlu0 0
  %2592 = vperm.xlu0 %2591, %v2347
  %v2593 = vpop.permute.xlu0 %2592
  %2596 = vset.pattern.permute.xlu0 0
  %2597 = vperm.xlu0 %2596, %v2349
  %v2598 = vpop.permute.xlu0 %2597
  %2601 = vset.pattern.permute.xlu0 0
  %2602 = vperm.xlu0 %2601, %v2351
  %v2603 = vpop.permute.xlu0 %2602
  %2606 = vset.pattern.permute.xlu0 0
  %2607 = vperm.xlu0 %2606, %v2353
  %v2608 = vpop.permute.xlu0 %2607
  %2611 = vset.pattern.permute.xlu0 0
  %2612 = vperm.xlu0 %2611, %v2355
  %v2613 = vpop.permute.xlu0 %2612
  %2616 = vset.pattern.permute.xlu0 0
  %2617 = vperm.xlu0 %2616, %v2357
  %v2618 = vpop.permute.xlu0 %2617
  %2621 = vset.pattern.permute.xlu0 0
  %2622 = vperm.xlu0 %2621, %v2359
  %v2623 = vpop.permute.xlu0 %2622
  %2626 = vset.pattern.permute.xlu0 0
  %2627 = vperm.xlu0 %2626, %v2361
  %v2628 = vpop.permute.xlu0 %2627
  %2631 = vset.pattern.permute.xlu0 0
  %2632 = vperm.xlu0 %2631, %v2363
  %v2633 = vpop.permute.xlu0 %2632
  %2636 = vset.pattern.permute.xlu0 0
  %2637 = vperm.xlu0 %2636, %v2365
  %v2638 = vpop.permute.xlu0 %2637
  %2641 = vset.pattern.permute.xlu0 0
  %2642 = vperm.xlu0 %2641, %v2367
  %v2643 = vpop.permute.xlu0 %2642
  %2646 = vset.pattern.permute.xlu0 0
  %2647 = vperm.xlu0 %2646, %v2369
  %v2648 = vpop.permute.xlu0 %2647
  %v2650 = vperm.slane %v738, 3
  %v2651 = vmul.f32 %v2373, %v2650
  %v2652 = vmul.f32 %v2378, %v2650
  %v2653 = vmul.f32 %v2383, %v2650
  %v2654 = vmul.f32 %v2388, %v2650
  %v2655 = vmul.f32 %v2393, %v2650
  %v2656 = vmul.f32 %v2398, %v2650
  %v2657 = vmul.f32 %v2403, %v2650
  %v2658 = vmul.f32 %v2408, %v2650
  %v2659 = vmul.f32 %v2413, %v2650
  %v2660 = vmul.f32 %v2418, %v2650
  %v2661 = vmul.f32 %v2423, %v2650
  %v2662 = vmul.f32 %v2428, %v2650
  %v2663 = vmul.f32 %v2433, %v2650
  %v2664 = vmul.f32 %v2438, %v2650
  %v2665 = vmul.f32 %v2443, %v2650
  %v2666 = vmul.f32 %v2448, %v2650
  %v2667 = vmul.f32 %v2453, %v2650
  %v2668 = vmul.f32 %v2458, %v2650
  %v2669 = vmul.f32 %v2463, %v2650
  %v2670 = vmul.f32 %v2468, %v2650
  %v2671 = vmul.f32 %v2473, %v2650
  %v2672 = vmul.f32 %v2478, %v2650
  %v2673 = vmul.f32 %v2483, %v2650
  %v2674 = vmul.f32 %v2488, %v2650
  %v2675 = vmul.f32 %v2493, %v2650
  %v2676 = vmul.f32 %v2498, %v2650
  %v2677 = vmul.f32 %v2503, %v2650
  %v2678 = vmul.f32 %v2508, %v2650
  %v2679 = vmul.f32 %v2513, %v2650
  %v2680 = vmul.f32 %v2518, %v2650
  %v2681 = vmul.f32 %v2523, %v2650
  %v2682 = vmul.f32 %v2528, %v2650
  %v2683 = vmul.f32 %v2533, %v2650
  %v2684 = vmul.f32 %v2538, %v2650
  %v2685 = vmul.f32 %v2543, %v2650
  %v2686 = vmul.f32 %v2548, %v2650
  %v2687 = vmul.f32 %v2553, %v2650
  %v2688 = vmul.f32 %v2558, %v2650
  %v2689 = vmul.f32 %v2563, %v2650
  %v2690 = vmul.f32 %v2568, %v2650
  %v2691 = vmul.f32 %v2573, %v2650
  %v2692 = vmul.f32 %v2578, %v2650
  %v2693 = vmul.f32 %v2583, %v2650
  %v2694 = vmul.f32 %v2588, %v2650
  %v2695 = vmul.f32 %v2593, %v2650
  %v2696 = vmul.f32 %v2598, %v2650
  %v2697 = vmul.f32 %v2603, %v2650
  %v2698 = vmul.f32 %v2608, %v2650
  %v2699 = vmul.f32 %v2613, %v2650
  %v2700 = vmul.f32 %v2618, %v2650
  %v2701 = vmul.f32 %v2623, %v2650
  %v2702 = vmul.f32 %v2628, %v2650
  %v2703 = vmul.f32 %v2633, %v2650
  %v2704 = vmul.f32 %v2638, %v2650
  %v2705 = vmul.f32 %v2643, %v2650
  %v2706 = vmul.f32 %v2648, %v2650
  %v2707 = vadd.f32 %v2203, %v2651
  %v2708 = vadd.f32 %v2204, %v2652
  %v2709 = vadd.f32 %v2205, %v2653
  %v2710 = vadd.f32 %v2206, %v2654
  %v2711 = vadd.f32 %v2207, %v2655
  %v2712 = vadd.f32 %v2208, %v2656
  %v2713 = vadd.f32 %v2209, %v2657
  %v2714 = vadd.f32 %v2210, %v2658
  %v2715 = vadd.f32 %v2211, %v2659
  %v2716 = vadd.f32 %v2212, %v2660
  %v2717 = vadd.f32 %v2213, %v2661
  %v2718 = vadd.f32 %v2214, %v2662
  %v2719 = vadd.f32 %v2215, %v2663
  %v2720 = vadd.f32 %v2216, %v2664
  %v2721 = vadd.f32 %v2217, %v2665
  %v2722 = vadd.f32 %v2218, %v2666
  %v2723 = vadd.f32 %v2219, %v2667
  %v2724 = vadd.f32 %v2220, %v2668
  %v2725 = vadd.f32 %v2221, %v2669
  %v2726 = vadd.f32 %v2222, %v2670
  %v2727 = vadd.f32 %v2223, %v2671
  %v2728 = vadd.f32 %v2224, %v2672
  %v2729 = vadd.f32 %v2225, %v2673
  %v2730 = vadd.f32 %v2226, %v2674
  %v2731 = vadd.f32 %v2227, %v2675
  %v2732 = vadd.f32 %v2228, %v2676
  %v2733 = vadd.f32 %v2229, %v2677
  %v2734 = vadd.f32 %v2230, %v2678
  %v2735 = vadd.f32 %v2231, %v2679
  %v2736 = vadd.f32 %v2232, %v2680
  %v2737 = vadd.f32 %v2233, %v2681
  %v2738 = vadd.f32 %v2234, %v2682
  %v2739 = vadd.f32 %v2235, %v2683
  %v2740 = vadd.f32 %v2236, %v2684
  %v2741 = vadd.f32 %v2237, %v2685
  %v2742 = vadd.f32 %v2238, %v2686
  %v2743 = vadd.f32 %v2239, %v2687
  %v2744 = vadd.f32 %v2240, %v2688
  %v2745 = vadd.f32 %v2241, %v2689
  %v2746 = vadd.f32 %v2242, %v2690
  %v2747 = vadd.f32 %v2243, %v2691
  %v2748 = vadd.f32 %v2244, %v2692
  %v2749 = vadd.f32 %v2245, %v2693
  %v2750 = vadd.f32 %v2246, %v2694
  %v2751 = vadd.f32 %v2247, %v2695
  %v2752 = vadd.f32 %v2248, %v2696
  %v2753 = vadd.f32 %v2249, %v2697
  %v2754 = vadd.f32 %v2250, %v2698
  %v2755 = vadd.f32 %v2251, %v2699
  %v2756 = vadd.f32 %v2252, %v2700
  %v2757 = vadd.f32 %v2253, %v2701
  %v2758 = vadd.f32 %v2254, %v2702
  %v2759 = vadd.f32 %v2255, %v2703
  %v2760 = vadd.f32 %v2256, %v2704
  %v2761 = vadd.f32 %v2257, %v2705
  %v2762 = vadd.f32 %v2258, %v2706
  %s2763 = scalar_lea.vmem [#allocation3], 1
  %v2764 = vld [vmem:[%s2763] ss:$2 sm:$0xff]
  %s2765 = scalar_lea.vmem [#allocation3], 17
  %v2766 = vld [vmem:[%s2765] ss:$2 sm:$0x3f]
  %s2767 = scalar_lea.vmem [#allocation3], 33
  %v2768 = vld [vmem:[%s2767] ss:$2 sm:$0xff]
  %s2769 = scalar_lea.vmem [#allocation3], 49
  %v2770 = vld [vmem:[%s2769] ss:$2 sm:$0x3f]
  %s2771 = scalar_lea.vmem [#allocation3], 65
  %v2772 = vld [vmem:[%s2771] ss:$2 sm:$0xff]
  %s2773 = scalar_lea.vmem [#allocation3], 81
  %v2774 = vld [vmem:[%s2773] ss:$2 sm:$0x3f]
  %s2775 = scalar_lea.vmem [#allocation3], 97
  %v2776 = vld [vmem:[%s2775] ss:$2 sm:$0xff]
  %s2777 = scalar_lea.vmem [#allocation3], 113
  %v2778 = vld [vmem:[%s2777] ss:$2 sm:$0x3f]
  %s2779 = scalar_lea.vmem [#allocation3], 129
  %v2780 = vld [vmem:[%s2779] ss:$2 sm:$0xff]
  %s2781 = scalar_lea.vmem [#allocation3], 145
  %v2782 = vld [vmem:[%s2781] ss:$2 sm:$0x3f]
  %s2783 = scalar_lea.vmem [#allocation3], 161
  %v2784 = vld [vmem:[%s2783] ss:$2 sm:$0xff]
  %s2785 = scalar_lea.vmem [#allocation3], 177
  %v2786 = vld [vmem:[%s2785] ss:$2 sm:$0x3f]
  %s2787 = scalar_lea.vmem [#allocation3], 193
  %v2788 = vld [vmem:[%s2787] ss:$2 sm:$0xff]
  %s2789 = scalar_lea.vmem [#allocation3], 209
  %v2790 = vld [vmem:[%s2789] ss:$2 sm:$0x3f]
  %s2791 = scalar_lea.vmem [#allocation3], 225
  %v2792 = vld [vmem:[%s2791] ss:$2 sm:$0xff]
  %s2793 = scalar_lea.vmem [#allocation3], 241
  %v2794 = vld [vmem:[%s2793] ss:$2 sm:$0x3f]
  %s2795 = scalar_lea.vmem [#allocation3], 257
  %v2796 = vld [vmem:[%s2795] ss:$2 sm:$0xff]
  %s2797 = scalar_lea.vmem [#allocation3], 273
  %v2798 = vld [vmem:[%s2797] ss:$2 sm:$0x3f]
  %s2799 = scalar_lea.vmem [#allocation3], 289
  %v2800 = vld [vmem:[%s2799] ss:$2 sm:$0xff]
  %s2801 = scalar_lea.vmem [#allocation3], 305
  %v2802 = vld [vmem:[%s2801] ss:$2 sm:$0x3f]
  %s2803 = scalar_lea.vmem [#allocation3], 321
  %v2804 = vld [vmem:[%s2803] ss:$2 sm:$0xff]
  %s2805 = scalar_lea.vmem [#allocation3], 337
  %v2806 = vld [vmem:[%s2805] ss:$2 sm:$0x3f]
  %s2807 = scalar_lea.vmem [#allocation3], 353
  %v2808 = vld [vmem:[%s2807] ss:$2 sm:$0xff]
  %s2809 = scalar_lea.vmem [#allocation3], 369
  %v2810 = vld [vmem:[%s2809] ss:$2 sm:$0x3f]
  %s2811 = scalar_lea.vmem [#allocation3], 385
  %v2812 = vld [vmem:[%s2811] ss:$2 sm:$0xff]
  %s2813 = scalar_lea.vmem [#allocation3], 401
  %v2814 = vld [vmem:[%s2813] ss:$2 sm:$0x3f]
  %s2815 = scalar_lea.vmem [#allocation3], 417
  %v2816 = vld [vmem:[%s2815] ss:$2 sm:$0xff]
  %s2817 = scalar_lea.vmem [#allocation3], 433
  %v2818 = vld [vmem:[%s2817] ss:$2 sm:$0x3f]
  %s2819 = scalar_lea.vmem [#allocation3], 481
  %v2820 = vld [vmem:[%s2819] ss:$2 sm:$0xff]
  %s2821 = scalar_lea.vmem [#allocation3], 497
  %v2822 = vld [vmem:[%s2821] ss:$2 sm:$0x3f]
  %s2823 = scalar_lea.vmem [#allocation3], 513
  %v2824 = vld [vmem:[%s2823] ss:$2 sm:$0xff]
  %s2825 = scalar_lea.vmem [#allocation3], 529
  %v2826 = vld [vmem:[%s2825] ss:$2 sm:$0x3f]
  %s2827 = scalar_lea.vmem [#allocation3], 545
  %v2828 = vld [vmem:[%s2827] ss:$2 sm:$0xff]
  %s2829 = scalar_lea.vmem [#allocation3], 561
  %v2830 = vld [vmem:[%s2829] ss:$2 sm:$0x3f]
  %s2831 = scalar_lea.vmem [#allocation3], 577
  %v2832 = vld [vmem:[%s2831] ss:$2 sm:$0xff]
  %s2833 = scalar_lea.vmem [#allocation3], 593
  %v2834 = vld [vmem:[%s2833] ss:$2 sm:$0x3f]
  %s2835 = scalar_lea.vmem [#allocation3], 609
  %v2836 = vld [vmem:[%s2835] ss:$2 sm:$0xff]
  %s2837 = scalar_lea.vmem [#allocation3], 625
  %v2838 = vld [vmem:[%s2837] ss:$2 sm:$0x3f]
  %s2839 = scalar_lea.vmem [#allocation3], 641
  %v2840 = vld [vmem:[%s2839] ss:$2 sm:$0xff]
  %s2841 = scalar_lea.vmem [#allocation3], 657
  %v2842 = vld [vmem:[%s2841] ss:$2 sm:$0x3f]
  %s2843 = scalar_lea.vmem [#allocation3], 673
  %v2844 = vld [vmem:[%s2843] ss:$2 sm:$0xff]
  %s2845 = scalar_lea.vmem [#allocation3], 689
  %v2846 = vld [vmem:[%s2845] ss:$2 sm:$0x3f]
  %s2847 = scalar_lea.vmem [#allocation3], 705
  %v2848 = vld [vmem:[%s2847] ss:$2 sm:$0xff]
  %s2849 = scalar_lea.vmem [#allocation3], 721
  %v2850 = vld [vmem:[%s2849] ss:$2 sm:$0x3f]
  %s2851 = scalar_lea.vmem [#allocation3], 737
  %v2852 = vld [vmem:[%s2851] ss:$2 sm:$0xff]
  %s2853 = scalar_lea.vmem [#allocation3], 753
  %v2854 = vld [vmem:[%s2853] ss:$2 sm:$0x3f]
  %s2855 = scalar_lea.vmem [#allocation3], 769
  %v2856 = vld [vmem:[%s2855] ss:$2 sm:$0xff]
  %s2857 = scalar_lea.vmem [#allocation3], 785
  %v2858 = vld [vmem:[%s2857] ss:$2 sm:$0x3f]
  %s2859 = scalar_lea.vmem [#allocation3], 801
  %v2860 = vld [vmem:[%s2859] ss:$2 sm:$0xff]
  %s2861 = scalar_lea.vmem [#allocation3], 817
  %v2862 = vld [vmem:[%s2861] ss:$2 sm:$0x3f]
  %s2863 = scalar_lea.vmem [#allocation3], 833
  %v2864 = vld [vmem:[%s2863] ss:$2 sm:$0xff]
  %s2865 = scalar_lea.vmem [#allocation3], 849
  %v2866 = vld [vmem:[%s2865] ss:$2 sm:$0x3f]
  %s2867 = scalar_lea.vmem [#allocation3], 865
  %v2868 = vld [vmem:[%s2867] ss:$2 sm:$0xff]
  %s2869 = scalar_lea.vmem [#allocation3], 881
  %v2870 = vld [vmem:[%s2869] ss:$2 sm:$0x3f]
  %s2871 = scalar_lea.vmem [#allocation3], 897
  %v2872 = vld [vmem:[%s2871] ss:$2 sm:$0xff]
  %s2873 = scalar_lea.vmem [#allocation3], 913
  %v2874 = vld [vmem:[%s2873] ss:$2 sm:$0x3f]
  %2876 = vset.pattern.permute.xlu0 0
  %2877 = vperm.xlu0 %2876, %v2764
  %v2878 = vpop.permute.xlu0 %2877
  %2881 = vset.pattern.permute.xlu0 0
  %2882 = vperm.xlu0 %2881, %v2766
  %v2883 = vpop.permute.xlu0 %2882
  %2886 = vset.pattern.permute.xlu0 0
  %2887 = vperm.xlu0 %2886, %v2768
  %v2888 = vpop.permute.xlu0 %2887
  %2891 = vset.pattern.permute.xlu0 0
  %2892 = vperm.xlu0 %2891, %v2770
  %v2893 = vpop.permute.xlu0 %2892
  %2896 = vset.pattern.permute.xlu0 0
  %2897 = vperm.xlu0 %2896, %v2772
  %v2898 = vpop.permute.xlu0 %2897
  %2901 = vset.pattern.permute.xlu0 0
  %2902 = vperm.xlu0 %2901, %v2774
  %v2903 = vpop.permute.xlu0 %2902
  %2906 = vset.pattern.permute.xlu0 0
  %2907 = vperm.xlu0 %2906, %v2776
  %v2908 = vpop.permute.xlu0 %2907
  %2911 = vset.pattern.permute.xlu0 0
  %2912 = vperm.xlu0 %2911, %v2778
  %v2913 = vpop.permute.xlu0 %2912
  %2916 = vset.pattern.permute.xlu0 0
  %2917 = vperm.xlu0 %2916, %v2780
  %v2918 = vpop.permute.xlu0 %2917
  %2921 = vset.pattern.permute.xlu0 0
  %2922 = vperm.xlu0 %2921, %v2782
  %v2923 = vpop.permute.xlu0 %2922
  %2926 = vset.pattern.permute.xlu0 0
  %2927 = vperm.xlu0 %2926, %v2784
  %v2928 = vpop.permute.xlu0 %2927
  %2931 = vset.pattern.permute.xlu0 0
  %2932 = vperm.xlu0 %2931, %v2786
  %v2933 = vpop.permute.xlu0 %2932
  %2936 = vset.pattern.permute.xlu0 0
  %2937 = vperm.xlu0 %2936, %v2788
  %v2938 = vpop.permute.xlu0 %2937
  %2941 = vset.pattern.permute.xlu0 0
  %2942 = vperm.xlu0 %2941, %v2790
  %v2943 = vpop.permute.xlu0 %2942
  %2946 = vset.pattern.permute.xlu0 0
  %2947 = vperm.xlu0 %2946, %v2792
  %v2948 = vpop.permute.xlu0 %2947
  %2951 = vset.pattern.permute.xlu0 0
  %2952 = vperm.xlu0 %2951, %v2794
  %v2953 = vpop.permute.xlu0 %2952
  %2956 = vset.pattern.permute.xlu0 0
  %2957 = vperm.xlu0 %2956, %v2796
  %v2958 = vpop.permute.xlu0 %2957
  %2961 = vset.pattern.permute.xlu0 0
  %2962 = vperm.xlu0 %2961, %v2798
  %v2963 = vpop.permute.xlu0 %2962
  %2966 = vset.pattern.permute.xlu0 0
  %2967 = vperm.xlu0 %2966, %v2800
  %v2968 = vpop.permute.xlu0 %2967
  %2971 = vset.pattern.permute.xlu0 0
  %2972 = vperm.xlu0 %2971, %v2802
  %v2973 = vpop.permute.xlu0 %2972
  %2976 = vset.pattern.permute.xlu0 0
  %2977 = vperm.xlu0 %2976, %v2804
  %v2978 = vpop.permute.xlu0 %2977
  %2981 = vset.pattern.permute.xlu0 0
  %2982 = vperm.xlu0 %2981, %v2806
  %v2983 = vpop.permute.xlu0 %2982
  %2986 = vset.pattern.permute.xlu0 0
  %2987 = vperm.xlu0 %2986, %v2808
  %v2988 = vpop.permute.xlu0 %2987
  %2991 = vset.pattern.permute.xlu0 0
  %2992 = vperm.xlu0 %2991, %v2810
  %v2993 = vpop.permute.xlu0 %2992
  %2996 = vset.pattern.permute.xlu0 0
  %2997 = vperm.xlu0 %2996, %v2812
  %v2998 = vpop.permute.xlu0 %2997
  %3001 = vset.pattern.permute.xlu0 0
  %3002 = vperm.xlu0 %3001, %v2814
  %v3003 = vpop.permute.xlu0 %3002
  %3006 = vset.pattern.permute.xlu0 0
  %3007 = vperm.xlu0 %3006, %v2816
  %v3008 = vpop.permute.xlu0 %3007
  %3011 = vset.pattern.permute.xlu0 0
  %3012 = vperm.xlu0 %3011, %v2818
  %v3013 = vpop.permute.xlu0 %3012
  %3016 = vset.pattern.permute.xlu0 0
  %3017 = vperm.xlu0 %3016, %v2820
  %v3018 = vpop.permute.xlu0 %3017
  %3021 = vset.pattern.permute.xlu0 0
  %3022 = vperm.xlu0 %3021, %v2822
  %v3023 = vpop.permute.xlu0 %3022
  %3026 = vset.pattern.permute.xlu0 0
  %3027 = vperm.xlu0 %3026, %v2824
  %v3028 = vpop.permute.xlu0 %3027
  %3031 = vset.pattern.permute.xlu0 0
  %3032 = vperm.xlu0 %3031, %v2826
  %v3033 = vpop.permute.xlu0 %3032
  %3036 = vset.pattern.permute.xlu0 0
  %3037 = vperm.xlu0 %3036, %v2828
  %v3038 = vpop.permute.xlu0 %3037
  %3041 = vset.pattern.permute.xlu0 0
  %3042 = vperm.xlu0 %3041, %v2830
  %v3043 = vpop.permute.xlu0 %3042
  %3046 = vset.pattern.permute.xlu0 0
  %3047 = vperm.xlu0 %3046, %v2832
  %v3048 = vpop.permute.xlu0 %3047
  %3051 = vset.pattern.permute.xlu0 0
  %3052 = vperm.xlu0 %3051, %v2834
  %v3053 = vpop.permute.xlu0 %3052
  %3056 = vset.pattern.permute.xlu0 0
  %3057 = vperm.xlu0 %3056, %v2836
  %v3058 = vpop.permute.xlu0 %3057
  %3061 = vset.pattern.permute.xlu0 0
  %3062 = vperm.xlu0 %3061, %v2838
  %v3063 = vpop.permute.xlu0 %3062
  %3066 = vset.pattern.permute.xlu0 0
  %3067 = vperm.xlu0 %3066, %v2840
  %v3068 = vpop.permute.xlu0 %3067
  %3071 = vset.pattern.permute.xlu0 0
  %3072 = vperm.xlu0 %3071, %v2842
  %v3073 = vpop.permute.xlu0 %3072
  %3076 = vset.pattern.permute.xlu0 0
  %3077 = vperm.xlu0 %3076, %v2844
  %v3078 = vpop.permute.xlu0 %3077
  %3081 = vset.pattern.permute.xlu0 0
  %3082 = vperm.xlu0 %3081, %v2846
  %v3083 = vpop.permute.xlu0 %3082
  %3086 = vset.pattern.permute.xlu0 0
  %3087 = vperm.xlu0 %3086, %v2848
  %v3088 = vpop.permute.xlu0 %3087
  %3091 = vset.pattern.permute.xlu0 0
  %3092 = vperm.xlu0 %3091, %v2850
  %v3093 = vpop.permute.xlu0 %3092
  %3096 = vset.pattern.permute.xlu0 0
  %3097 = vperm.xlu0 %3096, %v2852
  %v3098 = vpop.permute.xlu0 %3097
  %3101 = vset.pattern.permute.xlu0 0
  %3102 = vperm.xlu0 %3101, %v2854
  %v3103 = vpop.permute.xlu0 %3102
  %3106 = vset.pattern.permute.xlu0 0
  %3107 = vperm.xlu0 %3106, %v2856
  %v3108 = vpop.permute.xlu0 %3107
  %3111 = vset.pattern.permute.xlu0 0
  %3112 = vperm.xlu0 %3111, %v2858
  %v3113 = vpop.permute.xlu0 %3112
  %3116 = vset.pattern.permute.xlu0 0
  %3117 = vperm.xlu0 %3116, %v2860
  %v3118 = vpop.permute.xlu0 %3117
  %3121 = vset.pattern.permute.xlu0 0
  %3122 = vperm.xlu0 %3121, %v2862
  %v3123 = vpop.permute.xlu0 %3122
  %3126 = vset.pattern.permute.xlu0 0
  %3127 = vperm.xlu0 %3126, %v2864
  %v3128 = vpop.permute.xlu0 %3127
  %3131 = vset.pattern.permute.xlu0 0
  %3132 = vperm.xlu0 %3131, %v2866
  %v3133 = vpop.permute.xlu0 %3132
  %3136 = vset.pattern.permute.xlu0 0
  %3137 = vperm.xlu0 %3136, %v2868
  %v3138 = vpop.permute.xlu0 %3137
  %3141 = vset.pattern.permute.xlu0 0
  %3142 = vperm.xlu0 %3141, %v2870
  %v3143 = vpop.permute.xlu0 %3142
  %3146 = vset.pattern.permute.xlu0 0
  %3147 = vperm.xlu0 %3146, %v2872
  %v3148 = vpop.permute.xlu0 %3147
  %3151 = vset.pattern.permute.xlu0 0
  %3152 = vperm.xlu0 %3151, %v2874
  %v3153 = vpop.permute.xlu0 %3152
  %v3155 = vperm.slane %v738, 4
  %v3156 = vmul.f32 %v2878, %v3155
  %v3157 = vmul.f32 %v2883, %v3155
  %v3158 = vmul.f32 %v2888, %v3155
  %v3159 = vmul.f32 %v2893, %v3155
  %v3160 = vmul.f32 %v2898, %v3155
  %v3161 = vmul.f32 %v2903, %v3155
  %v3162 = vmul.f32 %v2908, %v3155
  %v3163 = vmul.f32 %v2913, %v3155
  %v3164 = vmul.f32 %v2918, %v3155
  %v3165 = vmul.f32 %v2923, %v3155
  %v3166 = vmul.f32 %v2928, %v3155
  %v3167 = vmul.f32 %v2933, %v3155
  %v3168 = vmul.f32 %v2938, %v3155
  %v3169 = vmul.f32 %v2943, %v3155
  %v3170 = vmul.f32 %v2948, %v3155
  %v3171 = vmul.f32 %v2953, %v3155
  %v3172 = vmul.f32 %v2958, %v3155
  %v3173 = vmul.f32 %v2963, %v3155
  %v3174 = vmul.f32 %v2968, %v3155
  %v3175 = vmul.f32 %v2973, %v3155
  %v3176 = vmul.f32 %v2978, %v3155
  %v3177 = vmul.f32 %v2983, %v3155
  %v3178 = vmul.f32 %v2988, %v3155
  %v3179 = vmul.f32 %v2993, %v3155
  %v3180 = vmul.f32 %v2998, %v3155
  %v3181 = vmul.f32 %v3003, %v3155
  %v3182 = vmul.f32 %v3008, %v3155
  %v3183 = vmul.f32 %v3013, %v3155
  %v3184 = vmul.f32 %v3018, %v3155
  %v3185 = vmul.f32 %v3023, %v3155
  %v3186 = vmul.f32 %v3028, %v3155
  %v3187 = vmul.f32 %v3033, %v3155
  %v3188 = vmul.f32 %v3038, %v3155
  %v3189 = vmul.f32 %v3043, %v3155
  %v3190 = vmul.f32 %v3048, %v3155
  %v3191 = vmul.f32 %v3053, %v3155
  %v3192 = vmul.f32 %v3058, %v3155
  %v3193 = vmul.f32 %v3063, %v3155
  %v3194 = vmul.f32 %v3068, %v3155
  %v3195 = vmul.f32 %v3073, %v3155
  %v3196 = vmul.f32 %v3078, %v3155
  %v3197 = vmul.f32 %v3083, %v3155
  %v3198 = vmul.f32 %v3088, %v3155
  %v3199 = vmul.f32 %v3093, %v3155
  %v3200 = vmul.f32 %v3098, %v3155
  %v3201 = vmul.f32 %v3103, %v3155
  %v3202 = vmul.f32 %v3108, %v3155
  %v3203 = vmul.f32 %v3113, %v3155
  %v3204 = vmul.f32 %v3118, %v3155
  %v3205 = vmul.f32 %v3123, %v3155
  %v3206 = vmul.f32 %v3128, %v3155
  %v3207 = vmul.f32 %v3133, %v3155
  %v3208 = vmul.f32 %v3138, %v3155
  %v3209 = vmul.f32 %v3143, %v3155
  %v3210 = vmul.f32 %v3148, %v3155
  %v3211 = vmul.f32 %v3153, %v3155
  %v3212 = vadd.f32 %v2707, %v3156
  %v3213 = vadd.f32 %v2708, %v3157
  %v3214 = vadd.f32 %v2709, %v3158
  %v3215 = vadd.f32 %v2710, %v3159
  %v3216 = vadd.f32 %v2711, %v3160
  %v3217 = vadd.f32 %v2712, %v3161
  %v3218 = vadd.f32 %v2713, %v3162
  %v3219 = vadd.f32 %v2714, %v3163
  %v3220 = vadd.f32 %v2715, %v3164
  %v3221 = vadd.f32 %v2716, %v3165
  %v3222 = vadd.f32 %v2717, %v3166
  %v3223 = vadd.f32 %v2718, %v3167
  %v3224 = vadd.f32 %v2719, %v3168
  %v3225 = vadd.f32 %v2720, %v3169
  %v3226 = vadd.f32 %v2721, %v3170
  %v3227 = vadd.f32 %v2722, %v3171
  %v3228 = vadd.f32 %v2723, %v3172
  %v3229 = vadd.f32 %v2724, %v3173
  %v3230 = vadd.f32 %v2725, %v3174
  %v3231 = vadd.f32 %v2726, %v3175
  %v3232 = vadd.f32 %v2727, %v3176
  %v3233 = vadd.f32 %v2728, %v3177
  %v3234 = vadd.f32 %v2729, %v3178
  %v3235 = vadd.f32 %v2730, %v3179
  %v3236 = vadd.f32 %v2731, %v3180
  %v3237 = vadd.f32 %v2732, %v3181
  %v3238 = vadd.f32 %v2733, %v3182
  %v3239 = vadd.f32 %v2734, %v3183
  %v3240 = vadd.f32 %v2735, %v3184
  %v3241 = vadd.f32 %v2736, %v3185
  %v3242 = vadd.f32 %v2737, %v3186
  %v3243 = vadd.f32 %v2738, %v3187
  %v3244 = vadd.f32 %v2739, %v3188
  %v3245 = vadd.f32 %v2740, %v3189
  %v3246 = vadd.f32 %v2741, %v3190
  %v3247 = vadd.f32 %v2742, %v3191
  %v3248 = vadd.f32 %v2743, %v3192
  %v3249 = vadd.f32 %v2744, %v3193
  %v3250 = vadd.f32 %v2745, %v3194
  %v3251 = vadd.f32 %v2746, %v3195
  %v3252 = vadd.f32 %v2747, %v3196
  %v3253 = vadd.f32 %v2748, %v3197
  %v3254 = vadd.f32 %v2749, %v3198
  %v3255 = vadd.f32 %v2750, %v3199
  %v3256 = vadd.f32 %v2751, %v3200
  %v3257 = vadd.f32 %v2752, %v3201
  %v3258 = vadd.f32 %v2753, %v3202
  %v3259 = vadd.f32 %v2754, %v3203
  %v3260 = vadd.f32 %v2755, %v3204
  %v3261 = vadd.f32 %v2756, %v3205
  %v3262 = vadd.f32 %v2757, %v3206
  %v3263 = vadd.f32 %v2758, %v3207
  %v3264 = vadd.f32 %v2759, %v3208
  %v3265 = vadd.f32 %v2760, %v3209
  %v3266 = vadd.f32 %v2761, %v3210
  %v3267 = vadd.f32 %v2762, %v3211
  %s3268 = scalar_lea.vmem [#allocation3], 2
  %v3269 = vld [vmem:[%s3268] ss:$2 sm:$0xff]
  %s3270 = scalar_lea.vmem [#allocation3], 18
  %v3271 = vld [vmem:[%s3270] ss:$2 sm:$0x3f]
  %s3272 = scalar_lea.vmem [#allocation3], 34
  %v3273 = vld [vmem:[%s3272] ss:$2 sm:$0xff]
  %s3274 = scalar_lea.vmem [#allocation3], 50
  %v3275 = vld [vmem:[%s3274] ss:$2 sm:$0x3f]
  %s3276 = scalar_lea.vmem [#allocation3], 66
  %v3277 = vld [vmem:[%s3276] ss:$2 sm:$0xff]
  %s3278 = scalar_lea.vmem [#allocation3], 82
  %v3279 = vld [vmem:[%s3278] ss:$2 sm:$0x3f]
  %s3280 = scalar_lea.vmem [#allocation3], 98
  %v3281 = vld [vmem:[%s3280] ss:$2 sm:$0xff]
  %s3282 = scalar_lea.vmem [#allocation3], 114
  %v3283 = vld [vmem:[%s3282] ss:$2 sm:$0x3f]
  %s3284 = scalar_lea.vmem [#allocation3], 130
  %v3285 = vld [vmem:[%s3284] ss:$2 sm:$0xff]
  %s3286 = scalar_lea.vmem [#allocation3], 146
  %v3287 = vld [vmem:[%s3286] ss:$2 sm:$0x3f]
  %s3288 = scalar_lea.vmem [#allocation3], 162
  %v3289 = vld [vmem:[%s3288] ss:$2 sm:$0xff]
  %s3290 = scalar_lea.vmem [#allocation3], 178
  %v3291 = vld [vmem:[%s3290] ss:$2 sm:$0x3f]
  %s3292 = scalar_lea.vmem [#allocation3], 194
  %v3293 = vld [vmem:[%s3292] ss:$2 sm:$0xff]
  %s3294 = scalar_lea.vmem [#allocation3], 210
  %v3295 = vld [vmem:[%s3294] ss:$2 sm:$0x3f]
  %s3296 = scalar_lea.vmem [#allocation3], 226
  %v3297 = vld [vmem:[%s3296] ss:$2 sm:$0xff]
  %s3298 = scalar_lea.vmem [#allocation3], 242
  %v3299 = vld [vmem:[%s3298] ss:$2 sm:$0x3f]
  %s3300 = scalar_lea.vmem [#allocation3], 258
  %v3301 = vld [vmem:[%s3300] ss:$2 sm:$0xff]
  %s3302 = scalar_lea.vmem [#allocation3], 274
  %v3303 = vld [vmem:[%s3302] ss:$2 sm:$0x3f]
  %s3304 = scalar_lea.vmem [#allocation3], 290
  %v3305 = vld [vmem:[%s3304] ss:$2 sm:$0xff]
  %s3306 = scalar_lea.vmem [#allocation3], 306
  %v3307 = vld [vmem:[%s3306] ss:$2 sm:$0x3f]
  %s3308 = scalar_lea.vmem [#allocation3], 322
  %v3309 = vld [vmem:[%s3308] ss:$2 sm:$0xff]
  %s3310 = scalar_lea.vmem [#allocation3], 338
  %v3311 = vld [vmem:[%s3310] ss:$2 sm:$0x3f]
  %s3312 = scalar_lea.vmem [#allocation3], 354
  %v3313 = vld [vmem:[%s3312] ss:$2 sm:$0xff]
  %s3314 = scalar_lea.vmem [#allocation3], 370
  %v3315 = vld [vmem:[%s3314] ss:$2 sm:$0x3f]
  %s3316 = scalar_lea.vmem [#allocation3], 386
  %v3317 = vld [vmem:[%s3316] ss:$2 sm:$0xff]
  %s3318 = scalar_lea.vmem [#allocation3], 402
  %v3319 = vld [vmem:[%s3318] ss:$2 sm:$0x3f]
  %s3320 = scalar_lea.vmem [#allocation3], 418
  %v3321 = vld [vmem:[%s3320] ss:$2 sm:$0xff]
  %s3322 = scalar_lea.vmem [#allocation3], 434
  %v3323 = vld [vmem:[%s3322] ss:$2 sm:$0x3f]
  %s3324 = scalar_lea.vmem [#allocation3], 482
  %v3325 = vld [vmem:[%s3324] ss:$2 sm:$0xff]
  %s3326 = scalar_lea.vmem [#allocation3], 498
  %v3327 = vld [vmem:[%s3326] ss:$2 sm:$0x3f]
  %s3328 = scalar_lea.vmem [#allocation3], 514
  %v3329 = vld [vmem:[%s3328] ss:$2 sm:$0xff]
  %s3330 = scalar_lea.vmem [#allocation3], 530
  %v3331 = vld [vmem:[%s3330] ss:$2 sm:$0x3f]
  %s3332 = scalar_lea.vmem [#allocation3], 546
  %v3333 = vld [vmem:[%s3332] ss:$2 sm:$0xff]
  %s3334 = scalar_lea.vmem [#allocation3], 562
  %v3335 = vld [vmem:[%s3334] ss:$2 sm:$0x3f]
  %s3336 = scalar_lea.vmem [#allocation3], 578
  %v3337 = vld [vmem:[%s3336] ss:$2 sm:$0xff]
  %s3338 = scalar_lea.vmem [#allocation3], 594
  %v3339 = vld [vmem:[%s3338] ss:$2 sm:$0x3f]
  %s3340 = scalar_lea.vmem [#allocation3], 610
  %v3341 = vld [vmem:[%s3340] ss:$2 sm:$0xff]
  %s3342 = scalar_lea.vmem [#allocation3], 626
  %v3343 = vld [vmem:[%s3342] ss:$2 sm:$0x3f]
  %s3344 = scalar_lea.vmem [#allocation3], 642
  %v3345 = vld [vmem:[%s3344] ss:$2 sm:$0xff]
  %s3346 = scalar_lea.vmem [#allocation3], 658
  %v3347 = vld [vmem:[%s3346] ss:$2 sm:$0x3f]
  %s3348 = scalar_lea.vmem [#allocation3], 674
  %v3349 = vld [vmem:[%s3348] ss:$2 sm:$0xff]
  %s3350 = scalar_lea.vmem [#allocation3], 690
  %v3351 = vld [vmem:[%s3350] ss:$2 sm:$0x3f]
  %s3352 = scalar_lea.vmem [#allocation3], 706
  %v3353 = vld [vmem:[%s3352] ss:$2 sm:$0xff]
  %s3354 = scalar_lea.vmem [#allocation3], 722
  %v3355 = vld [vmem:[%s3354] ss:$2 sm:$0x3f]
  %s3356 = scalar_lea.vmem [#allocation3], 738
  %v3357 = vld [vmem:[%s3356] ss:$2 sm:$0xff]
  %s3358 = scalar_lea.vmem [#allocation3], 754
  %v3359 = vld [vmem:[%s3358] ss:$2 sm:$0x3f]
  %s3360 = scalar_lea.vmem [#allocation3], 770
  %v3361 = vld [vmem:[%s3360] ss:$2 sm:$0xff]
  %s3362 = scalar_lea.vmem [#allocation3], 786
  %v3363 = vld [vmem:[%s3362] ss:$2 sm:$0x3f]
  %s3364 = scalar_lea.vmem [#allocation3], 802
  %v3365 = vld [vmem:[%s3364] ss:$2 sm:$0xff]
  %s3366 = scalar_lea.vmem [#allocation3], 818
  %v3367 = vld [vmem:[%s3366] ss:$2 sm:$0x3f]
  %s3368 = scalar_lea.vmem [#allocation3], 834
  %v3369 = vld [vmem:[%s3368] ss:$2 sm:$0xff]
  %s3370 = scalar_lea.vmem [#allocation3], 850
  %v3371 = vld [vmem:[%s3370] ss:$2 sm:$0x3f]
  %s3372 = scalar_lea.vmem [#allocation3], 866
  %v3373 = vld [vmem:[%s3372] ss:$2 sm:$0xff]
  %s3374 = scalar_lea.vmem [#allocation3], 882
  %v3375 = vld [vmem:[%s3374] ss:$2 sm:$0x3f]
  %s3376 = scalar_lea.vmem [#allocation3], 898
  %v3377 = vld [vmem:[%s3376] ss:$2 sm:$0xff]
  %s3378 = scalar_lea.vmem [#allocation3], 914
  %v3379 = vld [vmem:[%s3378] ss:$2 sm:$0x3f]
  %3381 = vset.pattern.permute.xlu0 0
  %3382 = vperm.xlu0 %3381, %v3269
  %v3383 = vpop.permute.xlu0 %3382
  %3386 = vset.pattern.permute.xlu0 0
  %3387 = vperm.xlu0 %3386, %v3271
  %v3388 = vpop.permute.xlu0 %3387
  %3391 = vset.pattern.permute.xlu0 0
  %3392 = vperm.xlu0 %3391, %v3273
  %v3393 = vpop.permute.xlu0 %3392
  %3396 = vset.pattern.permute.xlu0 0
  %3397 = vperm.xlu0 %3396, %v3275
  %v3398 = vpop.permute.xlu0 %3397
  %3401 = vset.pattern.permute.xlu0 0
  %3402 = vperm.xlu0 %3401, %v3277
  %v3403 = vpop.permute.xlu0 %3402
  %3406 = vset.pattern.permute.xlu0 0
  %3407 = vperm.xlu0 %3406, %v3279
  %v3408 = vpop.permute.xlu0 %3407
  %3411 = vset.pattern.permute.xlu0 0
  %3412 = vperm.xlu0 %3411, %v3281
  %v3413 = vpop.permute.xlu0 %3412
  %3416 = vset.pattern.permute.xlu0 0
  %3417 = vperm.xlu0 %3416, %v3283
  %v3418 = vpop.permute.xlu0 %3417
  %3421 = vset.pattern.permute.xlu0 0
  %3422 = vperm.xlu0 %3421, %v3285
  %v3423 = vpop.permute.xlu0 %3422
  %3426 = vset.pattern.permute.xlu0 0
  %3427 = vperm.xlu0 %3426, %v3287
  %v3428 = vpop.permute.xlu0 %3427
  %3431 = vset.pattern.permute.xlu0 0
  %3432 = vperm.xlu0 %3431, %v3289
  %v3433 = vpop.permute.xlu0 %3432
  %3436 = vset.pattern.permute.xlu0 0
  %3437 = vperm.xlu0 %3436, %v3291
  %v3438 = vpop.permute.xlu0 %3437
  %3441 = vset.pattern.permute.xlu0 0
  %3442 = vperm.xlu0 %3441, %v3293
  %v3443 = vpop.permute.xlu0 %3442
  %3446 = vset.pattern.permute.xlu0 0
  %3447 = vperm.xlu0 %3446, %v3295
  %v3448 = vpop.permute.xlu0 %3447
  %3451 = vset.pattern.permute.xlu0 0
  %3452 = vperm.xlu0 %3451, %v3297
  %v3453 = vpop.permute.xlu0 %3452
  %3456 = vset.pattern.permute.xlu0 0
  %3457 = vperm.xlu0 %3456, %v3299
  %v3458 = vpop.permute.xlu0 %3457
  %3461 = vset.pattern.permute.xlu0 0
  %3462 = vperm.xlu0 %3461, %v3301
  %v3463 = vpop.permute.xlu0 %3462
  %3466 = vset.pattern.permute.xlu0 0
  %3467 = vperm.xlu0 %3466, %v3303
  %v3468 = vpop.permute.xlu0 %3467
  %3471 = vset.pattern.permute.xlu0 0
  %3472 = vperm.xlu0 %3471, %v3305
  %v3473 = vpop.permute.xlu0 %3472
  %3476 = vset.pattern.permute.xlu0 0
  %3477 = vperm.xlu0 %3476, %v3307
  %v3478 = vpop.permute.xlu0 %3477
  %3481 = vset.pattern.permute.xlu0 0
  %3482 = vperm.xlu0 %3481, %v3309
  %v3483 = vpop.permute.xlu0 %3482
  %3486 = vset.pattern.permute.xlu0 0
  %3487 = vperm.xlu0 %3486, %v3311
  %v3488 = vpop.permute.xlu0 %3487
  %3491 = vset.pattern.permute.xlu0 0
  %3492 = vperm.xlu0 %3491, %v3313
  %v3493 = vpop.permute.xlu0 %3492
  %3496 = vset.pattern.permute.xlu0 0
  %3497 = vperm.xlu0 %3496, %v3315
  %v3498 = vpop.permute.xlu0 %3497
  %3501 = vset.pattern.permute.xlu0 0
  %3502 = vperm.xlu0 %3501, %v3317
  %v3503 = vpop.permute.xlu0 %3502
  %3506 = vset.pattern.permute.xlu0 0
  %3507 = vperm.xlu0 %3506, %v3319
  %v3508 = vpop.permute.xlu0 %3507
  %3511 = vset.pattern.permute.xlu0 0
  %3512 = vperm.xlu0 %3511, %v3321
  %v3513 = vpop.permute.xlu0 %3512
  %3516 = vset.pattern.permute.xlu0 0
  %3517 = vperm.xlu0 %3516, %v3323
  %v3518 = vpop.permute.xlu0 %3517
  %3521 = vset.pattern.permute.xlu0 0
  %3522 = vperm.xlu0 %3521, %v3325
  %v3523 = vpop.permute.xlu0 %3522
  %3526 = vset.pattern.permute.xlu0 0
  %3527 = vperm.xlu0 %3526, %v3327
  %v3528 = vpop.permute.xlu0 %3527
  %3531 = vset.pattern.permute.xlu0 0
  %3532 = vperm.xlu0 %3531, %v3329
  %v3533 = vpop.permute.xlu0 %3532
  %3536 = vset.pattern.permute.xlu0 0
  %3537 = vperm.xlu0 %3536, %v3331
  %v3538 = vpop.permute.xlu0 %3537
  %3541 = vset.pattern.permute.xlu0 0
  %3542 = vperm.xlu0 %3541, %v3333
  %v3543 = vpop.permute.xlu0 %3542
  %3546 = vset.pattern.permute.xlu0 0
  %3547 = vperm.xlu0 %3546, %v3335
  %v3548 = vpop.permute.xlu0 %3547
  %3551 = vset.pattern.permute.xlu0 0
  %3552 = vperm.xlu0 %3551, %v3337
  %v3553 = vpop.permute.xlu0 %3552
  %3556 = vset.pattern.permute.xlu0 0
  %3557 = vperm.xlu0 %3556, %v3339
  %v3558 = vpop.permute.xlu0 %3557
  %3561 = vset.pattern.permute.xlu0 0
  %3562 = vperm.xlu0 %3561, %v3341
  %v3563 = vpop.permute.xlu0 %3562
  %3566 = vset.pattern.permute.xlu0 0
  %3567 = vperm.xlu0 %3566, %v3343
  %v3568 = vpop.permute.xlu0 %3567
  %3571 = vset.pattern.permute.xlu0 0
  %3572 = vperm.xlu0 %3571, %v3345
  %v3573 = vpop.permute.xlu0 %3572
  %3576 = vset.pattern.permute.xlu0 0
  %3577 = vperm.xlu0 %3576, %v3347
  %v3578 = vpop.permute.xlu0 %3577
  %3581 = vset.pattern.permute.xlu0 0
  %3582 = vperm.xlu0 %3581, %v3349
  %v3583 = vpop.permute.xlu0 %3582
  %3586 = vset.pattern.permute.xlu0 0
  %3587 = vperm.xlu0 %3586, %v3351
  %v3588 = vpop.permute.xlu0 %3587
  %3591 = vset.pattern.permute.xlu0 0
  %3592 = vperm.xlu0 %3591, %v3353
  %v3593 = vpop.permute.xlu0 %3592
  %3596 = vset.pattern.permute.xlu0 0
  %3597 = vperm.xlu0 %3596, %v3355
  %v3598 = vpop.permute.xlu0 %3597
  %3601 = vset.pattern.permute.xlu0 0
  %3602 = vperm.xlu0 %3601, %v3357
  %v3603 = vpop.permute.xlu0 %3602
  %3606 = vset.pattern.permute.xlu0 0
  %3607 = vperm.xlu0 %3606, %v3359
  %v3608 = vpop.permute.xlu0 %3607
  %3611 = vset.pattern.permute.xlu0 0
  %3612 = vperm.xlu0 %3611, %v3361
  %v3613 = vpop.permute.xlu0 %3612
  %3616 = vset.pattern.permute.xlu0 0
  %3617 = vperm.xlu0 %3616, %v3363
  %v3618 = vpop.permute.xlu0 %3617
  %3621 = vset.pattern.permute.xlu0 0
  %3622 = vperm.xlu0 %3621, %v3365
  %v3623 = vpop.permute.xlu0 %3622
  %3626 = vset.pattern.permute.xlu0 0
  %3627 = vperm.xlu0 %3626, %v3367
  %v3628 = vpop.permute.xlu0 %3627
  %3631 = vset.pattern.permute.xlu0 0
  %3632 = vperm.xlu0 %3631, %v3369
  %v3633 = vpop.permute.xlu0 %3632
  %3636 = vset.pattern.permute.xlu0 0
  %3637 = vperm.xlu0 %3636, %v3371
  %v3638 = vpop.permute.xlu0 %3637
  %3641 = vset.pattern.permute.xlu0 0
  %3642 = vperm.xlu0 %3641, %v3373
  %v3643 = vpop.permute.xlu0 %3642
  %3646 = vset.pattern.permute.xlu0 0
  %3647 = vperm.xlu0 %3646, %v3375
  %v3648 = vpop.permute.xlu0 %3647
  %3651 = vset.pattern.permute.xlu0 0
  %3652 = vperm.xlu0 %3651, %v3377
  %v3653 = vpop.permute.xlu0 %3652
  %3656 = vset.pattern.permute.xlu0 0
  %3657 = vperm.xlu0 %3656, %v3379
  %v3658 = vpop.permute.xlu0 %3657
  %v3660 = vperm.slane %v738, 5
  %v3661 = vmul.f32 %v3383, %v3660
  %v3662 = vmul.f32 %v3388, %v3660
  %v3663 = vmul.f32 %v3393, %v3660
  %v3664 = vmul.f32 %v3398, %v3660
  %v3665 = vmul.f32 %v3403, %v3660
  %v3666 = vmul.f32 %v3408, %v3660
  %v3667 = vmul.f32 %v3413, %v3660
  %v3668 = vmul.f32 %v3418, %v3660
  %v3669 = vmul.f32 %v3423, %v3660
  %v3670 = vmul.f32 %v3428, %v3660
  %v3671 = vmul.f32 %v3433, %v3660
  %v3672 = vmul.f32 %v3438, %v3660
  %v3673 = vmul.f32 %v3443, %v3660
  %v3674 = vmul.f32 %v3448, %v3660
  %v3675 = vmul.f32 %v3453, %v3660
  %v3676 = vmul.f32 %v3458, %v3660
  %v3677 = vmul.f32 %v3463, %v3660
  %v3678 = vmul.f32 %v3468, %v3660
  %v3679 = vmul.f32 %v3473, %v3660
  %v3680 = vmul.f32 %v3478, %v3660
  %v3681 = vmul.f32 %v3483, %v3660
  %v3682 = vmul.f32 %v3488, %v3660
  %v3683 = vmul.f32 %v3493, %v3660
  %v3684 = vmul.f32 %v3498, %v3660
  %v3685 = vmul.f32 %v3503, %v3660
  %v3686 = vmul.f32 %v3508, %v3660
  %v3687 = vmul.f32 %v3513, %v3660
  %v3688 = vmul.f32 %v3518, %v3660
  %v3689 = vmul.f32 %v3523, %v3660
  %v3690 = vmul.f32 %v3528, %v3660
  %v3691 = vmul.f32 %v3533, %v3660
  %v3692 = vmul.f32 %v3538, %v3660
  %v3693 = vmul.f32 %v3543, %v3660
  %v3694 = vmul.f32 %v3548, %v3660
  %v3695 = vmul.f32 %v3553, %v3660
  %v3696 = vmul.f32 %v3558, %v3660
  %v3697 = vmul.f32 %v3563, %v3660
  %v3698 = vmul.f32 %v3568, %v3660
  %v3699 = vmul.f32 %v3573, %v3660
  %v3700 = vmul.f32 %v3578, %v3660
  %v3701 = vmul.f32 %v3583, %v3660
  %v3702 = vmul.f32 %v3588, %v3660
  %v3703 = vmul.f32 %v3593, %v3660
  %v3704 = vmul.f32 %v3598, %v3660
  %v3705 = vmul.f32 %v3603, %v3660
  %v3706 = vmul.f32 %v3608, %v3660
  %v3707 = vmul.f32 %v3613, %v3660
  %v3708 = vmul.f32 %v3618, %v3660
  %v3709 = vmul.f32 %v3623, %v3660
  %v3710 = vmul.f32 %v3628, %v3660
  %v3711 = vmul.f32 %v3633, %v3660
  %v3712 = vmul.f32 %v3638, %v3660
  %v3713 = vmul.f32 %v3643, %v3660
  %v3714 = vmul.f32 %v3648, %v3660
  %v3715 = vmul.f32 %v3653, %v3660
  %v3716 = vmul.f32 %v3658, %v3660
  %v3717 = vadd.f32 %v3212, %v3661
  %v3718 = vadd.f32 %v3213, %v3662
  %v3719 = vadd.f32 %v3214, %v3663
  %v3720 = vadd.f32 %v3215, %v3664
  %v3721 = vadd.f32 %v3216, %v3665
  %v3722 = vadd.f32 %v3217, %v3666
  %v3723 = vadd.f32 %v3218, %v3667
  %v3724 = vadd.f32 %v3219, %v3668
  %v3725 = vadd.f32 %v3220, %v3669
  %v3726 = vadd.f32 %v3221, %v3670
  %v3727 = vadd.f32 %v3222, %v3671
  %v3728 = vadd.f32 %v3223, %v3672
  %v3729 = vadd.f32 %v3224, %v3673
  %v3730 = vadd.f32 %v3225, %v3674
  %v3731 = vadd.f32 %v3226, %v3675
  %v3732 = vadd.f32 %v3227, %v3676
  %v3733 = vadd.f32 %v3228, %v3677
  %v3734 = vadd.f32 %v3229, %v3678
  %v3735 = vadd.f32 %v3230, %v3679
  %v3736 = vadd.f32 %v3231, %v3680
  %v3737 = vadd.f32 %v3232, %v3681
  %v3738 = vadd.f32 %v3233, %v3682
  %v3739 = vadd.f32 %v3234, %v3683
  %v3740 = vadd.f32 %v3235, %v3684
  %v3741 = vadd.f32 %v3236, %v3685
  %v3742 = vadd.f32 %v3237, %v3686
  %v3743 = vadd.f32 %v3238, %v3687
  %v3744 = vadd.f32 %v3239, %v3688
  %v3745 = vadd.f32 %v3240, %v3689
  %v3746 = vadd.f32 %v3241, %v3690
  %v3747 = vadd.f32 %v3242, %v3691
  %v3748 = vadd.f32 %v3243, %v3692
  %v3749 = vadd.f32 %v3244, %v3693
  %v3750 = vadd.f32 %v3245, %v3694
  %v3751 = vadd.f32 %v3246, %v3695
  %v3752 = vadd.f32 %v3247, %v3696
  %v3753 = vadd.f32 %v3248, %v3697
  %v3754 = vadd.f32 %v3249, %v3698
  %v3755 = vadd.f32 %v3250, %v3699
  %v3756 = vadd.f32 %v3251, %v3700
  %v3757 = vadd.f32 %v3252, %v3701
  %v3758 = vadd.f32 %v3253, %v3702
  %v3759 = vadd.f32 %v3254, %v3703
  %v3760 = vadd.f32 %v3255, %v3704
  %v3761 = vadd.f32 %v3256, %v3705
  %v3762 = vadd.f32 %v3257, %v3706
  %v3763 = vadd.f32 %v3258, %v3707
  %v3764 = vadd.f32 %v3259, %v3708
  %v3765 = vadd.f32 %v3260, %v3709
  %v3766 = vadd.f32 %v3261, %v3710
  %v3767 = vadd.f32 %v3262, %v3711
  %v3768 = vadd.f32 %v3263, %v3712
  %v3769 = vadd.f32 %v3264, %v3713
  %v3770 = vadd.f32 %v3265, %v3714
  %v3771 = vadd.f32 %v3266, %v3715
  %v3772 = vadd.f32 %v3267, %v3716
  %v3773 = vld [vmem:[%s625] ss:$2 sm:$0xff]
  %s3774 = scalar_lea.vmem %s625, 16 [#allocation2]
  %v3775 = vld [vmem:[%s3774] ss:$2 sm:$0x3f]
  %s3776 = scalar_lea.vmem %s625, 32 [#allocation2]
  %v3777 = vld [vmem:[%s3776] ss:$2 sm:$0xff]
  %s3778 = scalar_lea.vmem %s625, 48 [#allocation2]
  %v3779 = vld [vmem:[%s3778] ss:$2 sm:$0x3f]
  %s3780 = scalar_lea.vmem %s625, 64 [#allocation2]
  %v3781 = vld [vmem:[%s3780] ss:$2 sm:$0xff]
  %s3782 = scalar_lea.vmem %s625, 80 [#allocation2]
  %v3783 = vld [vmem:[%s3782] ss:$2 sm:$0x3f]
  %s3784 = scalar_lea.vmem %s625, 96 [#allocation2]
  %v3785 = vld [vmem:[%s3784] ss:$2 sm:$0xff]
  %s3786 = scalar_lea.vmem %s625, 112 [#allocation2]
  %v3787 = vld [vmem:[%s3786] ss:$2 sm:$0x3f]
  %s3788 = scalar_lea.vmem %s625, 128 [#allocation2]
  %v3789 = vld [vmem:[%s3788] ss:$2 sm:$0xff]
  %s3790 = scalar_lea.vmem %s625, 144 [#allocation2]
  %v3791 = vld [vmem:[%s3790] ss:$2 sm:$0x3f]
  %s3792 = scalar_lea.vmem %s625, 160 [#allocation2]
  %v3793 = vld [vmem:[%s3792] ss:$2 sm:$0xff]
  %s3794 = scalar_lea.vmem %s625, 176 [#allocation2]
  %v3795 = vld [vmem:[%s3794] ss:$2 sm:$0x3f]
  %s3796 = scalar_lea.vmem %s625, 192 [#allocation2]
  %v3797 = vld [vmem:[%s3796] ss:$2 sm:$0xff]
  %s3798 = scalar_lea.vmem %s625, 208 [#allocation2]
  %v3799 = vld [vmem:[%s3798] ss:$2 sm:$0x3f]
  %s3800 = scalar_lea.vmem %s625, 224 [#allocation2]
  %v3801 = vld [vmem:[%s3800] ss:$2 sm:$0xff]
  %s3802 = scalar_lea.vmem %s625, 240 [#allocation2]
  %v3803 = vld [vmem:[%s3802] ss:$2 sm:$0x3f]
  %s3804 = scalar_lea.vmem %s625, 256 [#allocation2]
  %v3805 = vld [vmem:[%s3804] ss:$2 sm:$0xff]
  %s3806 = scalar_lea.vmem %s625, 272 [#allocation2]
  %v3807 = vld [vmem:[%s3806] ss:$2 sm:$0x3f]
  %s3808 = scalar_lea.vmem %s625, 288 [#allocation2]
  %v3809 = vld [vmem:[%s3808] ss:$2 sm:$0xff]
  %s3810 = scalar_lea.vmem %s625, 304 [#allocation2]
  %v3811 = vld [vmem:[%s3810] ss:$2 sm:$0x3f]
  %s3812 = scalar_lea.vmem %s625, 320 [#allocation2]
  %v3813 = vld [vmem:[%s3812] ss:$2 sm:$0xff]
  %s3814 = scalar_lea.vmem %s625, 336 [#allocation2]
  %v3815 = vld [vmem:[%s3814] ss:$2 sm:$0x3f]
  %s3816 = scalar_lea.vmem %s625, 352 [#allocation2]
  %v3817 = vld [vmem:[%s3816] ss:$2 sm:$0xff]
  %s3818 = scalar_lea.vmem %s625, 368 [#allocation2]
  %v3819 = vld [vmem:[%s3818] ss:$2 sm:$0x3f]
  %s3820 = scalar_lea.vmem %s625, 384 [#allocation2]
  %v3821 = vld [vmem:[%s3820] ss:$2 sm:$0xff]
  %s3822 = scalar_lea.vmem %s625, 400 [#allocation2]
  %v3823 = vld [vmem:[%s3822] ss:$2 sm:$0x3f]
  %s3824 = scalar_lea.vmem %s625, 416 [#allocation2]
  %v3825 = vld [vmem:[%s3824] ss:$2 sm:$0xff]
  %s3826 = scalar_lea.vmem %s625, 432 [#allocation2]
  %v3827 = vld [vmem:[%s3826] ss:$2 sm:$0x3f]
  %s3828 = scalar_lea.vmem %s625, 480 [#allocation2]
  %v3829 = vld [vmem:[%s3828] ss:$2 sm:$0xff]
  %s3830 = scalar_lea.vmem %s625, 496 [#allocation2]
  %v3831 = vld [vmem:[%s3830] ss:$2 sm:$0x3f]
  %s3832 = scalar_lea.vmem %s625, 512 [#allocation2]
  %v3833 = vld [vmem:[%s3832] ss:$2 sm:$0xff]
  %s3834 = scalar_lea.vmem %s625, 528 [#allocation2]
  %v3835 = vld [vmem:[%s3834] ss:$2 sm:$0x3f]
  %s3836 = scalar_lea.vmem %s625, 544 [#allocation2]
  %v3837 = vld [vmem:[%s3836] ss:$2 sm:$0xff]
  %s3838 = scalar_lea.vmem %s625, 560 [#allocation2]
  %v3839 = vld [vmem:[%s3838] ss:$2 sm:$0x3f]
  %s3840 = scalar_lea.vmem %s625, 576 [#allocation2]
  %v3841 = vld [vmem:[%s3840] ss:$2 sm:$0xff]
  %s3842 = scalar_lea.vmem %s625, 592 [#allocation2]
  %v3843 = vld [vmem:[%s3842] ss:$2 sm:$0x3f]
  %s3844 = scalar_lea.vmem %s625, 608 [#allocation2]
  %v3845 = vld [vmem:[%s3844] ss:$2 sm:$0xff]
  %s3846 = scalar_lea.vmem %s625, 624 [#allocation2]
  %v3847 = vld [vmem:[%s3846] ss:$2 sm:$0x3f]
  %s3848 = scalar_lea.vmem %s625, 640 [#allocation2]
  %v3849 = vld [vmem:[%s3848] ss:$2 sm:$0xff]
  %s3850 = scalar_lea.vmem %s625, 656 [#allocation2]
  %v3851 = vld [vmem:[%s3850] ss:$2 sm:$0x3f]
  %s3852 = scalar_lea.vmem %s625, 672 [#allocation2]
  %v3853 = vld [vmem:[%s3852] ss:$2 sm:$0xff]
  %s3854 = scalar_lea.vmem %s625, 688 [#allocation2]
  %v3855 = vld [vmem:[%s3854] ss:$2 sm:$0x3f]
  %s3856 = scalar_lea.vmem %s625, 704 [#allocation2]
  %v3857 = vld [vmem:[%s3856] ss:$2 sm:$0xff]
  %s3858 = scalar_lea.vmem %s625, 720 [#allocation2]
  %v3859 = vld [vmem:[%s3858] ss:$2 sm:$0x3f]
  %s3860 = scalar_lea.vmem %s625, 736 [#allocation2]
  %v3861 = vld [vmem:[%s3860] ss:$2 sm:$0xff]
  %s3862 = scalar_lea.vmem %s625, 752 [#allocation2]
  %v3863 = vld [vmem:[%s3862] ss:$2 sm:$0x3f]
  %s3864 = scalar_lea.vmem %s625, 768 [#allocation2]
  %v3865 = vld [vmem:[%s3864] ss:$2 sm:$0xff]
  %s3866 = scalar_lea.vmem %s625, 784 [#allocation2]
  %v3867 = vld [vmem:[%s3866] ss:$2 sm:$0x3f]
  %s3868 = scalar_lea.vmem %s625, 800 [#allocation2]
  %v3869 = vld [vmem:[%s3868] ss:$2 sm:$0xff]
  %s3870 = scalar_lea.vmem %s625, 816 [#allocation2]
  %v3871 = vld [vmem:[%s3870] ss:$2 sm:$0x3f]
  %s3872 = scalar_lea.vmem %s625, 832 [#allocation2]
  %v3873 = vld [vmem:[%s3872] ss:$2 sm:$0xff]
  %s3874 = scalar_lea.vmem %s625, 848 [#allocation2]
  %v3875 = vld [vmem:[%s3874] ss:$2 sm:$0x3f]
  %s3876 = scalar_lea.vmem %s625, 864 [#allocation2]
  %v3877 = vld [vmem:[%s3876] ss:$2 sm:$0xff]
  %s3878 = scalar_lea.vmem %s625, 880 [#allocation2]
  %v3879 = vld [vmem:[%s3878] ss:$2 sm:$0x3f]
  %s3880 = scalar_lea.vmem %s625, 896 [#allocation2]
  %v3881 = vld [vmem:[%s3880] ss:$2 sm:$0xff]
  %s3882 = scalar_lea.vmem %s625, 912 [#allocation2]
  %v3883 = vld [vmem:[%s3882] ss:$2 sm:$0x3f]
  %3885 = vset.pattern.permute.xlu0 0
  %3886 = vperm.xlu0 %3885, %v3773
  %v3887 = vpop.permute.xlu0 %3886
  %3890 = vset.pattern.permute.xlu0 0
  %3891 = vperm.xlu0 %3890, %v3775
  %v3892 = vpop.permute.xlu0 %3891
  %3895 = vset.pattern.permute.xlu0 0
  %3896 = vperm.xlu0 %3895, %v3777
  %v3897 = vpop.permute.xlu0 %3896
  %3900 = vset.pattern.permute.xlu0 0
  %3901 = vperm.xlu0 %3900, %v3779
  %v3902 = vpop.permute.xlu0 %3901
  %3905 = vset.pattern.permute.xlu0 0
  %3906 = vperm.xlu0 %3905, %v3781
  %v3907 = vpop.permute.xlu0 %3906
  %3910 = vset.pattern.permute.xlu0 0
  %3911 = vperm.xlu0 %3910, %v3783
  %v3912 = vpop.permute.xlu0 %3911
  %3915 = vset.pattern.permute.xlu0 0
  %3916 = vperm.xlu0 %3915, %v3785
  %v3917 = vpop.permute.xlu0 %3916
  %3920 = vset.pattern.permute.xlu0 0
  %3921 = vperm.xlu0 %3920, %v3787
  %v3922 = vpop.permute.xlu0 %3921
  %3925 = vset.pattern.permute.xlu0 0
  %3926 = vperm.xlu0 %3925, %v3789
  %v3927 = vpop.permute.xlu0 %3926
  %3930 = vset.pattern.permute.xlu0 0
  %3931 = vperm.xlu0 %3930, %v3791
  %v3932 = vpop.permute.xlu0 %3931
  %3935 = vset.pattern.permute.xlu0 0
  %3936 = vperm.xlu0 %3935, %v3793
  %v3937 = vpop.permute.xlu0 %3936
  %3940 = vset.pattern.permute.xlu0 0
  %3941 = vperm.xlu0 %3940, %v3795
  %v3942 = vpop.permute.xlu0 %3941
  %3945 = vset.pattern.permute.xlu0 0
  %3946 = vperm.xlu0 %3945, %v3797
  %v3947 = vpop.permute.xlu0 %3946
  %3950 = vset.pattern.permute.xlu0 0
  %3951 = vperm.xlu0 %3950, %v3799
  %v3952 = vpop.permute.xlu0 %3951
  %3955 = vset.pattern.permute.xlu0 0
  %3956 = vperm.xlu0 %3955, %v3801
  %v3957 = vpop.permute.xlu0 %3956
  %3960 = vset.pattern.permute.xlu0 0
  %3961 = vperm.xlu0 %3960, %v3803
  %v3962 = vpop.permute.xlu0 %3961
  %3965 = vset.pattern.permute.xlu0 0
  %3966 = vperm.xlu0 %3965, %v3805
  %v3967 = vpop.permute.xlu0 %3966
  %3970 = vset.pattern.permute.xlu0 0
  %3971 = vperm.xlu0 %3970, %v3807
  %v3972 = vpop.permute.xlu0 %3971
  %3975 = vset.pattern.permute.xlu0 0
  %3976 = vperm.xlu0 %3975, %v3809
  %v3977 = vpop.permute.xlu0 %3976
  %3980 = vset.pattern.permute.xlu0 0
  %3981 = vperm.xlu0 %3980, %v3811
  %v3982 = vpop.permute.xlu0 %3981
  %3985 = vset.pattern.permute.xlu0 0
  %3986 = vperm.xlu0 %3985, %v3813
  %v3987 = vpop.permute.xlu0 %3986
  %3990 = vset.pattern.permute.xlu0 0
  %3991 = vperm.xlu0 %3990, %v3815
  %v3992 = vpop.permute.xlu0 %3991
  %3995 = vset.pattern.permute.xlu0 0
  %3996 = vperm.xlu0 %3995, %v3817
  %v3997 = vpop.permute.xlu0 %3996
  %4000 = vset.pattern.permute.xlu0 0
  %4001 = vperm.xlu0 %4000, %v3819
  %v4002 = vpop.permute.xlu0 %4001
  %4005 = vset.pattern.permute.xlu0 0
  %4006 = vperm.xlu0 %4005, %v3821
  %v4007 = vpop.permute.xlu0 %4006
  %4010 = vset.pattern.permute.xlu0 0
  %4011 = vperm.xlu0 %4010, %v3823
  %v4012 = vpop.permute.xlu0 %4011
  %4015 = vset.pattern.permute.xlu0 0
  %4016 = vperm.xlu0 %4015, %v3825
  %v4017 = vpop.permute.xlu0 %4016
  %4020 = vset.pattern.permute.xlu0 0
  %4021 = vperm.xlu0 %4020, %v3827
  %v4022 = vpop.permute.xlu0 %4021
  %4025 = vset.pattern.permute.xlu0 0
  %4026 = vperm.xlu0 %4025, %v3829
  %v4027 = vpop.permute.xlu0 %4026
  %4030 = vset.pattern.permute.xlu0 0
  %4031 = vperm.xlu0 %4030, %v3831
  %v4032 = vpop.permute.xlu0 %4031
  %4035 = vset.pattern.permute.xlu0 0
  %4036 = vperm.xlu0 %4035, %v3833
  %v4037 = vpop.permute.xlu0 %4036
  %4040 = vset.pattern.permute.xlu0 0
  %4041 = vperm.xlu0 %4040, %v3835
  %v4042 = vpop.permute.xlu0 %4041
  %4045 = vset.pattern.permute.xlu0 0
  %4046 = vperm.xlu0 %4045, %v3837
  %v4047 = vpop.permute.xlu0 %4046
  %4050 = vset.pattern.permute.xlu0 0
  %4051 = vperm.xlu0 %4050, %v3839
  %v4052 = vpop.permute.xlu0 %4051
  %4055 = vset.pattern.permute.xlu0 0
  %4056 = vperm.xlu0 %4055, %v3841
  %v4057 = vpop.permute.xlu0 %4056
  %4060 = vset.pattern.permute.xlu0 0
  %4061 = vperm.xlu0 %4060, %v3843
  %v4062 = vpop.permute.xlu0 %4061
  %4065 = vset.pattern.permute.xlu0 0
  %4066 = vperm.xlu0 %4065, %v3845
  %v4067 = vpop.permute.xlu0 %4066
  %4070 = vset.pattern.permute.xlu0 0
  %4071 = vperm.xlu0 %4070, %v3847
  %v4072 = vpop.permute.xlu0 %4071
  %4075 = vset.pattern.permute.xlu0 0
  %4076 = vperm.xlu0 %4075, %v3849
  %v4077 = vpop.permute.xlu0 %4076
  %4080 = vset.pattern.permute.xlu0 0
  %4081 = vperm.xlu0 %4080, %v3851
  %v4082 = vpop.permute.xlu0 %4081
  %4085 = vset.pattern.permute.xlu0 0
  %4086 = vperm.xlu0 %4085, %v3853
  %v4087 = vpop.permute.xlu0 %4086
  %4090 = vset.pattern.permute.xlu0 0
  %4091 = vperm.xlu0 %4090, %v3855
  %v4092 = vpop.permute.xlu0 %4091
  %4095 = vset.pattern.permute.xlu0 0
  %4096 = vperm.xlu0 %4095, %v3857
  %v4097 = vpop.permute.xlu0 %4096
  %4100 = vset.pattern.permute.xlu0 0
  %4101 = vperm.xlu0 %4100, %v3859
  %v4102 = vpop.permute.xlu0 %4101
  %4105 = vset.pattern.permute.xlu0 0
  %4106 = vperm.xlu0 %4105, %v3861
  %v4107 = vpop.permute.xlu0 %4106
  %4110 = vset.pattern.permute.xlu0 0
  %4111 = vperm.xlu0 %4110, %v3863
  %v4112 = vpop.permute.xlu0 %4111
  %4115 = vset.pattern.permute.xlu0 0
  %4116 = vperm.xlu0 %4115, %v3865
  %v4117 = vpop.permute.xlu0 %4116
  %4120 = vset.pattern.permute.xlu0 0
  %4121 = vperm.xlu0 %4120, %v3867
  %v4122 = vpop.permute.xlu0 %4121
  %4125 = vset.pattern.permute.xlu0 0
  %4126 = vperm.xlu0 %4125, %v3869
  %v4127 = vpop.permute.xlu0 %4126
  %4130 = vset.pattern.permute.xlu0 0
  %4131 = vperm.xlu0 %4130, %v3871
  %v4132 = vpop.permute.xlu0 %4131
  %4135 = vset.pattern.permute.xlu0 0
  %4136 = vperm.xlu0 %4135, %v3873
  %v4137 = vpop.permute.xlu0 %4136
  %4140 = vset.pattern.permute.xlu0 0
  %4141 = vperm.xlu0 %4140, %v3875
  %v4142 = vpop.permute.xlu0 %4141
  %4145 = vset.pattern.permute.xlu0 0
  %4146 = vperm.xlu0 %4145, %v3877
  %v4147 = vpop.permute.xlu0 %4146
  %4150 = vset.pattern.permute.xlu0 0
  %4151 = vperm.xlu0 %4150, %v3879
  %v4152 = vpop.permute.xlu0 %4151
  %4155 = vset.pattern.permute.xlu0 0
  %4156 = vperm.xlu0 %4155, %v3881
  %v4157 = vpop.permute.xlu0 %4156
  %4160 = vset.pattern.permute.xlu0 0
  %4161 = vperm.xlu0 %4160, %v3883
  %v4162 = vpop.permute.xlu0 %4161
  %v4164 = vperm.slane %v738, 6
  %v4165 = vmul.f32 %v3887, %v4164
  %v4166 = vmul.f32 %v3892, %v4164
  %v4167 = vmul.f32 %v3897, %v4164
  %v4168 = vmul.f32 %v3902, %v4164
  %v4169 = vmul.f32 %v3907, %v4164
  %v4170 = vmul.f32 %v3912, %v4164
  %v4171 = vmul.f32 %v3917, %v4164
  %v4172 = vmul.f32 %v3922, %v4164
  %v4173 = vmul.f32 %v3927, %v4164
  %v4174 = vmul.f32 %v3932, %v4164
  %v4175 = vmul.f32 %v3937, %v4164
  %v4176 = vmul.f32 %v3942, %v4164
  %v4177 = vmul.f32 %v3947, %v4164
  %v4178 = vmul.f32 %v3952, %v4164
  %v4179 = vmul.f32 %v3957, %v4164
  %v4180 = vmul.f32 %v3962, %v4164
  %v4181 = vmul.f32 %v3967, %v4164
  %v4182 = vmul.f32 %v3972, %v4164
  %v4183 = vmul.f32 %v3977, %v4164
  %v4184 = vmul.f32 %v3982, %v4164
  %v4185 = vmul.f32 %v3987, %v4164
  %v4186 = vmul.f32 %v3992, %v4164
  %v4187 = vmul.f32 %v3997, %v4164
  %v4188 = vmul.f32 %v4002, %v4164
  %v4189 = vmul.f32 %v4007, %v4164
  %v4190 = vmul.f32 %v4012, %v4164
  %v4191 = vmul.f32 %v4017, %v4164
  %v4192 = vmul.f32 %v4022, %v4164
  %v4193 = vmul.f32 %v4027, %v4164
  %v4194 = vmul.f32 %v4032, %v4164
  %v4195 = vmul.f32 %v4037, %v4164
  %v4196 = vmul.f32 %v4042, %v4164
  %v4197 = vmul.f32 %v4047, %v4164
  %v4198 = vmul.f32 %v4052, %v4164
  %v4199 = vmul.f32 %v4057, %v4164
  %v4200 = vmul.f32 %v4062, %v4164
  %v4201 = vmul.f32 %v4067, %v4164
  %v4202 = vmul.f32 %v4072, %v4164
  %v4203 = vmul.f32 %v4077, %v4164
  %v4204 = vmul.f32 %v4082, %v4164
  %v4205 = vmul.f32 %v4087, %v4164
  %v4206 = vmul.f32 %v4092, %v4164
  %v4207 = vmul.f32 %v4097, %v4164
  %v4208 = vmul.f32 %v4102, %v4164
  %v4209 = vmul.f32 %v4107, %v4164
  %v4210 = vmul.f32 %v4112, %v4164
  %v4211 = vmul.f32 %v4117, %v4164
  %v4212 = vmul.f32 %v4122, %v4164
  %v4213 = vmul.f32 %v4127, %v4164
  %v4214 = vmul.f32 %v4132, %v4164
  %v4215 = vmul.f32 %v4137, %v4164
  %v4216 = vmul.f32 %v4142, %v4164
  %v4217 = vmul.f32 %v4147, %v4164
  %v4218 = vmul.f32 %v4152, %v4164
  %v4219 = vmul.f32 %v4157, %v4164
  %v4220 = vmul.f32 %v4162, %v4164
  %v4221 = vadd.f32 %v3717, %v4165
  %v4222 = vadd.f32 %v3718, %v4166
  %v4223 = vadd.f32 %v3719, %v4167
  %v4224 = vadd.f32 %v3720, %v4168
  %v4225 = vadd.f32 %v3721, %v4169
  %v4226 = vadd.f32 %v3722, %v4170
  %v4227 = vadd.f32 %v3723, %v4171
  %v4228 = vadd.f32 %v3724, %v4172
  %v4229 = vadd.f32 %v3725, %v4173
  %v4230 = vadd.f32 %v3726, %v4174
  %v4231 = vadd.f32 %v3727, %v4175
  %v4232 = vadd.f32 %v3728, %v4176
  %v4233 = vadd.f32 %v3729, %v4177
  %v4234 = vadd.f32 %v3730, %v4178
  %v4235 = vadd.f32 %v3731, %v4179
  %v4236 = vadd.f32 %v3732, %v4180
  %v4237 = vadd.f32 %v3733, %v4181
  %v4238 = vadd.f32 %v3734, %v4182
  %v4239 = vadd.f32 %v3735, %v4183
  %v4240 = vadd.f32 %v3736, %v4184
  %v4241 = vadd.f32 %v3737, %v4185
  %v4242 = vadd.f32 %v3738, %v4186
  %v4243 = vadd.f32 %v3739, %v4187
  %v4244 = vadd.f32 %v3740, %v4188
  %v4245 = vadd.f32 %v3741, %v4189
  %v4246 = vadd.f32 %v3742, %v4190
  %v4247 = vadd.f32 %v3743, %v4191
  %v4248 = vadd.f32 %v3744, %v4192
  %v4249 = vadd.f32 %v3745, %v4193
  %v4250 = vadd.f32 %v3746, %v4194
  %v4251 = vadd.f32 %v3747, %v4195
  %v4252 = vadd.f32 %v3748, %v4196
  %v4253 = vadd.f32 %v3749, %v4197
  %v4254 = vadd.f32 %v3750, %v4198
  %v4255 = vadd.f32 %v3751, %v4199
  %v4256 = vadd.f32 %v3752, %v4200
  %v4257 = vadd.f32 %v3753, %v4201
  %v4258 = vadd.f32 %v3754, %v4202
  %v4259 = vadd.f32 %v3755, %v4203
  %v4260 = vadd.f32 %v3756, %v4204
  %v4261 = vadd.f32 %v3757, %v4205
  %v4262 = vadd.f32 %v3758, %v4206
  %v4263 = vadd.f32 %v3759, %v4207
  %v4264 = vadd.f32 %v3760, %v4208
  %v4265 = vadd.f32 %v3761, %v4209
  %v4266 = vadd.f32 %v3762, %v4210
  %v4267 = vadd.f32 %v3763, %v4211
  %v4268 = vadd.f32 %v3764, %v4212
  %v4269 = vadd.f32 %v3765, %v4213
  %v4270 = vadd.f32 %v3766, %v4214
  %v4271 = vadd.f32 %v3767, %v4215
  %v4272 = vadd.f32 %v3768, %v4216
  %v4273 = vadd.f32 %v3769, %v4217
  %v4274 = vadd.f32 %v3770, %v4218
  %v4275 = vadd.f32 %v3771, %v4219
  %v4276 = vadd.f32 %v3772, %v4220
  %s4277 = scalar_lea.vmem %s625, 1 [#allocation2]
  %v4278 = vld [vmem:[%s4277] ss:$2 sm:$0xff]
  %s4279 = scalar_lea.vmem %s625, 17 [#allocation2]
  %v4280 = vld [vmem:[%s4279] ss:$2 sm:$0x3f]
  %s4281 = scalar_lea.vmem %s625, 33 [#allocation2]
  %v4282 = vld [vmem:[%s4281] ss:$2 sm:$0xff]
  %s4283 = scalar_lea.vmem %s625, 49 [#allocation2]
  %v4284 = vld [vmem:[%s4283] ss:$2 sm:$0x3f]
  %s4285 = scalar_lea.vmem %s625, 65 [#allocation2]
  %v4286 = vld [vmem:[%s4285] ss:$2 sm:$0xff]
  %s4287 = scalar_lea.vmem %s625, 81 [#allocation2]
  %v4288 = vld [vmem:[%s4287] ss:$2 sm:$0x3f]
  %s4289 = scalar_lea.vmem %s625, 97 [#allocation2]
  %v4290 = vld [vmem:[%s4289] ss:$2 sm:$0xff]
  %s4291 = scalar_lea.vmem %s625, 113 [#allocation2]
  %v4292 = vld [vmem:[%s4291] ss:$2 sm:$0x3f]
  %s4293 = scalar_lea.vmem %s625, 129 [#allocation2]
  %v4294 = vld [vmem:[%s4293] ss:$2 sm:$0xff]
  %s4295 = scalar_lea.vmem %s625, 145 [#allocation2]
  %v4296 = vld [vmem:[%s4295] ss:$2 sm:$0x3f]
  %s4297 = scalar_lea.vmem %s625, 161 [#allocation2]
  %v4298 = vld [vmem:[%s4297] ss:$2 sm:$0xff]
  %s4299 = scalar_lea.vmem %s625, 177 [#allocation2]
  %v4300 = vld [vmem:[%s4299] ss:$2 sm:$0x3f]
  %s4301 = scalar_lea.vmem %s625, 193 [#allocation2]
  %v4302 = vld [vmem:[%s4301] ss:$2 sm:$0xff]
  %s4303 = scalar_lea.vmem %s625, 209 [#allocation2]
  %v4304 = vld [vmem:[%s4303] ss:$2 sm:$0x3f]
  %s4305 = scalar_lea.vmem %s625, 225 [#allocation2]
  %v4306 = vld [vmem:[%s4305] ss:$2 sm:$0xff]
  %s4307 = scalar_lea.vmem %s625, 241 [#allocation2]
  %v4308 = vld [vmem:[%s4307] ss:$2 sm:$0x3f]
  %s4309 = scalar_lea.vmem %s625, 257 [#allocation2]
  %v4310 = vld [vmem:[%s4309] ss:$2 sm:$0xff]
  %s4311 = scalar_lea.vmem %s625, 273 [#allocation2]
  %v4312 = vld [vmem:[%s4311] ss:$2 sm:$0x3f]
  %s4313 = scalar_lea.vmem %s625, 289 [#allocation2]
  %v4314 = vld [vmem:[%s4313] ss:$2 sm:$0xff]
  %s4315 = scalar_lea.vmem %s625, 305 [#allocation2]
  %v4316 = vld [vmem:[%s4315] ss:$2 sm:$0x3f]
  %s4317 = scalar_lea.vmem %s625, 321 [#allocation2]
  %v4318 = vld [vmem:[%s4317] ss:$2 sm:$0xff]
  %s4319 = scalar_lea.vmem %s625, 337 [#allocation2]
  %v4320 = vld [vmem:[%s4319] ss:$2 sm:$0x3f]
  %s4321 = scalar_lea.vmem %s625, 353 [#allocation2]
  %v4322 = vld [vmem:[%s4321] ss:$2 sm:$0xff]
  %s4323 = scalar_lea.vmem %s625, 369 [#allocation2]
  %v4324 = vld [vmem:[%s4323] ss:$2 sm:$0x3f]
  %s4325 = scalar_lea.vmem %s625, 385 [#allocation2]
  %v4326 = vld [vmem:[%s4325] ss:$2 sm:$0xff]
  %s4327 = scalar_lea.vmem %s625, 401 [#allocation2]
  %v4328 = vld [vmem:[%s4327] ss:$2 sm:$0x3f]
  %s4329 = scalar_lea.vmem %s625, 417 [#allocation2]
  %v4330 = vld [vmem:[%s4329] ss:$2 sm:$0xff]
  %s4331 = scalar_lea.vmem %s625, 433 [#allocation2]
  %v4332 = vld [vmem:[%s4331] ss:$2 sm:$0x3f]
  %s4333 = scalar_lea.vmem %s625, 481 [#allocation2]
  %v4334 = vld [vmem:[%s4333] ss:$2 sm:$0xff]
  %s4335 = scalar_lea.vmem %s625, 497 [#allocation2]
  %v4336 = vld [vmem:[%s4335] ss:$2 sm:$0x3f]
  %s4337 = scalar_lea.vmem %s625, 513 [#allocation2]
  %v4338 = vld [vmem:[%s4337] ss:$2 sm:$0xff]
  %s4339 = scalar_lea.vmem %s625, 529 [#allocation2]
  %v4340 = vld [vmem:[%s4339] ss:$2 sm:$0x3f]
  %s4341 = scalar_lea.vmem %s625, 545 [#allocation2]
  %v4342 = vld [vmem:[%s4341] ss:$2 sm:$0xff]
  %s4343 = scalar_lea.vmem %s625, 561 [#allocation2]
  %v4344 = vld [vmem:[%s4343] ss:$2 sm:$0x3f]
  %s4345 = scalar_lea.vmem %s625, 577 [#allocation2]
  %v4346 = vld [vmem:[%s4345] ss:$2 sm:$0xff]
  %s4347 = scalar_lea.vmem %s625, 593 [#allocation2]
  %v4348 = vld [vmem:[%s4347] ss:$2 sm:$0x3f]
  %s4349 = scalar_lea.vmem %s625, 609 [#allocation2]
  %v4350 = vld [vmem:[%s4349] ss:$2 sm:$0xff]
  %s4351 = scalar_lea.vmem %s625, 625 [#allocation2]
  %v4352 = vld [vmem:[%s4351] ss:$2 sm:$0x3f]
  %s4353 = scalar_lea.vmem %s625, 641 [#allocation2]
  %v4354 = vld [vmem:[%s4353] ss:$2 sm:$0xff]
  %s4355 = scalar_lea.vmem %s625, 657 [#allocation2]
  %v4356 = vld [vmem:[%s4355] ss:$2 sm:$0x3f]
  %s4357 = scalar_lea.vmem %s625, 673 [#allocation2]
  %v4358 = vld [vmem:[%s4357] ss:$2 sm:$0xff]
  %s4359 = scalar_lea.vmem %s625, 689 [#allocation2]
  %v4360 = vld [vmem:[%s4359] ss:$2 sm:$0x3f]
  %s4361 = scalar_lea.vmem %s625, 705 [#allocation2]
  %v4362 = vld [vmem:[%s4361] ss:$2 sm:$0xff]
  %s4363 = scalar_lea.vmem %s625, 721 [#allocation2]
  %v4364 = vld [vmem:[%s4363] ss:$2 sm:$0x3f]
  %s4365 = scalar_lea.vmem %s625, 737 [#allocation2]
  %v4366 = vld [vmem:[%s4365] ss:$2 sm:$0xff]
  %s4367 = scalar_lea.vmem %s625, 753 [#allocation2]
  %v4368 = vld [vmem:[%s4367] ss:$2 sm:$0x3f]
  %s4369 = scalar_lea.vmem %s625, 769 [#allocation2]
  %v4370 = vld [vmem:[%s4369] ss:$2 sm:$0xff]
  %s4371 = scalar_lea.vmem %s625, 785 [#allocation2]
  %v4372 = vld [vmem:[%s4371] ss:$2 sm:$0x3f]
  %s4373 = scalar_lea.vmem %s625, 801 [#allocation2]
  %v4374 = vld [vmem:[%s4373] ss:$2 sm:$0xff]
  %s4375 = scalar_lea.vmem %s625, 817 [#allocation2]
  %v4376 = vld [vmem:[%s4375] ss:$2 sm:$0x3f]
  %s4377 = scalar_lea.vmem %s625, 833 [#allocation2]
  %v4378 = vld [vmem:[%s4377] ss:$2 sm:$0xff]
  %s4379 = scalar_lea.vmem %s625, 849 [#allocation2]
  %v4380 = vld [vmem:[%s4379] ss:$2 sm:$0x3f]
  %s4381 = scalar_lea.vmem %s625, 865 [#allocation2]
  %v4382 = vld [vmem:[%s4381] ss:$2 sm:$0xff]
  %s4383 = scalar_lea.vmem %s625, 881 [#allocation2]
  %v4384 = vld [vmem:[%s4383] ss:$2 sm:$0x3f]
  %s4385 = scalar_lea.vmem %s625, 897 [#allocation2]
  %v4386 = vld [vmem:[%s4385] ss:$2 sm:$0xff]
  %s4387 = scalar_lea.vmem %s625, 913 [#allocation2]
  %v4388 = vld [vmem:[%s4387] ss:$2 sm:$0x3f]
  %4390 = vset.pattern.permute.xlu0 0
  %4391 = vperm.xlu0 %4390, %v4278
  %v4392 = vpop.permute.xlu0 %4391
  %4395 = vset.pattern.permute.xlu0 0
  %4396 = vperm.xlu0 %4395, %v4280
  %v4397 = vpop.permute.xlu0 %4396
  %4400 = vset.pattern.permute.xlu0 0
  %4401 = vperm.xlu0 %4400, %v4282
  %v4402 = vpop.permute.xlu0 %4401
  %4405 = vset.pattern.permute.xlu0 0
  %4406 = vperm.xlu0 %4405, %v4284
  %v4407 = vpop.permute.xlu0 %4406
  %4410 = vset.pattern.permute.xlu0 0
  %4411 = vperm.xlu0 %4410, %v4286
  %v4412 = vpop.permute.xlu0 %4411
  %4415 = vset.pattern.permute.xlu0 0
  %4416 = vperm.xlu0 %4415, %v4288
  %v4417 = vpop.permute.xlu0 %4416
  %4420 = vset.pattern.permute.xlu0 0
  %4421 = vperm.xlu0 %4420, %v4290
  %v4422 = vpop.permute.xlu0 %4421
  %4425 = vset.pattern.permute.xlu0 0
  %4426 = vperm.xlu0 %4425, %v4292
  %v4427 = vpop.permute.xlu0 %4426
  %4430 = vset.pattern.permute.xlu0 0
  %4431 = vperm.xlu0 %4430, %v4294
  %v4432 = vpop.permute.xlu0 %4431
  %4435 = vset.pattern.permute.xlu0 0
  %4436 = vperm.xlu0 %4435, %v4296
  %v4437 = vpop.permute.xlu0 %4436
  %4440 = vset.pattern.permute.xlu0 0
  %4441 = vperm.xlu0 %4440, %v4298
  %v4442 = vpop.permute.xlu0 %4441
  %4445 = vset.pattern.permute.xlu0 0
  %4446 = vperm.xlu0 %4445, %v4300
  %v4447 = vpop.permute.xlu0 %4446
  %4450 = vset.pattern.permute.xlu0 0
  %4451 = vperm.xlu0 %4450, %v4302
  %v4452 = vpop.permute.xlu0 %4451
  %4455 = vset.pattern.permute.xlu0 0
  %4456 = vperm.xlu0 %4455, %v4304
  %v4457 = vpop.permute.xlu0 %4456
  %4460 = vset.pattern.permute.xlu0 0
  %4461 = vperm.xlu0 %4460, %v4306
  %v4462 = vpop.permute.xlu0 %4461
  %4465 = vset.pattern.permute.xlu0 0
  %4466 = vperm.xlu0 %4465, %v4308
  %v4467 = vpop.permute.xlu0 %4466
  %4470 = vset.pattern.permute.xlu0 0
  %4471 = vperm.xlu0 %4470, %v4310
  %v4472 = vpop.permute.xlu0 %4471
  %4475 = vset.pattern.permute.xlu0 0
  %4476 = vperm.xlu0 %4475, %v4312
  %v4477 = vpop.permute.xlu0 %4476
  %4480 = vset.pattern.permute.xlu0 0
  %4481 = vperm.xlu0 %4480, %v4314
  %v4482 = vpop.permute.xlu0 %4481
  %4485 = vset.pattern.permute.xlu0 0
  %4486 = vperm.xlu0 %4485, %v4316
  %v4487 = vpop.permute.xlu0 %4486
  %4490 = vset.pattern.permute.xlu0 0
  %4491 = vperm.xlu0 %4490, %v4318
  %v4492 = vpop.permute.xlu0 %4491
  %4495 = vset.pattern.permute.xlu0 0
  %4496 = vperm.xlu0 %4495, %v4320
  %v4497 = vpop.permute.xlu0 %4496
  %4500 = vset.pattern.permute.xlu0 0
  %4501 = vperm.xlu0 %4500, %v4322
  %v4502 = vpop.permute.xlu0 %4501
  %4505 = vset.pattern.permute.xlu0 0
  %4506 = vperm.xlu0 %4505, %v4324
  %v4507 = vpop.permute.xlu0 %4506
  %4510 = vset.pattern.permute.xlu0 0
  %4511 = vperm.xlu0 %4510, %v4326
  %v4512 = vpop.permute.xlu0 %4511
  %4515 = vset.pattern.permute.xlu0 0
  %4516 = vperm.xlu0 %4515, %v4328
  %v4517 = vpop.permute.xlu0 %4516
  %4520 = vset.pattern.permute.xlu0 0
  %4521 = vperm.xlu0 %4520, %v4330
  %v4522 = vpop.permute.xlu0 %4521
  %4525 = vset.pattern.permute.xlu0 0
  %4526 = vperm.xlu0 %4525, %v4332
  %v4527 = vpop.permute.xlu0 %4526
  %4530 = vset.pattern.permute.xlu0 0
  %4531 = vperm.xlu0 %4530, %v4334
  %v4532 = vpop.permute.xlu0 %4531
  %4535 = vset.pattern.permute.xlu0 0
  %4536 = vperm.xlu0 %4535, %v4336
  %v4537 = vpop.permute.xlu0 %4536
  %4540 = vset.pattern.permute.xlu0 0
  %4541 = vperm.xlu0 %4540, %v4338
  %v4542 = vpop.permute.xlu0 %4541
  %4545 = vset.pattern.permute.xlu0 0
  %4546 = vperm.xlu0 %4545, %v4340
  %v4547 = vpop.permute.xlu0 %4546
  %4550 = vset.pattern.permute.xlu0 0
  %4551 = vperm.xlu0 %4550, %v4342
  %v4552 = vpop.permute.xlu0 %4551
  %4555 = vset.pattern.permute.xlu0 0
  %4556 = vperm.xlu0 %4555, %v4344
  %v4557 = vpop.permute.xlu0 %4556
  %4560 = vset.pattern.permute.xlu0 0
  %4561 = vperm.xlu0 %4560, %v4346
  %v4562 = vpop.permute.xlu0 %4561
  %4565 = vset.pattern.permute.xlu0 0
  %4566 = vperm.xlu0 %4565, %v4348
  %v4567 = vpop.permute.xlu0 %4566
  %4570 = vset.pattern.permute.xlu0 0
  %4571 = vperm.xlu0 %4570, %v4350
  %v4572 = vpop.permute.xlu0 %4571
  %4575 = vset.pattern.permute.xlu0 0
  %4576 = vperm.xlu0 %4575, %v4352
  %v4577 = vpop.permute.xlu0 %4576
  %4580 = vset.pattern.permute.xlu0 0
  %4581 = vperm.xlu0 %4580, %v4354
  %v4582 = vpop.permute.xlu0 %4581
  %4585 = vset.pattern.permute.xlu0 0
  %4586 = vperm.xlu0 %4585, %v4356
  %v4587 = vpop.permute.xlu0 %4586
  %4590 = vset.pattern.permute.xlu0 0
  %4591 = vperm.xlu0 %4590, %v4358
  %v4592 = vpop.permute.xlu0 %4591
  %4595 = vset.pattern.permute.xlu0 0
  %4596 = vperm.xlu0 %4595, %v4360
  %v4597 = vpop.permute.xlu0 %4596
  %4600 = vset.pattern.permute.xlu0 0
  %4601 = vperm.xlu0 %4600, %v4362
  %v4602 = vpop.permute.xlu0 %4601
  %4605 = vset.pattern.permute.xlu0 0
  %4606 = vperm.xlu0 %4605, %v4364
  %v4607 = vpop.permute.xlu0 %4606
  %4610 = vset.pattern.permute.xlu0 0
  %4611 = vperm.xlu0 %4610, %v4366
  %v4612 = vpop.permute.xlu0 %4611
  %4615 = vset.pattern.permute.xlu0 0
  %4616 = vperm.xlu0 %4615, %v4368
  %v4617 = vpop.permute.xlu0 %4616
  %4620 = vset.pattern.permute.xlu0 0
  %4621 = vperm.xlu0 %4620, %v4370
  %v4622 = vpop.permute.xlu0 %4621
  %4625 = vset.pattern.permute.xlu0 0
  %4626 = vperm.xlu0 %4625, %v4372
  %v4627 = vpop.permute.xlu0 %4626
  %4630 = vset.pattern.permute.xlu0 0
  %4631 = vperm.xlu0 %4630, %v4374
  %v4632 = vpop.permute.xlu0 %4631
  %4635 = vset.pattern.permute.xlu0 0
  %4636 = vperm.xlu0 %4635, %v4376
  %v4637 = vpop.permute.xlu0 %4636
  %4640 = vset.pattern.permute.xlu0 0
  %4641 = vperm.xlu0 %4640, %v4378
  %v4642 = vpop.permute.xlu0 %4641
  %4645 = vset.pattern.permute.xlu0 0
  %4646 = vperm.xlu0 %4645, %v4380
  %v4647 = vpop.permute.xlu0 %4646
  %4650 = vset.pattern.permute.xlu0 0
  %4651 = vperm.xlu0 %4650, %v4382
  %v4652 = vpop.permute.xlu0 %4651
  %4655 = vset.pattern.permute.xlu0 0
  %4656 = vperm.xlu0 %4655, %v4384
  %v4657 = vpop.permute.xlu0 %4656
  %4660 = vset.pattern.permute.xlu0 0
  %4661 = vperm.xlu0 %4660, %v4386
  %v4662 = vpop.permute.xlu0 %4661
  %4665 = vset.pattern.permute.xlu0 0
  %4666 = vperm.xlu0 %4665, %v4388
  %v4667 = vpop.permute.xlu0 %4666
  %v4669 = vperm.slane %v738, 7
  %v4670 = vmul.f32 %v4392, %v4669
  %v4671 = vmul.f32 %v4397, %v4669
  %v4672 = vmul.f32 %v4402, %v4669
  %v4673 = vmul.f32 %v4407, %v4669
  %v4674 = vmul.f32 %v4412, %v4669
  %v4675 = vmul.f32 %v4417, %v4669
  %v4676 = vmul.f32 %v4422, %v4669
  %v4677 = vmul.f32 %v4427, %v4669
  %v4678 = vmul.f32 %v4432, %v4669
  %v4679 = vmul.f32 %v4437, %v4669
  %v4680 = vmul.f32 %v4442, %v4669
  %v4681 = vmul.f32 %v4447, %v4669
  %v4682 = vmul.f32 %v4452, %v4669
  %v4683 = vmul.f32 %v4457, %v4669
  %v4684 = vmul.f32 %v4462, %v4669
  %v4685 = vmul.f32 %v4467, %v4669
  %v4686 = vmul.f32 %v4472, %v4669
  %v4687 = vmul.f32 %v4477, %v4669
  %v4688 = vmul.f32 %v4482, %v4669
  %v4689 = vmul.f32 %v4487, %v4669
  %v4690 = vmul.f32 %v4492, %v4669
  %v4691 = vmul.f32 %v4497, %v4669
  %v4692 = vmul.f32 %v4502, %v4669
  %v4693 = vmul.f32 %v4507, %v4669
  %v4694 = vmul.f32 %v4512, %v4669
  %v4695 = vmul.f32 %v4517, %v4669
  %v4696 = vmul.f32 %v4522, %v4669
  %v4697 = vmul.f32 %v4527, %v4669
  %v4698 = vmul.f32 %v4532, %v4669
  %v4699 = vmul.f32 %v4537, %v4669
  %v4700 = vmul.f32 %v4542, %v4669
  %v4701 = vmul.f32 %v4547, %v4669
  %v4702 = vmul.f32 %v4552, %v4669
  %v4703 = vmul.f32 %v4557, %v4669
  %v4704 = vmul.f32 %v4562, %v4669
  %v4705 = vmul.f32 %v4567, %v4669
  %v4706 = vmul.f32 %v4572, %v4669
  %v4707 = vmul.f32 %v4577, %v4669
  %v4708 = vmul.f32 %v4582, %v4669
  %v4709 = vmul.f32 %v4587, %v4669
  %v4710 = vmul.f32 %v4592, %v4669
  %v4711 = vmul.f32 %v4597, %v4669
  %v4712 = vmul.f32 %v4602, %v4669
  %v4713 = vmul.f32 %v4607, %v4669
  %v4714 = vmul.f32 %v4612, %v4669
  %v4715 = vmul.f32 %v4617, %v4669
  %v4716 = vmul.f32 %v4622, %v4669
  %v4717 = vmul.f32 %v4627, %v4669
  %v4718 = vmul.f32 %v4632, %v4669
  %v4719 = vmul.f32 %v4637, %v4669
  %v4720 = vmul.f32 %v4642, %v4669
  %v4721 = vmul.f32 %v4647, %v4669
  %v4722 = vmul.f32 %v4652, %v4669
  %v4723 = vmul.f32 %v4657, %v4669
  %v4724 = vmul.f32 %v4662, %v4669
  %v4725 = vmul.f32 %v4667, %v4669
  %v4726 = vadd.f32 %v4221, %v4670
  %v4727 = vadd.f32 %v4222, %v4671
  %v4728 = vadd.f32 %v4223, %v4672
  %v4729 = vadd.f32 %v4224, %v4673
  %v4730 = vadd.f32 %v4225, %v4674
  %v4731 = vadd.f32 %v4226, %v4675
  %v4732 = vadd.f32 %v4227, %v4676
  %v4733 = vadd.f32 %v4228, %v4677
  %v4734 = vadd.f32 %v4229, %v4678
  %v4735 = vadd.f32 %v4230, %v4679
  %v4736 = vadd.f32 %v4231, %v4680
  %v4737 = vadd.f32 %v4232, %v4681
  %v4738 = vadd.f32 %v4233, %v4682
  %v4739 = vadd.f32 %v4234, %v4683
  %v4740 = vadd.f32 %v4235, %v4684
  %v4741 = vadd.f32 %v4236, %v4685
  %v4742 = vadd.f32 %v4237, %v4686
  %v4743 = vadd.f32 %v4238, %v4687
  %v4744 = vadd.f32 %v4239, %v4688
  %v4745 = vadd.f32 %v4240, %v4689
  %v4746 = vadd.f32 %v4241, %v4690
  %v4747 = vadd.f32 %v4242, %v4691
  %v4748 = vadd.f32 %v4243, %v4692
  %v4749 = vadd.f32 %v4244, %v4693
  %v4750 = vadd.f32 %v4245, %v4694
  %v4751 = vadd.f32 %v4246, %v4695
  %v4752 = vadd.f32 %v4247, %v4696
  %v4753 = vadd.f32 %v4248, %v4697
  %v4754 = vadd.f32 %v4249, %v4698
  %v4755 = vadd.f32 %v4250, %v4699
  %v4756 = vadd.f32 %v4251, %v4700
  %v4757 = vadd.f32 %v4252, %v4701
  %v4758 = vadd.f32 %v4253, %v4702
  %v4759 = vadd.f32 %v4254, %v4703
  %v4760 = vadd.f32 %v4255, %v4704
  %v4761 = vadd.f32 %v4256, %v4705
  %v4762 = vadd.f32 %v4257, %v4706
  %v4763 = vadd.f32 %v4258, %v4707
  %v4764 = vadd.f32 %v4259, %v4708
  %v4765 = vadd.f32 %v4260, %v4709
  %v4766 = vadd.f32 %v4261, %v4710
  %v4767 = vadd.f32 %v4262, %v4711
  %v4768 = vadd.f32 %v4263, %v4712
  %v4769 = vadd.f32 %v4264, %v4713
  %v4770 = vadd.f32 %v4265, %v4714
  %v4771 = vadd.f32 %v4266, %v4715
  %v4772 = vadd.f32 %v4267, %v4716
  %v4773 = vadd.f32 %v4268, %v4717
  %v4774 = vadd.f32 %v4269, %v4718
  %v4775 = vadd.f32 %v4270, %v4719
  %v4776 = vadd.f32 %v4271, %v4720
  %v4777 = vadd.f32 %v4272, %v4721
  %v4778 = vadd.f32 %v4273, %v4722
  %v4779 = vadd.f32 %v4274, %v4723
  %v4780 = vadd.f32 %v4275, %v4724
  %v4781 = vadd.f32 %v4276, %v4725
  %s4782 = scalar_lea.vmem %s625, 2 [#allocation2]
  %v4783 = vld [vmem:[%s4782] ss:$2 sm:$0xff]
  %s4784 = scalar_lea.vmem %s625, 18 [#allocation2]
  %v4785 = vld [vmem:[%s4784] ss:$2 sm:$0x3f]
  %s4786 = scalar_lea.vmem %s625, 34 [#allocation2]
  %v4787 = vld [vmem:[%s4786] ss:$2 sm:$0xff]
  %s4788 = scalar_lea.vmem %s625, 50 [#allocation2]
  %v4789 = vld [vmem:[%s4788] ss:$2 sm:$0x3f]
  %s4790 = scalar_lea.vmem %s625, 66 [#allocation2]
  %v4791 = vld [vmem:[%s4790] ss:$2 sm:$0xff]
  %s4792 = scalar_lea.vmem %s625, 82 [#allocation2]
  %v4793 = vld [vmem:[%s4792] ss:$2 sm:$0x3f]
  %s4794 = scalar_lea.vmem %s625, 98 [#allocation2]
  %v4795 = vld [vmem:[%s4794] ss:$2 sm:$0xff]
  %s4796 = scalar_lea.vmem %s625, 114 [#allocation2]
  %v4797 = vld [vmem:[%s4796] ss:$2 sm:$0x3f]
  %s4798 = scalar_lea.vmem %s625, 130 [#allocation2]
  %v4799 = vld [vmem:[%s4798] ss:$2 sm:$0xff]
  %s4800 = scalar_lea.vmem %s625, 146 [#allocation2]
  %v4801 = vld [vmem:[%s4800] ss:$2 sm:$0x3f]
  %s4802 = scalar_lea.vmem %s625, 162 [#allocation2]
  %v4803 = vld [vmem:[%s4802] ss:$2 sm:$0xff]
  %s4804 = scalar_lea.vmem %s625, 178 [#allocation2]
  %v4805 = vld [vmem:[%s4804] ss:$2 sm:$0x3f]
  %s4806 = scalar_lea.vmem %s625, 194 [#allocation2]
  %v4807 = vld [vmem:[%s4806] ss:$2 sm:$0xff]
  %s4808 = scalar_lea.vmem %s625, 210 [#allocation2]
  %v4809 = vld [vmem:[%s4808] ss:$2 sm:$0x3f]
  %s4810 = scalar_lea.vmem %s625, 226 [#allocation2]
  %v4811 = vld [vmem:[%s4810] ss:$2 sm:$0xff]
  %s4812 = scalar_lea.vmem %s625, 242 [#allocation2]
  %v4813 = vld [vmem:[%s4812] ss:$2 sm:$0x3f]
  %s4814 = scalar_lea.vmem %s625, 258 [#allocation2]
  %v4815 = vld [vmem:[%s4814] ss:$2 sm:$0xff]
  %s4816 = scalar_lea.vmem %s625, 274 [#allocation2]
  %v4817 = vld [vmem:[%s4816] ss:$2 sm:$0x3f]
  %s4818 = scalar_lea.vmem %s625, 290 [#allocation2]
  %v4819 = vld [vmem:[%s4818] ss:$2 sm:$0xff]
  %s4820 = scalar_lea.vmem %s625, 306 [#allocation2]
  %v4821 = vld [vmem:[%s4820] ss:$2 sm:$0x3f]
  %s4822 = scalar_lea.vmem %s625, 322 [#allocation2]
  %v4823 = vld [vmem:[%s4822] ss:$2 sm:$0xff]
  %s4824 = scalar_lea.vmem %s625, 338 [#allocation2]
  %v4825 = vld [vmem:[%s4824] ss:$2 sm:$0x3f]
  %s4826 = scalar_lea.vmem %s625, 354 [#allocation2]
  %v4827 = vld [vmem:[%s4826] ss:$2 sm:$0xff]
  %s4828 = scalar_lea.vmem %s625, 370 [#allocation2]
  %v4829 = vld [vmem:[%s4828] ss:$2 sm:$0x3f]
  %s4830 = scalar_lea.vmem %s625, 386 [#allocation2]
  %v4831 = vld [vmem:[%s4830] ss:$2 sm:$0xff]
  %s4832 = scalar_lea.vmem %s625, 402 [#allocation2]
  %v4833 = vld [vmem:[%s4832] ss:$2 sm:$0x3f]
  %s4834 = scalar_lea.vmem %s625, 418 [#allocation2]
  %v4835 = vld [vmem:[%s4834] ss:$2 sm:$0xff]
  %s4836 = scalar_lea.vmem %s625, 434 [#allocation2]
  %v4837 = vld [vmem:[%s4836] ss:$2 sm:$0x3f]
  %s4838 = scalar_lea.vmem %s625, 482 [#allocation2]
  %v4839 = vld [vmem:[%s4838] ss:$2 sm:$0xff]
  %s4840 = scalar_lea.vmem %s625, 498 [#allocation2]
  %v4841 = vld [vmem:[%s4840] ss:$2 sm:$0x3f]
  %s4842 = scalar_lea.vmem %s625, 514 [#allocation2]
  %v4843 = vld [vmem:[%s4842] ss:$2 sm:$0xff]
  %s4844 = scalar_lea.vmem %s625, 530 [#allocation2]
  %v4845 = vld [vmem:[%s4844] ss:$2 sm:$0x3f]
  %s4846 = scalar_lea.vmem %s625, 546 [#allocation2]
  %v4847 = vld [vmem:[%s4846] ss:$2 sm:$0xff]
  %s4848 = scalar_lea.vmem %s625, 562 [#allocation2]
  %v4849 = vld [vmem:[%s4848] ss:$2 sm:$0x3f]
  %s4850 = scalar_lea.vmem %s625, 578 [#allocation2]
  %v4851 = vld [vmem:[%s4850] ss:$2 sm:$0xff]
  %s4852 = scalar_lea.vmem %s625, 594 [#allocation2]
  %v4853 = vld [vmem:[%s4852] ss:$2 sm:$0x3f]
  %s4854 = scalar_lea.vmem %s625, 610 [#allocation2]
  %v4855 = vld [vmem:[%s4854] ss:$2 sm:$0xff]
  %s4856 = scalar_lea.vmem %s625, 626 [#allocation2]
  %v4857 = vld [vmem:[%s4856] ss:$2 sm:$0x3f]
  %s4858 = scalar_lea.vmem %s625, 642 [#allocation2]
  %v4859 = vld [vmem:[%s4858] ss:$2 sm:$0xff]
  %s4860 = scalar_lea.vmem %s625, 658 [#allocation2]
  %v4861 = vld [vmem:[%s4860] ss:$2 sm:$0x3f]
  %s4862 = scalar_lea.vmem %s625, 674 [#allocation2]
  %v4863 = vld [vmem:[%s4862] ss:$2 sm:$0xff]
  %s4864 = scalar_lea.vmem %s625, 690 [#allocation2]
  %v4865 = vld [vmem:[%s4864] ss:$2 sm:$0x3f]
  %s4866 = scalar_lea.vmem %s625, 706 [#allocation2]
  %v4867 = vld [vmem:[%s4866] ss:$2 sm:$0xff]
  %s4868 = scalar_lea.vmem %s625, 722 [#allocation2]
  %v4869 = vld [vmem:[%s4868] ss:$2 sm:$0x3f]
  %s4870 = scalar_lea.vmem %s625, 738 [#allocation2]
  %v4871 = vld [vmem:[%s4870] ss:$2 sm:$0xff]
  %s4872 = scalar_lea.vmem %s625, 754 [#allocation2]
  %v4873 = vld [vmem:[%s4872] ss:$2 sm:$0x3f]
  %s4874 = scalar_lea.vmem %s625, 770 [#allocation2]
  %v4875 = vld [vmem:[%s4874] ss:$2 sm:$0xff]
  %s4876 = scalar_lea.vmem %s625, 786 [#allocation2]
  %v4877 = vld [vmem:[%s4876] ss:$2 sm:$0x3f]
  %s4878 = scalar_lea.vmem %s625, 802 [#allocation2]
  %v4879 = vld [vmem:[%s4878] ss:$2 sm:$0xff]
  %s4880 = scalar_lea.vmem %s625, 818 [#allocation2]
  %v4881 = vld [vmem:[%s4880] ss:$2 sm:$0x3f]
  %s4882 = scalar_lea.vmem %s625, 834 [#allocation2]
  %v4883 = vld [vmem:[%s4882] ss:$2 sm:$0xff]
  %s4884 = scalar_lea.vmem %s625, 850 [#allocation2]
  %v4885 = vld [vmem:[%s4884] ss:$2 sm:$0x3f]
  %s4886 = scalar_lea.vmem %s625, 866 [#allocation2]
  %v4887 = vld [vmem:[%s4886] ss:$2 sm:$0xff]
  %s4888 = scalar_lea.vmem %s625, 882 [#allocation2]
  %v4889 = vld [vmem:[%s4888] ss:$2 sm:$0x3f]
  %s4890 = scalar_lea.vmem %s625, 898 [#allocation2]
  %v4891 = vld [vmem:[%s4890] ss:$2 sm:$0xff]
  %s4892 = scalar_lea.vmem %s625, 914 [#allocation2]
  %v4893 = vld [vmem:[%s4892] ss:$2 sm:$0x3f]
  %4895 = vset.pattern.permute.xlu0 0
  %4896 = vperm.xlu0 %4895, %v4783
  %v4897 = vpop.permute.xlu0 %4896
  %4900 = vset.pattern.permute.xlu0 0
  %4901 = vperm.xlu0 %4900, %v4785
  %v4902 = vpop.permute.xlu0 %4901
  %4905 = vset.pattern.permute.xlu0 0
  %4906 = vperm.xlu0 %4905, %v4787
  %v4907 = vpop.permute.xlu0 %4906
  %4910 = vset.pattern.permute.xlu0 0
  %4911 = vperm.xlu0 %4910, %v4789
  %v4912 = vpop.permute.xlu0 %4911
  %4915 = vset.pattern.permute.xlu0 0
  %4916 = vperm.xlu0 %4915, %v4791
  %v4917 = vpop.permute.xlu0 %4916
  %4920 = vset.pattern.permute.xlu0 0
  %4921 = vperm.xlu0 %4920, %v4793
  %v4922 = vpop.permute.xlu0 %4921
  %4925 = vset.pattern.permute.xlu0 0
  %4926 = vperm.xlu0 %4925, %v4795
  %v4927 = vpop.permute.xlu0 %4926
  %4930 = vset.pattern.permute.xlu0 0
  %4931 = vperm.xlu0 %4930, %v4797
  %v4932 = vpop.permute.xlu0 %4931
  %4935 = vset.pattern.permute.xlu0 0
  %4936 = vperm.xlu0 %4935, %v4799
  %v4937 = vpop.permute.xlu0 %4936
  %4940 = vset.pattern.permute.xlu0 0
  %4941 = vperm.xlu0 %4940, %v4801
  %v4942 = vpop.permute.xlu0 %4941
  %4945 = vset.pattern.permute.xlu0 0
  %4946 = vperm.xlu0 %4945, %v4803
  %v4947 = vpop.permute.xlu0 %4946
  %4950 = vset.pattern.permute.xlu0 0
  %4951 = vperm.xlu0 %4950, %v4805
  %v4952 = vpop.permute.xlu0 %4951
  %4955 = vset.pattern.permute.xlu0 0
  %4956 = vperm.xlu0 %4955, %v4807
  %v4957 = vpop.permute.xlu0 %4956
  %4960 = vset.pattern.permute.xlu0 0
  %4961 = vperm.xlu0 %4960, %v4809
  %v4962 = vpop.permute.xlu0 %4961
  %4965 = vset.pattern.permute.xlu0 0
  %4966 = vperm.xlu0 %4965, %v4811
  %v4967 = vpop.permute.xlu0 %4966
  %4970 = vset.pattern.permute.xlu0 0
  %4971 = vperm.xlu0 %4970, %v4813
  %v4972 = vpop.permute.xlu0 %4971
  %4975 = vset.pattern.permute.xlu0 0
  %4976 = vperm.xlu0 %4975, %v4815
  %v4977 = vpop.permute.xlu0 %4976
  %4980 = vset.pattern.permute.xlu0 0
  %4981 = vperm.xlu0 %4980, %v4817
  %v4982 = vpop.permute.xlu0 %4981
  %4985 = vset.pattern.permute.xlu0 0
  %4986 = vperm.xlu0 %4985, %v4819
  %v4987 = vpop.permute.xlu0 %4986
  %4990 = vset.pattern.permute.xlu0 0
  %4991 = vperm.xlu0 %4990, %v4821
  %v4992 = vpop.permute.xlu0 %4991
  %4995 = vset.pattern.permute.xlu0 0
  %4996 = vperm.xlu0 %4995, %v4823
  %v4997 = vpop.permute.xlu0 %4996
  %5000 = vset.pattern.permute.xlu0 0
  %5001 = vperm.xlu0 %5000, %v4825
  %v5002 = vpop.permute.xlu0 %5001
  %5005 = vset.pattern.permute.xlu0 0
  %5006 = vperm.xlu0 %5005, %v4827
  %v5007 = vpop.permute.xlu0 %5006
  %5010 = vset.pattern.permute.xlu0 0
  %5011 = vperm.xlu0 %5010, %v4829
  %v5012 = vpop.permute.xlu0 %5011
  %5015 = vset.pattern.permute.xlu0 0
  %5016 = vperm.xlu0 %5015, %v4831
  %v5017 = vpop.permute.xlu0 %5016
  %5020 = vset.pattern.permute.xlu0 0
  %5021 = vperm.xlu0 %5020, %v4833
  %v5022 = vpop.permute.xlu0 %5021
  %5025 = vset.pattern.permute.xlu0 0
  %5026 = vperm.xlu0 %5025, %v4835
  %v5027 = vpop.permute.xlu0 %5026
  %5030 = vset.pattern.permute.xlu0 0
  %5031 = vperm.xlu0 %5030, %v4837
  %v5032 = vpop.permute.xlu0 %5031
  %5035 = vset.pattern.permute.xlu0 0
  %5036 = vperm.xlu0 %5035, %v4839
  %v5037 = vpop.permute.xlu0 %5036
  %5040 = vset.pattern.permute.xlu0 0
  %5041 = vperm.xlu0 %5040, %v4841
  %v5042 = vpop.permute.xlu0 %5041
  %5045 = vset.pattern.permute.xlu0 0
  %5046 = vperm.xlu0 %5045, %v4843
  %v5047 = vpop.permute.xlu0 %5046
  %5050 = vset.pattern.permute.xlu0 0
  %5051 = vperm.xlu0 %5050, %v4845
  %v5052 = vpop.permute.xlu0 %5051
  %5055 = vset.pattern.permute.xlu0 0
  %5056 = vperm.xlu0 %5055, %v4847
  %v5057 = vpop.permute.xlu0 %5056
  %5060 = vset.pattern.permute.xlu0 0
  %5061 = vperm.xlu0 %5060, %v4849
  %v5062 = vpop.permute.xlu0 %5061
  %5065 = vset.pattern.permute.xlu0 0
  %5066 = vperm.xlu0 %5065, %v4851
  %v5067 = vpop.permute.xlu0 %5066
  %5070 = vset.pattern.permute.xlu0 0
  %5071 = vperm.xlu0 %5070, %v4853
  %v5072 = vpop.permute.xlu0 %5071
  %5075 = vset.pattern.permute.xlu0 0
  %5076 = vperm.xlu0 %5075, %v4855
  %v5077 = vpop.permute.xlu0 %5076
  %5080 = vset.pattern.permute.xlu0 0
  %5081 = vperm.xlu0 %5080, %v4857
  %v5082 = vpop.permute.xlu0 %5081
  %5085 = vset.pattern.permute.xlu0 0
  %5086 = vperm.xlu0 %5085, %v4859
  %v5087 = vpop.permute.xlu0 %5086
  %5090 = vset.pattern.permute.xlu0 0
  %5091 = vperm.xlu0 %5090, %v4861
  %v5092 = vpop.permute.xlu0 %5091
  %5095 = vset.pattern.permute.xlu0 0
  %5096 = vperm.xlu0 %5095, %v4863
  %v5097 = vpop.permute.xlu0 %5096
  %5100 = vset.pattern.permute.xlu0 0
  %5101 = vperm.xlu0 %5100, %v4865
  %v5102 = vpop.permute.xlu0 %5101
  %5105 = vset.pattern.permute.xlu0 0
  %5106 = vperm.xlu0 %5105, %v4867
  %v5107 = vpop.permute.xlu0 %5106
  %5110 = vset.pattern.permute.xlu0 0
  %5111 = vperm.xlu0 %5110, %v4869
  %v5112 = vpop.permute.xlu0 %5111
  %5115 = vset.pattern.permute.xlu0 0
  %5116 = vperm.xlu0 %5115, %v4871
  %v5117 = vpop.permute.xlu0 %5116
  %5120 = vset.pattern.permute.xlu0 0
  %5121 = vperm.xlu0 %5120, %v4873
  %v5122 = vpop.permute.xlu0 %5121
  %5125 = vset.pattern.permute.xlu0 0
  %5126 = vperm.xlu0 %5125, %v4875
  %v5127 = vpop.permute.xlu0 %5126
  %5130 = vset.pattern.permute.xlu0 0
  %5131 = vperm.xlu0 %5130, %v4877
  %v5132 = vpop.permute.xlu0 %5131
  %5135 = vset.pattern.permute.xlu0 0
  %5136 = vperm.xlu0 %5135, %v4879
  %v5137 = vpop.permute.xlu0 %5136
  %5140 = vset.pattern.permute.xlu0 0
  %5141 = vperm.xlu0 %5140, %v4881
  %v5142 = vpop.permute.xlu0 %5141
  %5145 = vset.pattern.permute.xlu0 0
  %5146 = vperm.xlu0 %5145, %v4883
  %v5147 = vpop.permute.xlu0 %5146
  %5150 = vset.pattern.permute.xlu0 0
  %5151 = vperm.xlu0 %5150, %v4885
  %v5152 = vpop.permute.xlu0 %5151
  %5155 = vset.pattern.permute.xlu0 0
  %5156 = vperm.xlu0 %5155, %v4887
  %v5157 = vpop.permute.xlu0 %5156
  %5160 = vset.pattern.permute.xlu0 0
  %5161 = vperm.xlu0 %5160, %v4889
  %v5162 = vpop.permute.xlu0 %5161
  %5165 = vset.pattern.permute.xlu0 0
  %5166 = vperm.xlu0 %5165, %v4891
  %v5167 = vpop.permute.xlu0 %5166
  %5170 = vset.pattern.permute.xlu0 0
  %5171 = vperm.xlu0 %5170, %v4893
  %v5172 = vpop.permute.xlu0 %5171
  %v5174 = vperm.slane %v739, 0
  %v5175 = vmul.f32 %v4897, %v5174
  %v5176 = vmul.f32 %v4902, %v5174
  %v5177 = vmul.f32 %v4907, %v5174
  %v5178 = vmul.f32 %v4912, %v5174
  %v5179 = vmul.f32 %v4917, %v5174
  %v5180 = vmul.f32 %v4922, %v5174
  %v5181 = vmul.f32 %v4927, %v5174
  %v5182 = vmul.f32 %v4932, %v5174
  %v5183 = vmul.f32 %v4937, %v5174
  %v5184 = vmul.f32 %v4942, %v5174
  %v5185 = vmul.f32 %v4947, %v5174
  %v5186 = vmul.f32 %v4952, %v5174
  %v5187 = vmul.f32 %v4957, %v5174
  %v5188 = vmul.f32 %v4962, %v5174
  %v5189 = vmul.f32 %v4967, %v5174
  %v5190 = vmul.f32 %v4972, %v5174
  %v5191 = vmul.f32 %v4977, %v5174
  %v5192 = vmul.f32 %v4982, %v5174
  %v5193 = vmul.f32 %v4987, %v5174
  %v5194 = vmul.f32 %v4992, %v5174
  %v5195 = vmul.f32 %v4997, %v5174
  %v5196 = vmul.f32 %v5002, %v5174
  %v5197 = vmul.f32 %v5007, %v5174
  %v5198 = vmul.f32 %v5012, %v5174
  %v5199 = vmul.f32 %v5017, %v5174
  %v5200 = vmul.f32 %v5022, %v5174
  %v5201 = vmul.f32 %v5027, %v5174
  %v5202 = vmul.f32 %v5032, %v5174
  %v5203 = vmul.f32 %v5037, %v5174
  %v5204 = vmul.f32 %v5042, %v5174
  %v5205 = vmul.f32 %v5047, %v5174
  %v5206 = vmul.f32 %v5052, %v5174
  %v5207 = vmul.f32 %v5057, %v5174
  %v5208 = vmul.f32 %v5062, %v5174
  %v5209 = vmul.f32 %v5067, %v5174
  %v5210 = vmul.f32 %v5072, %v5174
  %v5211 = vmul.f32 %v5077, %v5174
  %v5212 = vmul.f32 %v5082, %v5174
  %v5213 = vmul.f32 %v5087, %v5174
  %v5214 = vmul.f32 %v5092, %v5174
  %v5215 = vmul.f32 %v5097, %v5174
  %v5216 = vmul.f32 %v5102, %v5174
  %v5217 = vmul.f32 %v5107, %v5174
  %v5218 = vmul.f32 %v5112, %v5174
  %v5219 = vmul.f32 %v5117, %v5174
  %v5220 = vmul.f32 %v5122, %v5174
  %v5221 = vmul.f32 %v5127, %v5174
  %v5222 = vmul.f32 %v5132, %v5174
  %v5223 = vmul.f32 %v5137, %v5174
  %v5224 = vmul.f32 %v5142, %v5174
  %v5225 = vmul.f32 %v5147, %v5174
  %v5226 = vmul.f32 %v5152, %v5174
  %v5227 = vmul.f32 %v5157, %v5174
  %v5228 = vmul.f32 %v5162, %v5174
  %v5229 = vmul.f32 %v5167, %v5174
  %v5230 = vmul.f32 %v5172, %v5174
  %v5231 = vadd.f32 %v4726, %v5175
  %v5232 = vadd.f32 %v4727, %v5176
  %v5233 = vadd.f32 %v4728, %v5177
  %v5234 = vadd.f32 %v4729, %v5178
  %v5235 = vadd.f32 %v4730, %v5179
  %v5236 = vadd.f32 %v4731, %v5180
  %v5237 = vadd.f32 %v4732, %v5181
  %v5238 = vadd.f32 %v4733, %v5182
  %v5239 = vadd.f32 %v4734, %v5183
  %v5240 = vadd.f32 %v4735, %v5184
  %v5241 = vadd.f32 %v4736, %v5185
  %v5242 = vadd.f32 %v4737, %v5186
  %v5243 = vadd.f32 %v4738, %v5187
  %v5244 = vadd.f32 %v4739, %v5188
  %v5245 = vadd.f32 %v4740, %v5189
  %v5246 = vadd.f32 %v4741, %v5190
  %v5247 = vadd.f32 %v4742, %v5191
  %v5248 = vadd.f32 %v4743, %v5192
  %v5249 = vadd.f32 %v4744, %v5193
  %v5250 = vadd.f32 %v4745, %v5194
  %v5251 = vadd.f32 %v4746, %v5195
  %v5252 = vadd.f32 %v4747, %v5196
  %v5253 = vadd.f32 %v4748, %v5197
  %v5254 = vadd.f32 %v4749, %v5198
  %v5255 = vadd.f32 %v4750, %v5199
  %v5256 = vadd.f32 %v4751, %v5200
  %v5257 = vadd.f32 %v4752, %v5201
  %v5258 = vadd.f32 %v4753, %v5202
  %v5259 = vadd.f32 %v4754, %v5203
  %v5260 = vadd.f32 %v4755, %v5204
  %v5261 = vadd.f32 %v4756, %v5205
  %v5262 = vadd.f32 %v4757, %v5206
  %v5263 = vadd.f32 %v4758, %v5207
  %v5264 = vadd.f32 %v4759, %v5208
  %v5265 = vadd.f32 %v4760, %v5209
  %v5266 = vadd.f32 %v4761, %v5210
  %v5267 = vadd.f32 %v4762, %v5211
  %v5268 = vadd.f32 %v4763, %v5212
  %v5269 = vadd.f32 %v4764, %v5213
  %v5270 = vadd.f32 %v4765, %v5214
  %v5271 = vadd.f32 %v4766, %v5215
  %v5272 = vadd.f32 %v4767, %v5216
  %v5273 = vadd.f32 %v4768, %v5217
  %v5274 = vadd.f32 %v4769, %v5218
  %v5275 = vadd.f32 %v4770, %v5219
  %v5276 = vadd.f32 %v4771, %v5220
  %v5277 = vadd.f32 %v4772, %v5221
  %v5278 = vadd.f32 %v4773, %v5222
  %v5279 = vadd.f32 %v4774, %v5223
  %v5280 = vadd.f32 %v4775, %v5224
  %v5281 = vadd.f32 %v4776, %v5225
  %v5282 = vadd.f32 %v4777, %v5226
  %v5283 = vadd.f32 %v4778, %v5227
  %v5284 = vadd.f32 %v4779, %v5228
  %v5285 = vadd.f32 %v4780, %v5229
  %v5286 = vadd.f32 %v4781, %v5230
  %vm5287 = vcmp.gt.f32.partialorder %v5231, 0.0
  %vm5288 = vcmp.gt.f32.partialorder %v5232, 0.0
  %vm5289 = vcmp.gt.f32.partialorder %v5233, 0.0
  %vm5290 = vcmp.gt.f32.partialorder %v5234, 0.0
  %vm5291 = vcmp.gt.f32.partialorder %v5235, 0.0
  %vm5292 = vcmp.gt.f32.partialorder %v5236, 0.0
  %vm5293 = vcmp.gt.f32.partialorder %v5237, 0.0
  %vm5294 = vcmp.gt.f32.partialorder %v5238, 0.0
  %vm5295 = vcmp.gt.f32.partialorder %v5239, 0.0
  %vm5296 = vcmp.gt.f32.partialorder %v5240, 0.0
  %vm5297 = vcmp.gt.f32.partialorder %v5241, 0.0
  %vm5298 = vcmp.gt.f32.partialorder %v5242, 0.0
  %vm5299 = vcmp.gt.f32.partialorder %v5243, 0.0
  %vm5300 = vcmp.gt.f32.partialorder %v5244, 0.0
  %vm5301 = vcmp.gt.f32.partialorder %v5245, 0.0
  %vm5302 = vcmp.gt.f32.partialorder %v5246, 0.0
  %vm5303 = vcmp.gt.f32.partialorder %v5247, 0.0
  %vm5304 = vcmp.gt.f32.partialorder %v5248, 0.0
  %vm5305 = vcmp.gt.f32.partialorder %v5249, 0.0
  %vm5306 = vcmp.gt.f32.partialorder %v5250, 0.0
  %vm5307 = vcmp.gt.f32.partialorder %v5251, 0.0
  %vm5308 = vcmp.gt.f32.partialorder %v5252, 0.0
  %vm5309 = vcmp.gt.f32.partialorder %v5253, 0.0
  %vm5310 = vcmp.gt.f32.partialorder %v5254, 0.0
  %vm5311 = vcmp.gt.f32.partialorder %v5255, 0.0
  %vm5312 = vcmp.gt.f32.partialorder %v5256, 0.0
  %vm5313 = vcmp.gt.f32.partialorder %v5257, 0.0
  %vm5314 = vcmp.gt.f32.partialorder %v5258, 0.0
  %vm5315 = vcmp.gt.f32.partialorder %v5259, 0.0
  %vm5316 = vcmp.gt.f32.partialorder %v5260, 0.0
  %vm5317 = vcmp.gt.f32.partialorder %v5261, 0.0
  %vm5318 = vcmp.gt.f32.partialorder %v5262, 0.0
  %vm5319 = vcmp.gt.f32.partialorder %v5263, 0.0
  %vm5320 = vcmp.gt.f32.partialorder %v5264, 0.0
  %vm5321 = vcmp.gt.f32.partialorder %v5265, 0.0
  %vm5322 = vcmp.gt.f32.partialorder %v5266, 0.0
  %vm5323 = vcmp.gt.f32.partialorder %v5267, 0.0
  %vm5324 = vcmp.gt.f32.partialorder %v5268, 0.0
  %vm5325 = vcmp.gt.f32.partialorder %v5269, 0.0
  %vm5326 = vcmp.gt.f32.partialorder %v5270, 0.0
  %vm5327 = vcmp.gt.f32.partialorder %v5271, 0.0
  %vm5328 = vcmp.gt.f32.partialorder %v5272, 0.0
  %vm5329 = vcmp.gt.f32.partialorder %v5273, 0.0
  %vm5330 = vcmp.gt.f32.partialorder %v5274, 0.0
  %vm5331 = vcmp.gt.f32.partialorder %v5275, 0.0
  %vm5332 = vcmp.gt.f32.partialorder %v5276, 0.0
  %vm5333 = vcmp.gt.f32.partialorder %v5277, 0.0
  %vm5334 = vcmp.gt.f32.partialorder %v5278, 0.0
  %vm5335 = vcmp.gt.f32.partialorder %v5279, 0.0
  %vm5336 = vcmp.gt.f32.partialorder %v5280, 0.0
  %vm5337 = vcmp.gt.f32.partialorder %v5281, 0.0
  %vm5338 = vcmp.gt.f32.partialorder %v5282, 0.0
  %vm5339 = vcmp.gt.f32.partialorder %v5283, 0.0
  %vm5340 = vcmp.gt.f32.partialorder %v5284, 0.0
  %vm5341 = vcmp.gt.f32.partialorder %v5285, 0.0
  %vm5342 = vcmp.gt.f32.partialorder %v5286, 0.0
  %v5343 = vmul.f32 %v5231, 0.01
  %v5344 = vmul.f32 %v5232, 0.01
  %v5345 = vmul.f32 %v5233, 0.01
  %v5346 = vmul.f32 %v5234, 0.01
  %v5347 = vmul.f32 %v5235, 0.01
  %v5348 = vmul.f32 %v5236, 0.01
  %v5349 = vmul.f32 %v5237, 0.01
  %v5350 = vmul.f32 %v5238, 0.01
  %v5351 = vmul.f32 %v5239, 0.01
  %v5352 = vmul.f32 %v5240, 0.01
  %v5353 = vmul.f32 %v5241, 0.01
  %v5354 = vmul.f32 %v5242, 0.01
  %v5355 = vmul.f32 %v5243, 0.01
  %v5356 = vmul.f32 %v5244, 0.01
  %v5357 = vmul.f32 %v5245, 0.01
  %v5358 = vmul.f32 %v5246, 0.01
  %v5359 = vmul.f32 %v5247, 0.01
  %v5360 = vmul.f32 %v5248, 0.01
  %v5361 = vmul.f32 %v5249, 0.01
  %v5362 = vmul.f32 %v5250, 0.01
  %v5363 = vmul.f32 %v5251, 0.01
  %v5364 = vmul.f32 %v5252, 0.01
  %v5365 = vmul.f32 %v5253, 0.01
  %v5366 = vmul.f32 %v5254, 0.01
  %v5367 = vmul.f32 %v5255, 0.01
  %v5368 = vmul.f32 %v5256, 0.01
  %v5369 = vmul.f32 %v5257, 0.01
  %v5370 = vmul.f32 %v5258, 0.01
  %v5371 = vmul.f32 %v5259, 0.01
  %v5372 = vmul.f32 %v5260, 0.01
  %v5373 = vmul.f32 %v5261, 0.01
  %v5374 = vmul.f32 %v5262, 0.01
  %v5375 = vmul.f32 %v5263, 0.01
  %v5376 = vmul.f32 %v5264, 0.01
  %v5377 = vmul.f32 %v5265, 0.01
  %v5378 = vmul.f32 %v5266, 0.01
  %v5379 = vmul.f32 %v5267, 0.01
  %v5380 = vmul.f32 %v5268, 0.01
  %v5381 = vmul.f32 %v5269, 0.01
  %v5382 = vmul.f32 %v5270, 0.01
  %v5383 = vmul.f32 %v5271, 0.01
  %v5384 = vmul.f32 %v5272, 0.01
  %v5385 = vmul.f32 %v5273, 0.01
  %v5386 = vmul.f32 %v5274, 0.01
  %v5387 = vmul.f32 %v5275, 0.01
  %v5388 = vmul.f32 %v5276, 0.01
  %v5389 = vmul.f32 %v5277, 0.01
  %v5390 = vmul.f32 %v5278, 0.01
  %v5391 = vmul.f32 %v5279, 0.01
  %v5392 = vmul.f32 %v5280, 0.01
  %v5393 = vmul.f32 %v5281, 0.01
  %v5394 = vmul.f32 %v5282, 0.01
  %v5395 = vmul.f32 %v5283, 0.01
  %v5396 = vmul.f32 %v5284, 0.01
  %v5397 = vmul.f32 %v5285, 0.01
  %v5398 = vmul.f32 %v5286, 0.01
  %v5399 = vsel %vm5287, %v5231, %v5343
  %v5400 = vsel %vm5288, %v5232, %v5344
  %v5401 = vsel %vm5289, %v5233, %v5345
  %v5402 = vsel %vm5290, %v5234, %v5346
  %v5403 = vsel %vm5291, %v5235, %v5347
  %v5404 = vsel %vm5292, %v5236, %v5348
  %v5405 = vsel %vm5293, %v5237, %v5349
  %v5406 = vsel %vm5294, %v5238, %v5350
  %v5407 = vsel %vm5295, %v5239, %v5351
  %v5408 = vsel %vm5296, %v5240, %v5352
  %v5409 = vsel %vm5297, %v5241, %v5353
  %v5410 = vsel %vm5298, %v5242, %v5354
  %v5411 = vsel %vm5299, %v5243, %v5355
  %v5412 = vsel %vm5300, %v5244, %v5356
  %v5413 = vsel %vm5301, %v5245, %v5357
  %v5414 = vsel %vm5302, %v5246, %v5358
  %v5415 = vsel %vm5303, %v5247, %v5359
  %v5416 = vsel %vm5304, %v5248, %v5360
  %v5417 = vsel %vm5305, %v5249, %v5361
  %v5418 = vsel %vm5306, %v5250, %v5362
  %v5419 = vsel %vm5307, %v5251, %v5363
  %v5420 = vsel %vm5308, %v5252, %v5364
  %v5421 = vsel %vm5309, %v5253, %v5365
  %v5422 = vsel %vm5310, %v5254, %v5366
  %v5423 = vsel %vm5311, %v5255, %v5367
  %v5424 = vsel %vm5312, %v5256, %v5368
  %v5425 = vsel %vm5313, %v5257, %v5369
  %v5426 = vsel %vm5314, %v5258, %v5370
  %v5427 = vsel %vm5315, %v5259, %v5371
  %v5428 = vsel %vm5316, %v5260, %v5372
  %v5429 = vsel %vm5317, %v5261, %v5373
  %v5430 = vsel %vm5318, %v5262, %v5374
  %v5431 = vsel %vm5319, %v5263, %v5375
  %v5432 = vsel %vm5320, %v5264, %v5376
  %v5433 = vsel %vm5321, %v5265, %v5377
  %v5434 = vsel %vm5322, %v5266, %v5378
  %v5435 = vsel %vm5323, %v5267, %v5379
  %v5436 = vsel %vm5324, %v5268, %v5380
  %v5437 = vsel %vm5325, %v5269, %v5381
  %v5438 = vsel %vm5326, %v5270, %v5382
  %v5439 = vsel %vm5327, %v5271, %v5383
  %v5440 = vsel %vm5328, %v5272, %v5384
  %v5441 = vsel %vm5329, %v5273, %v5385
  %v5442 = vsel %vm5330, %v5274, %v5386
  %v5443 = vsel %vm5331, %v5275, %v5387
  %v5444 = vsel %vm5332, %v5276, %v5388
  %v5445 = vsel %vm5333, %v5277, %v5389
  %v5446 = vsel %vm5334, %v5278, %v5390
  %v5447 = vsel %vm5335, %v5279, %v5391
  %v5448 = vsel %vm5336, %v5280, %v5392
  %v5449 = vsel %vm5337, %v5281, %v5393
  %v5450 = vsel %vm5338, %v5282, %v5394
  %v5451 = vsel %vm5339, %v5283, %v5395
  %v5452 = vsel %vm5340, %v5284, %v5396
  %v5453 = vsel %vm5341, %v5285, %v5397
  %v5454 = vsel %vm5342, %v5286, %v5398
  %vm5455 = vcmask 261120
  %5456 = vst.msk [vmem:[#allocation4] sm:$0xff] %vm5455, 0.0
  %5457 = vst.msk [vmem:[#allocation4 + $0x8] sm:$0xff] %vm5455, 0.0
  %5458 = vst.msk [vmem:[#allocation4 + $0x10] sm:$0xff] %vm5455, 0.0
  %5459 = vst.msk [vmem:[#allocation4 + $0x18] sm:$0xff] %vm5455, 0.0
  %5460 = vst.msk [vmem:[#allocation4 + $0x20] sm:$0xff] %vm5455, 0.0
  %5461 = vst.msk [vmem:[#allocation4 + $0x28] sm:$0xff] %vm5455, 0.0
  %5462 = vst.msk [vmem:[#allocation4 + $0x30] sm:$0xff] %vm5455, 0.0
  %5463 = vst.msk [vmem:[#allocation4 + $0x38] sm:$0xff] %vm5455, 0.0
  %5464 = vst.msk [vmem:[#allocation4 + $0x40] sm:$0xff] %vm5455, 0.0
  %5465 = vst.msk [vmem:[#allocation4 + $0x48] sm:$0xff] %vm5455, 0.0
  %5466 = vst.msk [vmem:[#allocation4 + $0x50] sm:$0xff] %vm5455, 0.0
  %5467 = vst.msk [vmem:[#allocation4 + $0x58] sm:$0xff] %vm5455, 0.0
  %5468 = vst.msk [vmem:[#allocation4 + $0x60] sm:$0xff] %vm5455, 0.0
  %5469 = vst.msk [vmem:[#allocation4 + $0x68] sm:$0xff] %vm5455, 0.0
  %5470 = vst.msk [vmem:[#allocation4 + $0x70] sm:$0xff] %vm5455, 0.0
  %5471 = vst.msk [vmem:[#allocation4 + $0x78] sm:$0xff] %vm5455, 0.0
  %5472 = vst.msk [vmem:[#allocation4 + $0x80] sm:$0xff] %vm5455, 0.0
  %5473 = vst.msk [vmem:[#allocation4 + $0x88] sm:$0xff] %vm5455, 0.0
  %5474 = vst.msk [vmem:[#allocation4 + $0x90] sm:$0xff] %vm5455, 0.0
  %5475 = vst.msk [vmem:[#allocation4 + $0x98] sm:$0xff] %vm5455, 0.0
  %5476 = vst.msk [vmem:[#allocation4 + $0xa0] sm:$0xff] %vm5455, 0.0
  %5477 = vst.msk [vmem:[#allocation4 + $0xa8] sm:$0xff] %vm5455, 0.0
  %5478 = vst.msk [vmem:[#allocation4 + $0xb0] sm:$0xff] %vm5455, 0.0
  %5479 = vst.msk [vmem:[#allocation4 + $0xb8] sm:$0xff] %vm5455, 0.0
  %5480 = vst.msk [vmem:[#allocation4 + $0xc0] sm:$0xff] %vm5455, 0.0
  %5481 = vst.msk [vmem:[#allocation4 + $0xc8] sm:$0xff] %vm5455, 0.0
  %5482 = vst.msk [vmem:[#allocation4 + $0xd0] sm:$0xff] %vm5455, 0.0
  %5483 = vst.msk [vmem:[#allocation4 + $0xd8] sm:$0xff] %vm5455, 0.0
  %5484 = vst.msk [vmem:[#allocation4 + $0xe0] sm:$0xff] %vm5455, 0.0
  %5485 = vst.msk [vmem:[#allocation4 + $0xe8] sm:$0xff] %vm5455, 0.0
  %5486 = vst.msk [vmem:[#allocation4 + $0xf0] sm:$0xff] %vm5455, 0.0
  %5487 = vst.msk [vmem:[#allocation4 + $0xf8] sm:$0xff] %vm5455, 0.0
  %5488 = vst.msk [vmem:[#allocation5] sm:$0xff] %vm5455, 0.0
  %5489 = vst.msk [vmem:[#allocation5 + $0x8] sm:$0xff] %vm5455, 0.0
  %5490 = vst.msk [vmem:[#allocation5 + $0x10] sm:$0xff] %vm5455, 0.0
  %5491 = vst.msk [vmem:[#allocation5 + $0x18] sm:$0xff] %vm5455, 0.0
  %5492 = vst.msk [vmem:[#allocation5 + $0x20] sm:$0xff] %vm5455, 0.0
  %5493 = vst.msk [vmem:[#allocation5 + $0x28] sm:$0xff] %vm5455, 0.0
  %5494 = vst.msk [vmem:[#allocation5 + $0x30] sm:$0xff] %vm5455, 0.0
  %5495 = vst.msk [vmem:[#allocation5 + $0x38] sm:$0xff] %vm5455, 0.0
  %5496 = vst.msk [vmem:[#allocation5 + $0x40] sm:$0xff] %vm5455, 0.0
  %5497 = vst.msk [vmem:[#allocation5 + $0x48] sm:$0xff] %vm5455, 0.0
  %5498 = vst.msk [vmem:[#allocation5 + $0x50] sm:$0xff] %vm5455, 0.0
  %5499 = vst.msk [vmem:[#allocation5 + $0x58] sm:$0xff] %vm5455, 0.0
  %5500 = vst.msk [vmem:[#allocation5 + $0x60] sm:$0xff] %vm5455, 0.0
  %5501 = vst.msk [vmem:[#allocation5 + $0x68] sm:$0xff] %vm5455, 0.0
  %5502 = vst.msk [vmem:[#allocation5 + $0x70] sm:$0xff] %vm5455, 0.0
  %5503 = vst.msk [vmem:[#allocation5 + $0x78] sm:$0xff] %vm5455, 0.0
  %5504 = vst.msk [vmem:[#allocation5 + $0x80] sm:$0xff] %vm5455, 0.0
  %5505 = vst.msk [vmem:[#allocation5 + $0x88] sm:$0xff] %vm5455, 0.0
  %5506 = vst.msk [vmem:[#allocation5 + $0x90] sm:$0xff] %vm5455, 0.0
  %5507 = vst.msk [vmem:[#allocation5 + $0x98] sm:$0xff] %vm5455, 0.0
  %5508 = vst.msk [vmem:[#allocation5 + $0xa0] sm:$0xff] %vm5455, 0.0
  %5509 = vst.msk [vmem:[#allocation5 + $0xa8] sm:$0xff] %vm5455, 0.0
  %5510 = vst.msk [vmem:[#allocation5 + $0xb0] sm:$0xff] %vm5455, 0.0
  %5511 = vst.msk [vmem:[#allocation5 + $0xb8] sm:$0xff] %vm5455, 0.0
  %5512 = vst.msk [vmem:[#allocation5 + $0xc0] sm:$0xff] %vm5455, 0.0
  %5513 = vst.msk [vmem:[#allocation5 + $0xc8] sm:$0xff] %vm5455, 0.0
  %5514 = vst.msk [vmem:[#allocation5 + $0xd0] sm:$0xff] %vm5455, 0.0
  %5515 = vst.msk [vmem:[#allocation5 + $0xd8] sm:$0xff] %vm5455, 0.0
  %5516 = vst.msk [vmem:[#allocation5 + $0xe0] sm:$0xff] %vm5455, 0.0
  %5517 = vst.msk [vmem:[#allocation5 + $0xe8] sm:$0xff] %vm5455, 0.0
  %5518 = vst.msk [vmem:[#allocation5 + $0xf0] sm:$0xff] %vm5455, 0.0
  %5519 = vst.msk [vmem:[#allocation5 + $0xf8] sm:$0xff] %vm5455, 0.0
  %5520 = vst.msk [vmem:[#allocation5 + $0x1] sm:$0xff] %vm5455, %v5399
  %vm5521 = vcmask 259072
  %5522 = vst.msk [vmem:[#allocation5 + $0x9] sm:$0x3f] %vm5521, %v5400
  %5523 = vst.msk [vmem:[#allocation5 + $0x11] sm:$0xff] %vm5455, %v5403
  %5524 = vst.msk [vmem:[#allocation5 + $0x19] sm:$0x3f] %vm5521, %v5404
  %5525 = vst.msk [vmem:[#allocation5 + $0x21] sm:$0xff] %vm5455, %v5407
  %5526 = vst.msk [vmem:[#allocation5 + $0x29] sm:$0x3f] %vm5521, %v5408
  %5527 = vst.msk [vmem:[#allocation5 + $0x31] sm:$0xff] %vm5455, %v5411
  %5528 = vst.msk [vmem:[#allocation5 + $0x39] sm:$0x3f] %vm5521, %v5412
  %5529 = vst.msk [vmem:[#allocation5 + $0x41] sm:$0xff] %vm5455, %v5415
  %5530 = vst.msk [vmem:[#allocation5 + $0x49] sm:$0x3f] %vm5521, %v5416
  %5531 = vst.msk [vmem:[#allocation5 + $0x51] sm:$0xff] %vm5455, %v5419
  %5532 = vst.msk [vmem:[#allocation5 + $0x59] sm:$0x3f] %vm5521, %v5420
  %5533 = vst.msk [vmem:[#allocation5 + $0x61] sm:$0xff] %vm5455, %v5423
  %5534 = vst.msk [vmem:[#allocation5 + $0x69] sm:$0x3f] %vm5521, %v5424
  %5535 = vst.msk [vmem:[#allocation5 + $0x81] sm:$0xff] %vm5455, %v5427
  %5536 = vst.msk [vmem:[#allocation5 + $0x89] sm:$0x3f] %vm5521, %v5428
  %5537 = vst.msk [vmem:[#allocation5 + $0x91] sm:$0xff] %vm5455, %v5431
  %5538 = vst.msk [vmem:[#allocation5 + $0x99] sm:$0x3f] %vm5521, %v5432
  %5539 = vst.msk [vmem:[#allocation5 + $0xa1] sm:$0xff] %vm5455, %v5435
  %5540 = vst.msk [vmem:[#allocation5 + $0xa9] sm:$0x3f] %vm5521, %v5436
  %5541 = vst.msk [vmem:[#allocation5 + $0xb1] sm:$0xff] %vm5455, %v5439
  %5542 = vst.msk [vmem:[#allocation5 + $0xb9] sm:$0x3f] %vm5521, %v5440
  %5543 = vst.msk [vmem:[#allocation5 + $0xc1] sm:$0xff] %vm5455, %v5443
  %5544 = vst.msk [vmem:[#allocation5 + $0xc9] sm:$0x3f] %vm5521, %v5444
  %5545 = vst.msk [vmem:[#allocation5 + $0xd1] sm:$0xff] %vm5455, %v5447
  %5546 = vst.msk [vmem:[#allocation5 + $0xd9] sm:$0x3f] %vm5521, %v5448
  %5547 = vst.msk [vmem:[#allocation5 + $0xe1] sm:$0xff] %vm5455, %v5451
  %5548 = vst.msk [vmem:[#allocation5 + $0xe9] sm:$0x3f] %vm5521, %v5452
  %s5549 = scalar_lea.vmem [#allocation4], 16
  %5550 = vst.msk [vmem:[%s5549 + $0x1] sm:$0xff] %vm5455, %v5401
  %5551 = vst.msk [vmem:[%s5549 + $0x9] sm:$0x3f] %vm5521, %v5402
  %5552 = vst.msk [vmem:[%s5549 + $0x11] sm:$0xff] %vm5455, %v5405
  %5553 = vst.msk [vmem:[%s5549 + $0x19] sm:$0x3f] %vm5521, %v5406
  %5554 = vst.msk [vmem:[%s5549 + $0x21] sm:$0xff] %vm5455, %v5409
  %5555 = vst.msk [vmem:[%s5549 + $0x29] sm:$0x3f] %vm5521, %v5410
  %5556 = vst.msk [vmem:[%s5549 + $0x31] sm:$0xff] %vm5455, %v5413
  %5557 = vst.msk [vmem:[%s5549 + $0x39] sm:$0x3f] %vm5521, %v5414
  %5558 = vst.msk [vmem:[%s5549 + $0x41] sm:$0xff] %vm5455, %v5417
  %5559 = vst.msk [vmem:[%s5549 + $0x49] sm:$0x3f] %vm5521, %v5418
  %5560 = vst.msk [vmem:[%s5549 + $0x51] sm:$0xff] %vm5455, %v5421
  %5561 = vst.msk [vmem:[%s5549 + $0x59] sm:$0x3f] %vm5521, %v5422
  %5562 = vst.msk [vmem:[%s5549 + $0x61] sm:$0xff] %vm5455, %v5425
  %5563 = vst.msk [vmem:[%s5549 + $0x69] sm:$0x3f] %vm5521, %v5426
  %5564 = vst.msk [vmem:[%s5549 + $0x81] sm:$0xff] %vm5455, %v5429
  %5565 = vst.msk [vmem:[%s5549 + $0x89] sm:$0x3f] %vm5521, %v5430
  %5566 = vst.msk [vmem:[%s5549 + $0x91] sm:$0xff] %vm5455, %v5433
  %5567 = vst.msk [vmem:[%s5549 + $0x99] sm:$0x3f] %vm5521, %v5434
  %5568 = vst.msk [vmem:[%s5549 + $0xa1] sm:$0xff] %vm5455, %v5437
  %5569 = vst.msk [vmem:[%s5549 + $0xa9] sm:$0x3f] %vm5521, %v5438
  %5570 = vst.msk [vmem:[%s5549 + $0xb1] sm:$0xff] %vm5455, %v5441
  %5571 = vst.msk [vmem:[%s5549 + $0xb9] sm:$0x3f] %vm5521, %v5442
  %5572 = vst.msk [vmem:[%s5549 + $0xc1] sm:$0xff] %vm5455, %v5445
  %5573 = vst.msk [vmem:[%s5549 + $0xc9] sm:$0x3f] %vm5521, %v5446
  %5574 = vst.msk [vmem:[%s5549 + $0xd1] sm:$0xff] %vm5455, %v5449
  %5575 = vst.msk [vmem:[%s5549 + $0xd9] sm:$0x3f] %vm5521, %v5450
  %5576 = vst.msk [vmem:[%s5549 + $0xe1] sm:$0xff] %vm5455, %v5453
  %5577 = vst.msk [vmem:[%s5549 + $0xe9] sm:$0x3f] %vm5521, %v5454
  %v5578 = vld [vmem:[#allocation4] ss:$2 sm:$0x7f]
  %s5579 = scalar_lea.vmem [#allocation4], 16
  %v5580 = vld [vmem:[%s5579] ss:$2 sm:$0x7f]
  %s5581 = scalar_lea.vmem [#allocation4], 32
  %v5582 = vld [vmem:[%s5581] ss:$2 sm:$0x7f]
  %s5583 = scalar_lea.vmem [#allocation4], 48
  %v5584 = vld [vmem:[%s5583] ss:$2 sm:$0x7f]
  %s5585 = scalar_lea.vmem [#allocation4], 64
  %v5586 = vld [vmem:[%s5585] ss:$2 sm:$0x7f]
  %s5587 = scalar_lea.vmem [#allocation4], 80
  %v5588 = vld [vmem:[%s5587] ss:$2 sm:$0x7f]
  %s5589 = scalar_lea.vmem [#allocation4], 96
  %v5590 = vld [vmem:[%s5589] ss:$2 sm:$0x7f]
  %s5591 = scalar_lea.vmem [#allocation4], 128
  %v5592 = vld [vmem:[%s5591] ss:$2 sm:$0x7f]
  %s5593 = scalar_lea.vmem [#allocation4], 144
  %v5594 = vld [vmem:[%s5593] ss:$2 sm:$0x7f]
  %s5595 = scalar_lea.vmem [#allocation4], 160
  %v5596 = vld [vmem:[%s5595] ss:$2 sm:$0x7f]
  %s5597 = scalar_lea.vmem [#allocation4], 176
  %v5598 = vld [vmem:[%s5597] ss:$2 sm:$0x7f]
  %s5599 = scalar_lea.vmem [#allocation4], 192
  %v5600 = vld [vmem:[%s5599] ss:$2 sm:$0x7f]
  %s5601 = scalar_lea.vmem [#allocation4], 208
  %v5602 = vld [vmem:[%s5601] ss:$2 sm:$0x7f]
  %s5603 = scalar_lea.vmem [#allocation4], 224
  %v5604 = vld [vmem:[%s5603] ss:$2 sm:$0x7f]
  %vm5605 = vcmask 260096
  %5606 = vst.msk [vmem:[#allocation6] sm:$0x7f] %vm5605, %v5578
  %5607 = vst.msk [vmem:[#allocation6 + $0xa8] sm:$0x7f] %vm5605, %v5592
  %v5610 = vrot.slane %v5580, 1
  %v5611 = vrot.slane %v5594, 1
  %vm5614 = vcmask 261127
  %5615 = vst.msk [vmem:[#allocation6] sm:$0x80] %vm5614, %v5610
  %5616 = vst.msk [vmem:[#allocation6 + $0x18] sm:$0x3f] %vm5521, %v5610
  %5617 = vst.msk [vmem:[#allocation6 + $0xa8] sm:$0x80] %vm5614, %v5611
  %5618 = vst.msk [vmem:[#allocation6 + $0xc0] sm:$0x3f] %vm5521, %v5611
  %v5621 = vrot.slane %v5582, 2
  %v5622 = vrot.slane %v5596, 2
  %vm5625 = vcmask 261126
  %5626 = vst.msk [vmem:[#allocation6 + $0x18] sm:$0xc0] %vm5625, %v5621
  %vm5627 = vcmask 258048
  %5628 = vst.msk [vmem:[#allocation6 + $0x30] sm:$0x1f] %vm5627, %v5621
  %5629 = vst.msk [vmem:[#allocation6 + $0xc0] sm:$0xc0] %vm5625, %v5622
  %5630 = vst.msk [vmem:[#allocation6 + $0xd8] sm:$0x1f] %vm5627, %v5622
  %v5633 = vrot.slane %v5584, 3
  %v5634 = vrot.slane %v5598, 3
  %vm5637 = vcmask 261125
  %5638 = vst.msk [vmem:[#allocation6 + $0x30] sm:$0xe0] %vm5637, %v5633
  %vm5639 = vcmask 257024
  %5640 = vst.msk [vmem:[#allocation6 + $0x48] sm:$0xf] %vm5639, %v5633
  %5641 = vst.msk [vmem:[#allocation6 + $0xd8] sm:$0xe0] %vm5637, %v5634
  %5642 = vst.msk [vmem:[#allocation6 + $0xf0] sm:$0xf] %vm5639, %v5634
  %v5645 = vrot.slane %v5586, 4
  %v5646 = vrot.slane %v5600, 4
  %vm5649 = vcmask 261124
  %5650 = vst.msk [vmem:[#allocation6 + $0x48] sm:$0xf0] %vm5649, %v5645
  %vm5651 = vcmask 256000
  %5652 = vst.msk [vmem:[#allocation6 + $0x60] sm:$0x7] %vm5651, %v5645
  %5653 = vst.msk [vmem:[#allocation6 + $0xf0] sm:$0xf0] %vm5649, %v5646
  %5654 = vst.msk [vmem:[#allocation6 + $0x108] sm:$0x7] %vm5651, %v5646
  %v5657 = vrot.slane %v5588, 5
  %v5658 = vrot.slane %v5602, 5
  %vm5661 = vcmask 261123
  %5662 = vst.msk [vmem:[#allocation6 + $0x60] sm:$0xf8] %vm5661, %v5657
  %vm5663 = vcmask 254976
  %5664 = vst.msk [vmem:[#allocation6 + $0x78] sm:$0x3] %vm5663, %v5657
  %5665 = vst.msk [vmem:[#allocation6 + $0x108] sm:$0xf8] %vm5661, %v5658
  %5666 = vst.msk [vmem:[#allocation6 + $0x120] sm:$0x3] %vm5663, %v5658
  %v5669 = vrot.slane %v5590, 6
  %v5670 = vrot.slane %v5604, 6
  %vm5673 = vcmask 261122
  %5674 = vst.msk [vmem:[#allocation6 + $0x78] sm:$0xfc] %vm5673, %v5669
  %vm5675 = vcmask 253952
  %5676 = vst.msk [vmem:[#allocation6 + $0x90] sm:$0x1] %vm5675, %v5669
  %5677 = vst.msk [vmem:[#allocation6 + $0x120] sm:$0xfc] %vm5673, %v5670
  %5678 = vst.msk [vmem:[#allocation6 + $0x138] sm:$0x1] %vm5675, %v5670
  %s5679 = scalar_lea.vmem [#allocation4], 1
  %v5680 = vld [vmem:[%s5679] ss:$2 sm:$0x7f]
  %s5681 = scalar_lea.vmem [#allocation4], 17
  %v5682 = vld [vmem:[%s5681] ss:$2 sm:$0x7f]
  %s5683 = scalar_lea.vmem [#allocation4], 33
  %v5684 = vld [vmem:[%s5683] ss:$2 sm:$0x7f]
  %s5685 = scalar_lea.vmem [#allocation4], 49
  %v5686 = vld [vmem:[%s5685] ss:$2 sm:$0x7f]
  %s5687 = scalar_lea.vmem [#allocation4], 65
  %v5688 = vld [vmem:[%s5687] ss:$2 sm:$0x7f]
  %s5689 = scalar_lea.vmem [#allocation4], 81
  %v5690 = vld [vmem:[%s5689] ss:$2 sm:$0x7f]
  %s5691 = scalar_lea.vmem [#allocation4], 97
  %v5692 = vld [vmem:[%s5691] ss:$2 sm:$0x7f]
  %s5693 = scalar_lea.vmem [#allocation4], 129
  %v5694 = vld [vmem:[%s5693] ss:$2 sm:$0x7f]
  %s5695 = scalar_lea.vmem [#allocation4], 145
  %v5696 = vld [vmem:[%s5695] ss:$2 sm:$0x7f]
  %s5697 = scalar_lea.vmem [#allocation4], 161
  %v5698 = vld [vmem:[%s5697] ss:$2 sm:$0x7f]
  %s5699 = scalar_lea.vmem [#allocation4], 177
  %v5700 = vld [vmem:[%s5699] ss:$2 sm:$0x7f]
  %s5701 = scalar_lea.vmem [#allocation4], 193
  %v5702 = vld [vmem:[%s5701] ss:$2 sm:$0x7f]
  %s5703 = scalar_lea.vmem [#allocation4], 209
  %v5704 = vld [vmem:[%s5703] ss:$2 sm:$0x7f]
  %s5705 = scalar_lea.vmem [#allocation4], 225
  %v5706 = vld [vmem:[%s5705] ss:$2 sm:$0x7f]
  %5709 = vrot.lane.b32.xlu0 %v5680, 32
  %v5710 = vpop.permute.xlu0 %5709
  %5711 = vrot.lane.b32.xlu0 %v5694, 32
  %v5712 = vpop.permute.xlu0 %5711
  %vm5715 = vcmask 522496
  %5716 = vst.msk [vmem:[#allocation6] sm:$0x7f] %vm5715, %v5710
  %5717 = vst.msk [vmem:[#allocation6 + $0xa8] sm:$0x7f] %vm5715, %v5712
  %v5720 = vrot.slane %v5682, 1
  %v5721 = vrot.slane %v5696, 1
  %5722 = vrot.lane.b32.xlu0 %v5720, 32
  %v5723 = vpop.permute.xlu0 %5722
  %5724 = vrot.lane.b32.xlu0 %v5721, 32
  %v5725 = vpop.permute.xlu0 %5724
  %vm5728 = vcmask 523527
  %5729 = vst.msk [vmem:[#allocation6] sm:$0x80] %vm5728, %v5723
  %vm5730 = vcmask 521472
  %5731 = vst.msk [vmem:[#allocation6 + $0x18] sm:$0x3f] %vm5730, %v5723
  %5732 = vst.msk [vmem:[#allocation6 + $0xa8] sm:$0x80] %vm5728, %v5725
  %5733 = vst.msk [vmem:[#allocation6 + $0xc0] sm:$0x3f] %vm5730, %v5725
  %v5736 = vrot.slane %v5684, 2
  %v5737 = vrot.slane %v5698, 2
  %5738 = vrot.lane.b32.xlu0 %v5736, 32
  %v5739 = vpop.permute.xlu0 %5738
  %5740 = vrot.lane.b32.xlu0 %v5737, 32
  %v5741 = vpop.permute.xlu0 %5740
  %vm5744 = vcmask 523526
  %5745 = vst.msk [vmem:[#allocation6 + $0x18] sm:$0xc0] %vm5744, %v5739
  %vm5746 = vcmask 520448
  %5747 = vst.msk [vmem:[#allocation6 + $0x30] sm:$0x1f] %vm5746, %v5739
  %5748 = vst.msk [vmem:[#allocation6 + $0xc0] sm:$0xc0] %vm5744, %v5741
  %5749 = vst.msk [vmem:[#allocation6 + $0xd8] sm:$0x1f] %vm5746, %v5741
  %v5752 = vrot.slane %v5686, 3
  %v5753 = vrot.slane %v5700, 3
  %5754 = vrot.lane.b32.xlu0 %v5752, 32
  %v5755 = vpop.permute.xlu0 %5754
  %5756 = vrot.lane.b32.xlu0 %v5753, 32
  %v5757 = vpop.permute.xlu0 %5756
  %vm5760 = vcmask 523525
  %5761 = vst.msk [vmem:[#allocation6 + $0x30] sm:$0xe0] %vm5760, %v5755
  %vm5762 = vcmask 519424
  %5763 = vst.msk [vmem:[#allocation6 + $0x48] sm:$0xf] %vm5762, %v5755
  %5764 = vst.msk [vmem:[#allocation6 + $0xd8] sm:$0xe0] %vm5760, %v5757
  %5765 = vst.msk [vmem:[#allocation6 + $0xf0] sm:$0xf] %vm5762, %v5757
  %v5768 = vrot.slane %v5688, 4
  %v5769 = vrot.slane %v5702, 4
  %5770 = vrot.lane.b32.xlu0 %v5768, 32
  %v5771 = vpop.permute.xlu0 %5770
  %5772 = vrot.lane.b32.xlu0 %v5769, 32
  %v5773 = vpop.permute.xlu0 %5772
  %vm5776 = vcmask 523524
  %5777 = vst.msk [vmem:[#allocation6 + $0x48] sm:$0xf0] %vm5776, %v5771
  %vm5778 = vcmask 518400
  %5779 = vst.msk [vmem:[#allocation6 + $0x60] sm:$0x7] %vm5778, %v5771
  %5780 = vst.msk [vmem:[#allocation6 + $0xf0] sm:$0xf0] %vm5776, %v5773
  %5781 = vst.msk [vmem:[#allocation6 + $0x108] sm:$0x7] %vm5778, %v5773
  %v5784 = vrot.slane %v5690, 5
  %v5785 = vrot.slane %v5704, 5
  %5786 = vrot.lane.b32.xlu0 %v5784, 32
  %v5787 = vpop.permute.xlu0 %5786
  %5788 = vrot.lane.b32.xlu0 %v5785, 32
  %v5789 = vpop.permute.xlu0 %5788
  %vm5792 = vcmask 523523
  %5793 = vst.msk [vmem:[#allocation6 + $0x60] sm:$0xf8] %vm5792, %v5787
  %vm5794 = vcmask 517376
  %5795 = vst.msk [vmem:[#allocation6 + $0x78] sm:$0x3] %vm5794, %v5787
  %5796 = vst.msk [vmem:[#allocation6 + $0x108] sm:$0xf8] %vm5792, %v5789
  %5797 = vst.msk [vmem:[#allocation6 + $0x120] sm:$0x3] %vm5794, %v5789
  %v5800 = vrot.slane %v5692, 6
  %v5801 = vrot.slane %v5706, 6
  %5802 = vrot.lane.b32.xlu0 %v5800, 32
  %v5803 = vpop.permute.xlu0 %5802
  %5804 = vrot.lane.b32.xlu0 %v5801, 32
  %v5805 = vpop.permute.xlu0 %5804
  %vm5808 = vcmask 523522
  %5809 = vst.msk [vmem:[#allocation6 + $0x78] sm:$0xfc] %vm5808, %v5803
  %vm5810 = vcmask 516352
  %5811 = vst.msk [vmem:[#allocation6 + $0x90] sm:$0x1] %vm5810, %v5803
  %5812 = vst.msk [vmem:[#allocation6 + $0x120] sm:$0xfc] %vm5808, %v5805
  %5813 = vst.msk [vmem:[#allocation6 + $0x138] sm:$0x1] %vm5810, %v5805
  %s5814 = scalar_lea.vmem [#allocation4], 2
  %v5815 = vld [vmem:[%s5814] ss:$2 sm:$0x7f]
  %s5816 = scalar_lea.vmem [#allocation4], 18
  %v5817 = vld [vmem:[%s5816] ss:$2 sm:$0x7f]
  %s5818 = scalar_lea.vmem [#allocation4], 34
  %v5819 = vld [vmem:[%s5818] ss:$2 sm:$0x7f]
  %s5820 = scalar_lea.vmem [#allocation4], 50
  %v5821 = vld [vmem:[%s5820] ss:$2 sm:$0x7f]
  %s5822 = scalar_lea.vmem [#allocation4], 66
  %v5823 = vld [vmem:[%s5822] ss:$2 sm:$0x7f]
  %s5824 = scalar_lea.vmem [#allocation4], 82
  %v5825 = vld [vmem:[%s5824] ss:$2 sm:$0x7f]
  %s5826 = scalar_lea.vmem [#allocation4], 98
  %v5827 = vld [vmem:[%s5826] ss:$2 sm:$0x7f]
  %s5828 = scalar_lea.vmem [#allocation4], 130
  %v5829 = vld [vmem:[%s5828] ss:$2 sm:$0x7f]
  %s5830 = scalar_lea.vmem [#allocation4], 146
  %v5831 = vld [vmem:[%s5830] ss:$2 sm:$0x7f]
  %s5832 = scalar_lea.vmem [#allocation4], 162
  %v5833 = vld [vmem:[%s5832] ss:$2 sm:$0x7f]
  %s5834 = scalar_lea.vmem [#allocation4], 178
  %v5835 = vld [vmem:[%s5834] ss:$2 sm:$0x7f]
  %s5836 = scalar_lea.vmem [#allocation4], 194
  %v5837 = vld [vmem:[%s5836] ss:$2 sm:$0x7f]
  %s5838 = scalar_lea.vmem [#allocation4], 210
  %v5839 = vld [vmem:[%s5838] ss:$2 sm:$0x7f]
  %s5840 = scalar_lea.vmem [#allocation4], 226
  %v5841 = vld [vmem:[%s5840] ss:$2 sm:$0x7f]
  %5844 = vrot.lane.b32.xlu0 %v5815, 64
  %v5845 = vpop.permute.xlu0 %5844
  %5846 = vrot.lane.b32.xlu0 %v5829, 64
  %v5847 = vpop.permute.xlu0 %5846
  %vm5850 = vcmask 784896
  %5851 = vst.msk [vmem:[#allocation6] sm:$0x7f] %vm5850, %v5845
  %5852 = vst.msk [vmem:[#allocation6 + $0xa8] sm:$0x7f] %vm5850, %v5847
  %v5855 = vrot.slane %v5817, 1
  %v5856 = vrot.slane %v5831, 1
  %5857 = vrot.lane.b32.xlu0 %v5855, 64
  %v5858 = vpop.permute.xlu0 %5857
  %5859 = vrot.lane.b32.xlu0 %v5856, 64
  %v5860 = vpop.permute.xlu0 %5859
  %vm5863 = vcmask 785927
  %5864 = vst.msk [vmem:[#allocation6] sm:$0x80] %vm5863, %v5858
  %vm5865 = vcmask 783872
  %5866 = vst.msk [vmem:[#allocation6 + $0x18] sm:$0x3f] %vm5865, %v5858
  %5867 = vst.msk [vmem:[#allocation6 + $0xa8] sm:$0x80] %vm5863, %v5860
  %5868 = vst.msk [vmem:[#allocation6 + $0xc0] sm:$0x3f] %vm5865, %v5860
  %v5871 = vrot.slane %v5819, 2
  %v5872 = vrot.slane %v5833, 2
  %5873 = vrot.lane.b32.xlu0 %v5871, 64
  %v5874 = vpop.permute.xlu0 %5873
  %5875 = vrot.lane.b32.xlu0 %v5872, 64
  %v5876 = vpop.permute.xlu0 %5875
  %vm5879 = vcmask 785926
  %5880 = vst.msk [vmem:[#allocation6 + $0x18] sm:$0xc0] %vm5879, %v5874
  %vm5881 = vcmask 782848
  %5882 = vst.msk [vmem:[#allocation6 + $0x30] sm:$0x1f] %vm5881, %v5874
  %5883 = vst.msk [vmem:[#allocation6 + $0xc0] sm:$0xc0] %vm5879, %v5876
  %5884 = vst.msk [vmem:[#allocation6 + $0xd8] sm:$0x1f] %vm5881, %v5876
  %v5887 = vrot.slane %v5821, 3
  %v5888 = vrot.slane %v5835, 3
  %5889 = vrot.lane.b32.xlu0 %v5887, 64
  %v5890 = vpop.permute.xlu0 %5889
  %5891 = vrot.lane.b32.xlu0 %v5888, 64
  %v5892 = vpop.permute.xlu0 %5891
  %vm5895 = vcmask 785925
  %5896 = vst.msk [vmem:[#allocation6 + $0x30] sm:$0xe0] %vm5895, %v5890
  %vm5897 = vcmask 781824
  %5898 = vst.msk [vmem:[#allocation6 + $0x48] sm:$0xf] %vm5897, %v5890
  %5899 = vst.msk [vmem:[#allocation6 + $0xd8] sm:$0xe0] %vm5895, %v5892
  %5900 = vst.msk [vmem:[#allocation6 + $0xf0] sm:$0xf] %vm5897, %v5892
  %v5903 = vrot.slane %v5823, 4
  %v5904 = vrot.slane %v5837, 4
  %5905 = vrot.lane.b32.xlu0 %v5903, 64
  %v5906 = vpop.permute.xlu0 %5905
  %5907 = vrot.lane.b32.xlu0 %v5904, 64
  %v5908 = vpop.permute.xlu0 %5907
  %vm5911 = vcmask 785924
  %5912 = vst.msk [vmem:[#allocation6 + $0x48] sm:$0xf0] %vm5911, %v5906
  %vm5913 = vcmask 780800
  %5914 = vst.msk [vmem:[#allocation6 + $0x60] sm:$0x7] %vm5913, %v5906
  %5915 = vst.msk [vmem:[#allocation6 + $0xf0] sm:$0xf0] %vm5911, %v5908
  %5916 = vst.msk [vmem:[#allocation6 + $0x108] sm:$0x7] %vm5913, %v5908
  %v5919 = vrot.slane %v5825, 5
  %v5920 = vrot.slane %v5839, 5
  %5921 = vrot.lane.b32.xlu0 %v5919, 64
  %v5922 = vpop.permute.xlu0 %5921
  %5923 = vrot.lane.b32.xlu0 %v5920, 64
  %v5924 = vpop.permute.xlu0 %5923
  %vm5927 = vcmask 785923
  %5928 = vst.msk [vmem:[#allocation6 + $0x60] sm:$0xf8] %vm5927, %v5922
  %vm5929 = vcmask 779776
  %5930 = vst.msk [vmem:[#allocation6 + $0x78] sm:$0x3] %vm5929, %v5922
  %5931 = vst.msk [vmem:[#allocation6 + $0x108] sm:$0xf8] %vm5927, %v5924
  %5932 = vst.msk [vmem:[#allocation6 + $0x120] sm:$0x3] %vm5929, %v5924
  %v5935 = vrot.slane %v5827, 6
  %v5936 = vrot.slane %v5841, 6
  %5937 = vrot.lane.b32.xlu0 %v5935, 64
  %v5938 = vpop.permute.xlu0 %5937
  %5939 = vrot.lane.b32.xlu0 %v5936, 64
  %v5940 = vpop.permute.xlu0 %5939
  %vm5943 = vcmask 785922
  %5944 = vst.msk [vmem:[#allocation6 + $0x78] sm:$0xfc] %vm5943, %v5938
  %vm5945 = vcmask 778752
  %5946 = vst.msk [vmem:[#allocation6 + $0x90] sm:$0x1] %vm5945, %v5938
  %5947 = vst.msk [vmem:[#allocation6 + $0x120] sm:$0xfc] %vm5943, %v5940
  %5948 = vst.msk [vmem:[#allocation6 + $0x138] sm:$0x1] %vm5945, %v5940
  %v5949 = vld [vmem:[#allocation5] ss:$2 sm:$0x7f]
  %s5950 = scalar_lea.vmem [#allocation5], 16
  %v5951 = vld [vmem:[%s5950] ss:$2 sm:$0x7f]
  %s5952 = scalar_lea.vmem [#allocation5], 32
  %v5953 = vld [vmem:[%s5952] ss:$2 sm:$0x7f]
  %s5954 = scalar_lea.vmem [#allocation5], 48
  %v5955 = vld [vmem:[%s5954] ss:$2 sm:$0x7f]
  %s5956 = scalar_lea.vmem [#allocation5], 64
  %v5957 = vld [vmem:[%s5956] ss:$2 sm:$0x7f]
  %s5958 = scalar_lea.vmem [#allocation5], 80
  %v5959 = vld [vmem:[%s5958] ss:$2 sm:$0x7f]
  %s5960 = scalar_lea.vmem [#allocation5], 96
  %v5961 = vld [vmem:[%s5960] ss:$2 sm:$0x7f]
  %s5962 = scalar_lea.vmem [#allocation5], 128
  %v5963 = vld [vmem:[%s5962] ss:$2 sm:$0x7f]
  %s5964 = scalar_lea.vmem [#allocation5], 144
  %v5965 = vld [vmem:[%s5964] ss:$2 sm:$0x7f]
  %s5966 = scalar_lea.vmem [#allocation5], 160
  %v5967 = vld [vmem:[%s5966] ss:$2 sm:$0x7f]
  %s5968 = scalar_lea.vmem [#allocation5], 176
  %v5969 = vld [vmem:[%s5968] ss:$2 sm:$0x7f]
  %s5970 = scalar_lea.vmem [#allocation5], 192
  %v5971 = vld [vmem:[%s5970] ss:$2 sm:$0x7f]
  %s5972 = scalar_lea.vmem [#allocation5], 208
  %v5973 = vld [vmem:[%s5972] ss:$2 sm:$0x7f]
  %s5974 = scalar_lea.vmem [#allocation5], 224
  %v5975 = vld [vmem:[%s5974] ss:$2 sm:$0x7f]
  %5978 = vrot.lane.b32.xlu0 %v5949, 96
  %v5979 = vpop.permute.xlu0 %5978
  %5980 = vrot.lane.b32.xlu0 %v5963, 96
  %v5981 = vpop.permute.xlu0 %5980
  %vm5984 = vcmask 1047296
  %5985 = vst.msk [vmem:[#allocation6] sm:$0x7f] %vm5984, %v5979
  %5986 = vst.msk [vmem:[#allocation6 + $0xa8] sm:$0x7f] %vm5984, %v5981
  %v5989 = vrot.slane %v5951, 1
  %v5990 = vrot.slane %v5965, 1
  %5991 = vrot.lane.b32.xlu0 %v5989, 96
  %v5992 = vpop.permute.xlu0 %5991
  %5993 = vrot.lane.b32.xlu0 %v5990, 96
  %v5994 = vpop.permute.xlu0 %5993
  %vm5997 = vcmask 1048327
  %5998 = vst.msk [vmem:[#allocation6] sm:$0x80] %vm5997, %v5992
  %vm5999 = vcmask 1046272
  %6000 = vst.msk [vmem:[#allocation6 + $0x18] sm:$0x3f] %vm5999, %v5992
  %6001 = vst.msk [vmem:[#allocation6 + $0xa8] sm:$0x80] %vm5997, %v5994
  %6002 = vst.msk [vmem:[#allocation6 + $0xc0] sm:$0x3f] %vm5999, %v5994
  %v6005 = vrot.slane %v5953, 2
  %v6006 = vrot.slane %v5967, 2
  %6007 = vrot.lane.b32.xlu0 %v6005, 96
  %v6008 = vpop.permute.xlu0 %6007
  %6009 = vrot.lane.b32.xlu0 %v6006, 96
  %v6010 = vpop.permute.xlu0 %6009
  %vm6013 = vcmask 1048326
  %6014 = vst.msk [vmem:[#allocation6 + $0x18] sm:$0xc0] %vm6013, %v6008
  %vm6015 = vcmask 1045248
  %6016 = vst.msk [vmem:[#allocation6 + $0x30] sm:$0x1f] %vm6015, %v6008
  %6017 = vst.msk [vmem:[#allocation6 + $0xc0] sm:$0xc0] %vm6013, %v6010
  %6018 = vst.msk [vmem:[#allocation6 + $0xd8] sm:$0x1f] %vm6015, %v6010
  %v6021 = vrot.slane %v5955, 3
  %v6022 = vrot.slane %v5969, 3
  %6023 = vrot.lane.b32.xlu0 %v6021, 96
  %v6024 = vpop.permute.xlu0 %6023
  %6025 = vrot.lane.b32.xlu0 %v6022, 96
  %v6026 = vpop.permute.xlu0 %6025
  %vm6029 = vcmask 1048325
  %6030 = vst.msk [vmem:[#allocation6 + $0x30] sm:$0xe0] %vm6029, %v6024
  %vm6031 = vcmask 1044224
  %6032 = vst.msk [vmem:[#allocation6 + $0x48] sm:$0xf] %vm6031, %v6024
  %6033 = vst.msk [vmem:[#allocation6 + $0xd8] sm:$0xe0] %vm6029, %v6026
  %6034 = vst.msk [vmem:[#allocation6 + $0xf0] sm:$0xf] %vm6031, %v6026
  %v6037 = vrot.slane %v5957, 4
  %v6038 = vrot.slane %v5971, 4
  %6039 = vrot.lane.b32.xlu0 %v6037, 96
  %v6040 = vpop.permute.xlu0 %6039
  %6041 = vrot.lane.b32.xlu0 %v6038, 96
  %v6042 = vpop.permute.xlu0 %6041
  %vm6045 = vcmask 1048324
  %6046 = vst.msk [vmem:[#allocation6 + $0x48] sm:$0xf0] %vm6045, %v6040
  %vm6047 = vcmask 1043200
  %6048 = vst.msk [vmem:[#allocation6 + $0x60] sm:$0x7] %vm6047, %v6040
  %6049 = vst.msk [vmem:[#allocation6 + $0xf0] sm:$0xf0] %vm6045, %v6042
  %6050 = vst.msk [vmem:[#allocation6 + $0x108] sm:$0x7] %vm6047, %v6042
  %v6053 = vrot.slane %v5959, 5
  %v6054 = vrot.slane %v5973, 5
  %6055 = vrot.lane.b32.xlu0 %v6053, 96
  %v6056 = vpop.permute.xlu0 %6055
  %6057 = vrot.lane.b32.xlu0 %v6054, 96
  %v6058 = vpop.permute.xlu0 %6057
  %vm6061 = vcmask 1048323
  %6062 = vst.msk [vmem:[#allocation6 + $0x60] sm:$0xf8] %vm6061, %v6056
  %vm6063 = vcmask 1042176
  %6064 = vst.msk [vmem:[#allocation6 + $0x78] sm:$0x3] %vm6063, %v6056
  %6065 = vst.msk [vmem:[#allocation6 + $0x108] sm:$0xf8] %vm6061, %v6058
  %6066 = vst.msk [vmem:[#allocation6 + $0x120] sm:$0x3] %vm6063, %v6058
  %v6069 = vrot.slane %v5961, 6
  %v6070 = vrot.slane %v5975, 6
  %6071 = vrot.lane.b32.xlu0 %v6069, 96
  %v6072 = vpop.permute.xlu0 %6071
  %6073 = vrot.lane.b32.xlu0 %v6070, 96
  %v6074 = vpop.permute.xlu0 %6073
  %vm6077 = vcmask 1048322
  %6078 = vst.msk [vmem:[#allocation6 + $0x78] sm:$0xfc] %vm6077, %v6072
  %vm6079 = vcmask 1041152
  %6080 = vst.msk [vmem:[#allocation6 + $0x90] sm:$0x1] %vm6079, %v6072
  %6081 = vst.msk [vmem:[#allocation6 + $0x120] sm:$0xfc] %vm6077, %v6074
  %6082 = vst.msk [vmem:[#allocation6 + $0x138] sm:$0x1] %vm6079, %v6074
  %s6083 = scalar_lea.vmem [#allocation5], 1
  %v6084 = vld [vmem:[%s6083] ss:$2 sm:$0x7f]
  %s6085 = scalar_lea.vmem [#allocation5], 17
  %v6086 = vld [vmem:[%s6085] ss:$2 sm:$0x7f]
  %s6087 = scalar_lea.vmem [#allocation5], 33
  %v6088 = vld [vmem:[%s6087] ss:$2 sm:$0x7f]
  %s6089 = scalar_lea.vmem [#allocation5], 49
  %v6090 = vld [vmem:[%s6089] ss:$2 sm:$0x7f]
  %s6091 = scalar_lea.vmem [#allocation5], 65
  %v6092 = vld [vmem:[%s6091] ss:$2 sm:$0x7f]
  %s6093 = scalar_lea.vmem [#allocation5], 81
  %v6094 = vld [vmem:[%s6093] ss:$2 sm:$0x7f]
  %s6095 = scalar_lea.vmem [#allocation5], 97
  %v6096 = vld [vmem:[%s6095] ss:$2 sm:$0x7f]
  %s6097 = scalar_lea.vmem [#allocation5], 129
  %v6098 = vld [vmem:[%s6097] ss:$2 sm:$0x7f]
  %s6099 = scalar_lea.vmem [#allocation5], 145
  %v6100 = vld [vmem:[%s6099] ss:$2 sm:$0x7f]
  %s6101 = scalar_lea.vmem [#allocation5], 161
  %v6102 = vld [vmem:[%s6101] ss:$2 sm:$0x7f]
  %s6103 = scalar_lea.vmem [#allocation5], 177
  %v6104 = vld [vmem:[%s6103] ss:$2 sm:$0x7f]
  %s6105 = scalar_lea.vmem [#allocation5], 193
  %v6106 = vld [vmem:[%s6105] ss:$2 sm:$0x7f]
  %s6107 = scalar_lea.vmem [#allocation5], 209
  %v6108 = vld [vmem:[%s6107] ss:$2 sm:$0x7f]
  %s6109 = scalar_lea.vmem [#allocation5], 225
  %v6110 = vld [vmem:[%s6109] ss:$2 sm:$0x7f]
  %6111 = vst.msk [vmem:[#allocation6 + $0x8] sm:$0x7f] %vm5605, %v6084
  %6112 = vst.msk [vmem:[#allocation6 + $0xb0] sm:$0x7f] %vm5605, %v6098
  %v6115 = vrot.slane %v6086, 1
  %v6116 = vrot.slane %v6100, 1
  %6119 = vst.msk [vmem:[#allocation6 + $0x8] sm:$0x80] %vm5614, %v6115
  %6120 = vst.msk [vmem:[#allocation6 + $0x20] sm:$0x3f] %vm5521, %v6115
  %6121 = vst.msk [vmem:[#allocation6 + $0xb0] sm:$0x80] %vm5614, %v6116
  %6122 = vst.msk [vmem:[#allocation6 + $0xc8] sm:$0x3f] %vm5521, %v6116
  %v6125 = vrot.slane %v6088, 2
  %v6126 = vrot.slane %v6102, 2
  %6129 = vst.msk [vmem:[#allocation6 + $0x20] sm:$0xc0] %vm5625, %v6125
  %6130 = vst.msk [vmem:[#allocation6 + $0x38] sm:$0x1f] %vm5627, %v6125
  %6131 = vst.msk [vmem:[#allocation6 + $0xc8] sm:$0xc0] %vm5625, %v6126
  %6132 = vst.msk [vmem:[#allocation6 + $0xe0] sm:$0x1f] %vm5627, %v6126
  %v6135 = vrot.slane %v6090, 3
  %v6136 = vrot.slane %v6104, 3
  %6139 = vst.msk [vmem:[#allocation6 + $0x38] sm:$0xe0] %vm5637, %v6135
  %6140 = vst.msk [vmem:[#allocation6 + $0x50] sm:$0xf] %vm5639, %v6135
  %6141 = vst.msk [vmem:[#allocation6 + $0xe0] sm:$0xe0] %vm5637, %v6136
  %6142 = vst.msk [vmem:[#allocation6 + $0xf8] sm:$0xf] %vm5639, %v6136
  %v6145 = vrot.slane %v6092, 4
  %v6146 = vrot.slane %v6106, 4
  %6149 = vst.msk [vmem:[#allocation6 + $0x50] sm:$0xf0] %vm5649, %v6145
  %6150 = vst.msk [vmem:[#allocation6 + $0x68] sm:$0x7] %vm5651, %v6145
  %6151 = vst.msk [vmem:[#allocation6 + $0xf8] sm:$0xf0] %vm5649, %v6146
  %6152 = vst.msk [vmem:[#allocation6 + $0x110] sm:$0x7] %vm5651, %v6146
  %v6155 = vrot.slane %v6094, 5
  %v6156 = vrot.slane %v6108, 5
  %6159 = vst.msk [vmem:[#allocation6 + $0x68] sm:$0xf8] %vm5661, %v6155
  %6160 = vst.msk [vmem:[#allocation6 + $0x80] sm:$0x3] %vm5663, %v6155
  %6161 = vst.msk [vmem:[#allocation6 + $0x110] sm:$0xf8] %vm5661, %v6156
  %6162 = vst.msk [vmem:[#allocation6 + $0x128] sm:$0x3] %vm5663, %v6156
  %v6165 = vrot.slane %v6096, 6
  %v6166 = vrot.slane %v6110, 6
  %6169 = vst.msk [vmem:[#allocation6 + $0x80] sm:$0xfc] %vm5673, %v6165
  %6170 = vst.msk [vmem:[#allocation6 + $0x98] sm:$0x1] %vm5675, %v6165
  %6171 = vst.msk [vmem:[#allocation6 + $0x128] sm:$0xfc] %vm5673, %v6166
  %6172 = vst.msk [vmem:[#allocation6 + $0x140] sm:$0x1] %vm5675, %v6166
  %s6173 = scalar_lea.vmem [#allocation5], 2
  %v6174 = vld [vmem:[%s6173] ss:$2 sm:$0x7f]
  %s6175 = scalar_lea.vmem [#allocation5], 18
  %v6176 = vld [vmem:[%s6175] ss:$2 sm:$0x7f]
  %s6177 = scalar_lea.vmem [#allocation5], 34
  %v6178 = vld [vmem:[%s6177] ss:$2 sm:$0x7f]
  %s6179 = scalar_lea.vmem [#allocation5], 50
  %v6180 = vld [vmem:[%s6179] ss:$2 sm:$0x7f]
  %s6181 = scalar_lea.vmem [#allocation5], 66
  %v6182 = vld [vmem:[%s6181] ss:$2 sm:$0x7f]
  %s6183 = scalar_lea.vmem [#allocation5], 82
  %v6184 = vld [vmem:[%s6183] ss:$2 sm:$0x7f]
  %s6185 = scalar_lea.vmem [#allocation5], 98
  %v6186 = vld [vmem:[%s6185] ss:$2 sm:$0x7f]
  %s6187 = scalar_lea.vmem [#allocation5], 130
  %v6188 = vld [vmem:[%s6187] ss:$2 sm:$0x7f]
  %s6189 = scalar_lea.vmem [#allocation5], 146
  %v6190 = vld [vmem:[%s6189] ss:$2 sm:$0x7f]
  %s6191 = scalar_lea.vmem [#allocation5], 162
  %v6192 = vld [vmem:[%s6191] ss:$2 sm:$0x7f]
  %s6193 = scalar_lea.vmem [#allocation5], 178
  %v6194 = vld [vmem:[%s6193] ss:$2 sm:$0x7f]
  %s6195 = scalar_lea.vmem [#allocation5], 194
  %v6196 = vld [vmem:[%s6195] ss:$2 sm:$0x7f]
  %s6197 = scalar_lea.vmem [#allocation5], 210
  %v6198 = vld [vmem:[%s6197] ss:$2 sm:$0x7f]
  %s6199 = scalar_lea.vmem [#allocation5], 226
  %v6200 = vld [vmem:[%s6199] ss:$2 sm:$0x7f]
  %6203 = vrot.lane.b32.xlu0 %v6174, 32
  %v6204 = vpop.permute.xlu0 %6203
  %6205 = vrot.lane.b32.xlu0 %v6188, 32
  %v6206 = vpop.permute.xlu0 %6205
  %6209 = vst.msk [vmem:[#allocation6 + $0x8] sm:$0x7f] %vm5715, %v6204
  %6210 = vst.msk [vmem:[#allocation6 + $0xb0] sm:$0x7f] %vm5715, %v6206
  %v6213 = vrot.slane %v6176, 1
  %v6214 = vrot.slane %v6190, 1
  %6215 = vrot.lane.b32.xlu0 %v6213, 32
  %v6216 = vpop.permute.xlu0 %6215
  %6217 = vrot.lane.b32.xlu0 %v6214, 32
  %v6218 = vpop.permute.xlu0 %6217
  %6221 = vst.msk [vmem:[#allocation6 + $0x8] sm:$0x80] %vm5728, %v6216
  %6222 = vst.msk [vmem:[#allocation6 + $0x20] sm:$0x3f] %vm5730, %v6216
  %6223 = vst.msk [vmem:[#allocation6 + $0xb0] sm:$0x80] %vm5728, %v6218
  %6224 = vst.msk [vmem:[#allocation6 + $0xc8] sm:$0x3f] %vm5730, %v6218
  %v6227 = vrot.slane %v6178, 2
  %v6228 = vrot.slane %v6192, 2
  %6229 = vrot.lane.b32.xlu0 %v6227, 32
  %v6230 = vpop.permute.xlu0 %6229
  %6231 = vrot.lane.b32.xlu0 %v6228, 32
  %v6232 = vpop.permute.xlu0 %6231
  %6235 = vst.msk [vmem:[#allocation6 + $0x20] sm:$0xc0] %vm5744, %v6230
  %6236 = vst.msk [vmem:[#allocation6 + $0x38] sm:$0x1f] %vm5746, %v6230
  %6237 = vst.msk [vmem:[#allocation6 + $0xc8] sm:$0xc0] %vm5744, %v6232
  %6238 = vst.msk [vmem:[#allocation6 + $0xe0] sm:$0x1f] %vm5746, %v6232
  %v6241 = vrot.slane %v6180, 3
  %v6242 = vrot.slane %v6194, 3
  %6243 = vrot.lane.b32.xlu0 %v6241, 32
  %v6244 = vpop.permute.xlu0 %6243
  %6245 = vrot.lane.b32.xlu0 %v6242, 32
  %v6246 = vpop.permute.xlu0 %6245
  %6249 = vst.msk [vmem:[#allocation6 + $0x38] sm:$0xe0] %vm5760, %v6244
  %6250 = vst.msk [vmem:[#allocation6 + $0x50] sm:$0xf] %vm5762, %v6244
  %6251 = vst.msk [vmem:[#allocation6 + $0xe0] sm:$0xe0] %vm5760, %v6246
  %6252 = vst.msk [vmem:[#allocation6 + $0xf8] sm:$0xf] %vm5762, %v6246
  %v6255 = vrot.slane %v6182, 4
  %v6256 = vrot.slane %v6196, 4
  %6257 = vrot.lane.b32.xlu0 %v6255, 32
  %v6258 = vpop.permute.xlu0 %6257
  %6259 = vrot.lane.b32.xlu0 %v6256, 32
  %v6260 = vpop.permute.xlu0 %6259
  %6263 = vst.msk [vmem:[#allocation6 + $0x50] sm:$0xf0] %vm5776, %v6258
  %6264 = vst.msk [vmem:[#allocation6 + $0x68] sm:$0x7] %vm5778, %v6258
  %6265 = vst.msk [vmem:[#allocation6 + $0xf8] sm:$0xf0] %vm5776, %v6260
  %6266 = vst.msk [vmem:[#allocation6 + $0x110] sm:$0x7] %vm5778, %v6260
  %v6269 = vrot.slane %v6184, 5
  %v6270 = vrot.slane %v6198, 5
  %6271 = vrot.lane.b32.xlu0 %v6269, 32
  %v6272 = vpop.permute.xlu0 %6271
  %6273 = vrot.lane.b32.xlu0 %v6270, 32
  %v6274 = vpop.permute.xlu0 %6273
  %6277 = vst.msk [vmem:[#allocation6 + $0x68] sm:$0xf8] %vm5792, %v6272
  %6278 = vst.msk [vmem:[#allocation6 + $0x80] sm:$0x3] %vm5794, %v6272
  %6279 = vst.msk [vmem:[#allocation6 + $0x110] sm:$0xf8] %vm5792, %v6274
  %6280 = vst.msk [vmem:[#allocation6 + $0x128] sm:$0x3] %vm5794, %v6274
  %v6283 = vrot.slane %v6186, 6
  %v6284 = vrot.slane %v6200, 6
  %6285 = vrot.lane.b32.xlu0 %v6283, 32
  %v6286 = vpop.permute.xlu0 %6285
  %6287 = vrot.lane.b32.xlu0 %v6284, 32
  %v6288 = vpop.permute.xlu0 %6287
  %6291 = vst.msk [vmem:[#allocation6 + $0x80] sm:$0xfc] %vm5808, %v6286
  %6292 = vst.msk [vmem:[#allocation6 + $0x98] sm:$0x1] %vm5810, %v6286
  %6293 = vst.msk [vmem:[#allocation6 + $0x128] sm:$0xfc] %vm5808, %v6288
  %6294 = vst.msk [vmem:[#allocation6 + $0x140] sm:$0x1] %vm5810, %v6288
  %v6295 = vld [vmem:[%s5549] ss:$2 sm:$0x7f]
  %s6296 = scalar_lea.vmem %s5549, 16 [#allocation4]
  %v6297 = vld [vmem:[%s6296] ss:$2 sm:$0x7f]
  %s6298 = scalar_lea.vmem %s5549, 32 [#allocation4]
  %v6299 = vld [vmem:[%s6298] ss:$2 sm:$0x7f]
  %s6300 = scalar_lea.vmem %s5549, 48 [#allocation4]
  %v6301 = vld [vmem:[%s6300] ss:$2 sm:$0x7f]
  %s6302 = scalar_lea.vmem %s5549, 64 [#allocation4]
  %v6303 = vld [vmem:[%s6302] ss:$2 sm:$0x7f]
  %s6304 = scalar_lea.vmem %s5549, 80 [#allocation4]
  %v6305 = vld [vmem:[%s6304] ss:$2 sm:$0x7f]
  %s6306 = scalar_lea.vmem %s5549, 96 [#allocation4]
  %v6307 = vld [vmem:[%s6306] ss:$2 sm:$0x7f]
  %s6308 = scalar_lea.vmem %s5549, 128 [#allocation4]
  %v6309 = vld [vmem:[%s6308] ss:$2 sm:$0x7f]
  %s6310 = scalar_lea.vmem %s5549, 144 [#allocation4]
  %v6311 = vld [vmem:[%s6310] ss:$2 sm:$0x7f]
  %s6312 = scalar_lea.vmem %s5549, 160 [#allocation4]
  %v6313 = vld [vmem:[%s6312] ss:$2 sm:$0x7f]
  %s6314 = scalar_lea.vmem %s5549, 176 [#allocation4]
  %v6315 = vld [vmem:[%s6314] ss:$2 sm:$0x7f]
  %s6316 = scalar_lea.vmem %s5549, 192 [#allocation4]
  %v6317 = vld [vmem:[%s6316] ss:$2 sm:$0x7f]
  %s6318 = scalar_lea.vmem %s5549, 208 [#allocation4]
  %v6319 = vld [vmem:[%s6318] ss:$2 sm:$0x7f]
  %s6320 = scalar_lea.vmem %s5549, 224 [#allocation4]
  %v6321 = vld [vmem:[%s6320] ss:$2 sm:$0x7f]
  %6324 = vrot.lane.b32.xlu0 %v6295, 64
  %v6325 = vpop.permute.xlu0 %6324
  %6326 = vrot.lane.b32.xlu0 %v6309, 64
  %v6327 = vpop.permute.xlu0 %6326
  %6330 = vst.msk [vmem:[#allocation6 + $0x8] sm:$0x7f] %vm5850, %v6325
  %6331 = vst.msk [vmem:[#allocation6 + $0xb0] sm:$0x7f] %vm5850, %v6327
  %v6334 = vrot.slane %v6297, 1
  %v6335 = vrot.slane %v6311, 1
  %6336 = vrot.lane.b32.xlu0 %v6334, 64
  %v6337 = vpop.permute.xlu0 %6336
  %6338 = vrot.lane.b32.xlu0 %v6335, 64
  %v6339 = vpop.permute.xlu0 %6338
  %6342 = vst.msk [vmem:[#allocation6 + $0x8] sm:$0x80] %vm5863, %v6337
  %6343 = vst.msk [vmem:[#allocation6 + $0x20] sm:$0x3f] %vm5865, %v6337
  %6344 = vst.msk [vmem:[#allocation6 + $0xb0] sm:$0x80] %vm5863, %v6339
  %6345 = vst.msk [vmem:[#allocation6 + $0xc8] sm:$0x3f] %vm5865, %v6339
  %v6348 = vrot.slane %v6299, 2
  %v6349 = vrot.slane %v6313, 2
  %6350 = vrot.lane.b32.xlu0 %v6348, 64
  %v6351 = vpop.permute.xlu0 %6350
  %6352 = vrot.lane.b32.xlu0 %v6349, 64
  %v6353 = vpop.permute.xlu0 %6352
  %6356 = vst.msk [vmem:[#allocation6 + $0x20] sm:$0xc0] %vm5879, %v6351
  %6357 = vst.msk [vmem:[#allocation6 + $0x38] sm:$0x1f] %vm5881, %v6351
  %6358 = vst.msk [vmem:[#allocation6 + $0xc8] sm:$0xc0] %vm5879, %v6353
  %6359 = vst.msk [vmem:[#allocation6 + $0xe0] sm:$0x1f] %vm5881, %v6353
  %v6362 = vrot.slane %v6301, 3
  %v6363 = vrot.slane %v6315, 3
  %6364 = vrot.lane.b32.xlu0 %v6362, 64
  %v6365 = vpop.permute.xlu0 %6364
  %6366 = vrot.lane.b32.xlu0 %v6363, 64
  %v6367 = vpop.permute.xlu0 %6366
  %6370 = vst.msk [vmem:[#allocation6 + $0x38] sm:$0xe0] %vm5895, %v6365
  %6371 = vst.msk [vmem:[#allocation6 + $0x50] sm:$0xf] %vm5897, %v6365
  %6372 = vst.msk [vmem:[#allocation6 + $0xe0] sm:$0xe0] %vm5895, %v6367
  %6373 = vst.msk [vmem:[#allocation6 + $0xf8] sm:$0xf] %vm5897, %v6367
  %v6376 = vrot.slane %v6303, 4
  %v6377 = vrot.slane %v6317, 4
  %6378 = vrot.lane.b32.xlu0 %v6376, 64
  %v6379 = vpop.permute.xlu0 %6378
  %6380 = vrot.lane.b32.xlu0 %v6377, 64
  %v6381 = vpop.permute.xlu0 %6380
  %6384 = vst.msk [vmem:[#allocation6 + $0x50] sm:$0xf0] %vm5911, %v6379
  %6385 = vst.msk [vmem:[#allocation6 + $0x68] sm:$0x7] %vm5913, %v6379
  %6386 = vst.msk [vmem:[#allocation6 + $0xf8] sm:$0xf0] %vm5911, %v6381
  %6387 = vst.msk [vmem:[#allocation6 + $0x110] sm:$0x7] %vm5913, %v6381
  %v6390 = vrot.slane %v6305, 5
  %v6391 = vrot.slane %v6319, 5
  %6392 = vrot.lane.b32.xlu0 %v6390, 64
  %v6393 = vpop.permute.xlu0 %6392
  %6394 = vrot.lane.b32.xlu0 %v6391, 64
  %v6395 = vpop.permute.xlu0 %6394
  %6398 = vst.msk [vmem:[#allocation6 + $0x68] sm:$0xf8] %vm5927, %v6393
  %6399 = vst.msk [vmem:[#allocation6 + $0x80] sm:$0x3] %vm5929, %v6393
  %6400 = vst.msk [vmem:[#allocation6 + $0x110] sm:$0xf8] %vm5927, %v6395
  %6401 = vst.msk [vmem:[#allocation6 + $0x128] sm:$0x3] %vm5929, %v6395
  %v6404 = vrot.slane %v6307, 6
  %v6405 = vrot.slane %v6321, 6
  %6406 = vrot.lane.b32.xlu0 %v6404, 64
  %v6407 = vpop.permute.xlu0 %6406
  %6408 = vrot.lane.b32.xlu0 %v6405, 64
  %v6409 = vpop.permute.xlu0 %6408
  %6412 = vst.msk [vmem:[#allocation6 + $0x80] sm:$0xfc] %vm5943, %v6407
  %6413 = vst.msk [vmem:[#allocation6 + $0x98] sm:$0x1] %vm5945, %v6407
  %6414 = vst.msk [vmem:[#allocation6 + $0x128] sm:$0xfc] %vm5943, %v6409
  %6415 = vst.msk [vmem:[#allocation6 + $0x140] sm:$0x1] %vm5945, %v6409
  %s6416 = scalar_lea.vmem %s5549, 1 [#allocation4]
  %v6417 = vld [vmem:[%s6416] ss:$2 sm:$0x7f]
  %s6418 = scalar_lea.vmem %s5549, 17 [#allocation4]
  %v6419 = vld [vmem:[%s6418] ss:$2 sm:$0x7f]
  %s6420 = scalar_lea.vmem %s5549, 33 [#allocation4]
  %v6421 = vld [vmem:[%s6420] ss:$2 sm:$0x7f]
  %s6422 = scalar_lea.vmem %s5549, 49 [#allocation4]
  %v6423 = vld [vmem:[%s6422] ss:$2 sm:$0x7f]
  %s6424 = scalar_lea.vmem %s5549, 65 [#allocation4]
  %v6425 = vld [vmem:[%s6424] ss:$2 sm:$0x7f]
  %s6426 = scalar_lea.vmem %s5549, 81 [#allocation4]
  %v6427 = vld [vmem:[%s6426] ss:$2 sm:$0x7f]
  %s6428 = scalar_lea.vmem %s5549, 97 [#allocation4]
  %v6429 = vld [vmem:[%s6428] ss:$2 sm:$0x7f]
  %s6430 = scalar_lea.vmem %s5549, 129 [#allocation4]
  %v6431 = vld [vmem:[%s6430] ss:$2 sm:$0x7f]
  %s6432 = scalar_lea.vmem %s5549, 145 [#allocation4]
  %v6433 = vld [vmem:[%s6432] ss:$2 sm:$0x7f]
  %s6434 = scalar_lea.vmem %s5549, 161 [#allocation4]
  %v6435 = vld [vmem:[%s6434] ss:$2 sm:$0x7f]
  %s6436 = scalar_lea.vmem %s5549, 177 [#allocation4]
  %v6437 = vld [vmem:[%s6436] ss:$2 sm:$0x7f]
  %s6438 = scalar_lea.vmem %s5549, 193 [#allocation4]
  %v6439 = vld [vmem:[%s6438] ss:$2 sm:$0x7f]
  %s6440 = scalar_lea.vmem %s5549, 209 [#allocation4]
  %v6441 = vld [vmem:[%s6440] ss:$2 sm:$0x7f]
  %s6442 = scalar_lea.vmem %s5549, 225 [#allocation4]
  %v6443 = vld [vmem:[%s6442] ss:$2 sm:$0x7f]
  %6446 = vrot.lane.b32.xlu0 %v6417, 96
  %v6447 = vpop.permute.xlu0 %6446
  %6448 = vrot.lane.b32.xlu0 %v6431, 96
  %v6449 = vpop.permute.xlu0 %6448
  %6452 = vst.msk [vmem:[#allocation6 + $0x8] sm:$0x7f] %vm5984, %v6447
  %6453 = vst.msk [vmem:[#allocation6 + $0xb0] sm:$0x7f] %vm5984, %v6449
  %v6456 = vrot.slane %v6419, 1
  %v6457 = vrot.slane %v6433, 1
  %6458 = vrot.lane.b32.xlu0 %v6456, 96
  %v6459 = vpop.permute.xlu0 %6458
  %6460 = vrot.lane.b32.xlu0 %v6457, 96
  %v6461 = vpop.permute.xlu0 %6460
  %6464 = vst.msk [vmem:[#allocation6 + $0x8] sm:$0x80] %vm5997, %v6459
  %6465 = vst.msk [vmem:[#allocation6 + $0x20] sm:$0x3f] %vm5999, %v6459
  %6466 = vst.msk [vmem:[#allocation6 + $0xb0] sm:$0x80] %vm5997, %v6461
  %6467 = vst.msk [vmem:[#allocation6 + $0xc8] sm:$0x3f] %vm5999, %v6461
  %v6470 = vrot.slane %v6421, 2
  %v6471 = vrot.slane %v6435, 2
  %6472 = vrot.lane.b32.xlu0 %v6470, 96
  %v6473 = vpop.permute.xlu0 %6472
  %6474 = vrot.lane.b32.xlu0 %v6471, 96
  %v6475 = vpop.permute.xlu0 %6474
  %6478 = vst.msk [vmem:[#allocation6 + $0x20] sm:$0xc0] %vm6013, %v6473
  %6479 = vst.msk [vmem:[#allocation6 + $0x38] sm:$0x1f] %vm6015, %v6473
  %6480 = vst.msk [vmem:[#allocation6 + $0xc8] sm:$0xc0] %vm6013, %v6475
  %6481 = vst.msk [vmem:[#allocation6 + $0xe0] sm:$0x1f] %vm6015, %v6475
  %v6484 = vrot.slane %v6423, 3
  %v6485 = vrot.slane %v6437, 3
  %6486 = vrot.lane.b32.xlu0 %v6484, 96
  %v6487 = vpop.permute.xlu0 %6486
  %6488 = vrot.lane.b32.xlu0 %v6485, 96
  %v6489 = vpop.permute.xlu0 %6488
  %6492 = vst.msk [vmem:[#allocation6 + $0x38] sm:$0xe0] %vm6029, %v6487
  %6493 = vst.msk [vmem:[#allocation6 + $0x50] sm:$0xf] %vm6031, %v6487
  %6494 = vst.msk [vmem:[#allocation6 + $0xe0] sm:$0xe0] %vm6029, %v6489
  %6495 = vst.msk [vmem:[#allocation6 + $0xf8] sm:$0xf] %vm6031, %v6489
  %v6498 = vrot.slane %v6425, 4
  %v6499 = vrot.slane %v6439, 4
  %6500 = vrot.lane.b32.xlu0 %v6498, 96
  %v6501 = vpop.permute.xlu0 %6500
  %6502 = vrot.lane.b32.xlu0 %v6499, 96
  %v6503 = vpop.permute.xlu0 %6502
  %6506 = vst.msk [vmem:[#allocation6 + $0x50] sm:$0xf0] %vm6045, %v6501
  %6507 = vst.msk [vmem:[#allocation6 + $0x68] sm:$0x7] %vm6047, %v6501
  %6508 = vst.msk [vmem:[#allocation6 + $0xf8] sm:$0xf0] %vm6045, %v6503
  %6509 = vst.msk [vmem:[#allocation6 + $0x110] sm:$0x7] %vm6047, %v6503
  %v6512 = vrot.slane %v6427, 5
  %v6513 = vrot.slane %v6441, 5
  %6514 = vrot.lane.b32.xlu0 %v6512, 96
  %v6515 = vpop.permute.xlu0 %6514
  %6516 = vrot.lane.b32.xlu0 %v6513, 96
  %v6517 = vpop.permute.xlu0 %6516
  %6520 = vst.msk [vmem:[#allocation6 + $0x68] sm:$0xf8] %vm6061, %v6515
  %6521 = vst.msk [vmem:[#allocation6 + $0x80] sm:$0x3] %vm6063, %v6515
  %6522 = vst.msk [vmem:[#allocation6 + $0x110] sm:$0xf8] %vm6061, %v6517
  %6523 = vst.msk [vmem:[#allocation6 + $0x128] sm:$0x3] %vm6063, %v6517
  %v6526 = vrot.slane %v6429, 6
  %v6527 = vrot.slane %v6443, 6
  %6528 = vrot.lane.b32.xlu0 %v6526, 96
  %v6529 = vpop.permute.xlu0 %6528
  %6530 = vrot.lane.b32.xlu0 %v6527, 96
  %v6531 = vpop.permute.xlu0 %6530
  %6534 = vst.msk [vmem:[#allocation6 + $0x80] sm:$0xfc] %vm6077, %v6529
  %6535 = vst.msk [vmem:[#allocation6 + $0x98] sm:$0x1] %vm6079, %v6529
  %6536 = vst.msk [vmem:[#allocation6 + $0x128] sm:$0xfc] %vm6077, %v6531
  %6537 = vst.msk [vmem:[#allocation6 + $0x140] sm:$0x1] %vm6079, %v6531
  %s6538 = scalar_lea.vmem %s5549, 2 [#allocation4]
  %v6539 = vld [vmem:[%s6538] ss:$2 sm:$0x7f]
  %s6540 = scalar_lea.vmem %s5549, 18 [#allocation4]
  %v6541 = vld [vmem:[%s6540] ss:$2 sm:$0x7f]
  %s6542 = scalar_lea.vmem %s5549, 34 [#allocation4]
  %v6543 = vld [vmem:[%s6542] ss:$2 sm:$0x7f]
  %s6544 = scalar_lea.vmem %s5549, 50 [#allocation4]
  %v6545 = vld [vmem:[%s6544] ss:$2 sm:$0x7f]
  %s6546 = scalar_lea.vmem %s5549, 66 [#allocation4]
  %v6547 = vld [vmem:[%s6546] ss:$2 sm:$0x7f]
  %s6548 = scalar_lea.vmem %s5549, 82 [#allocation4]
  %v6549 = vld [vmem:[%s6548] ss:$2 sm:$0x7f]
  %s6550 = scalar_lea.vmem %s5549, 98 [#allocation4]
  %v6551 = vld [vmem:[%s6550] ss:$2 sm:$0x7f]
  %s6552 = scalar_lea.vmem %s5549, 130 [#allocation4]
  %v6553 = vld [vmem:[%s6552] ss:$2 sm:$0x7f]
  %s6554 = scalar_lea.vmem %s5549, 146 [#allocation4]
  %v6555 = vld [vmem:[%s6554] ss:$2 sm:$0x7f]
  %s6556 = scalar_lea.vmem %s5549, 162 [#allocation4]
  %v6557 = vld [vmem:[%s6556] ss:$2 sm:$0x7f]
  %s6558 = scalar_lea.vmem %s5549, 178 [#allocation4]
  %v6559 = vld [vmem:[%s6558] ss:$2 sm:$0x7f]
  %s6560 = scalar_lea.vmem %s5549, 194 [#allocation4]
  %v6561 = vld [vmem:[%s6560] ss:$2 sm:$0x7f]
  %s6562 = scalar_lea.vmem %s5549, 210 [#allocation4]
  %v6563 = vld [vmem:[%s6562] ss:$2 sm:$0x7f]
  %s6564 = scalar_lea.vmem %s5549, 226 [#allocation4]
  %v6565 = vld [vmem:[%s6564] ss:$2 sm:$0x7f]
  %6566 = vst.msk [vmem:[#allocation6 + $0x10] sm:$0x7f] %vm5605, %v6539
  %6567 = vst.msk [vmem:[#allocation6 + $0xb8] sm:$0x7f] %vm5605, %v6553
  %v6570 = vrot.slane %v6541, 1
  %v6571 = vrot.slane %v6555, 1
  %6574 = vst.msk [vmem:[#allocation6 + $0x10] sm:$0x80] %vm5614, %v6570
  %6575 = vst.msk [vmem:[#allocation6 + $0x28] sm:$0x3f] %vm5521, %v6570
  %6576 = vst.msk [vmem:[#allocation6 + $0xb8] sm:$0x80] %vm5614, %v6571
  %6577 = vst.msk [vmem:[#allocation6 + $0xd0] sm:$0x3f] %vm5521, %v6571
  %v6580 = vrot.slane %v6543, 2
  %v6581 = vrot.slane %v6557, 2
  %6584 = vst.msk [vmem:[#allocation6 + $0x28] sm:$0xc0] %vm5625, %v6580
  %6585 = vst.msk [vmem:[#allocation6 + $0x40] sm:$0x1f] %vm5627, %v6580
  %6586 = vst.msk [vmem:[#allocation6 + $0xd0] sm:$0xc0] %vm5625, %v6581
  %6587 = vst.msk [vmem:[#allocation6 + $0xe8] sm:$0x1f] %vm5627, %v6581
  %v6590 = vrot.slane %v6545, 3
  %v6591 = vrot.slane %v6559, 3
  %6594 = vst.msk [vmem:[#allocation6 + $0x40] sm:$0xe0] %vm5637, %v6590
  %6595 = vst.msk [vmem:[#allocation6 + $0x58] sm:$0xf] %vm5639, %v6590
  %6596 = vst.msk [vmem:[#allocation6 + $0xe8] sm:$0xe0] %vm5637, %v6591
  %6597 = vst.msk [vmem:[#allocation6 + $0x100] sm:$0xf] %vm5639, %v6591
  %v6600 = vrot.slane %v6547, 4
  %v6601 = vrot.slane %v6561, 4
  %6604 = vst.msk [vmem:[#allocation6 + $0x58] sm:$0xf0] %vm5649, %v6600
  %6605 = vst.msk [vmem:[#allocation6 + $0x70] sm:$0x7] %vm5651, %v6600
  %6606 = vst.msk [vmem:[#allocation6 + $0x100] sm:$0xf0] %vm5649, %v6601
  %6607 = vst.msk [vmem:[#allocation6 + $0x118] sm:$0x7] %vm5651, %v6601
  %v6610 = vrot.slane %v6549, 5
  %v6611 = vrot.slane %v6563, 5
  %6614 = vst.msk [vmem:[#allocation6 + $0x70] sm:$0xf8] %vm5661, %v6610
  %6615 = vst.msk [vmem:[#allocation6 + $0x88] sm:$0x3] %vm5663, %v6610
  %6616 = vst.msk [vmem:[#allocation6 + $0x118] sm:$0xf8] %vm5661, %v6611
  %6617 = vst.msk [vmem:[#allocation6 + $0x130] sm:$0x3] %vm5663, %v6611
  %v6620 = vrot.slane %v6551, 6
  %v6621 = vrot.slane %v6565, 6
  %6624 = vst.msk [vmem:[#allocation6 + $0x88] sm:$0xfc] %vm5673, %v6620
  %6625 = vst.msk [vmem:[#allocation6 + $0xa0] sm:$0x1] %vm5675, %v6620
  %6626 = vst.msk [vmem:[#allocation6 + $0x130] sm:$0xfc] %vm5673, %v6621
  %6627 = vst.msk [vmem:[#allocation6 + $0x148] sm:$0x1] %vm5675, %v6621
  %v6628 = vld [vmem:[%s3] sm:$0xff]
  %v6629 = vld [vmem:[%s3 + $0x8] sm:$0xff]
  %v6630 = vld [vmem:[%s3 + $0x10] sm:$0xff]
  %v6631 = vld [vmem:[%s3 + $0x18] sm:$0xff]
  %v6632 = vld [vmem:[%s3 + $0x20] sm:$0xff]
  %v6633 = vld [vmem:[%s3 + $0x28] sm:$0xff]
  %v6634 = vld [vmem:[%s3 + $0x30] sm:$0xff]
  %v6635 = vld [vmem:[%s3 + $0x38] sm:$0xff]
  %v6636 = vld [vmem:[%s3 + $0x40] sm:$0xff]
  %v6637 = vld [vmem:[%s3 + $0x48] sm:$0xff]
  %v6638 = vld [vmem:[%s3 + $0x50] sm:$0xff]
  %v6639 = vld [vmem:[%s3 + $0x58] sm:$0xff]
  %v6640 = vld [vmem:[%s3 + $0x60] sm:$0xff]
  %v6641 = vld [vmem:[%s3 + $0x68] sm:$0xff]
  %v6642 = vld [vmem:[%s3 + $0x70] sm:$0xff]
  %v6643 = vld [vmem:[%s3 + $0x78] sm:$0xff]
  %v6644 = vld [vmem:[%s3 + $0x80] sm:$0xff]
  %v6645 = vld [vmem:[%s3 + $0x88] sm:$0xff]
  %v6646 = vld [vmem:[%s3 + $0x90] sm:$0xff]
  %v6647 = vld [vmem:[%s3 + $0x98] sm:$0xff]
  %v6648 = vld [vmem:[%s3 + $0xa0] sm:$0xff]
  %v6649 = vld [vmem:[%s3 + $0xa8] sm:$0xff]
  %v6650 = vld [vmem:[%s3 + $0xb0] sm:$0xff]
  %v6651 = vld [vmem:[%s3 + $0xb8] sm:$0xff]
  %v6652 = vld [vmem:[%s3 + $0xc0] sm:$0xff]
  %v6653 = vld [vmem:[%s3 + $0xc8] sm:$0xff]
  %v6654 = vld [vmem:[%s3 + $0xd0] sm:$0xff]
  %v6655 = vld [vmem:[%s3 + $0xd8] sm:$0xff]
  %v6656 = vld [vmem:[%s3 + $0xe0] sm:$0xff]
  %v6657 = vld [vmem:[%s3 + $0xe8] sm:$0xff]
  %v6658 = vld [vmem:[%s3 + $0xf0] sm:$0xff]
  %v6659 = vld [vmem:[%s3 + $0xf8] sm:$0xff]
  %v6660 = vld [vmem:[%s3 + $0x100] sm:$0xff]
  %v6661 = vld [vmem:[%s3 + $0x108] sm:$0xff]
  %v6662 = vld [vmem:[%s3 + $0x110] sm:$0xff]
  %v6663 = vld [vmem:[%s3 + $0x118] sm:$0xff]
  %v6664 = vld [vmem:[%s4] sm:$0x1]
  %v6665 = vld [vmem:[#allocation6] sm:$0xff]
  %v6666 = vld [vmem:[#allocation6 + $0x8] sm:$0xff]
  %v6667 = vld [vmem:[#allocation6 + $0x10] sm:$0xff]
  %v6668 = vld [vmem:[#allocation6 + $0x18] sm:$0xff]
  %v6669 = vld [vmem:[#allocation6 + $0x20] sm:$0xff]
  %v6670 = vld [vmem:[#allocation6 + $0x28] sm:$0xff]
  %v6671 = vld [vmem:[#allocation6 + $0x30] sm:$0xff]
  %v6672 = vld [vmem:[#allocation6 + $0x38] sm:$0xff]
  %v6673 = vld [vmem:[#allocation6 + $0x40] sm:$0xff]
  %v6674 = vld [vmem:[#allocation6 + $0x48] sm:$0xff]
  %v6675 = vld [vmem:[#allocation6 + $0x50] sm:$0xff]
  %v6676 = vld [vmem:[#allocation6 + $0x58] sm:$0xff]
  %v6677 = vld [vmem:[#allocation6 + $0x60] sm:$0xff]
  %v6678 = vld [vmem:[#allocation6 + $0x68] sm:$0xff]
  %v6679 = vld [vmem:[#allocation6 + $0x70] sm:$0xff]
  %v6680 = vld [vmem:[#allocation6 + $0x78] sm:$0xff]
  %v6681 = vld [vmem:[#allocation6 + $0x80] sm:$0xff]
  %v6682 = vld [vmem:[#allocation6 + $0x88] sm:$0xff]
  %v6683 = vld [vmem:[#allocation6 + $0x90] sm:$0x1]
  %v6684 = vld [vmem:[#allocation6 + $0x98] sm:$0x1]
  %v6685 = vld [vmem:[#allocation6 + $0xa0] sm:$0x1]
  %v6687 = vperm.slane %v6664, 0
  %v6690 = vsel %vm5455, %v6667, 0
  %v6693 = vsel %vm5455, %v6670, 0
  %v6696 = vsel %vm5455, %v6673, 0
  %v6699 = vsel %vm5455, %v6676, 0
  %v6702 = vsel %vm5455, %v6679, 0
  %v6705 = vsel %vm5455, %v6682, 0
  %v6708 = vsel %vm5455, %v6685, 0
  %6710 = vmatpush.msra.mxu0 %v6643
  %6711 = vmatpush.msra.mxu0 %v6642
  %6712 = vmatpush.msra.mxu0 %v6641
  %6713 = vmatpush.msra.mxu0 %v6640
  %6714 = vmatpush.msra.mxu0 %v6639
  %6715 = vmatpush.msra.mxu0 %v6638
  %6716 = vmatpush.msra.mxu0 %v6637
  %6717 = vmatpush.msra.mxu0 %v6636
  %6718 = vmatpush.msra.mxu0 %v6635
  %6719 = vmatpush.msra.mxu0 %v6634
  %6720 = vmatpush.msra.mxu0 %v6633
  %6721 = vmatpush.msra.mxu0 %v6632
  %6722 = vmatpush.msra.mxu0 %v6631
  %6723 = vmatpush.msra.mxu0 %v6630
  %6724 = vmatpush.msra.mxu0 %v6629
  %6725 = vmatpush.msra.mxu0 %v6628
  %6726 = vmatmul.f32.gmra.mxu0 %v6665
  %v6727 = vpop.f32.mrf.mxu0
  %v6728 = vadd.f32 %v6687, %v6727
  %6729 = vmatmul.f32.gmra.mxu0 %v6668
  %v6730 = vpop.f32.mrf.mxu0
  %v6731 = vadd.f32 %v6687, %v6730
  %6732 = vmatmul.f32.gmra.mxu0 %v6671
  %v6733 = vpop.f32.mrf.mxu0
  %v6734 = vadd.f32 %v6687, %v6733
  %6735 = vmatmul.f32.gmra.mxu0 %v6674
  %v6736 = vpop.f32.mrf.mxu0
  %v6737 = vadd.f32 %v6687, %v6736
  %6738 = vmatmul.f32.gmra.mxu0 %v6677
  %v6739 = vpop.f32.mrf.mxu0
  %v6740 = vadd.f32 %v6687, %v6739
  %6741 = vmatmul.f32.gmra.mxu0 %v6680
  %v6742 = vpop.f32.mrf.mxu0
  %v6743 = vadd.f32 %v6687, %v6742
  %6744 = vmatmul.f32.gmra.mxu0 %v6683
  %v6745 = vpop.f32.mrf.mxu0
  %v6746 = vadd.f32 %v6687, %v6745
  %6747 = vdwg.mxu0
  %6748 = vmatpush.msra.mxu0 %v6659
  %6749 = vmatpush.msra.mxu0 %v6658
  %6750 = vmatpush.msra.mxu0 %v6657
  %6751 = vmatpush.msra.mxu0 %v6656
  %6752 = vmatpush.msra.mxu0 %v6655
  %6753 = vmatpush.msra.mxu0 %v6654
  %6754 = vmatpush.msra.mxu0 %v6653
  %6755 = vmatpush.msra.mxu0 %v6652
  %6756 = vmatpush.msra.mxu0 %v6651
  %6757 = vmatpush.msra.mxu0 %v6650
  %6758 = vmatpush.msra.mxu0 %v6649
  %6759 = vmatpush.msra.mxu0 %v6648
  %6760 = vmatpush.msra.mxu0 %v6647
  %6761 = vmatpush.msra.mxu0 %v6646
  %6762 = vmatpush.msra.mxu0 %v6645
  %6763 = vmatpush.msra.mxu0 %v6644
  %6764 = vmatmul.f32.gmra.mxu0 %v6666
  %v6765 = vpop.f32.mrf.mxu0
  %v6766 = vadd.f32 %v6728, %v6765
  %6767 = vmatmul.f32.gmra.mxu0 %v6669
  %v6768 = vpop.f32.mrf.mxu0
  %v6769 = vadd.f32 %v6731, %v6768
  %6770 = vmatmul.f32.gmra.mxu0 %v6672
  %v6771 = vpop.f32.mrf.mxu0
  %v6772 = vadd.f32 %v6734, %v6771
  %6773 = vmatmul.f32.gmra.mxu0 %v6675
  %v6774 = vpop.f32.mrf.mxu0
  %v6775 = vadd.f32 %v6737, %v6774
  %6776 = vmatmul.f32.gmra.mxu0 %v6678
  %v6777 = vpop.f32.mrf.mxu0
  %v6778 = vadd.f32 %v6740, %v6777
  %6779 = vmatmul.f32.gmra.mxu0 %v6681
  %v6780 = vpop.f32.mrf.mxu0
  %v6781 = vadd.f32 %v6743, %v6780
  %6782 = vmatmul.f32.gmra.mxu0 %v6684
  %v6783 = vpop.f32.mrf.mxu0
  %v6784 = vadd.f32 %v6746, %v6783
  %6785 = vdwg.mxu0
  %6786 = vmatpush.msra.mxu0 0.0
  %6787 = vmatpush.msra.mxu0 0.0
  %6788 = vmatpush.msra.mxu0 0.0
  %6789 = vmatpush.msra.mxu0 0.0
  %6790 = vmatpush.msra.mxu0 0.0
  %6791 = vmatpush.msra.mxu0 0.0
  %6792 = vmatpush.msra.mxu0 0.0
  %6793 = vmatpush.msra.mxu0 0.0
  %6794 = vmatpush.msra.mxu0 0.0
  %6795 = vmatpush.msra.mxu0 0.0
  %6796 = vmatpush.msra.mxu0 0.0
  %6797 = vmatpush.msra.mxu0 0.0
  %6798 = vmatpush.msra.mxu0 %v6663
  %6799 = vmatpush.msra.mxu0 %v6662
  %6800 = vmatpush.msra.mxu0 %v6661
  %6801 = vmatpush.msra.mxu0 %v6660
  %6802 = vmatmul.f32.gmra.mxu0 %v6690
  %v6803 = vpop.f32.mrf.mxu0
  %v6804 = vadd.f32 %v6766, %v6803
  %6805 = vmatmul.f32.gmra.mxu0 %v6693
  %v6806 = vpop.f32.mrf.mxu0
  %v6807 = vadd.f32 %v6769, %v6806
  %6808 = vmatmul.f32.gmra.mxu0 %v6696
  %v6809 = vpop.f32.mrf.mxu0
  %v6810 = vadd.f32 %v6772, %v6809
  %6811 = vmatmul.f32.gmra.mxu0 %v6699
  %v6812 = vpop.f32.mrf.mxu0
  %v6813 = vadd.f32 %v6775, %v6812
  %6814 = vmatmul.f32.gmra.mxu0 %v6702
  %v6815 = vpop.f32.mrf.mxu0
  %v6816 = vadd.f32 %v6778, %v6815
  %6817 = vmatmul.f32.gmra.mxu0 %v6705
  %v6818 = vpop.f32.mrf.mxu0
  %v6819 = vadd.f32 %v6781, %v6818
  %6820 = vmatmul.f32.gmra.mxu0 %v6708
  %v6821 = vpop.f32.mrf.mxu0
  %v6822 = vadd.f32 %v6784, %v6821
  %6823 = vdwg.mxu0
  %vm6824 = vcmask 523264
  %6825 = vst.msk [vmem:[#allocation7] sm:$0xff] %vm6824, %v6804
  %6826 = vst.msk [vmem:[#allocation7 + $0x8] sm:$0xff] %vm6824, %v6807
  %6827 = vst.msk [vmem:[#allocation7 + $0x10] sm:$0xff] %vm6824, %v6810
  %6828 = vst.msk [vmem:[#allocation7 + $0x18] sm:$0xff] %vm6824, %v6813
  %6829 = vst.msk [vmem:[#allocation7 + $0x20] sm:$0xff] %vm6824, %v6816
  %6830 = vst.msk [vmem:[#allocation7 + $0x28] sm:$0xff] %vm6824, %v6819
  %vm6831 = vcmask 516096
  %6832 = vst.msk [vmem:[#allocation7 + $0x30] sm:$0x1] %vm6831, %v6822
  %s6833 = scalar_lea.vmem [#allocation6], 168
  %v6834 = vld [vmem:[%s6833] sm:$0xff]
  %v6835 = vld [vmem:[%s6833 + $0x8] sm:$0xff]
  %v6836 = vld [vmem:[%s6833 + $0x10] sm:$0xff]
  %v6837 = vld [vmem:[%s6833 + $0x18] sm:$0xff]
  %v6838 = vld [vmem:[%s6833 + $0x20] sm:$0xff]
  %v6839 = vld [vmem:[%s6833 + $0x28] sm:$0xff]
  %v6840 = vld [vmem:[%s6833 + $0x30] sm:$0xff]
  %v6841 = vld [vmem:[%s6833 + $0x38] sm:$0xff]
  %v6842 = vld [vmem:[%s6833 + $0x40] sm:$0xff]
  %v6843 = vld [vmem:[%s6833 + $0x48] sm:$0xff]
  %v6844 = vld [vmem:[%s6833 + $0x50] sm:$0xff]
  %v6845 = vld [vmem:[%s6833 + $0x58] sm:$0xff]
  %v6846 = vld [vmem:[%s6833 + $0x60] sm:$0xff]
  %v6847 = vld [vmem:[%s6833 + $0x68] sm:$0xff]
  %v6848 = vld [vmem:[%s6833 + $0x70] sm:$0xff]
  %v6849 = vld [vmem:[%s6833 + $0x78] sm:$0xff]
  %v6850 = vld [vmem:[%s6833 + $0x80] sm:$0xff]
  %v6851 = vld [vmem:[%s6833 + $0x88] sm:$0xff]
  %v6852 = vld [vmem:[%s6833 + $0x90] sm:$0x1]
  %v6853 = vld [vmem:[%s6833 + $0x98] sm:$0x1]
  %v6854 = vld [vmem:[%s6833 + $0xa0] sm:$0x1]
  %v6856 = vsel %vm5455, %v6836, 0
  %v6859 = vsel %vm5455, %v6839, 0
  %v6862 = vsel %vm5455, %v6842, 0
  %v6865 = vsel %vm5455, %v6845, 0
  %v6868 = vsel %vm5455, %v6848, 0
  %v6871 = vsel %vm5455, %v6851, 0
  %v6874 = vsel %vm5455, %v6854, 0
  %6876 = vmatpush.msra.mxu0 %v6643
  %6877 = vmatpush.msra.mxu0 %v6642
  %6878 = vmatpush.msra.mxu0 %v6641
  %6879 = vmatpush.msra.mxu0 %v6640
  %6880 = vmatpush.msra.mxu0 %v6639
  %6881 = vmatpush.msra.mxu0 %v6638
  %6882 = vmatpush.msra.mxu0 %v6637
  %6883 = vmatpush.msra.mxu0 %v6636
  %6884 = vmatpush.msra.mxu0 %v6635
  %6885 = vmatpush.msra.mxu0 %v6634
  %6886 = vmatpush.msra.mxu0 %v6633
  %6887 = vmatpush.msra.mxu0 %v6632
  %6888 = vmatpush.msra.mxu0 %v6631
  %6889 = vmatpush.msra.mxu0 %v6630
  %6890 = vmatpush.msra.mxu0 %v6629
  %6891 = vmatpush.msra.mxu0 %v6628
  %6892 = vmatmul.f32.gmra.mxu0 %v6834
  %v6893 = vpop.f32.mrf.mxu0
  %v6894 = vadd.f32 %v6687, %v6893
  %6895 = vmatmul.f32.gmra.mxu0 %v6837
  %v6896 = vpop.f32.mrf.mxu0
  %v6897 = vadd.f32 %v6687, %v6896
  %6898 = vmatmul.f32.gmra.mxu0 %v6840
  %v6899 = vpop.f32.mrf.mxu0
  %v6900 = vadd.f32 %v6687, %v6899
  %6901 = vmatmul.f32.gmra.mxu0 %v6843
  %v6902 = vpop.f32.mrf.mxu0
  %v6903 = vadd.f32 %v6687, %v6902
  %6904 = vmatmul.f32.gmra.mxu0 %v6846
  %v6905 = vpop.f32.mrf.mxu0
  %v6906 = vadd.f32 %v6687, %v6905
  %6907 = vmatmul.f32.gmra.mxu0 %v6849
  %v6908 = vpop.f32.mrf.mxu0
  %v6909 = vadd.f32 %v6687, %v6908
  %6910 = vmatmul.f32.gmra.mxu0 %v6852
  %v6911 = vpop.f32.mrf.mxu0
  %v6912 = vadd.f32 %v6687, %v6911
  %6913 = vdwg.mxu0
  %6914 = vmatpush.msra.mxu0 %v6659
  %6915 = vmatpush.msra.mxu0 %v6658
  %6916 = vmatpush.msra.mxu0 %v6657
  %6917 = vmatpush.msra.mxu0 %v6656
  %6918 = vmatpush.msra.mxu0 %v6655
  %6919 = vmatpush.msra.mxu0 %v6654
  %6920 = vmatpush.msra.mxu0 %v6653
  %6921 = vmatpush.msra.mxu0 %v6652
  %6922 = vmatpush.msra.mxu0 %v6651
  %6923 = vmatpush.msra.mxu0 %v6650
  %6924 = vmatpush.msra.mxu0 %v6649
  %6925 = vmatpush.msra.mxu0 %v6648
  %6926 = vmatpush.msra.mxu0 %v6647
  %6927 = vmatpush.msra.mxu0 %v6646
  %6928 = vmatpush.msra.mxu0 %v6645
  %6929 = vmatpush.msra.mxu0 %v6644
  %6930 = vmatmul.f32.gmra.mxu0 %v6835
  %v6931 = vpop.f32.mrf.mxu0
  %v6932 = vadd.f32 %v6894, %v6931
  %6933 = vmatmul.f32.gmra.mxu0 %v6838
  %v6934 = vpop.f32.mrf.mxu0
  %v6935 = vadd.f32 %v6897, %v6934
  %6936 = vmatmul.f32.gmra.mxu0 %v6841
  %v6937 = vpop.f32.mrf.mxu0
  %v6938 = vadd.f32 %v6900, %v6937
  %6939 = vmatmul.f32.gmra.mxu0 %v6844
  %v6940 = vpop.f32.mrf.mxu0
  %v6941 = vadd.f32 %v6903, %v6940
  %6942 = vmatmul.f32.gmra.mxu0 %v6847
  %v6943 = vpop.f32.mrf.mxu0
  %v6944 = vadd.f32 %v6906, %v6943
  %6945 = vmatmul.f32.gmra.mxu0 %v6850
  %v6946 = vpop.f32.mrf.mxu0
  %v6947 = vadd.f32 %v6909, %v6946
  %6948 = vmatmul.f32.gmra.mxu0 %v6853
  %v6949 = vpop.f32.mrf.mxu0
  %v6950 = vadd.f32 %v6912, %v6949
  %6951 = vdwg.mxu0
  %6952 = vmatpush.msra.mxu0 0.0
  %6953 = vmatpush.msra.mxu0 0.0
  %6954 = vmatpush.msra.mxu0 0.0
  %6955 = vmatpush.msra.mxu0 0.0
  %6956 = vmatpush.msra.mxu0 0.0
  %6957 = vmatpush.msra.mxu0 0.0
  %6958 = vmatpush.msra.mxu0 0.0
  %6959 = vmatpush.msra.mxu0 0.0
  %6960 = vmatpush.msra.mxu0 0.0
  %6961 = vmatpush.msra.mxu0 0.0
  %6962 = vmatpush.msra.mxu0 0.0
  %6963 = vmatpush.msra.mxu0 0.0
  %6964 = vmatpush.msra.mxu0 %v6663
  %6965 = vmatpush.msra.mxu0 %v6662
  %6966 = vmatpush.msra.mxu0 %v6661
  %6967 = vmatpush.msra.mxu0 %v6660
  %6968 = vmatmul.f32.gmra.mxu0 %v6856
  %v6969 = vpop.f32.mrf.mxu0
  %v6970 = vadd.f32 %v6932, %v6969
  %6971 = vmatmul.f32.gmra.mxu0 %v6859
  %v6972 = vpop.f32.mrf.mxu0
  %v6973 = vadd.f32 %v6935, %v6972
  %6974 = vmatmul.f32.gmra.mxu0 %v6862
  %v6975 = vpop.f32.mrf.mxu0
  %v6976 = vadd.f32 %v6938, %v6975
  %6977 = vmatmul.f32.gmra.mxu0 %v6865
  %v6978 = vpop.f32.mrf.mxu0
  %v6979 = vadd.f32 %v6941, %v6978
  %6980 = vmatmul.f32.gmra.mxu0 %v6868
  %v6981 = vpop.f32.mrf.mxu0
  %v6982 = vadd.f32 %v6944, %v6981
  %6983 = vmatmul.f32.gmra.mxu0 %v6871
  %v6984 = vpop.f32.mrf.mxu0
  %v6985 = vadd.f32 %v6947, %v6984
  %6986 = vmatmul.f32.gmra.mxu0 %v6874
  %v6987 = vpop.f32.mrf.mxu0
  %v6988 = vadd.f32 %v6950, %v6987
  %6989 = vdwg.mxu0
  %s6990 = scalar_lea.vmem [#allocation7], 56
  %6991 = vst.msk [vmem:[%s6990] sm:$0xff] %vm6824, %v6970
  %6992 = vst.msk [vmem:[%s6990 + $0x8] sm:$0xff] %vm6824, %v6973
  %6993 = vst.msk [vmem:[%s6990 + $0x10] sm:$0xff] %vm6824, %v6976
  %6994 = vst.msk [vmem:[%s6990 + $0x18] sm:$0xff] %vm6824, %v6979
  %6995 = vst.msk [vmem:[%s6990 + $0x20] sm:$0xff] %vm6824, %v6982
  %6996 = vst.msk [vmem:[%s6990 + $0x28] sm:$0xff] %vm6824, %v6985
  %6997 = vst.msk [vmem:[%s6990 + $0x30] sm:$0x1] %vm6831, %v6988
  %v6998 = vld [vmem:[#allocation7] sm:$0xff]
  %v6999 = vld [vmem:[#allocation7 + $0x8] sm:$0xff]
  %v7000 = vld [vmem:[#allocation7 + $0x10] sm:$0xff]
  %v7001 = vld [vmem:[#allocation7 + $0x18] sm:$0xff]
  %v7002 = vld [vmem:[#allocation7 + $0x20] sm:$0xff]
  %v7003 = vld [vmem:[#allocation7 + $0x28] sm:$0xff]
  %v7004 = vld [vmem:[#allocation7 + $0x30] sm:$0x1]
  %v7005 = vld [vmem:[#allocation7 + $0x38] sm:$0xff]
  %v7006 = vld [vmem:[#allocation7 + $0x40] sm:$0xff]
  %v7007 = vld [vmem:[#allocation7 + $0x48] sm:$0xff]
  %v7008 = vld [vmem:[#allocation7 + $0x50] sm:$0xff]
  %v7009 = vld [vmem:[#allocation7 + $0x58] sm:$0xff]
  %v7010 = vld [vmem:[#allocation7 + $0x60] sm:$0xff]
  %v7011 = vld [vmem:[#allocation7 + $0x68] sm:$0x1]
  %v7012 = vld [vmem:[%s5] sm:$0x1]
  %v7013 = vld [vmem:[%s6] sm:$0x1]
  %v7014 = vsel %vm6824, %v6998, 0.0
  %v7015 = vsel %vm6824, %v7005, 0.0
  %v7016 = vadd.f32 %v7014, %v7015
  %v7017 = vsel %vm6824, %v6999, 0.0
  %v7018 = vsel %vm6824, %v7006, 0.0
  %v7019 = vadd.f32 %v7017, %v7018
  %v7020 = vsel %vm6824, %v7000, 0.0
  %v7021 = vsel %vm6824, %v7007, 0.0
  %v7022 = vadd.f32 %v7020, %v7021
  %v7023 = vsel %vm6824, %v7001, 0.0
  %v7024 = vsel %vm6824, %v7008, 0.0
  %v7025 = vadd.f32 %v7023, %v7024
  %v7026 = vsel %vm6824, %v7002, 0.0
  %v7027 = vsel %vm6824, %v7009, 0.0
  %v7028 = vadd.f32 %v7026, %v7027
  %v7029 = vsel %vm6824, %v7003, 0.0
  %v7030 = vsel %vm6824, %v7010, 0.0
  %v7031 = vadd.f32 %v7029, %v7030
  %v7032 = vsel %vm6831, %v7004, 0.0
  %v7033 = vsel %vm6831, %v7011, 0.0
  %v7034 = vadd.f32 %v7032, %v7033
  %v7035 = vsel %vm6824, %v7016, 0.0
  %v7036 = vsel %vm6824, %v7019, 0.0
  %v7037 = vadd.f32 %v7035, %v7036
  %v7038 = vsel %vm6824, %v7022, 0.0
  %v7039 = vadd.f32 %v7037, %v7038
  %v7040 = vsel %vm6824, %v7025, 0.0
  %v7041 = vadd.f32 %v7039, %v7040
  %v7042 = vsel %vm6824, %v7028, 0.0
  %v7043 = vadd.f32 %v7041, %v7042
  %v7044 = vsel %vm6824, %v7031, 0.0
  %v7045 = vadd.f32 %v7043, %v7044
  %v7046 = vsel %vm6831, %v7034, 0.0
  %v7047 = vadd.f32 %v7045, %v7046
  %v7048 = vrot.slane %v7047, 4
  %v7049 = vadd.f32 %v7047, %v7048
  %v7050 = vrot.slane %v7049, 2
  %v7051 = vadd.f32 %v7049, %v7050
  %v7052 = vrot.slane %v7051, 1
  %v7053 = vadd.f32 %v7051, %v7052
  %v7054 = vrcp.pop 98.0
  %v7055 = vmul.f32 98.0, %v7054
  %v7056 = vsub.f32 1.0, %v7055
  %v7057 = vmul.f32 %v7054, %v7056
  %v7058 = vadd.f32 %v7054, %v7057
  %vm7059 = vweird.f32 %v7054
  %v7060 = vsel %vm7059, %v7054, %v7058
  %v7061 = vmul.f32 %v7053, %v7060
  %v7062 = vsub.f32 %v6998, %v7061
  %v7063 = vsub.f32 %v6999, %v7061
  %v7064 = vsub.f32 %v7000, %v7061
  %v7065 = vsub.f32 %v7001, %v7061
  %v7066 = vsub.f32 %v7002, %v7061
  %v7067 = vsub.f32 %v7003, %v7061
  %v7068 = vsub.f32 %v7004, %v7061
  %v7069 = vsub.f32 %v7005, %v7061
  %v7070 = vsub.f32 %v7006, %v7061
  %v7071 = vsub.f32 %v7007, %v7061
  %v7072 = vsub.f32 %v7008, %v7061
  %v7073 = vsub.f32 %v7009, %v7061
  %v7074 = vsub.f32 %v7010, %v7061
  %v7075 = vsub.f32 %v7011, %v7061
  %v7076 = vmul.f32 %v7062, %v7062
  %v7077 = vmul.f32 %v7063, %v7063
  %v7078 = vmul.f32 %v7064, %v7064
  %v7079 = vmul.f32 %v7065, %v7065
  %v7080 = vmul.f32 %v7066, %v7066
  %v7081 = vmul.f32 %v7067, %v7067
  %v7082 = vmul.f32 %v7068, %v7068
  %v7083 = vmul.f32 %v7069, %v7069
  %v7084 = vmul.f32 %v7070, %v7070
  %v7085 = vmul.f32 %v7071, %v7071
  %v7086 = vmul.f32 %v7072, %v7072
  %v7087 = vmul.f32 %v7073, %v7073
  %v7088 = vmul.f32 %v7074, %v7074
  %v7089 = vmul.f32 %v7075, %v7075
  %v7090 = vsel %vm6824, %v7076, 0.0
  %v7091 = vsel %vm6824, %v7083, 0.0
  %v7092 = vadd.f32 %v7090, %v7091
  %v7093 = vsel %vm6824, %v7077, 0.0
  %v7094 = vsel %vm6824, %v7084, 0.0
  %v7095 = vadd.f32 %v7093, %v7094
  %v7096 = vsel %vm6824, %v7078, 0.0
  %v7097 = vsel %vm6824, %v7085, 0.0
  %v7098 = vadd.f32 %v7096, %v7097
  %v7099 = vsel %vm6824, %v7079, 0.0
  %v7100 = vsel %vm6824, %v7086, 0.0
  %v7101 = vadd.f32 %v7099, %v7100
  %v7102 = vsel %vm6824, %v7080, 0.0
  %v7103 = vsel %vm6824, %v7087, 0.0
  %v7104 = vadd.f32 %v7102, %v7103
  %v7105 = vsel %vm6824, %v7081, 0.0
  %v7106 = vsel %vm6824, %v7088, 0.0
  %v7107 = vadd.f32 %v7105, %v7106
  %v7108 = vsel %vm6831, %v7082, 0.0
  %v7109 = vsel %vm6831, %v7089, 0.0
  %v7110 = vadd.f32 %v7108, %v7109
  %v7111 = vsel %vm6824, %v7092, 0.0
  %v7112 = vsel %vm6824, %v7095, 0.0
  %v7113 = vadd.f32 %v7111, %v7112
  %v7114 = vsel %vm6824, %v7098, 0.0
  %v7115 = vadd.f32 %v7113, %v7114
  %v7116 = vsel %vm6824, %v7101, 0.0
  %v7117 = vadd.f32 %v7115, %v7116
  %v7118 = vsel %vm6824, %v7104, 0.0
  %v7119 = vadd.f32 %v7117, %v7118
  %v7120 = vsel %vm6824, %v7107, 0.0
  %v7121 = vadd.f32 %v7119, %v7120
  %v7122 = vsel %vm6831, %v7110, 0.0
  %v7123 = vadd.f32 %v7121, %v7122
  %v7124 = vrot.slane %v7123, 4
  %v7125 = vadd.f32 %v7123, %v7124
  %v7126 = vrot.slane %v7125, 2
  %v7127 = vadd.f32 %v7125, %v7126
  %v7128 = vrot.slane %v7127, 1
  %v7129 = vadd.f32 %v7127, %v7128
  %v7130 = vmul.f32 %v7129, %v7060
  %v7131 = vadd.f32 %v7130, 1e-05
  %v7132 = vrsqrt.pop %v7131
  %v7133 = vmul.f32 %v7132, %v7131
  %v7134 = vmul.f32 %v7133, %v7132
  %v7135 = vmul.f32 0.5, %v7134
  %v7136 = vsub.f32 1.5, %v7135
  %v7137 = vmul.f32 %v7132, %v7136
  %vm7138 = vweird.f32 %v7131
  %vm7139 = vweird.f32 %v7132
  %vm7140 = vmor %vm7138, %vm7139
  %v7141 = vsel %vm7140, %v7132, %v7137
  %v7142 = vmul.f32 %v7141, %v7012
  %v7143 = vmul.f32 %v7061, %v7142
  %v7144 = vsub.f32 %v7013, %v7143
  %v7145 = vperm.slane %v7142, 0
  %v7146 = vmul.f32 %v6998, %v7145
  %v7147 = vmul.f32 %v6999, %v7145
  %v7148 = vmul.f32 %v7000, %v7145
  %v7149 = vmul.f32 %v7001, %v7145
  %v7150 = vmul.f32 %v7002, %v7145
  %v7151 = vmul.f32 %v7003, %v7145
  %v7152 = vmul.f32 %v7004, %v7145
  %v7153 = vmul.f32 %v7005, %v7145
  %v7154 = vmul.f32 %v7006, %v7145
  %v7155 = vmul.f32 %v7007, %v7145
  %v7156 = vmul.f32 %v7008, %v7145
  %v7157 = vmul.f32 %v7009, %v7145
  %v7158 = vmul.f32 %v7010, %v7145
  %v7159 = vmul.f32 %v7011, %v7145
  %v7161 = vperm.slane %v7144, 0
  %v7163 = vadd.f32 %v7146, %v7161
  %v7164 = vadd.f32 %v7147, %v7161
  %v7165 = vadd.f32 %v7148, %v7161
  %v7166 = vadd.f32 %v7149, %v7161
  %v7167 = vadd.f32 %v7150, %v7161
  %v7168 = vadd.f32 %v7151, %v7161
  %v7169 = vadd.f32 %v7152, %v7161
  %v7170 = vadd.f32 %v7153, %v7161
  %v7171 = vadd.f32 %v7154, %v7161
  %v7172 = vadd.f32 %v7155, %v7161
  %v7173 = vadd.f32 %v7156, %v7161
  %v7174 = vadd.f32 %v7157, %v7161
  %v7175 = vadd.f32 %v7158, %v7161
  %v7176 = vadd.f32 %v7159, %v7161
  %vm7177 = vcmp.gt.f32.partialorder %v7163, 0.0
  %vm7178 = vcmp.gt.f32.partialorder %v7164, 0.0
  %vm7179 = vcmp.gt.f32.partialorder %v7165, 0.0
  %vm7180 = vcmp.gt.f32.partialorder %v7166, 0.0
  %vm7181 = vcmp.gt.f32.partialorder %v7167, 0.0
  %vm7182 = vcmp.gt.f32.partialorder %v7168, 0.0
  %vm7183 = vcmp.gt.f32.partialorder %v7169, 0.0
  %vm7184 = vcmp.gt.f32.partialorder %v7170, 0.0
  %vm7185 = vcmp.gt.f32.partialorder %v7171, 0.0
  %vm7186 = vcmp.gt.f32.partialorder %v7172, 0.0
  %vm7187 = vcmp.gt.f32.partialorder %v7173, 0.0
  %vm7188 = vcmp.gt.f32.partialorder %v7174, 0.0
  %vm7189 = vcmp.gt.f32.partialorder %v7175, 0.0
  %vm7190 = vcmp.gt.f32.partialorder %v7176, 0.0
  %v7191 = vmul.f32 %v7163, 0.01
  %v7192 = vmul.f32 %v7164, 0.01
  %v7193 = vmul.f32 %v7165, 0.01
  %v7194 = vmul.f32 %v7166, 0.01
  %v7195 = vmul.f32 %v7167, 0.01
  %v7196 = vmul.f32 %v7168, 0.01
  %v7197 = vmul.f32 %v7169, 0.01
  %v7198 = vmul.f32 %v7170, 0.01
  %v7199 = vmul.f32 %v7171, 0.01
  %v7200 = vmul.f32 %v7172, 0.01
  %v7201 = vmul.f32 %v7173, 0.01
  %v7202 = vmul.f32 %v7174, 0.01
  %v7203 = vmul.f32 %v7175, 0.01
  %v7204 = vmul.f32 %v7176, 0.01
  %v7205 = vsel %vm7177, %v7163, %v7191
  %v7206 = vsel %vm7178, %v7164, %v7192
  %v7207 = vsel %vm7179, %v7165, %v7193
  %v7208 = vsel %vm7180, %v7166, %v7194
  %v7209 = vsel %vm7181, %v7167, %v7195
  %v7210 = vsel %vm7182, %v7168, %v7196
  %v7211 = vsel %vm7183, %v7169, %v7197
  %v7212 = vsel %vm7184, %v7170, %v7198
  %v7213 = vsel %vm7185, %v7171, %v7199
  %v7214 = vsel %vm7186, %v7172, %v7200
  %v7215 = vsel %vm7187, %v7173, %v7201
  %v7216 = vsel %vm7188, %v7174, %v7202
  %v7217 = vsel %vm7189, %v7175, %v7203
  %v7218 = vsel %vm7190, %v7176, %v7204
  %7219 = vst.msk [vmem:[#allocation7] sm:$0xff] %vm6824, %v7205
  %7220 = vst.msk [vmem:[#allocation7 + $0x8] sm:$0xff] %vm6824, %v7206
  %7221 = vst.msk [vmem:[#allocation7 + $0x10] sm:$0xff] %vm6824, %v7207
  %7222 = vst.msk [vmem:[#allocation7 + $0x18] sm:$0xff] %vm6824, %v7208
  %7223 = vst.msk [vmem:[#allocation7 + $0x20] sm:$0xff] %vm6824, %v7209
  %7224 = vst.msk [vmem:[#allocation7 + $0x28] sm:$0xff] %vm6824, %v7210
  %7225 = vst.msk [vmem:[#allocation7 + $0x30] sm:$0x1] %vm6831, %v7211
  %7226 = vst.msk [vmem:[#allocation7 + $0x38] sm:$0xff] %vm6824, %v7212
  %7227 = vst.msk [vmem:[#allocation7 + $0x40] sm:$0xff] %vm6824, %v7213
  %7228 = vst.msk [vmem:[#allocation7 + $0x48] sm:$0xff] %vm6824, %v7214
  %7229 = vst.msk [vmem:[#allocation7 + $0x50] sm:$0xff] %vm6824, %v7215
  %7230 = vst.msk [vmem:[#allocation7 + $0x58] sm:$0xff] %vm6824, %v7216
  %7231 = vst.msk [vmem:[#allocation7 + $0x60] sm:$0xff] %vm6824, %v7217
  %7232 = vst.msk [vmem:[#allocation7 + $0x68] sm:$0x1] %vm6831, %v7218
  %v7233 = vld [vmem:[#allocation7] sm:$0x7f]
  %v7234 = vld [vmem:[#allocation7 + $0x38] sm:$0x7f]
  %vm7235 = vcmask 522240
  %7236 = vst.msk [vmem:[#allocation8] sm:$0x7f] %vm7235, %v7233
  %7237 = vst.msk [vmem:[#allocation8 + $0x20] sm:$0x7f] %vm7235, %v7234
  %v7238 = vld [vmem:[#allocation7 + $0x7] sm:$0x7f]
  %v7239 = vld [vmem:[#allocation7 + $0x3f] sm:$0x7f]
  %7240 = vst.msk [vmem:[#allocation9] sm:$0x7f] %vm7235, %v7238
  %7241 = vst.msk [vmem:[#allocation9 + $0x18] sm:$0x7f] %vm7235, %v7239
  %v7242 = vld [vmem:[#allocation7 + $0xe] sm:$0x7f]
  %v7243 = vld [vmem:[#allocation7 + $0x46] sm:$0x7f]
  %s7244 = scalar_lea.vmem [#allocation8], 8
  %7245 = vst.msk [vmem:[%s7244] sm:$0x7f] %vm7235, %v7242
  %7246 = vst.msk [vmem:[%s7244 + $0x20] sm:$0x7f] %vm7235, %v7243
  %v7247 = vld [vmem:[#allocation7 + $0x15] sm:$0x7f]
  %v7248 = vld [vmem:[#allocation7 + $0x4d] sm:$0x7f]
  %s7249 = scalar_lea.vmem [#allocation9], 8
  %7250 = vst.msk [vmem:[%s7249] sm:$0x7f] %vm7235, %v7247
  %7251 = vst.msk [vmem:[%s7249 + $0x18] sm:$0x7f] %vm7235, %v7248
  %v7252 = vld [vmem:[#allocation7 + $0x1c] sm:$0x7f]
  %v7253 = vld [vmem:[#allocation7 + $0x54] sm:$0x7f]
  %s7254 = scalar_lea.vmem [#allocation8], 16
  %7255 = vst.msk [vmem:[%s7254] sm:$0x7f] %vm7235, %v7252
  %7256 = vst.msk [vmem:[%s7254 + $0x20] sm:$0x7f] %vm7235, %v7253
  %v7257 = vld [vmem:[#allocation7 + $0x23] sm:$0x7f]
  %v7258 = vld [vmem:[#allocation7 + $0x5b] sm:$0x7f]
  %s7259 = scalar_lea.vmem [#allocation9], 16
  %7260 = vst.msk [vmem:[%s7259] sm:$0x7f] %vm7235, %v7257
  %7261 = vst.msk [vmem:[%s7259 + $0x18] sm:$0x7f] %vm7235, %v7258
  %v7262 = vld [vmem:[#allocation7 + $0x2a] sm:$0x7f]
  %v7263 = vld [vmem:[#allocation7 + $0x62] sm:$0x7f]
  %s7264 = scalar_lea.vmem [#allocation8], 24
  %7265 = vst.msk [vmem:[%s7264] sm:$0x7f] %vm7235, %v7262
  %7266 = vst.msk [vmem:[%s7264 + $0x20] sm:$0x7f] %vm7235, %v7263
  %v7267 = vld [vmem:[#allocation8] ss:$2 sm:$0x7]
  %s7268 = scalar_lea.vmem [#allocation8], 8
  %v7269 = vld [vmem:[%s7268] ss:$2 sm:$0x7]
  %s7270 = scalar_lea.vmem [#allocation8], 16
  %v7271 = vld [vmem:[%s7270] ss:$2 sm:$0x7]
  %s7272 = scalar_lea.vmem [#allocation8], 32
  %v7273 = vld [vmem:[%s7272] ss:$2 sm:$0x7]
  %s7274 = scalar_lea.vmem [#allocation8], 40
  %v7275 = vld [vmem:[%s7274] ss:$2 sm:$0x7]
  %s7276 = scalar_lea.vmem [#allocation8], 48
  %v7277 = vld [vmem:[%s7276] ss:$2 sm:$0x7]
  %vm7278 = vcmask 518144
  %7279 = vst.msk [vmem:[#allocation10] sm:$0x7] %vm7278, %v7267
  %7280 = vst.msk [vmem:[#allocation10 + $0x50] sm:$0x7] %vm7278, %v7273
  %v7283 = vrot.slane %v7269, 5
  %v7284 = vrot.slane %v7275, 5
  %vm7287 = vcmask 521219
  %7288 = vst.msk [vmem:[#allocation10] sm:$0x38] %vm7287, %v7283
  %7289 = vst.msk [vmem:[#allocation10 + $0x50] sm:$0x38] %vm7287, %v7284
  %v7292 = vrot.slane %v7271, 2
  %v7293 = vrot.slane %v7277, 2
  %vm7296 = vcmask 523270
  %7297 = vst.msk [vmem:[#allocation10] sm:$0xc0] %vm7296, %v7292
  %7298 = vst.msk [vmem:[#allocation10 + $0x28] sm:$0x1] %vm6831, %v7292
  %7299 = vst.msk [vmem:[#allocation10 + $0x50] sm:$0xc0] %vm7296, %v7293
  %7300 = vst.msk [vmem:[#allocation10 + $0x78] sm:$0x1] %vm6831, %v7293
  %s7301 = scalar_lea.vmem [#allocation8], 1
  %v7302 = vld [vmem:[%s7301] ss:$2 sm:$0x7]
  %s7303 = scalar_lea.vmem [#allocation8], 9
  %v7304 = vld [vmem:[%s7303] ss:$2 sm:$0x7]
  %s7305 = scalar_lea.vmem [#allocation8], 17
  %v7306 = vld [vmem:[%s7305] ss:$2 sm:$0x7]
  %s7307 = scalar_lea.vmem [#allocation8], 33
  %v7308 = vld [vmem:[%s7307] ss:$2 sm:$0x7]
  %s7309 = scalar_lea.vmem [#allocation8], 41
  %v7310 = vld [vmem:[%s7309] ss:$2 sm:$0x7]
  %s7311 = scalar_lea.vmem [#allocation8], 49
  %v7312 = vld [vmem:[%s7311] ss:$2 sm:$0x7]
  %7315 = vrot.lane.b32.xlu0 %v7302, 64
  %v7316 = vpop.permute.xlu0 %7315
  %7317 = vrot.lane.b32.xlu0 %v7308, 64
  %v7318 = vpop.permute.xlu0 %7317
  %vm7321 = vcmask 1042944
  %7322 = vst.msk [vmem:[#allocation10] sm:$0x7] %vm7321, %v7316
  %7323 = vst.msk [vmem:[#allocation10 + $0x50] sm:$0x7] %vm7321, %v7318
  %v7326 = vrot.slane %v7304, 5
  %v7327 = vrot.slane %v7310, 5
  %7328 = vrot.lane.b32.xlu0 %v7326, 64
  %v7329 = vpop.permute.xlu0 %7328
  %7330 = vrot.lane.b32.xlu0 %v7327, 64
  %v7331 = vpop.permute.xlu0 %7330
  %vm7334 = vcmask 1046019
  %7335 = vst.msk [vmem:[#allocation10] sm:$0x38] %vm7334, %v7329
  %7336 = vst.msk [vmem:[#allocation10 + $0x50] sm:$0x38] %vm7334, %v7331
  %v7339 = vrot.slane %v7306, 2
  %v7340 = vrot.slane %v7312, 2
  %7341 = vrot.lane.b32.xlu0 %v7339, 64
  %v7342 = vpop.permute.xlu0 %7341
  %7343 = vrot.lane.b32.xlu0 %v7340, 64
  %v7344 = vpop.permute.xlu0 %7343
  %vm7347 = vcmask 1048070
  %7348 = vst.msk [vmem:[#allocation10] sm:$0xc0] %vm7347, %v7342
  %vm7349 = vcmask 1040896
  %7350 = vst.msk [vmem:[#allocation10 + $0x28] sm:$0x1] %vm7349, %v7342
  %7351 = vst.msk [vmem:[#allocation10 + $0x50] sm:$0xc0] %vm7347, %v7344
  %7352 = vst.msk [vmem:[#allocation10 + $0x78] sm:$0x1] %vm7349, %v7344
  %s7353 = scalar_lea.vmem [#allocation8], 2
  %v7354 = vld [vmem:[%s7353] ss:$2 sm:$0x7]
  %s7355 = scalar_lea.vmem [#allocation8], 10
  %v7356 = vld [vmem:[%s7355] ss:$2 sm:$0x7]
  %s7357 = scalar_lea.vmem [#allocation8], 18
  %v7358 = vld [vmem:[%s7357] ss:$2 sm:$0x7]
  %s7359 = scalar_lea.vmem [#allocation8], 34
  %v7360 = vld [vmem:[%s7359] ss:$2 sm:$0x7]
  %s7361 = scalar_lea.vmem [#allocation8], 42
  %v7362 = vld [vmem:[%s7361] ss:$2 sm:$0x7]
  %s7363 = scalar_lea.vmem [#allocation8], 50
  %v7364 = vld [vmem:[%s7363] ss:$2 sm:$0x7]
  %7365 = vst.msk [vmem:[#allocation10 + $0x8] sm:$0x7] %vm7278, %v7354
  %7366 = vst.msk [vmem:[#allocation10 + $0x58] sm:$0x7] %vm7278, %v7360
  %v7369 = vrot.slane %v7356, 5
  %v7370 = vrot.slane %v7362, 5
  %7373 = vst.msk [vmem:[#allocation10 + $0x8] sm:$0x38] %vm7287, %v7369
  %7374 = vst.msk [vmem:[#allocation10 + $0x58] sm:$0x38] %vm7287, %v7370
  %v7377 = vrot.slane %v7358, 2
  %v7378 = vrot.slane %v7364, 2
  %7381 = vst.msk [vmem:[#allocation10 + $0x8] sm:$0xc0] %vm7296, %v7377
  %7382 = vst.msk [vmem:[#allocation10 + $0x30] sm:$0x1] %vm6831, %v7377
  %7383 = vst.msk [vmem:[#allocation10 + $0x58] sm:$0xc0] %vm7296, %v7378
  %7384 = vst.msk [vmem:[#allocation10 + $0x80] sm:$0x1] %vm6831, %v7378
  %v7385 = vld [vmem:[#allocation9] ss:$2 sm:$0x7]
  %s7386 = scalar_lea.vmem [#allocation9], 8
  %v7387 = vld [vmem:[%s7386] ss:$2 sm:$0x7]
  %s7388 = scalar_lea.vmem [#allocation9], 16
  %v7389 = vld [vmem:[%s7388] ss:$2 sm:$0x7]
  %s7390 = scalar_lea.vmem [#allocation9], 24
  %v7391 = vld [vmem:[%s7390] ss:$2 sm:$0x7]
  %s7392 = scalar_lea.vmem [#allocation9], 32
  %v7393 = vld [vmem:[%s7392] ss:$2 sm:$0x7]
  %s7394 = scalar_lea.vmem [#allocation9], 40
  %v7395 = vld [vmem:[%s7394] ss:$2 sm:$0x7]
  %7398 = vrot.lane.b32.xlu0 %v7385, 64
  %v7399 = vpop.permute.xlu0 %7398
  %7400 = vrot.lane.b32.xlu0 %v7391, 64
  %v7401 = vpop.permute.xlu0 %7400
  %7404 = vst.msk [vmem:[#allocation10 + $0x8] sm:$0x7] %vm7321, %v7399
  %7405 = vst.msk [vmem:[#allocation10 + $0x58] sm:$0x7] %vm7321, %v7401
  %v7408 = vrot.slane %v7387, 5
  %v7409 = vrot.slane %v7393, 5
  %7410 = vrot.lane.b32.xlu0 %v7408, 64
  %v7411 = vpop.permute.xlu0 %7410
  %7412 = vrot.lane.b32.xlu0 %v7409, 64
  %v7413 = vpop.permute.xlu0 %7412
  %7416 = vst.msk [vmem:[#allocation10 + $0x8] sm:$0x38] %vm7334, %v7411
  %7417 = vst.msk [vmem:[#allocation10 + $0x58] sm:$0x38] %vm7334, %v7413
  %v7420 = vrot.slane %v7389, 2
  %v7421 = vrot.slane %v7395, 2
  %7422 = vrot.lane.b32.xlu0 %v7420, 64
  %v7423 = vpop.permute.xlu0 %7422
  %7424 = vrot.lane.b32.xlu0 %v7421, 64
  %v7425 = vpop.permute.xlu0 %7424
  %7428 = vst.msk [vmem:[#allocation10 + $0x8] sm:$0xc0] %vm7347, %v7423
  %7429 = vst.msk [vmem:[#allocation10 + $0x30] sm:$0x1] %vm7349, %v7423
  %7430 = vst.msk [vmem:[#allocation10 + $0x58] sm:$0xc0] %vm7347, %v7425
  %7431 = vst.msk [vmem:[#allocation10 + $0x80] sm:$0x1] %vm7349, %v7425
  %s7432 = scalar_lea.vmem [#allocation9], 1
  %v7433 = vld [vmem:[%s7432] ss:$2 sm:$0x7]
  %s7434 = scalar_lea.vmem [#allocation9], 9
  %v7435 = vld [vmem:[%s7434] ss:$2 sm:$0x7]
  %s7436 = scalar_lea.vmem [#allocation9], 17
  %v7437 = vld [vmem:[%s7436] ss:$2 sm:$0x7]
  %s7438 = scalar_lea.vmem [#allocation9], 25
  %v7439 = vld [vmem:[%s7438] ss:$2 sm:$0x7]
  %s7440 = scalar_lea.vmem [#allocation9], 33
  %v7441 = vld [vmem:[%s7440] ss:$2 sm:$0x7]
  %s7442 = scalar_lea.vmem [#allocation9], 41
  %v7443 = vld [vmem:[%s7442] ss:$2 sm:$0x7]
  %7444 = vst.msk [vmem:[#allocation10 + $0x10] sm:$0x7] %vm7278, %v7433
  %7445 = vst.msk [vmem:[#allocation10 + $0x60] sm:$0x7] %vm7278, %v7439
  %v7448 = vrot.slane %v7435, 5
  %v7449 = vrot.slane %v7441, 5
  %7452 = vst.msk [vmem:[#allocation10 + $0x10] sm:$0x38] %vm7287, %v7448
  %7453 = vst.msk [vmem:[#allocation10 + $0x60] sm:$0x38] %vm7287, %v7449
  %v7456 = vrot.slane %v7437, 2
  %v7457 = vrot.slane %v7443, 2
  %7460 = vst.msk [vmem:[#allocation10 + $0x10] sm:$0xc0] %vm7296, %v7456
  %7461 = vst.msk [vmem:[#allocation10 + $0x38] sm:$0x1] %vm6831, %v7456
  %7462 = vst.msk [vmem:[#allocation10 + $0x60] sm:$0xc0] %vm7296, %v7457
  %7463 = vst.msk [vmem:[#allocation10 + $0x88] sm:$0x1] %vm6831, %v7457
  %s7464 = scalar_lea.vmem [#allocation9], 2
  %v7465 = vld [vmem:[%s7464] ss:$2 sm:$0x7]
  %s7466 = scalar_lea.vmem [#allocation9], 10
  %v7467 = vld [vmem:[%s7466] ss:$2 sm:$0x7]
  %s7468 = scalar_lea.vmem [#allocation9], 18
  %v7469 = vld [vmem:[%s7468] ss:$2 sm:$0x7]
  %s7470 = scalar_lea.vmem [#allocation9], 26
  %v7471 = vld [vmem:[%s7470] ss:$2 sm:$0x7]
  %s7472 = scalar_lea.vmem [#allocation9], 34
  %v7473 = vld [vmem:[%s7472] ss:$2 sm:$0x7]
  %s7474 = scalar_lea.vmem [#allocation9], 42
  %v7475 = vld [vmem:[%s7474] ss:$2 sm:$0x7]
  %7478 = vrot.lane.b32.xlu0 %v7465, 64
  %v7479 = vpop.permute.xlu0 %7478
  %7480 = vrot.lane.b32.xlu0 %v7471, 64
  %v7481 = vpop.permute.xlu0 %7480
  %7484 = vst.msk [vmem:[#allocation10 + $0x10] sm:$0x7] %vm7321, %v7479
  %7485 = vst.msk [vmem:[#allocation10 + $0x60] sm:$0x7] %vm7321, %v7481
  %v7488 = vrot.slane %v7467, 5
  %v7489 = vrot.slane %v7473, 5
  %7490 = vrot.lane.b32.xlu0 %v7488, 64
  %v7491 = vpop.permute.xlu0 %7490
  %7492 = vrot.lane.b32.xlu0 %v7489, 64
  %v7493 = vpop.permute.xlu0 %7492
  %7496 = vst.msk [vmem:[#allocation10 + $0x10] sm:$0x38] %vm7334, %v7491
  %7497 = vst.msk [vmem:[#allocation10 + $0x60] sm:$0x38] %vm7334, %v7493
  %v7500 = vrot.slane %v7469, 2
  %v7501 = vrot.slane %v7475, 2
  %7502 = vrot.lane.b32.xlu0 %v7500, 64
  %v7503 = vpop.permute.xlu0 %7502
  %7504 = vrot.lane.b32.xlu0 %v7501, 64
  %v7505 = vpop.permute.xlu0 %7504
  %7508 = vst.msk [vmem:[#allocation10 + $0x10] sm:$0xc0] %vm7347, %v7503
  %7509 = vst.msk [vmem:[#allocation10 + $0x38] sm:$0x1] %vm7349, %v7503
  %7510 = vst.msk [vmem:[#allocation10 + $0x60] sm:$0xc0] %vm7347, %v7505
  %7511 = vst.msk [vmem:[#allocation10 + $0x88] sm:$0x1] %vm7349, %v7505
  %v7512 = vld [vmem:[%s7244] ss:$2 sm:$0x7]
  %s7513 = scalar_lea.vmem %s7244, 8 [#allocation8]
  %v7514 = vld [vmem:[%s7513] ss:$2 sm:$0x7]
  %s7515 = scalar_lea.vmem %s7244, 16 [#allocation8]
  %v7516 = vld [vmem:[%s7515] ss:$2 sm:$0x7]
  %s7517 = scalar_lea.vmem %s7244, 32 [#allocation8]
  %v7518 = vld [vmem:[%s7517] ss:$2 sm:$0x7]
  %s7519 = scalar_lea.vmem %s7244, 40 [#allocation8]
  %v7520 = vld [vmem:[%s7519] ss:$2 sm:$0x7]
  %s7521 = scalar_lea.vmem %s7244, 48 [#allocation8]
  %v7522 = vld [vmem:[%s7521] ss:$2 sm:$0x7]
  %7523 = vst.msk [vmem:[#allocation10 + $0x18] sm:$0x7] %vm7278, %v7512
  %7524 = vst.msk [vmem:[#allocation10 + $0x68] sm:$0x7] %vm7278, %v7518
  %v7527 = vrot.slane %v7514, 5
  %v7528 = vrot.slane %v7520, 5
  %7531 = vst.msk [vmem:[#allocation10 + $0x18] sm:$0x38] %vm7287, %v7527
  %7532 = vst.msk [vmem:[#allocation10 + $0x68] sm:$0x38] %vm7287, %v7528
  %v7535 = vrot.slane %v7516, 2
  %v7536 = vrot.slane %v7522, 2
  %7539 = vst.msk [vmem:[#allocation10 + $0x18] sm:$0xc0] %vm7296, %v7535
  %7540 = vst.msk [vmem:[#allocation10 + $0x40] sm:$0x1] %vm6831, %v7535
  %7541 = vst.msk [vmem:[#allocation10 + $0x68] sm:$0xc0] %vm7296, %v7536
  %7542 = vst.msk [vmem:[#allocation10 + $0x90] sm:$0x1] %vm6831, %v7536
  %s7543 = scalar_lea.vmem %s7244, 1 [#allocation8]
  %v7544 = vld [vmem:[%s7543] ss:$2 sm:$0x7]
  %s7545 = scalar_lea.vmem %s7244, 9 [#allocation8]
  %v7546 = vld [vmem:[%s7545] ss:$2 sm:$0x7]
  %s7547 = scalar_lea.vmem %s7244, 17 [#allocation8]
  %v7548 = vld [vmem:[%s7547] ss:$2 sm:$0x7]
  %s7549 = scalar_lea.vmem %s7244, 33 [#allocation8]
  %v7550 = vld [vmem:[%s7549] ss:$2 sm:$0x7]
  %s7551 = scalar_lea.vmem %s7244, 41 [#allocation8]
  %v7552 = vld [vmem:[%s7551] ss:$2 sm:$0x7]
  %s7553 = scalar_lea.vmem %s7244, 49 [#allocation8]
  %v7554 = vld [vmem:[%s7553] ss:$2 sm:$0x7]
  %7557 = vrot.lane.b32.xlu0 %v7544, 64
  %v7558 = vpop.permute.xlu0 %7557
  %7559 = vrot.lane.b32.xlu0 %v7550, 64
  %v7560 = vpop.permute.xlu0 %7559
  %7563 = vst.msk [vmem:[#allocation10 + $0x18] sm:$0x7] %vm7321, %v7558
  %7564 = vst.msk [vmem:[#allocation10 + $0x68] sm:$0x7] %vm7321, %v7560
  %v7567 = vrot.slane %v7546, 5
  %v7568 = vrot.slane %v7552, 5
  %7569 = vrot.lane.b32.xlu0 %v7567, 64
  %v7570 = vpop.permute.xlu0 %7569
  %7571 = vrot.lane.b32.xlu0 %v7568, 64
  %v7572 = vpop.permute.xlu0 %7571
  %7575 = vst.msk [vmem:[#allocation10 + $0x18] sm:$0x38] %vm7334, %v7570
  %7576 = vst.msk [vmem:[#allocation10 + $0x68] sm:$0x38] %vm7334, %v7572
  %v7579 = vrot.slane %v7548, 2
  %v7580 = vrot.slane %v7554, 2
  %7581 = vrot.lane.b32.xlu0 %v7579, 64
  %v7582 = vpop.permute.xlu0 %7581
  %7583 = vrot.lane.b32.xlu0 %v7580, 64
  %v7584 = vpop.permute.xlu0 %7583
  %7587 = vst.msk [vmem:[#allocation10 + $0x18] sm:$0xc0] %vm7347, %v7582
  %7588 = vst.msk [vmem:[#allocation10 + $0x40] sm:$0x1] %vm7349, %v7582
  %7589 = vst.msk [vmem:[#allocation10 + $0x68] sm:$0xc0] %vm7347, %v7584
  %7590 = vst.msk [vmem:[#allocation10 + $0x90] sm:$0x1] %vm7349, %v7584
  %s7591 = scalar_lea.vmem %s7244, 2 [#allocation8]
  %v7592 = vld [vmem:[%s7591] ss:$2 sm:$0x7]
  %s7593 = scalar_lea.vmem %s7244, 10 [#allocation8]
  %v7594 = vld [vmem:[%s7593] ss:$2 sm:$0x7]
  %s7595 = scalar_lea.vmem %s7244, 18 [#allocation8]
  %v7596 = vld [vmem:[%s7595] ss:$2 sm:$0x7]
  %s7597 = scalar_lea.vmem %s7244, 34 [#allocation8]
  %v7598 = vld [vmem:[%s7597] ss:$2 sm:$0x7]
  %s7599 = scalar_lea.vmem %s7244, 42 [#allocation8]
  %v7600 = vld [vmem:[%s7599] ss:$2 sm:$0x7]
  %s7601 = scalar_lea.vmem %s7244, 50 [#allocation8]
  %v7602 = vld [vmem:[%s7601] ss:$2 sm:$0x7]
  %7603 = vst.msk [vmem:[#allocation10 + $0x20] sm:$0x7] %vm7278, %v7592
  %7604 = vst.msk [vmem:[#allocation10 + $0x70] sm:$0x7] %vm7278, %v7598
  %v7607 = vrot.slane %v7594, 5
  %v7608 = vrot.slane %v7600, 5
  %7611 = vst.msk [vmem:[#allocation10 + $0x20] sm:$0x38] %vm7287, %v7607
  %7612 = vst.msk [vmem:[#allocation10 + $0x70] sm:$0x38] %vm7287, %v7608
  %v7615 = vrot.slane %v7596, 2
  %v7616 = vrot.slane %v7602, 2
  %7619 = vst.msk [vmem:[#allocation10 + $0x20] sm:$0xc0] %vm7296, %v7615
  %7620 = vst.msk [vmem:[#allocation10 + $0x48] sm:$0x1] %vm6831, %v7615
  %7621 = vst.msk [vmem:[#allocation10 + $0x70] sm:$0xc0] %vm7296, %v7616
  %7622 = vst.msk [vmem:[#allocation10 + $0x98] sm:$0x1] %vm6831, %v7616
  %v7623 = vld [vmem:[%s7] sm:$0xff]
  %v7624 = vld [vmem:[%s7 + $0x8] sm:$0xff]
  %v7625 = vld [vmem:[%s7 + $0x10] sm:$0xff]
  %v7626 = vld [vmem:[%s7 + $0x18] sm:$0xff]
  %v7627 = vld [vmem:[%s7 + $0x20] sm:$0xff]
  %v7628 = vld [vmem:[%s7 + $0x28] sm:$0xff]
  %v7629 = vld [vmem:[%s7 + $0x30] sm:$0xff]
  %v7630 = vld [vmem:[%s7 + $0x38] sm:$0xff]
  %v7631 = vld [vmem:[%s7 + $0x40] sm:$0xff]
  %v7632 = vld [vmem:[%s7 + $0x48] sm:$0xff]
  %v7633 = vld [vmem:[%s7 + $0x50] sm:$0xff]
  %v7634 = vld [vmem:[%s7 + $0x58] sm:$0xff]
  %v7635 = vld [vmem:[%s7 + $0x60] sm:$0xff]
  %v7636 = vld [vmem:[%s7 + $0x68] sm:$0xff]
  %v7637 = vld [vmem:[%s7 + $0x70] sm:$0xff]
  %v7638 = vld [vmem:[%s7 + $0x78] sm:$0xff]
  %v7639 = vld [vmem:[%s7 + $0x80] sm:$0xff]
  %v7640 = vld [vmem:[%s7 + $0x88] sm:$0xff]
  %v7641 = vld [vmem:[%s7 + $0x90] sm:$0xff]
  %v7642 = vld [vmem:[%s7 + $0x98] sm:$0xff]
  %v7643 = vld [vmem:[%s7 + $0xa0] sm:$0xff]
  %v7644 = vld [vmem:[%s7 + $0xa8] sm:$0xff]
  %v7645 = vld [vmem:[%s7 + $0xb0] sm:$0xff]
  %v7646 = vld [vmem:[%s7 + $0xb8] sm:$0xff]
  %v7647 = vld [vmem:[%s7 + $0xc0] sm:$0xff]
  %v7648 = vld [vmem:[%s7 + $0xc8] sm:$0xff]
  %v7649 = vld [vmem:[%s7 + $0xd0] sm:$0xff]
  %v7650 = vld [vmem:[%s7 + $0xd8] sm:$0xff]
  %v7651 = vld [vmem:[%s7 + $0xe0] sm:$0xff]
  %v7652 = vld [vmem:[%s7 + $0xe8] sm:$0xff]
  %v7653 = vld [vmem:[%s7 + $0xf0] sm:$0xff]
  %v7654 = vld [vmem:[%s7 + $0xf8] sm:$0xff]
  %v7655 = vld [vmem:[%s7 + $0x100] sm:$0xff]
  %v7656 = vld [vmem:[%s7 + $0x108] sm:$0xff]
  %v7657 = vld [vmem:[%s7 + $0x110] sm:$0xff]
  %v7658 = vld [vmem:[%s7 + $0x118] sm:$0xff]
  %v7659 = vld [vmem:[%s7 + $0x120] sm:$0xff]
  %v7660 = vld [vmem:[%s7 + $0x128] sm:$0xff]
  %v7661 = vld [vmem:[%s7 + $0x130] sm:$0xff]
  %v7662 = vld [vmem:[%s7 + $0x138] sm:$0xff]
  %v7663 = vld [vmem:[%s7 + $0x140] sm:$0xff]
  %v7664 = vld [vmem:[%s7 + $0x148] sm:$0xff]
  %v7665 = vld [vmem:[%s7 + $0x150] sm:$0xff]
  %v7666 = vld [vmem:[%s7 + $0x158] sm:$0xff]
  %v7667 = vld [vmem:[%s7 + $0x160] sm:$0xff]
  %v7668 = vld [vmem:[%s7 + $0x168] sm:$0xff]
  %v7669 = vld [vmem:[%s7 + $0x170] sm:$0xff]
  %v7670 = vld [vmem:[%s7 + $0x178] sm:$0xff]
  %v7671 = vld [vmem:[%s7 + $0x180] sm:$0xff]
  %v7672 = vld [vmem:[%s7 + $0x188] sm:$0xff]
  %v7673 = vld [vmem:[%s7 + $0x190] sm:$0xff]
  %v7674 = vld [vmem:[%s7 + $0x198] sm:$0xff]
  %v7675 = vld [vmem:[%s7 + $0x1a0] sm:$0xff]
  %v7676 = vld [vmem:[%s7 + $0x1a8] sm:$0xff]
  %v7677 = vld [vmem:[%s7 + $0x1b0] sm:$0xff]
  %v7678 = vld [vmem:[%s7 + $0x1b8] sm:$0xff]
  %v7679 = vld [vmem:[%s7 + $0x1c0] sm:$0xff]
  %v7680 = vld [vmem:[%s7 + $0x1c8] sm:$0xff]
  %v7681 = vld [vmem:[%s7 + $0x1d0] sm:$0xff]
  %v7682 = vld [vmem:[%s7 + $0x1d8] sm:$0xff]
  %v7683 = vld [vmem:[%s7 + $0x1e0] sm:$0xff]
  %v7684 = vld [vmem:[%s7 + $0x1e8] sm:$0xff]
  %v7685 = vld [vmem:[%s7 + $0x1f0] sm:$0xff]
  %v7686 = vld [vmem:[%s7 + $0x1f8] sm:$0xff]
  %v7687 = vld [vmem:[%s7 + $0x200] sm:$0xff]
  %v7688 = vld [vmem:[%s7 + $0x208] sm:$0xff]
  %v7689 = vld [vmem:[%s7 + $0x210] sm:$0xff]
  %v7690 = vld [vmem:[%s7 + $0x218] sm:$0xff]
  %v7691 = vld [vmem:[%s7 + $0x220] sm:$0xff]
  %v7692 = vld [vmem:[%s7 + $0x228] sm:$0xff]
  %v7693 = vld [vmem:[%s7 + $0x230] sm:$0xff]
  %v7694 = vld [vmem:[%s7 + $0x238] sm:$0xff]
  %v7695 = vld [vmem:[%s8] sm:$0x1]
  %v7696 = vld [vmem:[#allocation10] sm:$0xff]
  %v7697 = vld [vmem:[#allocation10 + $0x8] sm:$0xff]
  %v7698 = vld [vmem:[#allocation10 + $0x10] sm:$0xff]
  %v7699 = vld [vmem:[#allocation10 + $0x18] sm:$0xff]
  %v7700 = vld [vmem:[#allocation10 + $0x20] sm:$0xff]
  %v7701 = vld [vmem:[#allocation10 + $0x28] sm:$0x1]
  %v7702 = vld [vmem:[#allocation10 + $0x30] sm:$0x1]
  %v7703 = vld [vmem:[#allocation10 + $0x38] sm:$0x1]
  %v7704 = vld [vmem:[#allocation10 + $0x40] sm:$0x1]
  %v7705 = vld [vmem:[#allocation10 + $0x48] sm:$0x1]
  %v7707 = vperm.slane %v7695, 0
  %v7710 = vsel %vm6824, %v7700, 0
  %v7713 = vsel %vm6824, %v7705, 0
  %7715 = vmatpush.msra.mxu0 %v7638
  %7716 = vmatpush.msra.mxu0 %v7637
  %7717 = vmatpush.msra.mxu0 %v7636
  %7718 = vmatpush.msra.mxu0 %v7635
  %7719 = vmatpush.msra.mxu0 %v7634
  %7720 = vmatpush.msra.mxu0 %v7633
  %7721 = vmatpush.msra.mxu0 %v7632
  %7722 = vmatpush.msra.mxu0 %v7631
  %7723 = vmatpush.msra.mxu0 %v7630
  %7724 = vmatpush.msra.mxu0 %v7629
  %7725 = vmatpush.msra.mxu0 %v7628
  %7726 = vmatpush.msra.mxu0 %v7627
  %7727 = vmatpush.msra.mxu0 %v7626
  %7728 = vmatpush.msra.mxu0 %v7625
  %7729 = vmatpush.msra.mxu0 %v7624
  %7730 = vmatpush.msra.mxu0 %v7623
  %7731 = vmatmul.f32.gmra.mxu0 %v7696
  %v7732 = vpop.f32.mrf.mxu0
  %v7733 = vadd.f32 %v7707, %v7732
  %7734 = vmatmul.f32.gmra.mxu0 %v7701
  %v7735 = vpop.f32.mrf.mxu0
  %v7736 = vadd.f32 %v7707, %v7735
  %7737 = vdwg.mxu0
  %7738 = vmatpush.msra.mxu0 %v7654
  %7739 = vmatpush.msra.mxu0 %v7653
  %7740 = vmatpush.msra.mxu0 %v7652
  %7741 = vmatpush.msra.mxu0 %v7651
  %7742 = vmatpush.msra.mxu0 %v7650
  %7743 = vmatpush.msra.mxu0 %v7649
  %7744 = vmatpush.msra.mxu0 %v7648
  %7745 = vmatpush.msra.mxu0 %v7647
  %7746 = vmatpush.msra.mxu0 %v7646
  %7747 = vmatpush.msra.mxu0 %v7645
  %7748 = vmatpush.msra.mxu0 %v7644
  %7749 = vmatpush.msra.mxu0 %v7643
  %7750 = vmatpush.msra.mxu0 %v7642
  %7751 = vmatpush.msra.mxu0 %v7641
  %7752 = vmatpush.msra.mxu0 %v7640
  %7753 = vmatpush.msra.mxu0 %v7639
  %7754 = vmatmul.f32.gmra.mxu0 %v7697
  %v7755 = vpop.f32.mrf.mxu0
  %v7756 = vadd.f32 %v7733, %v7755
  %7757 = vmatmul.f32.gmra.mxu0 %v7702
  %v7758 = vpop.f32.mrf.mxu0
  %v7759 = vadd.f32 %v7736, %v7758
  %7760 = vdwg.mxu0
  %7761 = vmatpush.msra.mxu0 %v7670
  %7762 = vmatpush.msra.mxu0 %v7669
  %7763 = vmatpush.msra.mxu0 %v7668
  %7764 = vmatpush.msra.mxu0 %v7667
  %7765 = vmatpush.msra.mxu0 %v7666
  %7766 = vmatpush.msra.mxu0 %v7665
  %7767 = vmatpush.msra.mxu0 %v7664
  %7768 = vmatpush.msra.mxu0 %v7663
  %7769 = vmatpush.msra.mxu0 %v7662
  %7770 = vmatpush.msra.mxu0 %v7661
  %7771 = vmatpush.msra.mxu0 %v7660
  %7772 = vmatpush.msra.mxu0 %v7659
  %7773 = vmatpush.msra.mxu0 %v7658
  %7774 = vmatpush.msra.mxu0 %v7657
  %7775 = vmatpush.msra.mxu0 %v7656
  %7776 = vmatpush.msra.mxu0 %v7655
  %7777 = vmatmul.f32.gmra.mxu0 %v7698
  %v7778 = vpop.f32.mrf.mxu0
  %v7779 = vadd.f32 %v7756, %v7778
  %7780 = vmatmul.f32.gmra.mxu0 %v7703
  %v7781 = vpop.f32.mrf.mxu0
  %v7782 = vadd.f32 %v7759, %v7781
  %7783 = vdwg.mxu0
  %7784 = vmatpush.msra.mxu0 %v7686
  %7785 = vmatpush.msra.mxu0 %v7685
  %7786 = vmatpush.msra.mxu0 %v7684
  %7787 = vmatpush.msra.mxu0 %v7683
  %7788 = vmatpush.msra.mxu0 %v7682
  %7789 = vmatpush.msra.mxu0 %v7681
  %7790 = vmatpush.msra.mxu0 %v7680
  %7791 = vmatpush.msra.mxu0 %v7679
  %7792 = vmatpush.msra.mxu0 %v7678
  %7793 = vmatpush.msra.mxu0 %v7677
  %7794 = vmatpush.msra.mxu0 %v7676
  %7795 = vmatpush.msra.mxu0 %v7675
  %7796 = vmatpush.msra.mxu0 %v7674
  %7797 = vmatpush.msra.mxu0 %v7673
  %7798 = vmatpush.msra.mxu0 %v7672
  %7799 = vmatpush.msra.mxu0 %v7671
  %7800 = vmatmul.f32.gmra.mxu0 %v7699
  %v7801 = vpop.f32.mrf.mxu0
  %v7802 = vadd.f32 %v7779, %v7801
  %7803 = vmatmul.f32.gmra.mxu0 %v7704
  %v7804 = vpop.f32.mrf.mxu0
  %v7805 = vadd.f32 %v7782, %v7804
  %7806 = vdwg.mxu0
  %7807 = vmatpush.msra.mxu0 0.0
  %7808 = vmatpush.msra.mxu0 0.0
  %7809 = vmatpush.msra.mxu0 0.0
  %7810 = vmatpush.msra.mxu0 0.0
  %7811 = vmatpush.msra.mxu0 0.0
  %7812 = vmatpush.msra.mxu0 0.0
  %7813 = vmatpush.msra.mxu0 0.0
  %7814 = vmatpush.msra.mxu0 0.0
  %7815 = vmatpush.msra.mxu0 %v7694
  %7816 = vmatpush.msra.mxu0 %v7693
  %7817 = vmatpush.msra.mxu0 %v7692
  %7818 = vmatpush.msra.mxu0 %v7691
  %7819 = vmatpush.msra.mxu0 %v7690
  %7820 = vmatpush.msra.mxu0 %v7689
  %7821 = vmatpush.msra.mxu0 %v7688
  %7822 = vmatpush.msra.mxu0 %v7687
  %7823 = vmatmul.f32.gmra.mxu0 %v7710
  %v7824 = vpop.f32.mrf.mxu0
  %v7825 = vadd.f32 %v7802, %v7824
  %7826 = vmatmul.f32.gmra.mxu0 %v7713
  %v7827 = vpop.f32.mrf.mxu0
  %v7828 = vadd.f32 %v7805, %v7827
  %7829 = vdwg.mxu0
  %7830 = vst [vmem:[#allocation11] sm:$0xff] %v7825
  %7831 = vst [vmem:[#allocation11 + $0x8] sm:$0x1] %v7828
  %s7832 = scalar_lea.vmem [#allocation10], 80
  %v7833 = vld [vmem:[%s7832] sm:$0xff]
  %v7834 = vld [vmem:[%s7832 + $0x8] sm:$0xff]
  %v7835 = vld [vmem:[%s7832 + $0x10] sm:$0xff]
  %v7836 = vld [vmem:[%s7832 + $0x18] sm:$0xff]
  %v7837 = vld [vmem:[%s7832 + $0x20] sm:$0xff]
  %v7838 = vld [vmem:[%s7832 + $0x28] sm:$0x1]
  %v7839 = vld [vmem:[%s7832 + $0x30] sm:$0x1]
  %v7840 = vld [vmem:[%s7832 + $0x38] sm:$0x1]
  %v7841 = vld [vmem:[%s7832 + $0x40] sm:$0x1]
  %v7842 = vld [vmem:[%s7832 + $0x48] sm:$0x1]
  %v7844 = vsel %vm6824, %v7837, 0
  %v7847 = vsel %vm6824, %v7842, 0
  %7849 = vmatpush.msra.mxu0 %v7638
  %7850 = vmatpush.msra.mxu0 %v7637
  %7851 = vmatpush.msra.mxu0 %v7636
  %7852 = vmatpush.msra.mxu0 %v7635
  %7853 = vmatpush.msra.mxu0 %v7634
  %7854 = vmatpush.msra.mxu0 %v7633
  %7855 = vmatpush.msra.mxu0 %v7632
  %7856 = vmatpush.msra.mxu0 %v7631
  %7857 = vmatpush.msra.mxu0 %v7630
  %7858 = vmatpush.msra.mxu0 %v7629
  %7859 = vmatpush.msra.mxu0 %v7628
  %7860 = vmatpush.msra.mxu0 %v7627
  %7861 = vmatpush.msra.mxu0 %v7626
  %7862 = vmatpush.msra.mxu0 %v7625
  %7863 = vmatpush.msra.mxu0 %v7624
  %7864 = vmatpush.msra.mxu0 %v7623
  %7865 = vmatmul.f32.gmra.mxu0 %v7833
  %v7866 = vpop.f32.mrf.mxu0
  %v7867 = vadd.f32 %v7707, %v7866
  %7868 = vmatmul.f32.gmra.mxu0 %v7838
  %v7869 = vpop.f32.mrf.mxu0
  %v7870 = vadd.f32 %v7707, %v7869
  %7871 = vdwg.mxu0
  %7872 = vmatpush.msra.mxu0 %v7654
  %7873 = vmatpush.msra.mxu0 %v7653
  %7874 = vmatpush.msra.mxu0 %v7652
  %7875 = vmatpush.msra.mxu0 %v7651
  %7876 = vmatpush.msra.mxu0 %v7650
  %7877 = vmatpush.msra.mxu0 %v7649
  %7878 = vmatpush.msra.mxu0 %v7648
  %7879 = vmatpush.msra.mxu0 %v7647
  %7880 = vmatpush.msra.mxu0 %v7646
  %7881 = vmatpush.msra.mxu0 %v7645
  %7882 = vmatpush.msra.mxu0 %v7644
  %7883 = vmatpush.msra.mxu0 %v7643
  %7884 = vmatpush.msra.mxu0 %v7642
  %7885 = vmatpush.msra.mxu0 %v7641
  %7886 = vmatpush.msra.mxu0 %v7640
  %7887 = vmatpush.msra.mxu0 %v7639
  %7888 = vmatmul.f32.gmra.mxu0 %v7834
  %v7889 = vpop.f32.mrf.mxu0
  %v7890 = vadd.f32 %v7867, %v7889
  %7891 = vmatmul.f32.gmra.mxu0 %v7839
  %v7892 = vpop.f32.mrf.mxu0
  %v7893 = vadd.f32 %v7870, %v7892
  %7894 = vdwg.mxu0
  %7895 = vmatpush.msra.mxu0 %v7670
  %7896 = vmatpush.msra.mxu0 %v7669
  %7897 = vmatpush.msra.mxu0 %v7668
  %7898 = vmatpush.msra.mxu0 %v7667
  %7899 = vmatpush.msra.mxu0 %v7666
  %7900 = vmatpush.msra.mxu0 %v7665
  %7901 = vmatpush.msra.mxu0 %v7664
  %7902 = vmatpush.msra.mxu0 %v7663
  %7903 = vmatpush.msra.mxu0 %v7662
  %7904 = vmatpush.msra.mxu0 %v7661
  %7905 = vmatpush.msra.mxu0 %v7660
  %7906 = vmatpush.msra.mxu0 %v7659
  %7907 = vmatpush.msra.mxu0 %v7658
  %7908 = vmatpush.msra.mxu0 %v7657
  %7909 = vmatpush.msra.mxu0 %v7656
  %7910 = vmatpush.msra.mxu0 %v7655
  %7911 = vmatmul.f32.gmra.mxu0 %v7835
  %v7912 = vpop.f32.mrf.mxu0
  %v7913 = vadd.f32 %v7890, %v7912
  %7914 = vmatmul.f32.gmra.mxu0 %v7840
  %v7915 = vpop.f32.mrf.mxu0
  %v7916 = vadd.f32 %v7893, %v7915
  %7917 = vdwg.mxu0
  %7918 = vmatpush.msra.mxu0 %v7686
  %7919 = vmatpush.msra.mxu0 %v7685
  %7920 = vmatpush.msra.mxu0 %v7684
  %7921 = vmatpush.msra.mxu0 %v7683
  %7922 = vmatpush.msra.mxu0 %v7682
  %7923 = vmatpush.msra.mxu0 %v7681
  %7924 = vmatpush.msra.mxu0 %v7680
  %7925 = vmatpush.msra.mxu0 %v7679
  %7926 = vmatpush.msra.mxu0 %v7678
  %7927 = vmatpush.msra.mxu0 %v7677
  %7928 = vmatpush.msra.mxu0 %v7676
  %7929 = vmatpush.msra.mxu0 %v7675
  %7930 = vmatpush.msra.mxu0 %v7674
  %7931 = vmatpush.msra.mxu0 %v7673
  %7932 = vmatpush.msra.mxu0 %v7672
  %7933 = vmatpush.msra.mxu0 %v7671
  %7934 = vmatmul.f32.gmra.mxu0 %v7836
  %v7935 = vpop.f32.mrf.mxu0
  %v7936 = vadd.f32 %v7913, %v7935
  %7937 = vmatmul.f32.gmra.mxu0 %v7841
  %v7938 = vpop.f32.mrf.mxu0
  %v7939 = vadd.f32 %v7916, %v7938
  %7940 = vdwg.mxu0
  %7941 = vmatpush.msra.mxu0 0.0
  %7942 = vmatpush.msra.mxu0 0.0
  %7943 = vmatpush.msra.mxu0 0.0
  %7944 = vmatpush.msra.mxu0 0.0
  %7945 = vmatpush.msra.mxu0 0.0
  %7946 = vmatpush.msra.mxu0 0.0
  %7947 = vmatpush.msra.mxu0 0.0
  %7948 = vmatpush.msra.mxu0 0.0
  %7949 = vmatpush.msra.mxu0 %v7694
  %7950 = vmatpush.msra.mxu0 %v7693
  %7951 = vmatpush.msra.mxu0 %v7692
  %7952 = vmatpush.msra.mxu0 %v7691
  %7953 = vmatpush.msra.mxu0 %v7690
  %7954 = vmatpush.msra.mxu0 %v7689
  %7955 = vmatpush.msra.mxu0 %v7688
  %7956 = vmatpush.msra.mxu0 %v7687
  %7957 = vmatmul.f32.gmra.mxu0 %v7844
  %v7958 = vpop.f32.mrf.mxu0
  %v7959 = vadd.f32 %v7936, %v7958
  %7960 = vmatmul.f32.gmra.mxu0 %v7847
  %v7961 = vpop.f32.mrf.mxu0
  %v7962 = vadd.f32 %v7939, %v7961
  %7963 = vdwg.mxu0
  %s7964 = scalar_lea.vmem [#allocation11], 16
  %7965 = vst [vmem:[%s7964] sm:$0xff] %v7959
  %7966 = vst [vmem:[%s7964 + $0x8] sm:$0x1] %v7962
  %v7967 = vld [vmem:[#allocation11] sm:$0xff]
  %v7968 = vld [vmem:[#allocation11 + $0x8] sm:$0x1]
  %v7969 = vld [vmem:[#allocation11 + $0x10] sm:$0xff]
  %v7970 = vld [vmem:[#allocation11 + $0x18] sm:$0x1]
  %v7971 = vld [vmem:[%s9] sm:$0x1]
  %v7972 = vld [vmem:[%s10] sm:$0x1]
  %v7973 = vadd.f32 %v7967, %v7969
  %vm7974 = vcmask 1040384
  %v7975 = vsel %vm7974, %v7968, 0.0
  %v7976 = vsel %vm7974, %v7970, 0.0
  %v7977 = vadd.f32 %v7975, %v7976
  %v7978 = vsel %vm7974, %v7977, 0.0
  %v7979 = vadd.f32 %v7973, %v7978
  %v7980 = vrot.slane %v7979, 4
  %v7981 = vadd.f32 %v7979, %v7980
  %v7982 = vrot.slane %v7981, 2
  %v7983 = vadd.f32 %v7981, %v7982
  %v7984 = vrot.slane %v7983, 1
  %v7985 = vadd.f32 %v7983, %v7984
  %v7986 = vrcp.pop 18.0
  %v7987 = vmul.f32 18.0, %v7986
  %v7988 = vsub.f32 1.0, %v7987
  %v7989 = vmul.f32 %v7986, %v7988
  %v7990 = vadd.f32 %v7986, %v7989
  %vm7991 = vweird.f32 %v7986
  %v7992 = vsel %vm7991, %v7986, %v7990
  %v7993 = vmul.f32 %v7985, %v7992
  %v7994 = vsub.f32 %v7967, %v7993
  %v7995 = vsub.f32 %v7968, %v7993
  %v7996 = vsub.f32 %v7969, %v7993
  %v7997 = vsub.f32 %v7970, %v7993
  %v7998 = vmul.f32 %v7994, %v7994
  %v7999 = vmul.f32 %v7995, %v7995
  %v8000 = vmul.f32 %v7996, %v7996
  %v8001 = vmul.f32 %v7997, %v7997
  %v8002 = vadd.f32 %v7998, %v8000
  %v8003 = vsel %vm7974, %v7999, 0.0
  %v8004 = vsel %vm7974, %v8001, 0.0
  %v8005 = vadd.f32 %v8003, %v8004
  %v8006 = vsel %vm7974, %v8005, 0.0
  %v8007 = vadd.f32 %v8002, %v8006
  %v8008 = vrot.slane %v8007, 4
  %v8009 = vadd.f32 %v8007, %v8008
  %v8010 = vrot.slane %v8009, 2
  %v8011 = vadd.f32 %v8009, %v8010
  %v8012 = vrot.slane %v8011, 1
  %v8013 = vadd.f32 %v8011, %v8012
  %v8014 = vmul.f32 %v8013, %v7992
  %v8015 = vadd.f32 %v8014, 1e-05
  %v8016 = vrsqrt.pop %v8015
  %v8017 = vmul.f32 %v8016, %v8015
  %v8018 = vmul.f32 %v8017, %v8016
  %v8019 = vmul.f32 0.5, %v8018
  %v8020 = vsub.f32 1.5, %v8019
  %v8021 = vmul.f32 %v8016, %v8020
  %vm8022 = vweird.f32 %v8015
  %vm8023 = vweird.f32 %v8016
  %vm8024 = vmor %vm8022, %vm8023
  %v8025 = vsel %vm8024, %v8016, %v8021
  %v8026 = vmul.f32 %v8025, %v7971
  %v8027 = vmul.f32 %v7993, %v8026
  %v8028 = vsub.f32 %v7972, %v8027
  %v8029 = vperm.slane %v8026, 0
  %v8030 = vmul.f32 %v7967, %v8029
  %v8031 = vmul.f32 %v7968, %v8029
  %v8032 = vmul.f32 %v7969, %v8029
  %v8033 = vmul.f32 %v7970, %v8029
  %v8035 = vperm.slane %v8028, 0
  %v8037 = vadd.f32 %v8030, %v8035
  %v8038 = vadd.f32 %v8031, %v8035
  %v8039 = vadd.f32 %v8032, %v8035
  %v8040 = vadd.f32 %v8033, %v8035
  %vm8041 = vcmp.gt.f32.partialorder %v8037, 0.0
  %vm8042 = vcmp.gt.f32.partialorder %v8038, 0.0
  %vm8043 = vcmp.gt.f32.partialorder %v8039, 0.0
  %vm8044 = vcmp.gt.f32.partialorder %v8040, 0.0
  %v8045 = vmul.f32 %v8037, 0.01
  %v8046 = vmul.f32 %v8038, 0.01
  %v8047 = vmul.f32 %v8039, 0.01
  %v8048 = vmul.f32 %v8040, 0.01
  %v8049 = vsel %vm8041, %v8037, %v8045
  %v8050 = vsel %vm8042, %v8038, %v8046
  %v8051 = vsel %vm8043, %v8039, %v8047
  %v8052 = vsel %vm8044, %v8040, %v8048
  %8053 = vst [vmem:[#allocation11] sm:$0xff] %v8049
  %8054 = vst [vmem:[#allocation11 + $0x8] sm:$0x1] %v8050
  %8055 = vst [vmem:[#allocation11 + $0x10] sm:$0xff] %v8051
  %8056 = vst [vmem:[#allocation11 + $0x18] sm:$0x1] %v8052
  %v8057 = vld [vmem:[%s11] sm:$0xff]
  %v8058 = vld [vmem:[%s11 + $0x8] sm:$0x1]
  %v8059 = vld [vmem:[#allocation11] sm:$0x1]
  %v8060 = vld [vmem:[#allocation11 + $0x10] sm:$0x1]
  %v8061 = vperm.slane %v8057, 0
  %v8062 = vmul.f32 %v8059, %v8061
  %v8063 = vmul.f32 %v8060, %v8061
  %v8064 = vadd.f32 %v8062, 0.0
  %v8065 = vadd.f32 %v8063, 0.0
  %v8066 = vld [vmem:[#allocation11 + $0x1] sm:$0x1]
  %v8067 = vld [vmem:[#allocation11 + $0x11] sm:$0x1]
  %v8068 = vperm.slane %v8057, 1
  %v8069 = vmul.f32 %v8066, %v8068
  %v8070 = vmul.f32 %v8067, %v8068
  %v8071 = vadd.f32 %v8064, %v8069
  %v8072 = vadd.f32 %v8065, %v8070
  %v8073 = vld [vmem:[#allocation11 + $0x2] sm:$0x1]
  %v8074 = vld [vmem:[#allocation11 + $0x12] sm:$0x1]
  %v8075 = vperm.slane %v8057, 2
  %v8076 = vmul.f32 %v8073, %v8075
  %v8077 = vmul.f32 %v8074, %v8075
  %v8078 = vadd.f32 %v8071, %v8076
  %v8079 = vadd.f32 %v8072, %v8077
  %v8080 = vld [vmem:[#allocation11 + $0x3] sm:$0x1]
  %v8081 = vld [vmem:[#allocation11 + $0x13] sm:$0x1]
  %v8082 = vperm.slane %v8057, 3
  %v8083 = vmul.f32 %v8080, %v8082
  %v8084 = vmul.f32 %v8081, %v8082
  %v8085 = vadd.f32 %v8078, %v8083
  %v8086 = vadd.f32 %v8079, %v8084
  %v8087 = vld [vmem:[#allocation11 + $0x4] sm:$0x1]
  %v8088 = vld [vmem:[#allocation11 + $0x14] sm:$0x1]
  %v8089 = vperm.slane %v8057, 4
  %v8090 = vmul.f32 %v8087, %v8089
  %v8091 = vmul.f32 %v8088, %v8089
  %v8092 = vadd.f32 %v8085, %v8090
  %v8093 = vadd.f32 %v8086, %v8091
  %v8094 = vld [vmem:[#allocation11 + $0x5] sm:$0x1]
  %v8095 = vld [vmem:[#allocation11 + $0x15] sm:$0x1]
  %v8096 = vperm.slane %v8057, 5
  %v8097 = vmul.f32 %v8094, %v8096
  %v8098 = vmul.f32 %v8095, %v8096
  %v8099 = vadd.f32 %v8092, %v8097
  %v8100 = vadd.f32 %v8093, %v8098
  %v8101 = vld [vmem:[#allocation11 + $0x6] sm:$0x1]
  %v8102 = vld [vmem:[#allocation11 + $0x16] sm:$0x1]
  %v8103 = vperm.slane %v8057, 6
  %v8104 = vmul.f32 %v8101, %v8103
  %v8105 = vmul.f32 %v8102, %v8103
  %v8106 = vadd.f32 %v8099, %v8104
  %v8107 = vadd.f32 %v8100, %v8105
  %v8108 = vld [vmem:[#allocation11 + $0x7] sm:$0x1]
  %v8109 = vld [vmem:[#allocation11 + $0x17] sm:$0x1]
  %v8110 = vperm.slane %v8057, 7
  %v8111 = vmul.f32 %v8108, %v8110
  %v8112 = vmul.f32 %v8109, %v8110
  %v8113 = vadd.f32 %v8106, %v8111
  %v8114 = vadd.f32 %v8107, %v8112
  %v8115 = vld [vmem:[#allocation11 + $0x8] sm:$0x1]
  %v8116 = vld [vmem:[#allocation11 + $0x18] sm:$0x1]
  %v8117 = vperm.slane %v8058, 0
  %v8118 = vmul.f32 %v8115, %v8117
  %v8119 = vmul.f32 %v8116, %v8117
  %v8120 = vadd.f32 %v8113, %v8118
  %v8121 = vadd.f32 %v8114, %v8119
  %v8124 = vrot.slane %v8121, 7
  %vm8125 = vcmask 1041409
  %v8126 = vsel %vm8125, %v8124, %v8120
  %vm8128 = vcmask 1041408
  %v8129 = vsel %vm8128, %v8126, 0.0
  %8130 = vadd.xlane.f32.xlu0 %v8129
  %v8131 = vpop.xlane.xlu0 %8130
  %v8132 = vld [vmem:[#allocation12] sm:$0x1]
  %v8134 = vperm.slane %v8132, 0
  %v8136 = vadd.f32 %v8131, %v8134
  %v8137 = vxor.u32 %v8136, 2147483648
  %v8138 = vmul.f32 %v8137, 1.442695
  %v8139 = vpow.pop %v8138
  %v8140 = vadd.f32 %v8139, 1.0
  %v8141 = vrcp.pop %v8140
  %v8142 = vmul.f32 %v8140, %v8141
  %v8143 = vsub.f32 1.0, %v8142
  %v8144 = vmul.f32 %v8141, %v8143
  %v8145 = vadd.f32 %v8141, %v8144
  %vm8146 = vweird.f32 %v8140
  %vm8147 = vweird.f32 %v8141
  %vm8148 = vmor %vm8146, %vm8147
  %v8149 = vsel %vm8148, %v8141, %v8145
  %v8150 = vand.u32 2147483647, %v8140
  %vm8151 = vcmp.eq.f32.partialorder %v8150, 8.507059e+37
  %v8152 = vand.u32 %v8140, 2147483648
  %v8153 = vor.u32 1.1754944e-38, %v8152
  %v8154 = vsel %vm8151, %v8153, %v8149
  %v8155 = vmul.f32 1.0, %v8154
  %vm8156 = vcmask 1024
  %8157 = vst.msk [vmem:[%s13] sm:$0x3] %vm8156, %v8155
  // Predicated region
  $region54: #{discriminator_forward.1} parent=0 // pred_check
    _
  $region55: #{discriminator_forward.1} parent=0 // pred_check_branch
    %8159 = sbr.rel (0) target = $region57
  $region56: #{discriminator_forward.1} parent=0 // pred_region
    _
  $region57: #{discriminator_forward.1} parent=0 // pred_fallthru
    _
  // Predicated region
  $region58: #{discriminator_forward.1} parent=0 // pred_check
    _
  $region59: #{discriminator_forward.1} parent=0 // pred_check_branch
    %8161 = sbr.rel (0) target = $region61
  $region60: #{discriminator_forward.1} parent=0 // pred_region
    _
  $region61: #{discriminator_forward.1} parent=0 // pred_fallthru
    _

</llo_original>
